<compile_context>
chip_gen: v7x
topology: tpu7x:2x2x1
jax: 0.10.0
libtpu: 0.0.40
codegen_flags: <defaults>
</compile_context>

<pallas_src>
import jax
import jax.numpy as jnp
from jax.experimental import pallas as pl
from jax.experimental.pallas import tpu as pltpu


def _round_up(v: int, m: int) -> int:
    return (v + m - 1) // m * m


# ---------------------------------------------------------------------------
# Fused DenseBlock kernel (one batch element per grid step).
# ---------------------------------------------------------------------------
def _dense_block_kernel(x_ref, w_ref, b_ref, o_ref, stack_ref):
    """Fused 5x(Conv3x3 + bias + ELU + InstanceNorm2d) dense chain in VMEM.

    x_ref:     (1, H, W, Cin0)        input feature map (real channels only)
    w_ref:     (L, 9, CS, CS) bf16    zero-padded conv taps, tap = kh*3 + kw;
                                      layer i's output columns already placed at
                                      that feature's channel offset in the stack
    b_ref:     (L, 1, CS) f32         zero-padded biases (same column placement)
    o_ref:     (1, H*W, CS) f32       lane-dense output (first out_dims real)
    stack_ref: (H+2, W+2, CS) f32     feature stack with 1-px halo (VMEM scratch)
    """
    _, H, W, Cin0 = x_ref.shape
    HW, CS = o_ref.shape[1], o_ref.shape[2]
    n_layers = w_ref.shape[0]
    inv_hw = 1.0 / float(HW)

    # Zero the stack (halo ring + unused channel lanes), then drop the input
    # feature map into its channel slot of the interior (done once per sample).
    stack_ref[...] = jnp.zeros_like(stack_ref)
    stack_ref[pl.ds(1, H), pl.ds(1, W), pl.ds(0, Cin0)] = x_ref[0]

    for i in range(n_layers):
        # ---- 3x3 conv: 9 whole-plane MXU matmuls, f32 accumulation ----------
        acc = jnp.zeros((HW, CS), jnp.float32)
        for kh in range(3):
            for kw in range(3):
                patch = stack_ref[pl.ds(kh, H), pl.ds(kw, W), :]      # (H, W, CS)
                patch = patch.reshape(HW, CS).astype(jnp.bfloat16)
                acc = acc + jnp.dot(patch, w_ref[i, 3 * kh + kw],
                                    preferred_element_type=jnp.float32)

        # ---- bias (hoisted, whole plane) + ELU(alpha=1) in f32 ---------------
        acc = acc + b_ref[i]                                          # (1, CS) bcast
        neg = jnp.exp(jnp.minimum(acc, 0.0)) - 1.0
        y = jnp.where(acc > 0, acc, neg)

        # ---- InstanceNorm2d(affine=False, eps=1e-5), biased variance ---------
        # Single pass on the in-register plane (no o_ref round-trip).
        mean = jnp.sum(y, axis=0, keepdims=True) * inv_hw             # (1, CS)
        d = y - mean
        var = jnp.sum(d * d, axis=0, keepdims=True) * inv_hw
        yn = d * jax.lax.rsqrt(var + 1e-5)

        if i < n_layers - 1:
            # yn is zero everywhere except this layer's output columns (which the
            # padded weights placed at the right stack offset), and those stack
            # columns are still zero -> a single lane-aligned "+=" appends y_i.
            interior = stack_ref[pl.ds(1, H), pl.ds(1, W), :]
            stack_ref[pl.ds(1, H), pl.ds(1, W), :] = interior + yn.reshape(H, W, CS)
        else:
            o_ref[0] = yn                                             # lane-dense store


# ---------------------------------------------------------------------------
# Parameter packing: zero-pad all 5 layers into uniform, lane-padded tensors.
# ---------------------------------------------------------------------------
def pack_dense_block_params(params, in_dims, out_dims, mode="enc"):
    n = 1 if mode == "enc" else 2
    cins = [in_dims * (n + i) for i in range(5)]
    couts = [in_dims] * 4 + [out_dims]
    # Total stack channels == last layer's cin; lane-pad to a multiple of 128.
    CS = _round_up(max(cins[4], out_dims), 128)

    w_all = jnp.zeros((5, 9, CS, CS), jnp.float32)
    b_all = jnp.zeros((5, 1, CS), jnp.float32)
    for i, (w, b) in enumerate(params):
        cin, cout = cins[i], couts[i]
        # Intermediate outputs are appended right after the current stack; the
        # final layer's output starts at column 0 of the output buffer.
        off = cins[i] if i < 4 else 0
        w9 = w.reshape(9, cin, cout)
        w_all = w_all.at[i, :, :cin, off:off + cout].set(w9)
        b_all = b_all.at[i, 0, off:off + cout].set(b)
    return w_all.astype(jnp.bfloat16), b_all, CS


def init_dense_block_params(key, in_dims, out_dims, mode="enc"):
    """Deterministic synthetic parameters matching DenseBlock.__init__ shapes."""
    n = 1 if mode == "enc" else 2
    cins = [in_dims * (n + i) for i in range(5)]
    couts = [in_dims] * 4 + [out_dims]
    params = []
    for cin, cout in zip(cins, couts):
        key, kw_, kb_ = jax.random.split(key, 3)
        scale = 1.0 / float(jnp.sqrt(9.0 * cin))
        w = jax.random.uniform(kw_, (3, 3, cin, cout), jnp.float32, -scale, scale)
        bvec = jax.random.uniform(kb_, (cout,), jnp.float32, -scale, scale)
        params.append((w, bvec))
    return params


# ---------------------------------------------------------------------------
# Wrapper: one pallas_call for the whole DenseBlock (grid over batch).
# ---------------------------------------------------------------------------
def dense_block(x, params, in_dims, out_dims, mode="enc"):
    """DenseBlock forward.  x: (N, H, W, Cin0) f32 NHWC -> (N, H, W, out_dims)."""
    N, H, W, Cin0 = x.shape
    HW = H * W
    w_all, b_all, CS = pack_dense_block_params(params, in_dims, out_dims, mode)

    out = pl.pallas_call(
        _dense_block_kernel,
        out_shape=jax.ShapeDtypeStruct((N, HW, CS), jnp.float32),
        grid=(N,),
        in_specs=[
            pl.BlockSpec((1, H, W, Cin0), lambda b: (b, 0, 0, 0)),
            pl.BlockSpec((5, 9, CS, CS), lambda b: (0, 0, 0, 0)),
            pl.BlockSpec((5, 1, CS), lambda b: (0, 0, 0)),
        ],
        out_specs=pl.BlockSpec((1, HW, CS), lambda b: (b, 0, 0)),
        scratch_shapes=[pltpu.VMEM((H + 2, W + 2, CS), jnp.float32)],
        compiler_params=pltpu.CompilerParams(
            dimension_semantics=("parallel",),
            vmem_limit_bytes=32 * 1024 * 1024,
        ),
    )(x, w_all, b_all)

    # Drop the lane padding once at the end (kept lane-dense inside the kernel).
    return out.reshape(N, H, W, CS)[..., :out_dims]


# ---------------------------------------------------------------------------
# Pure-JAX reference (mirrors the kernel's bf16-matmul / f32-accumulate path).
# ---------------------------------------------------------------------------
def _conv2d_block_ref(x, w, b):
    y = jax.lax.conv_general_dilated(
        x.astype(jnp.bfloat16), w.astype(jnp.bfloat16),
        window_strides=(1, 1), padding=((1, 1), (1, 1)),
        dimension_numbers=("NHWC", "HWIO", "NHWC"),
        preferred_element_type=jnp.float32)
    y = y + b.astype(jnp.float32)
    y = jnp.where(y > 0, y, jnp.exp(jnp.minimum(y, 0.0)) - 1.0)        # ELU
    mean = jnp.mean(y, axis=(1, 2), keepdims=True)
    var = jnp.mean((y - mean) ** 2, axis=(1, 2), keepdims=True)
    return (y - mean) * jax.lax.rsqrt(var + 1e-5)                      # InstanceNorm2d


def dense_block_ref(x, params):
    feats = [x]
    y = None
    for (w, b) in params:
        inp = feats[0] if len(feats) == 1 else jnp.concatenate(feats, axis=-1)
        y = _conv2d_block_ref(inp, w, b)
        feats.append(y)
    return y


if __name__ == "__main__":
    key = jax.random.PRNGKey(0)
    k_x, k_p = jax.random.split(key)
    N, H, W, in_dims, out_dims = 2, 8, 16, 4, 8
    x = jax.random.normal(k_x, (N, H, W, in_dims), jnp.float32)        # NHWC
    params = init_dense_block_params(k_p, in_dims, out_dims, mode="enc")

    out = dense_block(x, params, in_dims, out_dims, mode="enc")
    out = jax.block_until_ready(out)

    assert out.shape == (N, H, W, out_dims), out.shape
    assert bool(jnp.all(jnp.isfinite(out)))

    ref = dense_block_ref(x, params)
    err = float(jnp.max(jnp.abs(out - ref)))
    assert err < 5e-2, f"max |kernel - reference| = {err}"
    print("KERNEL_OK")
</pallas_src>

<mosaic_0001>
module attributes {stable_mosaic.version = 11 : i64} {
  func.func @_dense_block_kernel(%arg0: i32, %arg1: memref<1x8x16x4xf32, #tpu.memory_space<vmem>>, %arg2: memref<5x9x128x128xbf16, #tpu.memory_space<vmem>>, %arg3: memref<5x1x128xf32, #tpu.memory_space<vmem>>, %arg4: memref<1x128x128xf32, #tpu.memory_space<vmem>>, %arg5: memref<10x18x128xf32, #tpu.memory_space<vmem>>) attributes {dimension_semantics = [#tpu.dimension_semantics<parallel>], iteration_bounds = array<i64: 2>, scalar_prefetch = 0 : i64, scratch_operands = 1 : i64, tpu.core_type = #tpu.core_type<tc>, window_params = [{transform_indices = @transform_0, window_bounds = array<i64: 1, 8, 16, 4>}, {pipeline_mode = #tpu.pipeline_mode<synchronous>, transform_indices = @transform_1, window_bounds = array<i64: 5, 9, 128, 128>}, {pipeline_mode = #tpu.pipeline_mode<synchronous>, transform_indices = @transform_2, window_bounds = array<i64: 5, 1, 128>}, {transform_indices = @transform_3, window_bounds = array<i64: 1, 128, 128>}]} {
    %cst = arith.constant 0.000000e+00 : f32
    %0 = vector.broadcast %cst : f32 to vector<10x18x128xf32>
    %c0 = arith.constant 0 : index
    %c0_0 = arith.constant 0 : index
    %c0_1 = arith.constant 0 : index
    %1 = vector.load %arg5[%c0, %c0_0, %c0_1] : memref<10x18x128xf32, #tpu.memory_space<vmem>>, vector<10x18x128xf32>
    tpu.vector_store %arg5[%c0, %c0_0, %c0_1], %0 {strides = array<i32>} : memref<10x18x128xf32, #tpu.memory_space<vmem>>, vector<10x18x128xf32>,
    %c0_2 = arith.constant 0 : index
    %c0_3 = arith.constant 0 : index
    %c0_4 = arith.constant 0 : index
    %c0_5 = arith.constant 0 : index
    %2 = vector.load %arg1[%c0_2, %c0_3, %c0_4, %c0_5] : memref<1x8x16x4xf32, #tpu.memory_space<vmem>>, vector<1x8x16x4xf32>
    %3 = vector.shape_cast %2 : vector<1x8x16x4xf32> to vector<8x16x4xf32>
    %c1 = arith.constant 1 : index
    %c1_6 = arith.constant 1 : index
    %c0_7 = arith.constant 0 : index
    %4 = vector.load %arg5[%c1, %c1_6, %c0_7] : memref<10x18x128xf32, #tpu.memory_space<vmem>>, vector<8x16x4xf32>
    tpu.vector_store %arg5[%c1, %c1_6, %c0_7], %3 {strides = array<i32>} : memref<10x18x128xf32, #tpu.memory_space<vmem>>, vector<8x16x4xf32>,
    %cst_8 = arith.constant 0.000000e+00 : f32
    %5 = vector.broadcast %cst_8 : f32 to vector<128x128xf32>
    %c0_9 = arith.constant 0 : index
    %c0_10 = arith.constant 0 : index
    %c0_11 = arith.constant 0 : index
    %6 = vector.load %arg5[%c0_9, %c0_10, %c0_11] : memref<10x18x128xf32, #tpu.memory_space<vmem>>, vector<8x16x128xf32>
    %7 = vector.shape_cast %6 : vector<8x16x128xf32> to vector<128x128xf32>
    %8 = arith.truncf %7 : vector<128x128xf32> to vector<128x128xbf16>
    %c0_12 = arith.constant 0 : index
    %c0_13 = arith.constant 0 : index
    %c0_14 = arith.constant 0 : index
    %c0_15 = arith.constant 0 : index
    %9 = vector.load %arg2[%c0_12, %c0_13, %c0_14, %c0_15] : memref<5x9x128x128xbf16, #tpu.memory_space<vmem>>, vector<1x1x128x128xbf16>
    %10 = vector.shape_cast %9 : vector<1x1x128x128xbf16> to vector<128x128xbf16>
    %cst_16 = arith.constant dense<0.000000e+00> : vector<128x128xf32>
    %11 = tpu.matmul %8, %10, %cst_16 {dimension_numbers = #tpu.dot_dimension_numbers<[1], [0], [0], [1], [0, 0, 1, 1], [], []>} : vector<128x128xbf16>, vector<128x128xbf16>, vector<128x128xf32> -> vector<128x128xf32>
    %12 = arith.addf %5, %11 : vector<128x128xf32>
    %c0_17 = arith.constant 0 : index
    %c1_18 = arith.constant 1 : index
    %c0_19 = arith.constant 0 : index
    %13 = vector.load %arg5[%c0_17, %c1_18, %c0_19] : memref<10x18x128xf32, #tpu.memory_space<vmem>>, vector<8x16x128xf32>
    %14 = vector.shape_cast %13 : vector<8x16x128xf32> to vector<128x128xf32>
    %15 = arith.truncf %14 : vector<128x128xf32> to vector<128x128xbf16>
    %c0_20 = arith.constant 0 : index
    %c1_21 = arith.constant 1 : index
    %c0_22 = arith.constant 0 : index
    %c0_23 = arith.constant 0 : index
    %16 = vector.load %arg2[%c0_20, %c1_21, %c0_22, %c0_23] : memref<5x9x128x128xbf16, #tpu.memory_space<vmem>>, vector<1x1x128x128xbf16>
    %17 = vector.shape_cast %16 : vector<1x1x128x128xbf16> to vector<128x128xbf16>
    %cst_24 = arith.constant dense<0.000000e+00> : vector<128x128xf32>
    %18 = tpu.matmul %15, %17, %cst_24 {dimension_numbers = #tpu.dot_dimension_numbers<[1], [0], [0], [1], [0, 0, 1, 1], [], []>} : vector<128x128xbf16>, vector<128x128xbf16>, vector<128x128xf32> -> vector<128x128xf32>
    %19 = arith.addf %12, %18 : vector<128x128xf32>
    %c0_25 = arith.constant 0 : index
    %c2 = arith.constant 2 : index
    %c0_26 = arith.constant 0 : index
    %20 = vector.load %arg5[%c0_25, %c2, %c0_26] : memref<10x18x128xf32, #tpu.memory_space<vmem>>, vector<8x16x128xf32>
    %21 = vector.shape_cast %20 : vector<8x16x128xf32> to vector<128x128xf32>
    %22 = arith.truncf %21 : vector<128x128xf32> to vector<128x128xbf16>
    %c0_27 = arith.constant 0 : index
    %c2_28 = arith.constant 2 : index
    %c0_29 = arith.constant 0 : index
    %c0_30 = arith.constant 0 : index
    %23 = vector.load %arg2[%c0_27, %c2_28, %c0_29, %c0_30] : memref<5x9x128x128xbf16, #tpu.memory_space<vmem>>, vector<1x1x128x128xbf16>
    %24 = vector.shape_cast %23 : vector<1x1x128x128xbf16> to vector<128x128xbf16>
    %cst_31 = arith.constant dense<0.000000e+00> : vector<128x128xf32>
    %25 = tpu.matmul %22, %24, %cst_31 {dimension_numbers = #tpu.dot_dimension_numbers<[1], [0], [0], [1], [0, 0, 1, 1], [], []>} : vector<128x128xbf16>, vector<128x128xbf16>, vector<128x128xf32> -> vector<128x128xf32>
    %26 = arith.addf %19, %25 : vector<128x128xf32>
    %c1_32 = arith.constant 1 : index
    %c0_33 = arith.constant 0 : index
    %c0_34 = arith.constant 0 : index
    %27 = vector.load %arg5[%c1_32, %c0_33, %c0_34] : memref<10x18x128xf32, #tpu.memory_space<vmem>>, vector<8x16x128xf32>
    %28 = vector.shape_cast %27 : vector<8x16x128xf32> to vector<128x128xf32>
    %29 = arith.truncf %28 : vector<128x128xf32> to vector<128x128xbf16>
    %c0_35 = arith.constant 0 : index
    %c3 = arith.constant 3 : index
    %c0_36 = arith.constant 0 : index
    %c0_37 = arith.constant 0 : index
    %30 = vector.load %arg2[%c0_35, %c3, %c0_36, %c0_37] : memref<5x9x128x128xbf16, #tpu.memory_space<vmem>>, vector<1x1x128x128xbf16>
    %31 = vector.shape_cast %30 : vector<1x1x128x128xbf16> to vector<128x128xbf16>
    %cst_38 = arith.constant dense<0.000000e+00> : vector<128x128xf32>
    %32 = tpu.matmul %29, %31, %cst_38 {dimension_numbers = #tpu.dot_dimension_numbers<[1], [0], [0], [1], [0, 0, 1, 1], [], []>} : vector<128x128xbf16>, vector<128x128xbf16>, vector<128x128xf32> -> vector<128x128xf32>
    %33 = arith.addf %26, %32 : vector<128x128xf32>
    %c1_39 = arith.constant 1 : index
    %c1_40 = arith.constant 1 : index
    %c0_41 = arith.constant 0 : index
    %34 = vector.load %arg5[%c1_39, %c1_40, %c0_41] : memref<10x18x128xf32, #tpu.memory_space<vmem>>, vector<8x16x128xf32>
    %35 = vector.shape_cast %34 : vector<8x16x128xf32> to vector<128x128xf32>
    %36 = arith.truncf %35 : vector<128x128xf32> to vector<128x128xbf16>
    %c0_42 = arith.constant 0 : index
    %c4 = arith.constant 4 : index
    %c0_43 = arith.constant 0 : index
    %c0_44 = arith.constant 0 : index
    %37 = vector.load %arg2[%c0_42, %c4, %c0_43, %c0_44] : memref<5x9x128x128xbf16, #tpu.memory_space<vmem>>, vector<1x1x128x128xbf16>
    %38 = vector.shape_cast %37 : vector<1x1x128x128xbf16> to vector<128x128xbf16>
    %cst_45 = arith.constant dense<0.000000e+00> : vector<128x128xf32>
    %39 = tpu.matmul %36, %38, %cst_45 {dimension_numbers = #tpu.dot_dimension_numbers<[1], [0], [0], [1], [0, 0, 1, 1], [], []>} : vector<128x128xbf16>, vector<128x128xbf16>, vector<128x128xf32> -> vector<128x128xf32>
    %40 = arith.addf %33, %39 : vector<128x128xf32>
    %c1_46 = arith.constant 1 : index
    %c2_47 = arith.constant 2 : index
    %c0_48 = arith.constant 0 : index
    %41 = vector.load %arg5[%c1_46, %c2_47, %c0_48] : memref<10x18x128xf32, #tpu.memory_space<vmem>>, vector<8x16x128xf32>
    %42 = vector.shape_cast %41 : vector<8x16x128xf32> to vector<128x128xf32>
    %43 = arith.truncf %42 : vector<128x128xf32> to vector<128x128xbf16>
    %c0_49 = arith.constant 0 : index
    %c5 = arith.constant 5 : index
    %c0_50 = arith.constant 0 : index
    %c0_51 = arith.constant 0 : index
    %44 = vector.load %arg2[%c0_49, %c5, %c0_50, %c0_51] : memref<5x9x128x128xbf16, #tpu.memory_space<vmem>>, vector<1x1x128x128xbf16>
    %45 = vector.shape_cast %44 : vector<1x1x128x128xbf16> to vector<128x128xbf16>
    %cst_52 = arith.constant dense<0.000000e+00> : vector<128x128xf32>
    %46 = tpu.matmul %43, %45, %cst_52 {dimension_numbers = #tpu.dot_dimension_numbers<[1], [0], [0], [1], [0, 0, 1, 1], [], []>} : vector<128x128xbf16>, vector<128x128xbf16>, vector<128x128xf32> -> vector<128x128xf32>
    %47 = arith.addf %40, %46 : vector<128x128xf32>
    %c2_53 = arith.constant 2 : index
    %c0_54 = arith.constant 0 : index
    %c0_55 = arith.constant 0 : index
    %48 = vector.load %arg5[%c2_53, %c0_54, %c0_55] : memref<10x18x128xf32, #tpu.memory_space<vmem>>, vector<8x16x128xf32>
    %49 = vector.shape_cast %48 : vector<8x16x128xf32> to vector<128x128xf32>
    %50 = arith.truncf %49 : vector<128x128xf32> to vector<128x128xbf16>
    %c0_56 = arith.constant 0 : index
    %c6 = arith.constant 6 : index
    %c0_57 = arith.constant 0 : index
    %c0_58 = arith.constant 0 : index
    %51 = vector.load %arg2[%c0_56, %c6, %c0_57, %c0_58] : memref<5x9x128x128xbf16, #tpu.memory_space<vmem>>, vector<1x1x128x128xbf16>
    %52 = vector.shape_cast %51 : vector<1x1x128x128xbf16> to vector<128x128xbf16>
    %cst_59 = arith.constant dense<0.000000e+00> : vector<128x128xf32>
    %53 = tpu.matmul %50, %52, %cst_59 {dimension_numbers = #tpu.dot_dimension_numbers<[1], [0], [0], [1], [0, 0, 1, 1], [], []>} : vector<128x128xbf16>, vector<128x128xbf16>, vector<128x128xf32> -> vector<128x128xf32>
    %54 = arith.addf %47, %53 : vector<128x128xf32>
    %c2_60 = arith.constant 2 : index
    %c1_61 = arith.constant 1 : index
    %c0_62 = arith.constant 0 : index
    %55 = vector.load %arg5[%c2_60, %c1_61, %c0_62] : memref<10x18x128xf32, #tpu.memory_space<vmem>>, vector<8x16x128xf32>
    %56 = vector.shape_cast %55 : vector<8x16x128xf32> to vector<128x128xf32>
    %57 = arith.truncf %56 : vector<128x128xf32> to vector<128x128xbf16>
    %c0_63 = arith.constant 0 : index
    %c7 = arith.constant 7 : index
    %c0_64 = arith.constant 0 : index
    %c0_65 = arith.constant 0 : index
    %58 = vector.load %arg2[%c0_63, %c7, %c0_64, %c0_65] : memref<5x9x128x128xbf16, #tpu.memory_space<vmem>>, vector<1x1x128x128xbf16>
    %59 = vector.shape_cast %58 : vector<1x1x128x128xbf16> to vector<128x128xbf16>
    %cst_66 = arith.constant dense<0.000000e+00> : vector<128x128xf32>
    %60 = tpu.matmul %57, %59, %cst_66 {dimension_numbers = #tpu.dot_dimension_numbers<[1], [0], [0], [1], [0, 0, 1, 1], [], []>} : vector<128x128xbf16>, vector<128x128xbf16>, vector<128x128xf32> -> vector<128x128xf32>
    %61 = arith.addf %54, %60 : vector<128x128xf32>
    %c2_67 = arith.constant 2 : index
    %c2_68 = arith.constant 2 : index
    %c0_69 = arith.constant 0 : index
    %62 = vector.load %arg5[%c2_67, %c2_68, %c0_69] : memref<10x18x128xf32, #tpu.memory_space<vmem>>, vector<8x16x128xf32>
    %63 = vector.shape_cast %62 : vector<8x16x128xf32> to vector<128x128xf32>
    %64 = arith.truncf %63 : vector<128x128xf32> to vector<128x128xbf16>
    %c0_70 = arith.constant 0 : index
    %c8 = arith.constant 8 : index
    %c0_71 = arith.constant 0 : index
    %c0_72 = arith.constant 0 : index
    %65 = vector.load %arg2[%c0_70, %c8, %c0_71, %c0_72] : memref<5x9x128x128xbf16, #tpu.memory_space<vmem>>, vector<1x1x128x128xbf16>
    %66 = vector.shape_cast %65 : vector<1x1x128x128xbf16> to vector<128x128xbf16>
    %cst_73 = arith.constant dense<0.000000e+00> : vector<128x128xf32>
    %67 = tpu.matmul %64, %66, %cst_73 {dimension_numbers = #tpu.dot_dimension_numbers<[1], [0], [0], [1], [0, 0, 1, 1], [], []>} : vector<128x128xbf16>, vector<128x128xbf16>, vector<128x128xf32> -> vector<128x128xf32>
    %68 = arith.addf %61, %67 : vector<128x128xf32>
    %c0_74 = arith.constant 0 : index
    %c0_75 = arith.constant 0 : index
    %c0_76 = arith.constant 0 : index
    %69 = vector.load %arg3[%c0_74, %c0_75, %c0_76] : memref<5x1x128xf32, #tpu.memory_space<vmem>>, vector<1x1x128xf32>
    %70 = vector.shape_cast %69 : vector<1x1x128xf32> to vector<1x128xf32>
    %71 = vector.broadcast %70 : vector<1x128xf32> to vector<128x128xf32>
    %72 = arith.addf %68, %71 : vector<128x128xf32>
    %cst_77 = arith.constant 0.000000e+00 : f32
    %73 = vector.broadcast %cst_77 : f32 to vector<128x128xf32>
    %74 = arith.minimumf %72, %73 : vector<128x128xf32>
    %75 = math.exp %74 : vector<128x128xf32>
    %cst_78 = arith.constant 1.000000e+00 : f32
    %76 = vector.broadcast %cst_78 : f32 to vector<128x128xf32>
    %77 = arith.subf %75, %76 : vector<128x128xf32>
    %cst_79 = arith.constant 0.000000e+00 : f32
    %78 = vector.broadcast %cst_79 : f32 to vector<128x128xf32>
    %79 = arith.cmpf ogt, %72, %78 : vector<128x128xf32>
    %80 = arith.select %79, %72, %77 : vector<128x128xi1>, vector<128x128xf32>
    %cst_80 = arith.constant dense<0.000000e+00> : vector<128xf32>
    %81 = vector.multi_reduction <add>, %80, %cst_80 [0] : vector<128x128xf32> to vector<128xf32>
    %82 = vector.shape_cast %81 : vector<128xf32> to vector<1x128xf32>
    %cst_81 = arith.constant 7.812500e-03 : f32
    %83 = vector.broadcast %cst_81 : f32 to vector<1x128xf32>
    %84 = arith.mulf %82, %83 : vector<1x128xf32>
    %85 = vector.broadcast %84 : vector<1x128xf32> to vector<128x128xf32>
    %86 = arith.subf %80, %85 : vector<128x128xf32>
    %87 = arith.mulf %86, %86 : vector<128x128xf32>
    %cst_82 = arith.constant dense<0.000000e+00> : vector<128xf32>
    %88 = vector.multi_reduction <add>, %87, %cst_82 [0] : vector<128x128xf32> to vector<128xf32>
    %89 = vector.shape_cast %88 : vector<128xf32> to vector<1x128xf32>
    %cst_83 = arith.constant 7.812500e-03 : f32
    %90 = vector.broadcast %cst_83 : f32 to vector<1x128xf32>
    %91 = arith.mulf %89, %90 : vector<1x128xf32>
    %cst_84 = arith.constant 9.99999974E-6 : f32
    %92 = vector.broadcast %cst_84 : f32 to vector<1x128xf32>
    %93 = arith.addf %91, %92 : vector<1x128xf32>
    %94 = math.rsqrt %93 : vector<1x128xf32>
    %95 = vector.broadcast %94 : vector<1x128xf32> to vector<128x128xf32>
    %96 = arith.mulf %86, %95 : vector<128x128xf32>
    %c1_85 = arith.constant 1 : index
    %c1_86 = arith.constant 1 : index
    %c0_87 = arith.constant 0 : index
    %97 = vector.load %arg5[%c1_85, %c1_86, %c0_87] : memref<10x18x128xf32, #tpu.memory_space<vmem>>, vector<8x16x128xf32>
    %98 = vector.shape_cast %96 : vector<128x128xf32> to vector<8x16x128xf32>
    %99 = arith.addf %97, %98 : vector<8x16x128xf32>
    %c1_88 = arith.constant 1 : index
    %c1_89 = arith.constant 1 : index
    %c0_90 = arith.constant 0 : index
    %100 = vector.load %arg5[%c1_88, %c1_89, %c0_90] : memref<10x18x128xf32, #tpu.memory_space<vmem>>, vector<8x16x128xf32>
    tpu.vector_store %arg5[%c1_88, %c1_89, %c0_90], %99 {strides = array<i32>} : memref<10x18x128xf32, #tpu.memory_space<vmem>>, vector<8x16x128xf32>,
    %cst_91 = arith.constant 0.000000e+00 : f32
    %101 = vector.broadcast %cst_91 : f32 to vector<128x128xf32>
    %c0_92 = arith.constant 0 : index
    %c0_93 = arith.constant 0 : index
    %c0_94 = arith.constant 0 : index
    %102 = vector.load %arg5[%c0_92, %c0_93, %c0_94] : memref<10x18x128xf32, #tpu.memory_space<vmem>>, vector<8x16x128xf32>
    %103 = vector.shape_cast %102 : vector<8x16x128xf32> to vector<128x128xf32>
    %104 = arith.truncf %103 : vector<128x128xf32> to vector<128x128xbf16>
    %c1_95 = arith.constant 1 : index
    %c0_96 = arith.constant 0 : index
    %c0_97 = arith.constant 0 : index
    %c0_98 = arith.constant 0 : index
    %105 = vector.load %arg2[%c1_95, %c0_96, %c0_97, %c0_98] : memref<5x9x128x128xbf16, #tpu.memory_space<vmem>>, vector<1x1x128x128xbf16>
    %106 = vector.shape_cast %105 : vector<1x1x128x128xbf16> to vector<128x128xbf16>
    %cst_99 = arith.constant dense<0.000000e+00> : vector<128x128xf32>
    %107 = tpu.matmul %104, %106, %cst_99 {dimension_numbers = #tpu.dot_dimension_numbers<[1], [0], [0], [1], [0, 0, 1, 1], [], []>} : vector<128x128xbf16>, vector<128x128xbf16>, vector<128x128xf32> -> vector<128x128xf32>
    %108 = arith.addf %101, %107 : vector<128x128xf32>
    %c0_100 = arith.constant 0 : index
    %c1_101 = arith.constant 1 : index
    %c0_102 = arith.constant 0 : index
    %109 = vector.load %arg5[%c0_100, %c1_101, %c0_102] : memref<10x18x128xf32, #tpu.memory_space<vmem>>, vector<8x16x128xf32>
    %110 = vector.shape_cast %109 : vector<8x16x128xf32> to vector<128x128xf32>
    %111 = arith.truncf %110 : vector<128x128xf32> to vector<128x128xbf16>
    %c1_103 = arith.constant 1 : index
    %c1_104 = arith.constant 1 : index
    %c0_105 = arith.constant 0 : index
    %c0_106 = arith.constant 0 : index
    %112 = vector.load %arg2[%c1_103, %c1_104, %c0_105, %c0_106] : memref<5x9x128x128xbf16, #tpu.memory_space<vmem>>, vector<1x1x128x128xbf16>
    %113 = vector.shape_cast %112 : vector<1x1x128x128xbf16> to vector<128x128xbf16>
    %cst_107 = arith.constant dense<0.000000e+00> : vector<128x128xf32>
    %114 = tpu.matmul %111, %113, %cst_107 {dimension_numbers = #tpu.dot_dimension_numbers<[1], [0], [0], [1], [0, 0, 1, 1], [], []>} : vector<128x128xbf16>, vector<128x128xbf16>, vector<128x128xf32> -> vector<128x128xf32>
    %115 = arith.addf %108, %114 : vector<128x128xf32>
    %c0_108 = arith.constant 0 : index
    %c2_109 = arith.constant 2 : index
    %c0_110 = arith.constant 0 : index
    %116 = vector.load %arg5[%c0_108, %c2_109, %c0_110] : memref<10x18x128xf32, #tpu.memory_space<vmem>>, vector<8x16x128xf32>
    %117 = vector.shape_cast %116 : vector<8x16x128xf32> to vector<128x128xf32>
    %118 = arith.truncf %117 : vector<128x128xf32> to vector<128x128xbf16>
    %c1_111 = arith.constant 1 : index
    %c2_112 = arith.constant 2 : index
    %c0_113 = arith.constant 0 : index
    %c0_114 = arith.constant 0 : index
    %119 = vector.load %arg2[%c1_111, %c2_112, %c0_113, %c0_114] : memref<5x9x128x128xbf16, #tpu.memory_space<vmem>>, vector<1x1x128x128xbf16>
    %120 = vector.shape_cast %119 : vector<1x1x128x128xbf16> to vector<128x128xbf16>
    %cst_115 = arith.constant dense<0.000000e+00> : vector<128x128xf32>
    %121 = tpu.matmul %118, %120, %cst_115 {dimension_numbers = #tpu.dot_dimension_numbers<[1], [0], [0], [1], [0, 0, 1, 1], [], []>} : vector<128x128xbf16>, vector<128x128xbf16>, vector<128x128xf32> -> vector<128x128xf32>
    %122 = arith.addf %115, %121 : vector<128x128xf32>
    %c1_116 = arith.constant 1 : index
    %c0_117 = arith.constant 0 : index
    %c0_118 = arith.constant 0 : index
    %123 = vector.load %arg5[%c1_116, %c0_117, %c0_118] : memref<10x18x128xf32, #tpu.memory_space<vmem>>, vector<8x16x128xf32>
    %124 = vector.shape_cast %123 : vector<8x16x128xf32> to vector<128x128xf32>
    %125 = arith.truncf %124 : vector<128x128xf32> to vector<128x128xbf16>
    %c1_119 = arith.constant 1 : index
    %c3_120 = arith.constant 3 : index
    %c0_121 = arith.constant 0 : index
    %c0_122 = arith.constant 0 : index
    %126 = vector.load %arg2[%c1_119, %c3_120, %c0_121, %c0_122] : memref<5x9x128x128xbf16, #tpu.memory_space<vmem>>, vector<1x1x128x128xbf16>
    %127 = vector.shape_cast %126 : vector<1x1x128x128xbf16> to vector<128x128xbf16>
    %cst_123 = arith.constant dense<0.000000e+00> : vector<128x128xf32>
    %128 = tpu.matmul %125, %127, %cst_123 {dimension_numbers = #tpu.dot_dimension_numbers<[1], [0], [0], [1], [0, 0, 1, 1], [], []>} : vector<128x128xbf16>, vector<128x128xbf16>, vector<128x128xf32> -> vector<128x128xf32>
    %129 = arith.addf %122, %128 : vector<128x128xf32>
    %c1_124 = arith.constant 1 : index
    %c1_125 = arith.constant 1 : index
    %c0_126 = arith.constant 0 : index
    %130 = vector.load %arg5[%c1_124, %c1_125, %c0_126] : memref<10x18x128xf32, #tpu.memory_space<vmem>>, vector<8x16x128xf32>
    %131 = vector.shape_cast %130 : vector<8x16x128xf32> to vector<128x128xf32>
    %132 = arith.truncf %131 : vector<128x128xf32> to vector<128x128xbf16>
    %c1_127 = arith.constant 1 : index
    %c4_128 = arith.constant 4 : index
    %c0_129 = arith.constant 0 : index
    %c0_130 = arith.constant 0 : index
    %133 = vector.load %arg2[%c1_127, %c4_128, %c0_129, %c0_130] : memref<5x9x128x128xbf16, #tpu.memory_space<vmem>>, vector<1x1x128x128xbf16>
    %134 = vector.shape_cast %133 : vector<1x1x128x128xbf16> to vector<128x128xbf16>
    %cst_131 = arith.constant dense<0.000000e+00> : vector<128x128xf32>
    %135 = tpu.matmul %132, %134, %cst_131 {dimension_numbers = #tpu.dot_dimension_numbers<[1], [0], [0], [1], [0, 0, 1, 1], [], []>} : vector<128x128xbf16>, vector<128x128xbf16>, vector<128x128xf32> -> vector<128x128xf32>
    %136 = arith.addf %129, %135 : vector<128x128xf32>
    %c1_132 = arith.constant 1 : index
    %c2_133 = arith.constant 2 : index
    %c0_134 = arith.constant 0 : index
    %137 = vector.load %arg5[%c1_132, %c2_133, %c0_134] : memref<10x18x128xf32, #tpu.memory_space<vmem>>, vector<8x16x128xf32>
    %138 = vector.shape_cast %137 : vector<8x16x128xf32> to vector<128x128xf32>
    %139 = arith.truncf %138 : vector<128x128xf32> to vector<128x128xbf16>
    %c1_135 = arith.constant 1 : index
    %c5_136 = arith.constant 5 : index
    %c0_137 = arith.constant 0 : index
    %c0_138 = arith.constant 0 : index
    %140 = vector.load %arg2[%c1_135, %c5_136, %c0_137, %c0_138] : memref<5x9x128x128xbf16, #tpu.memory_space<vmem>>, vector<1x1x128x128xbf16>
    %141 = vector.shape_cast %140 : vector<1x1x128x128xbf16> to vector<128x128xbf16>
    %cst_139 = arith.constant dense<0.000000e+00> : vector<128x128xf32>
    %142 = tpu.matmul %139, %141, %cst_139 {dimension_numbers = #tpu.dot_dimension_numbers<[1], [0], [0], [1], [0, 0, 1, 1], [], []>} : vector<128x128xbf16>, vector<128x128xbf16>, vector<128x128xf32> -> vector<128x128xf32>
    %143 = arith.addf %136, %142 : vector<128x128xf32>
    %c2_140 = arith.constant 2 : index
    %c0_141 = arith.constant 0 : index
    %c0_142 = arith.constant 0 : index
    %144 = vector.load %arg5[%c2_140, %c0_141, %c0_142] : memref<10x18x128xf32, #tpu.memory_space<vmem>>, vector<8x16x128xf32>
    %145 = vector.shape_cast %144 : vector<8x16x128xf32> to vector<128x128xf32>
    %146 = arith.truncf %145 : vector<128x128xf32> to vector<128x128xbf16>
    %c1_143 = arith.constant 1 : index
    %c6_144 = arith.constant 6 : index
    %c0_145 = arith.constant 0 : index
    %c0_146 = arith.constant 0 : index
    %147 = vector.load %arg2[%c1_143, %c6_144, %c0_145, %c0_146] : memref<5x9x128x128xbf16, #tpu.memory_space<vmem>>, vector<1x1x128x128xbf16>
    %148 = vector.shape_cast %147 : vector<1x1x128x128xbf16> to vector<128x128xbf16>
    %cst_147 = arith.constant dense<0.000000e+00> : vector<128x128xf32>
    %149 = tpu.matmul %146, %148, %cst_147 {dimension_numbers = #tpu.dot_dimension_numbers<[1], [0], [0], [1], [0, 0, 1, 1], [], []>} : vector<128x128xbf16>, vector<128x128xbf16>, vector<128x128xf32> -> vector<128x128xf32>
    %150 = arith.addf %143, %149 : vector<128x128xf32>
    %c2_148 = arith.constant 2 : index
    %c1_149 = arith.constant 1 : index
    %c0_150 = arith.constant 0 : index
    %151 = vector.load %arg5[%c2_148, %c1_149, %c0_150] : memref<10x18x128xf32, #tpu.memory_space<vmem>>, vector<8x16x128xf32>
    %152 = vector.shape_cast %151 : vector<8x16x128xf32> to vector<128x128xf32>
    %153 = arith.truncf %152 : vector<128x128xf32> to vector<128x128xbf16>
    %c1_151 = arith.constant 1 : index
    %c7_152 = arith.constant 7 : index
    %c0_153 = arith.constant 0 : index
    %c0_154 = arith.constant 0 : index
    %154 = vector.load %arg2[%c1_151, %c7_152, %c0_153, %c0_154] : memref<5x9x128x128xbf16, #tpu.memory_space<vmem>>, vector<1x1x128x128xbf16>
    %155 = vector.shape_cast %154 : vector<1x1x128x128xbf16> to vector<128x128xbf16>
    %cst_155 = arith.constant dense<0.000000e+00> : vector<128x128xf32>
    %156 = tpu.matmul %153, %155, %cst_155 {dimension_numbers = #tpu.dot_dimension_numbers<[1], [0], [0], [1], [0, 0, 1, 1], [], []>} : vector<128x128xbf16>, vector<128x128xbf16>, vector<128x128xf32> -> vector<128x128xf32>
    %157 = arith.addf %150, %156 : vector<128x128xf32>
    %c2_156 = arith.constant 2 : index
    %c2_157 = arith.constant 2 : index
    %c0_158 = arith.constant 0 : index
    %158 = vector.load %arg5[%c2_156, %c2_157, %c0_158] : memref<10x18x128xf32, #tpu.memory_space<vmem>>, vector<8x16x128xf32>
    %159 = vector.shape_cast %158 : vector<8x16x128xf32> to vector<128x128xf32>
    %160 = arith.truncf %159 : vector<128x128xf32> to vector<128x128xbf16>
    %c1_159 = arith.constant 1 : index
    %c8_160 = arith.constant 8 : index
    %c0_161 = arith.constant 0 : index
    %c0_162 = arith.constant 0 : index
    %161 = vector.load %arg2[%c1_159, %c8_160, %c0_161, %c0_162] : memref<5x9x128x128xbf16, #tpu.memory_space<vmem>>, vector<1x1x128x128xbf16>
    %162 = vector.shape_cast %161 : vector<1x1x128x128xbf16> to vector<128x128xbf16>
    %cst_163 = arith.constant dense<0.000000e+00> : vector<128x128xf32>
    %163 = tpu.matmul %160, %162, %cst_163 {dimension_numbers = #tpu.dot_dimension_numbers<[1], [0], [0], [1], [0, 0, 1, 1], [], []>} : vector<128x128xbf16>, vector<128x128xbf16>, vector<128x128xf32> -> vector<128x128xf32>
    %164 = arith.addf %157, %163 : vector<128x128xf32>
    %c1_164 = arith.constant 1 : index
    %c0_165 = arith.constant 0 : index
    %c0_166 = arith.constant 0 : index
    %165 = vector.load %arg3[%c1_164, %c0_165, %c0_166] : memref<5x1x128xf32, #tpu.memory_space<vmem>>, vector<1x1x128xf32>
    %166 = vector.shape_cast %165 : vector<1x1x128xf32> to vector<1x128xf32>
    %167 = vector.broadcast %166 : vector<1x128xf32> to vector<128x128xf32>
    %168 = arith.addf %164, %167 : vector<128x128xf32>
    %cst_167 = arith.constant 0.000000e+00 : f32
    %169 = vector.broadcast %cst_167 : f32 to vector<128x128xf32>
    %170 = arith.minimumf %168, %169 : vector<128x128xf32>
    %171 = math.exp %170 : vector<128x128xf32>
    %cst_168 = arith.constant 1.000000e+00 : f32
    %172 = vector.broadcast %cst_168 : f32 to vector<128x128xf32>
    %173 = arith.subf %171, %172 : vector<128x128xf32>
    %cst_169 = arith.constant 0.000000e+00 : f32
    %174 = vector.broadcast %cst_169 : f32 to vector<128x128xf32>
    %175 = arith.cmpf ogt, %168, %174 : vector<128x128xf32>
    %176 = arith.select %175, %168, %173 : vector<128x128xi1>, vector<128x128xf32>
    %cst_170 = arith.constant dense<0.000000e+00> : vector<128xf32>
    %177 = vector.multi_reduction <add>, %176, %cst_170 [0] : vector<128x128xf32> to vector<128xf32>
    %178 = vector.shape_cast %177 : vector<128xf32> to vector<1x128xf32>
    %cst_171 = arith.constant 7.812500e-03 : f32
    %179 = vector.broadcast %cst_171 : f32 to vector<1x128xf32>
    %180 = arith.mulf %178, %179 : vector<1x128xf32>
    %181 = vector.broadcast %180 : vector<1x128xf32> to vector<128x128xf32>
    %182 = arith.subf %176, %181 : vector<128x128xf32>
    %183 = arith.mulf %182, %182 : vector<128x128xf32>
    %cst_172 = arith.constant dense<0.000000e+00> : vector<128xf32>
    %184 = vector.multi_reduction <add>, %183, %cst_172 [0] : vector<128x128xf32> to vector<128xf32>
    %185 = vector.shape_cast %184 : vector<128xf32> to vector<1x128xf32>
    %cst_173 = arith.constant 7.812500e-03 : f32
    %186 = vector.broadcast %cst_173 : f32 to vector<1x128xf32>
    %187 = arith.mulf %185, %186 : vector<1x128xf32>
    %cst_174 = arith.constant 9.99999974E-6 : f32
    %188 = vector.broadcast %cst_174 : f32 to vector<1x128xf32>
    %189 = arith.addf %187, %188 : vector<1x128xf32>
    %190 = math.rsqrt %189 : vector<1x128xf32>
    %191 = vector.broadcast %190 : vector<1x128xf32> to vector<128x128xf32>
    %192 = arith.mulf %182, %191 : vector<128x128xf32>
    %c1_175 = arith.constant 1 : index
    %c1_176 = arith.constant 1 : index
    %c0_177 = arith.constant 0 : index
    %193 = vector.load %arg5[%c1_175, %c1_176, %c0_177] : memref<10x18x128xf32, #tpu.memory_space<vmem>>, vector<8x16x128xf32>
    %194 = vector.shape_cast %192 : vector<128x128xf32> to vector<8x16x128xf32>
    %195 = arith.addf %193, %194 : vector<8x16x128xf32>
    %c1_178 = arith.constant 1 : index
    %c1_179 = arith.constant 1 : index
    %c0_180 = arith.constant 0 : index
    %196 = vector.load %arg5[%c1_178, %c1_179, %c0_180] : memref<10x18x128xf32, #tpu.memory_space<vmem>>, vector<8x16x128xf32>
    tpu.vector_store %arg5[%c1_178, %c1_179, %c0_180], %195 {strides = array<i32>} : memref<10x18x128xf32, #tpu.memory_space<vmem>>, vector<8x16x128xf32>,
    %cst_181 = arith.constant 0.000000e+00 : f32
    %197 = vector.broadcast %cst_181 : f32 to vector<128x128xf32>
    %c0_182 = arith.constant 0 : index
    %c0_183 = arith.constant 0 : index
    %c0_184 = arith.constant 0 : index
    %198 = vector.load %arg5[%c0_182, %c0_183, %c0_184] : memref<10x18x128xf32, #tpu.memory_space<vmem>>, vector<8x16x128xf32>
    %199 = vector.shape_cast %198 : vector<8x16x128xf32> to vector<128x128xf32>
    %200 = arith.truncf %199 : vector<128x128xf32> to vector<128x128xbf16>
    %c2_185 = arith.constant 2 : index
    %c0_186 = arith.constant 0 : index
    %c0_187 = arith.constant 0 : index
    %c0_188 = arith.constant 0 : index
    %201 = vector.load %arg2[%c2_185, %c0_186, %c0_187, %c0_188] : memref<5x9x128x128xbf16, #tpu.memory_space<vmem>>, vector<1x1x128x128xbf16>
    %202 = vector.shape_cast %201 : vector<1x1x128x128xbf16> to vector<128x128xbf16>
    %cst_189 = arith.constant dense<0.000000e+00> : vector<128x128xf32>
    %203 = tpu.matmul %200, %202, %cst_189 {dimension_numbers = #tpu.dot_dimension_numbers<[1], [0], [0], [1], [0, 0, 1, 1], [], []>} : vector<128x128xbf16>, vector<128x128xbf16>, vector<128x128xf32> -> vector<128x128xf32>
    %204 = arith.addf %197, %203 : vector<128x128xf32>
    %c0_190 = arith.constant 0 : index
    %c1_191 = arith.constant 1 : index
    %c0_192 = arith.constant 0 : index
    %205 = vector.load %arg5[%c0_190, %c1_191, %c0_192] : memref<10x18x128xf32, #tpu.memory_space<vmem>>, vector<8x16x128xf32>
    %206 = vector.shape_cast %205 : vector<8x16x128xf32> to vector<128x128xf32>
    %207 = arith.truncf %206 : vector<128x128xf32> to vector<128x128xbf16>
    %c2_193 = arith.constant 2 : index
    %c1_194 = arith.constant 1 : index
    %c0_195 = arith.constant 0 : index
    %c0_196 = arith.constant 0 : index
    %208 = vector.load %arg2[%c2_193, %c1_194, %c0_195, %c0_196] : memref<5x9x128x128xbf16, #tpu.memory_space<vmem>>, vector<1x1x128x128xbf16>
    %209 = vector.shape_cast %208 : vector<1x1x128x128xbf16> to vector<128x128xbf16>
    %cst_197 = arith.constant dense<0.000000e+00> : vector<128x128xf32>
    %210 = tpu.matmul %207, %209, %cst_197 {dimension_numbers = #tpu.dot_dimension_numbers<[1], [0], [0], [1], [0, 0, 1, 1], [], []>} : vector<128x128xbf16>, vector<128x128xbf16>, vector<128x128xf32> -> vector<128x128xf32>
    %211 = arith.addf %204, %210 : vector<128x128xf32>
    %c0_198 = arith.constant 0 : index
    %c2_199 = arith.constant 2 : index
    %c0_200 = arith.constant 0 : index
    %212 = vector.load %arg5[%c0_198, %c2_199, %c0_200] : memref<10x18x128xf32, #tpu.memory_space<vmem>>, vector<8x16x128xf32>
    %213 = vector.shape_cast %212 : vector<8x16x128xf32> to vector<128x128xf32>
    %214 = arith.truncf %213 : vector<128x128xf32> to vector<128x128xbf16>
    %c2_201 = arith.constant 2 : index
    %c2_202 = arith.constant 2 : index
    %c0_203 = arith.constant 0 : index
    %c0_204 = arith.constant 0 : index
    %215 = vector.load %arg2[%c2_201, %c2_202, %c0_203, %c0_204] : memref<5x9x128x128xbf16, #tpu.memory_space<vmem>>, vector<1x1x128x128xbf16>
    %216 = vector.shape_cast %215 : vector<1x1x128x128xbf16> to vector<128x128xbf16>
    %cst_205 = arith.constant dense<0.000000e+00> : vector<128x128xf32>
    %217 = tpu.matmul %214, %216, %cst_205 {dimension_numbers = #tpu.dot_dimension_numbers<[1], [0], [0], [1], [0, 0, 1, 1], [], []>} : vector<128x128xbf16>, vector<128x128xbf16>, vector<128x128xf32> -> vector<128x128xf32>
    %218 = arith.addf %211, %217 : vector<128x128xf32>
    %c1_206 = arith.constant 1 : index
    %c0_207 = arith.constant 0 : index
    %c0_208 = arith.constant 0 : index
    %219 = vector.load %arg5[%c1_206, %c0_207, %c0_208] : memref<10x18x128xf32, #tpu.memory_space<vmem>>, vector<8x16x128xf32>
    %220 = vector.shape_cast %219 : vector<8x16x128xf32> to vector<128x128xf32>
    %221 = arith.truncf %220 : vector<128x128xf32> to vector<128x128xbf16>
    %c2_209 = arith.constant 2 : index
    %c3_210 = arith.constant 3 : index
    %c0_211 = arith.constant 0 : index
    %c0_212 = arith.constant 0 : index
    %222 = vector.load %arg2[%c2_209, %c3_210, %c0_211, %c0_212] : memref<5x9x128x128xbf16, #tpu.memory_space<vmem>>, vector<1x1x128x128xbf16>
    %223 = vector.shape_cast %222 : vector<1x1x128x128xbf16> to vector<128x128xbf16>
    %cst_213 = arith.constant dense<0.000000e+00> : vector<128x128xf32>
    %224 = tpu.matmul %221, %223, %cst_213 {dimension_numbers = #tpu.dot_dimension_numbers<[1], [0], [0], [1], [0, 0, 1, 1], [], []>} : vector<128x128xbf16>, vector<128x128xbf16>, vector<128x128xf32> -> vector<128x128xf32>
    %225 = arith.addf %218, %224 : vector<128x128xf32>
    %c1_214 = arith.constant 1 : index
    %c1_215 = arith.constant 1 : index
    %c0_216 = arith.constant 0 : index
    %226 = vector.load %arg5[%c1_214, %c1_215, %c0_216] : memref<10x18x128xf32, #tpu.memory_space<vmem>>, vector<8x16x128xf32>
    %227 = vector.shape_cast %226 : vector<8x16x128xf32> to vector<128x128xf32>
    %228 = arith.truncf %227 : vector<128x128xf32> to vector<128x128xbf16>
    %c2_217 = arith.constant 2 : index
    %c4_218 = arith.constant 4 : index
    %c0_219 = arith.constant 0 : index
    %c0_220 = arith.constant 0 : index
    %229 = vector.load %arg2[%c2_217, %c4_218, %c0_219, %c0_220] : memref<5x9x128x128xbf16, #tpu.memory_space<vmem>>, vector<1x1x128x128xbf16>
    %230 = vector.shape_cast %229 : vector<1x1x128x128xbf16> to vector<128x128xbf16>
    %cst_221 = arith.constant dense<0.000000e+00> : vector<128x128xf32>
    %231 = tpu.matmul %228, %230, %cst_221 {dimension_numbers = #tpu.dot_dimension_numbers<[1], [0], [0], [1], [0, 0, 1, 1], [], []>} : vector<128x128xbf16>, vector<128x128xbf16>, vector<128x128xf32> -> vector<128x128xf32>
    %232 = arith.addf %225, %231 : vector<128x128xf32>
    %c1_222 = arith.constant 1 : index
    %c2_223 = arith.constant 2 : index
    %c0_224 = arith.constant 0 : index
    %233 = vector.load %arg5[%c1_222, %c2_223, %c0_224] : memref<10x18x128xf32, #tpu.memory_space<vmem>>, vector<8x16x128xf32>
    %234 = vector.shape_cast %233 : vector<8x16x128xf32> to vector<128x128xf32>
    %235 = arith.truncf %234 : vector<128x128xf32> to vector<128x128xbf16>
    %c2_225 = arith.constant 2 : index
    %c5_226 = arith.constant 5 : index
    %c0_227 = arith.constant 0 : index
    %c0_228 = arith.constant 0 : index
    %236 = vector.load %arg2[%c2_225, %c5_226, %c0_227, %c0_228] : memref<5x9x128x128xbf16, #tpu.memory_space<vmem>>, vector<1x1x128x128xbf16>
    %237 = vector.shape_cast %236 : vector<1x1x128x128xbf16> to vector<128x128xbf16>
    %cst_229 = arith.constant dense<0.000000e+00> : vector<128x128xf32>
    %238 = tpu.matmul %235, %237, %cst_229 {dimension_numbers = #tpu.dot_dimension_numbers<[1], [0], [0], [1], [0, 0, 1, 1], [], []>} : vector<128x128xbf16>, vector<128x128xbf16>, vector<128x128xf32> -> vector<128x128xf32>
    %239 = arith.addf %232, %238 : vector<128x128xf32>
    %c2_230 = arith.constant 2 : index
    %c0_231 = arith.constant 0 : index
    %c0_232 = arith.constant 0 : index
    %240 = vector.load %arg5[%c2_230, %c0_231, %c0_232] : memref<10x18x128xf32, #tpu.memory_space<vmem>>, vector<8x16x128xf32>
    %241 = vector.shape_cast %240 : vector<8x16x128xf32> to vector<128x128xf32>
    %242 = arith.truncf %241 : vector<128x128xf32> to vector<128x128xbf16>
    %c2_233 = arith.constant 2 : index
    %c6_234 = arith.constant 6 : index
    %c0_235 = arith.constant 0 : index
    %c0_236 = arith.constant 0 : index
    %243 = vector.load %arg2[%c2_233, %c6_234, %c0_235, %c0_236] : memref<5x9x128x128xbf16, #tpu.memory_space<vmem>>, vector<1x1x128x128xbf16>
    %244 = vector.shape_cast %243 : vector<1x1x128x128xbf16> to vector<128x128xbf16>
    %cst_237 = arith.constant dense<0.000000e+00> : vector<128x128xf32>
    %245 = tpu.matmul %242, %244, %cst_237 {dimension_numbers = #tpu.dot_dimension_numbers<[1], [0], [0], [1], [0, 0, 1, 1], [], []>} : vector<128x128xbf16>, vector<128x128xbf16>, vector<128x128xf32> -> vector<128x128xf32>
    %246 = arith.addf %239, %245 : vector<128x128xf32>
    %c2_238 = arith.constant 2 : index
    %c1_239 = arith.constant 1 : index
    %c0_240 = arith.constant 0 : index
    %247 = vector.load %arg5[%c2_238, %c1_239, %c0_240] : memref<10x18x128xf32, #tpu.memory_space<vmem>>, vector<8x16x128xf32>
    %248 = vector.shape_cast %247 : vector<8x16x128xf32> to vector<128x128xf32>
    %249 = arith.truncf %248 : vector<128x128xf32> to vector<128x128xbf16>
    %c2_241 = arith.constant 2 : index
    %c7_242 = arith.constant 7 : index
    %c0_243 = arith.constant 0 : index
    %c0_244 = arith.constant 0 : index
    %250 = vector.load %arg2[%c2_241, %c7_242, %c0_243, %c0_244] : memref<5x9x128x128xbf16, #tpu.memory_space<vmem>>, vector<1x1x128x128xbf16>
    %251 = vector.shape_cast %250 : vector<1x1x128x128xbf16> to vector<128x128xbf16>
    %cst_245 = arith.constant dense<0.000000e+00> : vector<128x128xf32>
    %252 = tpu.matmul %249, %251, %cst_245 {dimension_numbers = #tpu.dot_dimension_numbers<[1], [0], [0], [1], [0, 0, 1, 1], [], []>} : vector<128x128xbf16>, vector<128x128xbf16>, vector<128x128xf32> -> vector<128x128xf32>
    %253 = arith.addf %246, %252 : vector<128x128xf32>
    %c2_246 = arith.constant 2 : index
    %c2_247 = arith.constant 2 : index
    %c0_248 = arith.constant 0 : index
    %254 = vector.load %arg5[%c2_246, %c2_247, %c0_248] : memref<10x18x128xf32, #tpu.memory_space<vmem>>, vector<8x16x128xf32>
    %255 = vector.shape_cast %254 : vector<8x16x128xf32> to vector<128x128xf32>
    %256 = arith.truncf %255 : vector<128x128xf32> to vector<128x128xbf16>
    %c2_249 = arith.constant 2 : index
    %c8_250 = arith.constant 8 : index
    %c0_251 = arith.constant 0 : index
    %c0_252 = arith.constant 0 : index
    %257 = vector.load %arg2[%c2_249, %c8_250, %c0_251, %c0_252] : memref<5x9x128x128xbf16, #tpu.memory_space<vmem>>, vector<1x1x128x128xbf16>
    %258 = vector.shape_cast %257 : vector<1x1x128x128xbf16> to vector<128x128xbf16>
    %cst_253 = arith.constant dense<0.000000e+00> : vector<128x128xf32>
    %259 = tpu.matmul %256, %258, %cst_253 {dimension_numbers = #tpu.dot_dimension_numbers<[1], [0], [0], [1], [0, 0, 1, 1], [], []>} : vector<128x128xbf16>, vector<128x128xbf16>, vector<128x128xf32> -> vector<128x128xf32>
    %260 = arith.addf %253, %259 : vector<128x128xf32>
    %c2_254 = arith.constant 2 : index
    %c0_255 = arith.constant 0 : index
    %c0_256 = arith.constant 0 : index
    %261 = vector.load %arg3[%c2_254, %c0_255, %c0_256] : memref<5x1x128xf32, #tpu.memory_space<vmem>>, vector<1x1x128xf32>
    %262 = vector.shape_cast %261 : vector<1x1x128xf32> to vector<1x128xf32>
    %263 = vector.broadcast %262 : vector<1x128xf32> to vector<128x128xf32>
    %264 = arith.addf %260, %263 : vector<128x128xf32>
    %cst_257 = arith.constant 0.000000e+00 : f32
    %265 = vector.broadcast %cst_257 : f32 to vector<128x128xf32>
    %266 = arith.minimumf %264, %265 : vector<128x128xf32>
    %267 = math.exp %266 : vector<128x128xf32>
    %cst_258 = arith.constant 1.000000e+00 : f32
    %268 = vector.broadcast %cst_258 : f32 to vector<128x128xf32>
    %269 = arith.subf %267, %268 : vector<128x128xf32>
    %cst_259 = arith.constant 0.000000e+00 : f32
    %270 = vector.broadcast %cst_259 : f32 to vector<128x128xf32>
    %271 = arith.cmpf ogt, %264, %270 : vector<128x128xf32>
    %272 = arith.select %271, %264, %269 : vector<128x128xi1>, vector<128x128xf32>
    %cst_260 = arith.constant dense<0.000000e+00> : vector<128xf32>
    %273 = vector.multi_reduction <add>, %272, %cst_260 [0] : vector<128x128xf32> to vector<128xf32>
    %274 = vector.shape_cast %273 : vector<128xf32> to vector<1x128xf32>
    %cst_261 = arith.constant 7.812500e-03 : f32
    %275 = vector.broadcast %cst_261 : f32 to vector<1x128xf32>
    %276 = arith.mulf %274, %275 : vector<1x128xf32>
    %277 = vector.broadcast %276 : vector<1x128xf32> to vector<128x128xf32>
    %278 = arith.subf %272, %277 : vector<128x128xf32>
    %279 = arith.mulf %278, %278 : vector<128x128xf32>
    %cst_262 = arith.constant dense<0.000000e+00> : vector<128xf32>
    %280 = vector.multi_reduction <add>, %279, %cst_262 [0] : vector<128x128xf32> to vector<128xf32>
    %281 = vector.shape_cast %280 : vector<128xf32> to vector<1x128xf32>
    %cst_263 = arith.constant 7.812500e-03 : f32
    %282 = vector.broadcast %cst_263 : f32 to vector<1x128xf32>
    %283 = arith.mulf %281, %282 : vector<1x128xf32>
    %cst_264 = arith.constant 9.99999974E-6 : f32
    %284 = vector.broadcast %cst_264 : f32 to vector<1x128xf32>
    %285 = arith.addf %283, %284 : vector<1x128xf32>
    %286 = math.rsqrt %285 : vector<1x128xf32>
    %287 = vector.broadcast %286 : vector<1x128xf32> to vector<128x128xf32>
    %288 = arith.mulf %278, %287 : vector<128x128xf32>
    %c1_265 = arith.constant 1 : index
    %c1_266 = arith.constant 1 : index
    %c0_267 = arith.constant 0 : index
    %289 = vector.load %arg5[%c1_265, %c1_266, %c0_267] : memref<10x18x128xf32, #tpu.memory_space<vmem>>, vector<8x16x128xf32>
    %290 = vector.shape_cast %288 : vector<128x128xf32> to vector<8x16x128xf32>
    %291 = arith.addf %289, %290 : vector<8x16x128xf32>
    %c1_268 = arith.constant 1 : index
    %c1_269 = arith.constant 1 : index
    %c0_270 = arith.constant 0 : index
    %292 = vector.load %arg5[%c1_268, %c1_269, %c0_270] : memref<10x18x128xf32, #tpu.memory_space<vmem>>, vector<8x16x128xf32>
    tpu.vector_store %arg5[%c1_268, %c1_269, %c0_270], %291 {strides = array<i32>} : memref<10x18x128xf32, #tpu.memory_space<vmem>>, vector<8x16x128xf32>,
    %cst_271 = arith.constant 0.000000e+00 : f32
    %293 = vector.broadcast %cst_271 : f32 to vector<128x128xf32>
    %c0_272 = arith.constant 0 : index
    %c0_273 = arith.constant 0 : index
    %c0_274 = arith.constant 0 : index
    %294 = vector.load %arg5[%c0_272, %c0_273, %c0_274] : memref<10x18x128xf32, #tpu.memory_space<vmem>>, vector<8x16x128xf32>
    %295 = vector.shape_cast %294 : vector<8x16x128xf32> to vector<128x128xf32>
    %296 = arith.truncf %295 : vector<128x128xf32> to vector<128x128xbf16>
    %c3_275 = arith.constant 3 : index
    %c0_276 = arith.constant 0 : index
    %c0_277 = arith.constant 0 : index
    %c0_278 = arith.constant 0 : index
    %297 = vector.load %arg2[%c3_275, %c0_276, %c0_277, %c0_278] : memref<5x9x128x128xbf16, #tpu.memory_space<vmem>>, vector<1x1x128x128xbf16>
    %298 = vector.shape_cast %297 : vector<1x1x128x128xbf16> to vector<128x128xbf16>
    %cst_279 = arith.constant dense<0.000000e+00> : vector<128x128xf32>
    %299 = tpu.matmul %296, %298, %cst_279 {dimension_numbers = #tpu.dot_dimension_numbers<[1], [0], [0], [1], [0, 0, 1, 1], [], []>} : vector<128x128xbf16>, vector<128x128xbf16>, vector<128x128xf32> -> vector<128x128xf32>
    %300 = arith.addf %293, %299 : vector<128x128xf32>
    %c0_280 = arith.constant 0 : index
    %c1_281 = arith.constant 1 : index
    %c0_282 = arith.constant 0 : index
    %301 = vector.load %arg5[%c0_280, %c1_281, %c0_282] : memref<10x18x128xf32, #tpu.memory_space<vmem>>, vector<8x16x128xf32>
    %302 = vector.shape_cast %301 : vector<8x16x128xf32> to vector<128x128xf32>
    %303 = arith.truncf %302 : vector<128x128xf32> to vector<128x128xbf16>
    %c3_283 = arith.constant 3 : index
    %c1_284 = arith.constant 1 : index
    %c0_285 = arith.constant 0 : index
    %c0_286 = arith.constant 0 : index
    %304 = vector.load %arg2[%c3_283, %c1_284, %c0_285, %c0_286] : memref<5x9x128x128xbf16, #tpu.memory_space<vmem>>, vector<1x1x128x128xbf16>
    %305 = vector.shape_cast %304 : vector<1x1x128x128xbf16> to vector<128x128xbf16>
    %cst_287 = arith.constant dense<0.000000e+00> : vector<128x128xf32>
    %306 = tpu.matmul %303, %305, %cst_287 {dimension_numbers = #tpu.dot_dimension_numbers<[1], [0], [0], [1], [0, 0, 1, 1], [], []>} : vector<128x128xbf16>, vector<128x128xbf16>, vector<128x128xf32> -> vector<128x128xf32>
    %307 = arith.addf %300, %306 : vector<128x128xf32>
    %c0_288 = arith.constant 0 : index
    %c2_289 = arith.constant 2 : index
    %c0_290 = arith.constant 0 : index
    %308 = vector.load %arg5[%c0_288, %c2_289, %c0_290] : memref<10x18x128xf32, #tpu.memory_space<vmem>>, vector<8x16x128xf32>
    %309 = vector.shape_cast %308 : vector<8x16x128xf32> to vector<128x128xf32>
    %310 = arith.truncf %309 : vector<128x128xf32> to vector<128x128xbf16>
    %c3_291 = arith.constant 3 : index
    %c2_292 = arith.constant 2 : index
    %c0_293 = arith.constant 0 : index
    %c0_294 = arith.constant 0 : index
    %311 = vector.load %arg2[%c3_291, %c2_292, %c0_293, %c0_294] : memref<5x9x128x128xbf16, #tpu.memory_space<vmem>>, vector<1x1x128x128xbf16>
    %312 = vector.shape_cast %311 : vector<1x1x128x128xbf16> to vector<128x128xbf16>
    %cst_295 = arith.constant dense<0.000000e+00> : vector<128x128xf32>
    %313 = tpu.matmul %310, %312, %cst_295 {dimension_numbers = #tpu.dot_dimension_numbers<[1], [0], [0], [1], [0, 0, 1, 1], [], []>} : vector<128x128xbf16>, vector<128x128xbf16>, vector<128x128xf32> -> vector<128x128xf32>
    %314 = arith.addf %307, %313 : vector<128x128xf32>
    %c1_296 = arith.constant 1 : index
    %c0_297 = arith.constant 0 : index
    %c0_298 = arith.constant 0 : index
    %315 = vector.load %arg5[%c1_296, %c0_297, %c0_298] : memref<10x18x128xf32, #tpu.memory_space<vmem>>, vector<8x16x128xf32>
    %316 = vector.shape_cast %315 : vector<8x16x128xf32> to vector<128x128xf32>
    %317 = arith.truncf %316 : vector<128x128xf32> to vector<128x128xbf16>
    %c3_299 = arith.constant 3 : index
    %c3_300 = arith.constant 3 : index
    %c0_301 = arith.constant 0 : index
    %c0_302 = arith.constant 0 : index
    %318 = vector.load %arg2[%c3_299, %c3_300, %c0_301, %c0_302] : memref<5x9x128x128xbf16, #tpu.memory_space<vmem>>, vector<1x1x128x128xbf16>
    %319 = vector.shape_cast %318 : vector<1x1x128x128xbf16> to vector<128x128xbf16>
    %cst_303 = arith.constant dense<0.000000e+00> : vector<128x128xf32>
    %320 = tpu.matmul %317, %319, %cst_303 {dimension_numbers = #tpu.dot_dimension_numbers<[1], [0], [0], [1], [0, 0, 1, 1], [], []>} : vector<128x128xbf16>, vector<128x128xbf16>, vector<128x128xf32> -> vector<128x128xf32>
    %321 = arith.addf %314, %320 : vector<128x128xf32>
    %c1_304 = arith.constant 1 : index
    %c1_305 = arith.constant 1 : index
    %c0_306 = arith.constant 0 : index
    %322 = vector.load %arg5[%c1_304, %c1_305, %c0_306] : memref<10x18x128xf32, #tpu.memory_space<vmem>>, vector<8x16x128xf32>
    %323 = vector.shape_cast %322 : vector<8x16x128xf32> to vector<128x128xf32>
    %324 = arith.truncf %323 : vector<128x128xf32> to vector<128x128xbf16>
    %c3_307 = arith.constant 3 : index
    %c4_308 = arith.constant 4 : index
    %c0_309 = arith.constant 0 : index
    %c0_310 = arith.constant 0 : index
    %325 = vector.load %arg2[%c3_307, %c4_308, %c0_309, %c0_310] : memref<5x9x128x128xbf16, #tpu.memory_space<vmem>>, vector<1x1x128x128xbf16>
    %326 = vector.shape_cast %325 : vector<1x1x128x128xbf16> to vector<128x128xbf16>
    %cst_311 = arith.constant dense<0.000000e+00> : vector<128x128xf32>
    %327 = tpu.matmul %324, %326, %cst_311 {dimension_numbers = #tpu.dot_dimension_numbers<[1], [0], [0], [1], [0, 0, 1, 1], [], []>} : vector<128x128xbf16>, vector<128x128xbf16>, vector<128x128xf32> -> vector<128x128xf32>
    %328 = arith.addf %321, %327 : vector<128x128xf32>
    %c1_312 = arith.constant 1 : index
    %c2_313 = arith.constant 2 : index
    %c0_314 = arith.constant 0 : index
    %329 = vector.load %arg5[%c1_312, %c2_313, %c0_314] : memref<10x18x128xf32, #tpu.memory_space<vmem>>, vector<8x16x128xf32>
    %330 = vector.shape_cast %329 : vector<8x16x128xf32> to vector<128x128xf32>
    %331 = arith.truncf %330 : vector<128x128xf32> to vector<128x128xbf16>
    %c3_315 = arith.constant 3 : index
    %c5_316 = arith.constant 5 : index
    %c0_317 = arith.constant 0 : index
    %c0_318 = arith.constant 0 : index
    %332 = vector.load %arg2[%c3_315, %c5_316, %c0_317, %c0_318] : memref<5x9x128x128xbf16, #tpu.memory_space<vmem>>, vector<1x1x128x128xbf16>
    %333 = vector.shape_cast %332 : vector<1x1x128x128xbf16> to vector<128x128xbf16>
    %cst_319 = arith.constant dense<0.000000e+00> : vector<128x128xf32>
    %334 = tpu.matmul %331, %333, %cst_319 {dimension_numbers = #tpu.dot_dimension_numbers<[1], [0], [0], [1], [0, 0, 1, 1], [], []>} : vector<128x128xbf16>, vector<128x128xbf16>, vector<128x128xf32> -> vector<128x128xf32>
    %335 = arith.addf %328, %334 : vector<128x128xf32>
    %c2_320 = arith.constant 2 : index
    %c0_321 = arith.constant 0 : index
    %c0_322 = arith.constant 0 : index
    %336 = vector.load %arg5[%c2_320, %c0_321, %c0_322] : memref<10x18x128xf32, #tpu.memory_space<vmem>>, vector<8x16x128xf32>
    %337 = vector.shape_cast %336 : vector<8x16x128xf32> to vector<128x128xf32>
    %338 = arith.truncf %337 : vector<128x128xf32> to vector<128x128xbf16>
    %c3_323 = arith.constant 3 : index
    %c6_324 = arith.constant 6 : index
    %c0_325 = arith.constant 0 : index
    %c0_326 = arith.constant 0 : index
    %339 = vector.load %arg2[%c3_323, %c6_324, %c0_325, %c0_326] : memref<5x9x128x128xbf16, #tpu.memory_space<vmem>>, vector<1x1x128x128xbf16>
    %340 = vector.shape_cast %339 : vector<1x1x128x128xbf16> to vector<128x128xbf16>
    %cst_327 = arith.constant dense<0.000000e+00> : vector<128x128xf32>
    %341 = tpu.matmul %338, %340, %cst_327 {dimension_numbers = #tpu.dot_dimension_numbers<[1], [0], [0], [1], [0, 0, 1, 1], [], []>} : vector<128x128xbf16>, vector<128x128xbf16>, vector<128x128xf32> -> vector<128x128xf32>
    %342 = arith.addf %335, %341 : vector<128x128xf32>
    %c2_328 = arith.constant 2 : index
    %c1_329 = arith.constant 1 : index
    %c0_330 = arith.constant 0 : index
    %343 = vector.load %arg5[%c2_328, %c1_329, %c0_330] : memref<10x18x128xf32, #tpu.memory_space<vmem>>, vector<8x16x128xf32>
    %344 = vector.shape_cast %343 : vector<8x16x128xf32> to vector<128x128xf32>
    %345 = arith.truncf %344 : vector<128x128xf32> to vector<128x128xbf16>
    %c3_331 = arith.constant 3 : index
    %c7_332 = arith.constant 7 : index
    %c0_333 = arith.constant 0 : index
    %c0_334 = arith.constant 0 : index
    %346 = vector.load %arg2[%c3_331, %c7_332, %c0_333, %c0_334] : memref<5x9x128x128xbf16, #tpu.memory_space<vmem>>, vector<1x1x128x128xbf16>
    %347 = vector.shape_cast %346 : vector<1x1x128x128xbf16> to vector<128x128xbf16>
    %cst_335 = arith.constant dense<0.000000e+00> : vector<128x128xf32>
    %348 = tpu.matmul %345, %347, %cst_335 {dimension_numbers = #tpu.dot_dimension_numbers<[1], [0], [0], [1], [0, 0, 1, 1], [], []>} : vector<128x128xbf16>, vector<128x128xbf16>, vector<128x128xf32> -> vector<128x128xf32>
    %349 = arith.addf %342, %348 : vector<128x128xf32>
    %c2_336 = arith.constant 2 : index
    %c2_337 = arith.constant 2 : index
    %c0_338 = arith.constant 0 : index
    %350 = vector.load %arg5[%c2_336, %c2_337, %c0_338] : memref<10x18x128xf32, #tpu.memory_space<vmem>>, vector<8x16x128xf32>
    %351 = vector.shape_cast %350 : vector<8x16x128xf32> to vector<128x128xf32>
    %352 = arith.truncf %351 : vector<128x128xf32> to vector<128x128xbf16>
    %c3_339 = arith.constant 3 : index
    %c8_340 = arith.constant 8 : index
    %c0_341 = arith.constant 0 : index
    %c0_342 = arith.constant 0 : index
    %353 = vector.load %arg2[%c3_339, %c8_340, %c0_341, %c0_342] : memref<5x9x128x128xbf16, #tpu.memory_space<vmem>>, vector<1x1x128x128xbf16>
    %354 = vector.shape_cast %353 : vector<1x1x128x128xbf16> to vector<128x128xbf16>
    %cst_343 = arith.constant dense<0.000000e+00> : vector<128x128xf32>
    %355 = tpu.matmul %352, %354, %cst_343 {dimension_numbers = #tpu.dot_dimension_numbers<[1], [0], [0], [1], [0, 0, 1, 1], [], []>} : vector<128x128xbf16>, vector<128x128xbf16>, vector<128x128xf32> -> vector<128x128xf32>
    %356 = arith.addf %349, %355 : vector<128x128xf32>
    %c3_344 = arith.constant 3 : index
    %c0_345 = arith.constant 0 : index
    %c0_346 = arith.constant 0 : index
    %357 = vector.load %arg3[%c3_344, %c0_345, %c0_346] : memref<5x1x128xf32, #tpu.memory_space<vmem>>, vector<1x1x128xf32>
    %358 = vector.shape_cast %357 : vector<1x1x128xf32> to vector<1x128xf32>
    %359 = vector.broadcast %358 : vector<1x128xf32> to vector<128x128xf32>
    %360 = arith.addf %356, %359 : vector<128x128xf32>
    %cst_347 = arith.constant 0.000000e+00 : f32
    %361 = vector.broadcast %cst_347 : f32 to vector<128x128xf32>
    %362 = arith.minimumf %360, %361 : vector<128x128xf32>
    %363 = math.exp %362 : vector<128x128xf32>
    %cst_348 = arith.constant 1.000000e+00 : f32
    %364 = vector.broadcast %cst_348 : f32 to vector<128x128xf32>
    %365 = arith.subf %363, %364 : vector<128x128xf32>
    %cst_349 = arith.constant 0.000000e+00 : f32
    %366 = vector.broadcast %cst_349 : f32 to vector<128x128xf32>
    %367 = arith.cmpf ogt, %360, %366 : vector<128x128xf32>
    %368 = arith.select %367, %360, %365 : vector<128x128xi1>, vector<128x128xf32>
    %cst_350 = arith.constant dense<0.000000e+00> : vector<128xf32>
    %369 = vector.multi_reduction <add>, %368, %cst_350 [0] : vector<128x128xf32> to vector<128xf32>
    %370 = vector.shape_cast %369 : vector<128xf32> to vector<1x128xf32>
    %cst_351 = arith.constant 7.812500e-03 : f32
    %371 = vector.broadcast %cst_351 : f32 to vector<1x128xf32>
    %372 = arith.mulf %370, %371 : vector<1x128xf32>
    %373 = vector.broadcast %372 : vector<1x128xf32> to vector<128x128xf32>
    %374 = arith.subf %368, %373 : vector<128x128xf32>
    %375 = arith.mulf %374, %374 : vector<128x128xf32>
    %cst_352 = arith.constant dense<0.000000e+00> : vector<128xf32>
    %376 = vector.multi_reduction <add>, %375, %cst_352 [0] : vector<128x128xf32> to vector<128xf32>
    %377 = vector.shape_cast %376 : vector<128xf32> to vector<1x128xf32>
    %cst_353 = arith.constant 7.812500e-03 : f32
    %378 = vector.broadcast %cst_353 : f32 to vector<1x128xf32>
    %379 = arith.mulf %377, %378 : vector<1x128xf32>
    %cst_354 = arith.constant 9.99999974E-6 : f32
    %380 = vector.broadcast %cst_354 : f32 to vector<1x128xf32>
    %381 = arith.addf %379, %380 : vector<1x128xf32>
    %382 = math.rsqrt %381 : vector<1x128xf32>
    %383 = vector.broadcast %382 : vector<1x128xf32> to vector<128x128xf32>
    %384 = arith.mulf %374, %383 : vector<128x128xf32>
    %c1_355 = arith.constant 1 : index
    %c1_356 = arith.constant 1 : index
    %c0_357 = arith.constant 0 : index
    %385 = vector.load %arg5[%c1_355, %c1_356, %c0_357] : memref<10x18x128xf32, #tpu.memory_space<vmem>>, vector<8x16x128xf32>
    %386 = vector.shape_cast %384 : vector<128x128xf32> to vector<8x16x128xf32>
    %387 = arith.addf %385, %386 : vector<8x16x128xf32>
    %c1_358 = arith.constant 1 : index
    %c1_359 = arith.constant 1 : index
    %c0_360 = arith.constant 0 : index
    %388 = vector.load %arg5[%c1_358, %c1_359, %c0_360] : memref<10x18x128xf32, #tpu.memory_space<vmem>>, vector<8x16x128xf32>
    tpu.vector_store %arg5[%c1_358, %c1_359, %c0_360], %387 {strides = array<i32>} : memref<10x18x128xf32, #tpu.memory_space<vmem>>, vector<8x16x128xf32>,
    %cst_361 = arith.constant 0.000000e+00 : f32
    %389 = vector.broadcast %cst_361 : f32 to vector<128x128xf32>
    %c0_362 = arith.constant 0 : index
    %c0_363 = arith.constant 0 : index
    %c0_364 = arith.constant 0 : index
    %390 = vector.load %arg5[%c0_362, %c0_363, %c0_364] : memref<10x18x128xf32, #tpu.memory_space<vmem>>, vector<8x16x128xf32>
    %391 = vector.shape_cast %390 : vector<8x16x128xf32> to vector<128x128xf32>
    %392 = arith.truncf %391 : vector<128x128xf32> to vector<128x128xbf16>
    %c4_365 = arith.constant 4 : index
    %c0_366 = arith.constant 0 : index
    %c0_367 = arith.constant 0 : index
    %c0_368 = arith.constant 0 : index
    %393 = vector.load %arg2[%c4_365, %c0_366, %c0_367, %c0_368] : memref<5x9x128x128xbf16, #tpu.memory_space<vmem>>, vector<1x1x128x128xbf16>
    %394 = vector.shape_cast %393 : vector<1x1x128x128xbf16> to vector<128x128xbf16>
    %cst_369 = arith.constant dense<0.000000e+00> : vector<128x128xf32>
    %395 = tpu.matmul %392, %394, %cst_369 {dimension_numbers = #tpu.dot_dimension_numbers<[1], [0], [0], [1], [0, 0, 1, 1], [], []>} : vector<128x128xbf16>, vector<128x128xbf16>, vector<128x128xf32> -> vector<128x128xf32>
    %396 = arith.addf %389, %395 : vector<128x128xf32>
    %c0_370 = arith.constant 0 : index
    %c1_371 = arith.constant 1 : index
    %c0_372 = arith.constant 0 : index
    %397 = vector.load %arg5[%c0_370, %c1_371, %c0_372] : memref<10x18x128xf32, #tpu.memory_space<vmem>>, vector<8x16x128xf32>
    %398 = vector.shape_cast %397 : vector<8x16x128xf32> to vector<128x128xf32>
    %399 = arith.truncf %398 : vector<128x128xf32> to vector<128x128xbf16>
    %c4_373 = arith.constant 4 : index
    %c1_374 = arith.constant 1 : index
    %c0_375 = arith.constant 0 : index
    %c0_376 = arith.constant 0 : index
    %400 = vector.load %arg2[%c4_373, %c1_374, %c0_375, %c0_376] : memref<5x9x128x128xbf16, #tpu.memory_space<vmem>>, vector<1x1x128x128xbf16>
    %401 = vector.shape_cast %400 : vector<1x1x128x128xbf16> to vector<128x128xbf16>
    %cst_377 = arith.constant dense<0.000000e+00> : vector<128x128xf32>
    %402 = tpu.matmul %399, %401, %cst_377 {dimension_numbers = #tpu.dot_dimension_numbers<[1], [0], [0], [1], [0, 0, 1, 1], [], []>} : vector<128x128xbf16>, vector<128x128xbf16>, vector<128x128xf32> -> vector<128x128xf32>
    %403 = arith.addf %396, %402 : vector<128x128xf32>
    %c0_378 = arith.constant 0 : index
    %c2_379 = arith.constant 2 : index
    %c0_380 = arith.constant 0 : index
    %404 = vector.load %arg5[%c0_378, %c2_379, %c0_380] : memref<10x18x128xf32, #tpu.memory_space<vmem>>, vector<8x16x128xf32>
    %405 = vector.shape_cast %404 : vector<8x16x128xf32> to vector<128x128xf32>
    %406 = arith.truncf %405 : vector<128x128xf32> to vector<128x128xbf16>
    %c4_381 = arith.constant 4 : index
    %c2_382 = arith.constant 2 : index
    %c0_383 = arith.constant 0 : index
    %c0_384 = arith.constant 0 : index
    %407 = vector.load %arg2[%c4_381, %c2_382, %c0_383, %c0_384] : memref<5x9x128x128xbf16, #tpu.memory_space<vmem>>, vector<1x1x128x128xbf16>
    %408 = vector.shape_cast %407 : vector<1x1x128x128xbf16> to vector<128x128xbf16>
    %cst_385 = arith.constant dense<0.000000e+00> : vector<128x128xf32>
    %409 = tpu.matmul %406, %408, %cst_385 {dimension_numbers = #tpu.dot_dimension_numbers<[1], [0], [0], [1], [0, 0, 1, 1], [], []>} : vector<128x128xbf16>, vector<128x128xbf16>, vector<128x128xf32> -> vector<128x128xf32>
    %410 = arith.addf %403, %409 : vector<128x128xf32>
    %c1_386 = arith.constant 1 : index
    %c0_387 = arith.constant 0 : index
    %c0_388 = arith.constant 0 : index
    %411 = vector.load %arg5[%c1_386, %c0_387, %c0_388] : memref<10x18x128xf32, #tpu.memory_space<vmem>>, vector<8x16x128xf32>
    %412 = vector.shape_cast %411 : vector<8x16x128xf32> to vector<128x128xf32>
    %413 = arith.truncf %412 : vector<128x128xf32> to vector<128x128xbf16>
    %c4_389 = arith.constant 4 : index
    %c3_390 = arith.constant 3 : index
    %c0_391 = arith.constant 0 : index
    %c0_392 = arith.constant 0 : index
    %414 = vector.load %arg2[%c4_389, %c3_390, %c0_391, %c0_392] : memref<5x9x128x128xbf16, #tpu.memory_space<vmem>>, vector<1x1x128x128xbf16>
    %415 = vector.shape_cast %414 : vector<1x1x128x128xbf16> to vector<128x128xbf16>
    %cst_393 = arith.constant dense<0.000000e+00> : vector<128x128xf32>
    %416 = tpu.matmul %413, %415, %cst_393 {dimension_numbers = #tpu.dot_dimension_numbers<[1], [0], [0], [1], [0, 0, 1, 1], [], []>} : vector<128x128xbf16>, vector<128x128xbf16>, vector<128x128xf32> -> vector<128x128xf32>
    %417 = arith.addf %410, %416 : vector<128x128xf32>
    %c1_394 = arith.constant 1 : index
    %c1_395 = arith.constant 1 : index
    %c0_396 = arith.constant 0 : index
    %418 = vector.load %arg5[%c1_394, %c1_395, %c0_396] : memref<10x18x128xf32, #tpu.memory_space<vmem>>, vector<8x16x128xf32>
    %419 = vector.shape_cast %418 : vector<8x16x128xf32> to vector<128x128xf32>
    %420 = arith.truncf %419 : vector<128x128xf32> to vector<128x128xbf16>
    %c4_397 = arith.constant 4 : index
    %c4_398 = arith.constant 4 : index
    %c0_399 = arith.constant 0 : index
    %c0_400 = arith.constant 0 : index
    %421 = vector.load %arg2[%c4_397, %c4_398, %c0_399, %c0_400] : memref<5x9x128x128xbf16, #tpu.memory_space<vmem>>, vector<1x1x128x128xbf16>
    %422 = vector.shape_cast %421 : vector<1x1x128x128xbf16> to vector<128x128xbf16>
    %cst_401 = arith.constant dense<0.000000e+00> : vector<128x128xf32>
    %423 = tpu.matmul %420, %422, %cst_401 {dimension_numbers = #tpu.dot_dimension_numbers<[1], [0], [0], [1], [0, 0, 1, 1], [], []>} : vector<128x128xbf16>, vector<128x128xbf16>, vector<128x128xf32> -> vector<128x128xf32>
    %424 = arith.addf %417, %423 : vector<128x128xf32>
    %c1_402 = arith.constant 1 : index
    %c2_403 = arith.constant 2 : index
    %c0_404 = arith.constant 0 : index
    %425 = vector.load %arg5[%c1_402, %c2_403, %c0_404] : memref<10x18x128xf32, #tpu.memory_space<vmem>>, vector<8x16x128xf32>
    %426 = vector.shape_cast %425 : vector<8x16x128xf32> to vector<128x128xf32>
    %427 = arith.truncf %426 : vector<128x128xf32> to vector<128x128xbf16>
    %c4_405 = arith.constant 4 : index
    %c5_406 = arith.constant 5 : index
    %c0_407 = arith.constant 0 : index
    %c0_408 = arith.constant 0 : index
    %428 = vector.load %arg2[%c4_405, %c5_406, %c0_407, %c0_408] : memref<5x9x128x128xbf16, #tpu.memory_space<vmem>>, vector<1x1x128x128xbf16>
    %429 = vector.shape_cast %428 : vector<1x1x128x128xbf16> to vector<128x128xbf16>
    %cst_409 = arith.constant dense<0.000000e+00> : vector<128x128xf32>
    %430 = tpu.matmul %427, %429, %cst_409 {dimension_numbers = #tpu.dot_dimension_numbers<[1], [0], [0], [1], [0, 0, 1, 1], [], []>} : vector<128x128xbf16>, vector<128x128xbf16>, vector<128x128xf32> -> vector<128x128xf32>
    %431 = arith.addf %424, %430 : vector<128x128xf32>
    %c2_410 = arith.constant 2 : index
    %c0_411 = arith.constant 0 : index
    %c0_412 = arith.constant 0 : index
    %432 = vector.load %arg5[%c2_410, %c0_411, %c0_412] : memref<10x18x128xf32, #tpu.memory_space<vmem>>, vector<8x16x128xf32>
    %433 = vector.shape_cast %432 : vector<8x16x128xf32> to vector<128x128xf32>
    %434 = arith.truncf %433 : vector<128x128xf32> to vector<128x128xbf16>
    %c4_413 = arith.constant 4 : index
    %c6_414 = arith.constant 6 : index
    %c0_415 = arith.constant 0 : index
    %c0_416 = arith.constant 0 : index
    %435 = vector.load %arg2[%c4_413, %c6_414, %c0_415, %c0_416] : memref<5x9x128x128xbf16, #tpu.memory_space<vmem>>, vector<1x1x128x128xbf16>
    %436 = vector.shape_cast %435 : vector<1x1x128x128xbf16> to vector<128x128xbf16>
    %cst_417 = arith.constant dense<0.000000e+00> : vector<128x128xf32>
    %437 = tpu.matmul %434, %436, %cst_417 {dimension_numbers = #tpu.dot_dimension_numbers<[1], [0], [0], [1], [0, 0, 1, 1], [], []>} : vector<128x128xbf16>, vector<128x128xbf16>, vector<128x128xf32> -> vector<128x128xf32>
    %438 = arith.addf %431, %437 : vector<128x128xf32>
    %c2_418 = arith.constant 2 : index
    %c1_419 = arith.constant 1 : index
    %c0_420 = arith.constant 0 : index
    %439 = vector.load %arg5[%c2_418, %c1_419, %c0_420] : memref<10x18x128xf32, #tpu.memory_space<vmem>>, vector<8x16x128xf32>
    %440 = vector.shape_cast %439 : vector<8x16x128xf32> to vector<128x128xf32>
    %441 = arith.truncf %440 : vector<128x128xf32> to vector<128x128xbf16>
    %c4_421 = arith.constant 4 : index
    %c7_422 = arith.constant 7 : index
    %c0_423 = arith.constant 0 : index
    %c0_424 = arith.constant 0 : index
    %442 = vector.load %arg2[%c4_421, %c7_422, %c0_423, %c0_424] : memref<5x9x128x128xbf16, #tpu.memory_space<vmem>>, vector<1x1x128x128xbf16>
    %443 = vector.shape_cast %442 : vector<1x1x128x128xbf16> to vector<128x128xbf16>
    %cst_425 = arith.constant dense<0.000000e+00> : vector<128x128xf32>
    %444 = tpu.matmul %441, %443, %cst_425 {dimension_numbers = #tpu.dot_dimension_numbers<[1], [0], [0], [1], [0, 0, 1, 1], [], []>} : vector<128x128xbf16>, vector<128x128xbf16>, vector<128x128xf32> -> vector<128x128xf32>
    %445 = arith.addf %438, %444 : vector<128x128xf32>
    %c2_426 = arith.constant 2 : index
    %c2_427 = arith.constant 2 : index
    %c0_428 = arith.constant 0 : index
    %446 = vector.load %arg5[%c2_426, %c2_427, %c0_428] : memref<10x18x128xf32, #tpu.memory_space<vmem>>, vector<8x16x128xf32>
    %447 = vector.shape_cast %446 : vector<8x16x128xf32> to vector<128x128xf32>
    %448 = arith.truncf %447 : vector<128x128xf32> to vector<128x128xbf16>
    %c4_429 = arith.constant 4 : index
    %c8_430 = arith.constant 8 : index
    %c0_431 = arith.constant 0 : index
    %c0_432 = arith.constant 0 : index
    %449 = vector.load %arg2[%c4_429, %c8_430, %c0_431, %c0_432] : memref<5x9x128x128xbf16, #tpu.memory_space<vmem>>, vector<1x1x128x128xbf16>
    %450 = vector.shape_cast %449 : vector<1x1x128x128xbf16> to vector<128x128xbf16>
    %cst_433 = arith.constant dense<0.000000e+00> : vector<128x128xf32>
    %451 = tpu.matmul %448, %450, %cst_433 {dimension_numbers = #tpu.dot_dimension_numbers<[1], [0], [0], [1], [0, 0, 1, 1], [], []>} : vector<128x128xbf16>, vector<128x128xbf16>, vector<128x128xf32> -> vector<128x128xf32>
    %452 = arith.addf %445, %451 : vector<128x128xf32>
    %c4_434 = arith.constant 4 : index
    %c0_435 = arith.constant 0 : index
    %c0_436 = arith.constant 0 : index
    %453 = vector.load %arg3[%c4_434, %c0_435, %c0_436] : memref<5x1x128xf32, #tpu.memory_space<vmem>>, vector<1x1x128xf32>
    %454 = vector.shape_cast %453 : vector<1x1x128xf32> to vector<1x128xf32>
    %455 = vector.broadcast %454 : vector<1x128xf32> to vector<128x128xf32>
    %456 = arith.addf %452, %455 : vector<128x128xf32>
    %cst_437 = arith.constant 0.000000e+00 : f32
    %457 = vector.broadcast %cst_437 : f32 to vector<128x128xf32>
    %458 = arith.minimumf %456, %457 : vector<128x128xf32>
    %459 = math.exp %458 : vector<128x128xf32>
    %cst_438 = arith.constant 1.000000e+00 : f32
    %460 = vector.broadcast %cst_438 : f32 to vector<128x128xf32>
    %461 = arith.subf %459, %460 : vector<128x128xf32>
    %cst_439 = arith.constant 0.000000e+00 : f32
    %462 = vector.broadcast %cst_439 : f32 to vector<128x128xf32>
    %463 = arith.cmpf ogt, %456, %462 : vector<128x128xf32>
    %464 = arith.select %463, %456, %461 : vector<128x128xi1>, vector<128x128xf32>
    %cst_440 = arith.constant dense<0.000000e+00> : vector<128xf32>
    %465 = vector.multi_reduction <add>, %464, %cst_440 [0] : vector<128x128xf32> to vector<128xf32>
    %466 = vector.shape_cast %465 : vector<128xf32> to vector<1x128xf32>
    %cst_441 = arith.constant 7.812500e-03 : f32
    %467 = vector.broadcast %cst_441 : f32 to vector<1x128xf32>
    %468 = arith.mulf %466, %467 : vector<1x128xf32>
    %469 = vector.broadcast %468 : vector<1x128xf32> to vector<128x128xf32>
    %470 = arith.subf %464, %469 : vector<128x128xf32>
    %471 = arith.mulf %470, %470 : vector<128x128xf32>
    %cst_442 = arith.constant dense<0.000000e+00> : vector<128xf32>
    %472 = vector.multi_reduction <add>, %471, %cst_442 [0] : vector<128x128xf32> to vector<128xf32>
    %473 = vector.shape_cast %472 : vector<128xf32> to vector<1x128xf32>
    %cst_443 = arith.constant 7.812500e-03 : f32
    %474 = vector.broadcast %cst_443 : f32 to vector<1x128xf32>
    %475 = arith.mulf %473, %474 : vector<1x128xf32>
    %cst_444 = arith.constant 9.99999974E-6 : f32
    %476 = vector.broadcast %cst_444 : f32 to vector<1x128xf32>
    %477 = arith.addf %475, %476 : vector<1x128xf32>
    %478 = math.rsqrt %477 : vector<1x128xf32>
    %479 = vector.broadcast %478 : vector<1x128xf32> to vector<128x128xf32>
    %480 = arith.mulf %470, %479 : vector<128x128xf32>
    %c0_445 = arith.constant 0 : index
    %c0_446 = arith.constant 0 : index
    %c0_447 = arith.constant 0 : index
    %481 = vector.load %arg4[%c0_445, %c0_446, %c0_447] : memref<1x128x128xf32, #tpu.memory_space<vmem>>, vector<1x128x128xf32>
    %482 = vector.shape_cast %481 : vector<1x128x128xf32> to vector<128x128xf32>
    %483 = vector.shape_cast %480 : vector<128x128xf32> to vector<1x128x128xf32>
    tpu.vector_store %arg4[%c0_445, %c0_446, %c0_447], %483 {strides = array<i32>} : memref<1x128x128xf32, #tpu.memory_space<vmem>>, vector<1x128x128xf32>,
    return
  }
  func.func @transform_0(%arg0: i32) -> (i32, i32, i32, i32) {
    %c0_i32 = arith.constant 0 : i32
    %c0_i32_0 = arith.constant 0 : i32
    %c0_i32_1 = arith.constant 0 : i32
    %c0_i32_2 = arith.constant 0 : i32
    return %arg0, %c0_i32, %c0_i32_0, %c0_i32_1 : i32, i32, i32, i32
  }
  func.func @transform_1(%arg0: i32) -> (i32, i32, i32, i32) {
    %c0_i32 = arith.constant 0 : i32
    %c0_i32_0 = arith.constant 0 : i32
    %c0_i32_1 = arith.constant 0 : i32
    %c0_i32_2 = arith.constant 0 : i32
    %c0_i32_3 = arith.constant 0 : i32
    return %c0_i32, %c0_i32_0, %c0_i32_1, %c0_i32_2 : i32, i32, i32, i32
  }
  func.func @transform_2(%arg0: i32) -> (i32, i32, i32) {
    %c0_i32 = arith.constant 0 : i32
    %c0_i32_0 = arith.constant 0 : i32
    %c0_i32_1 = arith.constant 0 : i32
    %c0_i32_2 = arith.constant 0 : i32
    return %c0_i32, %c0_i32_0, %c0_i32_1 : i32, i32, i32
  }
  func.func @transform_3(%arg0: i32) -> (i32, i32, i32) {
    %c0_i32 = arith.constant 0 : i32
    %c0_i32_0 = arith.constant 0 : i32
    %c0_i32_1 = arith.constant 0 : i32
    return %arg0, %c0_i32, %c0_i32_0 : i32, i32, i32
  }
}

</mosaic_0001>

<llo_original>
// kernel: tpu_custom_call.1
$region0: #{tpu_custom_call.1}
  #allocation0 [shape = 'u32[]', space=smem, size = 0x4, offset = 0x4, fixed_abs, tag = 'smem constant byte address 0x4 - core index']
  #allocation1 [shape = 'u32[144,128]{1,0:T(1,128)}', space=vmem, size = 0x12000, scoped, tag = 'internal scratch']
  #allocation2 [shape = 'f32[10,18,128]{2,1,0:T(8,128)}', space=vmem, size = 0x1e000, scoped, tag = 'scratch operand']
  %s0 = inlined_call_operand.vmem [shape: f32[2,8,16,4], index: 0, kind: input, shape index: {}]
  %s1 = inlined_call_operand.hbm [shape: bf16[5,9,128,128], index: 1, kind: input, shape index: {}]
  %s2 = inlined_call_operand.hbm [shape: f32[5,1,128], index: 2, kind: input, shape index: {}]
  %s3 = inlined_call_operand.hbm [shape: f32[2,128,128], index: 3, kind: output, shape index: {}]
  %s4 = sld [smem:[#allocation0]]
  $region53: #{tpu_custom_call.1} parent=0
    _
  %s6 = ssub.s32 1, %s4
  %s7 = scalar_select 0, %s6, %s4
  $region1: #{tpu_custom_call.1} parent=0
    #allocation3 [shape = 'u8[1474560]{0}', space=vmem, size = 0x168000, scoped, tag = 'input window, operand 1, single buffered']
    #allocation4 [shape = 's32[2]{0}', space=sflag, size = 0x8, scoped, tag = 'scoped memory for tpu_custom_call.1']
    #allocation5 [shape = 's32[2]{0}', space=sflag, size = 0x8, scoped, tag = 'scoped memory for tpu_custom_call.1']
    #allocation6 [shape = 'u8[2560]{0}', space=vmem, size = 0xc00, scoped, tag = 'input window, operand 2, single buffered']
    #allocation7 [shape = 's32[1]{0}', space=sflag, size = 0x4, scoped, tag = 'scoped memory for tpu_custom_call.1']
    #allocation8 [shape = 'u8[131072]{0}', space=vmem, size = 0x20000, scoped, tag = 'output window, operand 0']
    %8 = vsyncpa [#allocation4], 0
    %9 = vsyncpa [#allocation7], 0
    %10 = vsyncpa [#allocation5], 0
    %s11 = scalar_lea.sflag [#allocation5], 1
    %12 = vsyncpa %s11, 0
    loop: start=0, step=1, limit=4
    $region2: #{tpu_custom_call.1} parent=1 // loop_pre_header
      _
    $region3: #{tpu_custom_call.1} parent=1 // loop_header
      %s14 = sphi 0, %s18
      %p15 = scmp.ge.s32.totalorder %s14, 4
      %s24 = sphi 0, %s26
      %s27 = sphi 0, %s24
      %s28 = sphi 0, %s27
      %s44 = sphi 0, %s28
      %s48 = sphi 0, %s48
      %s50 = sphi 0, %s48
      %s51 = sphi 0, %s50
      %s65 = sphi 0, %s51
      %s69 = sphi 0, %s69
      %s71 = sphi 0, %s69
      %s72 = sphi 0, %s71
      %s86 = sphi 0, %s72
      %s92 = sphi 0, %s94
      %s95 = sphi 0, %s92
      %s96 = sphi 0, %s95
      %s112 = sphi 0, %s96
    $region4: #{tpu_custom_call.1} parent=1 // loop_header_branch
      %17 = sbr.rel (%p15) target = $region8
    $region5: #{tpu_custom_call.1} parent=1 // loop_body
      %s19 = ssub.s32 %s14, 1
      %s20 = ssub.s32 %s14, 2
      %s21 = sadd.s32 %s14, 1
      %s22 = ssub.s32 %s14, %s21
      %p23 = scmp.eq.s32.totalorder %s22, 0
      %s25 = sadd.s32 %s24, 1
      %s26 = scalar_select %p23, %s24, %s25
      %p29 = pneg %p23
      %p30 = scmp.eq.s32.totalorder %s14, 1
      %p31 = por %p29, %p30
      %p32 = scmp.ne.s32.totalorder %s24, %s27
      %p33 = scmp.eq.s32.totalorder %s14, 0
      %p34 = por %p32, %p33
      %p35 = scmp.ne.s32.totalorder %s24, %s27
      %p36 = scmp.eq.s32.totalorder %s19, 1
      %p37 = por %p35, %p36
      %p38 = scmp.ne.s32.totalorder %s27, %s28
      %p39 = scmp.eq.s32.totalorder %s19, 0
      %p40 = por %p38, %p39
      %p41 = scmp.ne.s32.totalorder %s27, %s28
      %p42 = scmp.eq.s32.totalorder %s20, 1
      %p43 = por %p41, %p42
      %p45 = scmp.ne.s32.totalorder %s28, %s44
      %p46 = scmp.eq.s32.totalorder %s20, 0
      %p47 = por %p45, %p46
      %s49 = sadd.s32 %s48, 1
      %p52 = scmp.eq.s32.totalorder %s14, 1
      %p53 = scmp.ne.s32.totalorder %s48, %s50
      %p54 = scmp.eq.s32.totalorder %s14, 0
      %p55 = por %p53, %p54
      %p56 = scmp.ne.s32.totalorder %s48, %s50
      %p57 = scmp.eq.s32.totalorder %s19, 1
      %p58 = por %p56, %p57
      %p59 = scmp.ne.s32.totalorder %s50, %s51
      %p60 = scmp.eq.s32.totalorder %s19, 0
      %p61 = por %p59, %p60
      %p62 = scmp.ne.s32.totalorder %s50, %s51
      %p63 = scmp.eq.s32.totalorder %s20, 1
      %p64 = por %p62, %p63
      %p66 = scmp.ne.s32.totalorder %s51, %s65
      %p67 = scmp.eq.s32.totalorder %s20, 0
      %p68 = por %p66, %p67
      %s70 = sadd.s32 %s69, 1
      %p73 = scmp.eq.s32.totalorder %s14, 1
      %p74 = scmp.ne.s32.totalorder %s69, %s71
      %p75 = scmp.eq.s32.totalorder %s14, 0
      %p76 = por %p74, %p75
      %p77 = scmp.ne.s32.totalorder %s69, %s71
      %p78 = scmp.eq.s32.totalorder %s19, 1
      %p79 = por %p77, %p78
      %p80 = scmp.ne.s32.totalorder %s71, %s72
      %p81 = scmp.eq.s32.totalorder %s19, 0
      %p82 = por %p80, %p81
      %p83 = scmp.ne.s32.totalorder %s71, %s72
      %p84 = scmp.eq.s32.totalorder %s20, 1
      %p85 = por %p83, %p84
      %p87 = scmp.ne.s32.totalorder %s72, %s86
      %p88 = scmp.eq.s32.totalorder %s20, 0
      %p89 = por %p87, %p88
      %s90 = ssub.s32 %s14, %s21
      %p91 = scmp.eq.s32.totalorder %s90, 0
      %s93 = sadd.s32 %s92, 1
      %s94 = scalar_select %p91, %s92, %s93
      %p97 = pneg %p91
      %p98 = scmp.eq.s32.totalorder %s14, 1
      %p99 = por %p97, %p98
      %p100 = scmp.ne.s32.totalorder %s92, %s95
      %p101 = scmp.eq.s32.totalorder %s14, 0
      %p102 = por %p100, %p101
      %p103 = scmp.ne.s32.totalorder %s92, %s95
      %p104 = scmp.eq.s32.totalorder %s19, 1
      %p105 = por %p103, %p104
      %p106 = scmp.ne.s32.totalorder %s95, %s96
      %p107 = scmp.eq.s32.totalorder %s19, 0
      %p108 = por %p106, %p107
      %p109 = scmp.ne.s32.totalorder %s95, %s96
      %p110 = scmp.eq.s32.totalorder %s20, 1
      %p111 = por %p109, %p110
      %p113 = scmp.ne.s32.totalorder %s96, %s112
      %p114 = scmp.eq.s32.totalorder %s20, 0
      %p115 = por %p113, %p114
      %p116 = scmp.le.s32.totalorder 1, %s14
      %p117 = scmp.lt.s32.totalorder %s14, 3
      %p118 = pnand %p116, %p117
      %p119 = pneg %p118
      // Predicated region
      $region9: #{tpu_custom_call.1} parent=5 // pred_check
        _
      $region10: #{tpu_custom_call.1} parent=5 // pred_check_branch
        %121 = sbr.rel (%p118) target = $region12
      $region11: #{tpu_custom_call.1} parent=5 // pred_region
        %s122 = ssub.s32 %s14, 1
        // Predicated region
        $region13: #{tpu_custom_call.1} parent=11 // pred_check
          %p123 = pneg %p61
        $region14: #{tpu_custom_call.1} parent=11 // pred_check_branch
          %125 = sbr.rel (%p123) target = $region16
        $region15: #{tpu_custom_call.1} parent=11 // pred_region
          %s127 = ssub.s32 46080, 46080
          %128 = vsyncadd [#allocation4], %s127
          %s129 = sshll.u32 [#allocation3], 4
          %s130 = int_to_ptr.vmem [resolvable:$true] %s129
          %135 = dma.hbm_to_vmem [thread:$0]  %s1, 46080, %s130, [#allocation4], 64, 64, 4
        $region16: #{tpu_custom_call.1} parent=11 // pred_fallthru
          _
        // Predicated region
        $region17: #{tpu_custom_call.1} parent=11 // pred_check
          %p136 = pneg %p82
        $region18: #{tpu_custom_call.1} parent=11 // pred_check_branch
          %138 = sbr.rel (%p136) target = $region20
        $region19: #{tpu_custom_call.1} parent=11 // pred_region
          %s140 = ssub.s32 80, 80
          %141 = vsyncadd [#allocation7], %s140
          %s142 = sshll.u32 [#allocation6], 4
          %s143 = int_to_ptr.vmem [resolvable:$true] %s142
          %148 = dma.hbm_to_vmem [thread:$0]  %s2, 80, %s143, [#allocation7], 16, 16, 1
        $region20: #{tpu_custom_call.1} parent=11 // pred_fallthru
          _
      $region12: #{tpu_custom_call.1} parent=5 // pred_fallthru
        _
      %p149 = scmp.lt.s32.totalorder %s14, 2
      // Predicated region
      $region21: #{tpu_custom_call.1} parent=5 // pred_check
        %p150 = pneg %p149
      $region22: #{tpu_custom_call.1} parent=5 // pred_check_branch
        %152 = sbr.rel (%p150) target = $region24
      $region23: #{tpu_custom_call.1} parent=5 // pred_region
        // Predicated region
        $region25: #{tpu_custom_call.1} parent=23 // pred_check
          %p153 = pneg %p34
        $region26: #{tpu_custom_call.1} parent=23 // pred_check_branch
          %155 = sbr.rel (%p153) target = $region28
        $region27: #{tpu_custom_call.1} parent=23 // pred_region
          %p156 = scmp.lt.s32.totalorder %s14, 1
          %s157 = scalar_select %p156, %s14, 1
          %s158 = smul.addr %s157, 16
          %s159 = smul.addr %s158, 8
          %s160 = scalar_lea.vmem %s0, %s159
        $region28: #{tpu_custom_call.1} parent=23 // pred_fallthru
          _
      $region24: #{tpu_custom_call.1} parent=5 // pred_fallthru
        _
      %p161 = scmp.le.s32.totalorder 1, %s14
      %p162 = scmp.lt.s32.totalorder %s14, 3
      %p163 = pnand %p161, %p162
      %p164 = pneg %p163
      // Predicated region
      $region29: #{tpu_custom_call.1} parent=5 // pred_check
        _
      $region30: #{tpu_custom_call.1} parent=5 // pred_check_branch
        %166 = sbr.rel (%p163) target = $region32
      $region31: #{tpu_custom_call.1} parent=5 // pred_region
        %s167 = ssub.s32 %s14, 1
        // Predicated region
        $region33: #{tpu_custom_call.1} parent=31 // pred_check
          %p168 = pneg %p61
        $region34: #{tpu_custom_call.1} parent=31 // pred_check_branch
          %170 = sbr.rel (%p168) target = $region36
        $region35: #{tpu_custom_call.1} parent=31 // pred_region
          %171 = dma.done [#allocation4], 46080
        $region36: #{tpu_custom_call.1} parent=31 // pred_fallthru
          _
        // Predicated region
        $region37: #{tpu_custom_call.1} parent=31 // pred_check
          %p172 = pneg %p82
        $region38: #{tpu_custom_call.1} parent=31 // pred_check_branch
          %174 = sbr.rel (%p172) target = $region40
        $region39: #{tpu_custom_call.1} parent=31 // pred_region
          %175 = dma.done [#allocation7], 80
        $region40: #{tpu_custom_call.1} parent=31 // pred_fallthru
          _
        %p176 = scmp.lt.s32.totalorder %s19, 1
        %s177 = scalar_select %p176, %s19, 1
        %s178 = smul.addr %s177, 16
        %s179 = smul.addr %s178, 8
        %s180 = scalar_lea.vmem %s0, %s179
        %p181 = pneg %p40
        %p182 = pneg %p37
        %p183 = pneg %p61
        %p184 = pneg %p58
        %p185 = pneg %p82
        %p186 = pneg %p79
        %p187 = pneg %p108
        %p188 = pneg %p105
        %s189 = sand.u32 %s95, 1
        %s190 = scalar_lea.sflag [#allocation5], %s189
        %s191 = sand.u32 %s95, 1
        %s192 = smul.addr %s191, 128
        %s193 = scalar_lea.vmem [#allocation8], %s192
        %p194 = scmp.lt.s32.totalorder %s19, 1
        %s195 = scalar_select %p194, %s19, 1
        %s196 = smul.addr %s195, 16
        %s197 = smul.addr %s196, 8
        %s198 = scalar_lea.vmem %s0, %s197
        %200 = vst [vmem:[#allocation2] sm:$0xff] 0.0
        %201 = vst [vmem:[#allocation2 + $0x8] sm:$0xff] 0.0
        %202 = vst [vmem:[#allocation2 + $0x10] sm:$0x3] 0.0
        %203 = vst [vmem:[#allocation2 + $0x18] sm:$0xff] 0.0
        %204 = vst [vmem:[#allocation2 + $0x20] sm:$0xff] 0.0
        %205 = vst [vmem:[#allocation2 + $0x28] sm:$0x3] 0.0
        %206 = vst [vmem:[#allocation2 + $0x30] sm:$0xff] 0.0
        %207 = vst [vmem:[#allocation2 + $0x38] sm:$0xff] 0.0
        %208 = vst [vmem:[#allocation2 + $0x40] sm:$0x3] 0.0
        %209 = vst [vmem:[#allocation2 + $0x48] sm:$0xff] 0.0
        %210 = vst [vmem:[#allocation2 + $0x50] sm:$0xff] 0.0
        %211 = vst [vmem:[#allocation2 + $0x58] sm:$0x3] 0.0
        %212 = vst [vmem:[#allocation2 + $0x60] sm:$0xff] 0.0
        %213 = vst [vmem:[#allocation2 + $0x68] sm:$0xff] 0.0
        %214 = vst [vmem:[#allocation2 + $0x70] sm:$0x3] 0.0
        %215 = vst [vmem:[#allocation2 + $0x78] sm:$0xff] 0.0
        %216 = vst [vmem:[#allocation2 + $0x80] sm:$0xff] 0.0
        %217 = vst [vmem:[#allocation2 + $0x88] sm:$0x3] 0.0
        %218 = vst [vmem:[#allocation2 + $0x90] sm:$0xff] 0.0
        %219 = vst [vmem:[#allocation2 + $0x98] sm:$0xff] 0.0
        %220 = vst [vmem:[#allocation2 + $0xa0] sm:$0x3] 0.0
        %221 = vst [vmem:[#allocation2 + $0xa8] sm:$0xff] 0.0
        %222 = vst [vmem:[#allocation2 + $0xb0] sm:$0xff] 0.0
        %223 = vst [vmem:[#allocation2 + $0xb8] sm:$0x3] 0.0
        %224 = vst [vmem:[#allocation2 + $0xc0] sm:$0xff] 0.0
        %225 = vst [vmem:[#allocation2 + $0xc8] sm:$0xff] 0.0
        %226 = vst [vmem:[#allocation2 + $0xd0] sm:$0x3] 0.0
        %227 = vst [vmem:[#allocation2 + $0xd8] sm:$0xff] 0.0
        %228 = vst [vmem:[#allocation2 + $0xe0] sm:$0xff] 0.0
        %229 = vst [vmem:[#allocation2 + $0xe8] sm:$0x3] 0.0
        %v230 = vld [vmem:[%s198] sm:$0xff]
        %v231 = vld [vmem:[%s198 + $0x8] sm:$0xff]
        %v232 = vld [vmem:[%s198 + $0x10] sm:$0xff]
        %v233 = vld [vmem:[%s198 + $0x18] sm:$0xff]
        %v234 = vld [vmem:[%s198 + $0x20] sm:$0xff]
        %v235 = vld [vmem:[%s198 + $0x28] sm:$0xff]
        %v236 = vld [vmem:[%s198 + $0x30] sm:$0xff]
        %v237 = vld [vmem:[%s198 + $0x38] sm:$0xff]
        %v238 = vld [vmem:[%s198 + $0x40] sm:$0xff]
        %v239 = vld [vmem:[%s198 + $0x48] sm:$0xff]
        %v240 = vld [vmem:[%s198 + $0x50] sm:$0xff]
        %v241 = vld [vmem:[%s198 + $0x58] sm:$0xff]
        %v242 = vld [vmem:[%s198 + $0x60] sm:$0xff]
        %v243 = vld [vmem:[%s198 + $0x68] sm:$0xff]
        %v244 = vld [vmem:[%s198 + $0x70] sm:$0xff]
        %v245 = vld [vmem:[%s198 + $0x78] sm:$0xff]
        %s246 = scalar_lea.vmem [#allocation2], 24
        %vm247 = vcmask 31744
        %248 = vst.msk [vmem:[%s246 + $0x1] sm:$0xff] %vm247, %v230
        %249 = vst.msk [vmem:[%s246 + $0x9] sm:$0xff] %vm247, %v231
        %250 = vst.msk [vmem:[%s246 + $0x19] sm:$0xff] %vm247, %v232
        %251 = vst.msk [vmem:[%s246 + $0x21] sm:$0xff] %vm247, %v233
        %252 = vst.msk [vmem:[%s246 + $0x31] sm:$0xff] %vm247, %v234
        %253 = vst.msk [vmem:[%s246 + $0x39] sm:$0xff] %vm247, %v235
        %254 = vst.msk [vmem:[%s246 + $0x49] sm:$0xff] %vm247, %v236
        %255 = vst.msk [vmem:[%s246 + $0x51] sm:$0xff] %vm247, %v237
        %256 = vst.msk [vmem:[%s246 + $0x61] sm:$0xff] %vm247, %v238
        %257 = vst.msk [vmem:[%s246 + $0x69] sm:$0xff] %vm247, %v239
        %258 = vst.msk [vmem:[%s246 + $0x79] sm:$0xff] %vm247, %v240
        %259 = vst.msk [vmem:[%s246 + $0x81] sm:$0xff] %vm247, %v241
        %260 = vst.msk [vmem:[%s246 + $0x91] sm:$0xff] %vm247, %v242
        %261 = vst.msk [vmem:[%s246 + $0x99] sm:$0xff] %vm247, %v243
        %262 = vst.msk [vmem:[%s246 + $0xa9] sm:$0xff] %vm247, %v244
        %263 = vst.msk [vmem:[%s246 + $0xb1] sm:$0xff] %vm247, %v245
        %v264 = vld [vmem:[#allocation2] sm:$0xff]
        %v265 = vld [vmem:[#allocation2 + $0x8] sm:$0xff]
        %v266 = vld [vmem:[#allocation2 + $0x18] sm:$0xff]
        %v267 = vld [vmem:[#allocation2 + $0x20] sm:$0xff]
        %v268 = vld [vmem:[#allocation2 + $0x30] sm:$0xff]
        %v269 = vld [vmem:[#allocation2 + $0x38] sm:$0xff]
        %v270 = vld [vmem:[#allocation2 + $0x48] sm:$0xff]
        %v271 = vld [vmem:[#allocation2 + $0x50] sm:$0xff]
        %v272 = vld [vmem:[#allocation2 + $0x60] sm:$0xff]
        %v273 = vld [vmem:[#allocation2 + $0x68] sm:$0xff]
        %v274 = vld [vmem:[#allocation2 + $0x78] sm:$0xff]
        %v275 = vld [vmem:[#allocation2 + $0x80] sm:$0xff]
        %v276 = vld [vmem:[#allocation2 + $0x90] sm:$0xff]
        %v277 = vld [vmem:[#allocation2 + $0x98] sm:$0xff]
        %v278 = vld [vmem:[#allocation2 + $0xa8] sm:$0xff]
        %v279 = vld [vmem:[#allocation2 + $0xb0] sm:$0xff]
        %v280 = vpack.c.bf16 %v265, %v264
        %v281 = vpack.c.bf16 %v267, %v266
        %v282 = vpack.c.bf16 %v269, %v268
        %v283 = vpack.c.bf16 %v271, %v270
        %v284 = vpack.c.bf16 %v273, %v272
        %v285 = vpack.c.bf16 %v275, %v274
        %v286 = vpack.c.bf16 %v277, %v276
        %v287 = vpack.c.bf16 %v279, %v278
        %v288 = vld [vmem:[#allocation3] sm:$0xf]
        %v289 = vld [vmem:[#allocation3 + $0x4] sm:$0xf]
        %v290 = vld [vmem:[#allocation3 + $0x8] sm:$0xf]
        %v291 = vld [vmem:[#allocation3 + $0xc] sm:$0xf]
        %v292 = vld [vmem:[#allocation3 + $0x10] sm:$0xf]
        %v293 = vld [vmem:[#allocation3 + $0x14] sm:$0xf]
        %v294 = vld [vmem:[#allocation3 + $0x18] sm:$0xf]
        %v295 = vld [vmem:[#allocation3 + $0x1c] sm:$0xf]
        %v296 = vld [vmem:[#allocation3 + $0x20] sm:$0xf]
        %v297 = vld [vmem:[#allocation3 + $0x24] sm:$0xf]
        %v298 = vld [vmem:[#allocation3 + $0x28] sm:$0xf]
        %v299 = vld [vmem:[#allocation3 + $0x2c] sm:$0xf]
        %v300 = vld [vmem:[#allocation3 + $0x30] sm:$0xf]
        %v301 = vld [vmem:[#allocation3 + $0x34] sm:$0xf]
        %v302 = vld [vmem:[#allocation3 + $0x38] sm:$0xf]
        %v303 = vld [vmem:[#allocation3 + $0x3c] sm:$0xf]
        %v304 = vld [vmem:[#allocation2 + $0x1] sm:$0xff]
        %v305 = vld [vmem:[#allocation2 + $0x9] sm:$0xff]
        %v306 = vld [vmem:[#allocation2 + $0x19] sm:$0xff]
        %v307 = vld [vmem:[#allocation2 + $0x21] sm:$0xff]
        %v308 = vld [vmem:[#allocation2 + $0x31] sm:$0xff]
        %v309 = vld [vmem:[#allocation2 + $0x39] sm:$0xff]
        %v310 = vld [vmem:[#allocation2 + $0x49] sm:$0xff]
        %v311 = vld [vmem:[#allocation2 + $0x51] sm:$0xff]
        %v312 = vld [vmem:[#allocation2 + $0x61] sm:$0xff]
        %v313 = vld [vmem:[#allocation2 + $0x69] sm:$0xff]
        %v314 = vld [vmem:[#allocation2 + $0x79] sm:$0xff]
        %v315 = vld [vmem:[#allocation2 + $0x81] sm:$0xff]
        %v316 = vld [vmem:[#allocation2 + $0x91] sm:$0xff]
        %v317 = vld [vmem:[#allocation2 + $0x99] sm:$0xff]
        %v318 = vld [vmem:[#allocation2 + $0xa9] sm:$0xff]
        %v319 = vld [vmem:[#allocation2 + $0xb1] sm:$0xff]
        %v320 = vpack.c.bf16 %v305, %v304
        %v321 = vpack.c.bf16 %v307, %v306
        %v322 = vpack.c.bf16 %v309, %v308
        %v323 = vpack.c.bf16 %v311, %v310
        %v324 = vpack.c.bf16 %v313, %v312
        %v325 = vpack.c.bf16 %v315, %v314
        %v326 = vpack.c.bf16 %v317, %v316
        %v327 = vpack.c.bf16 %v319, %v318
        %s328 = scalar_lea.vmem [#allocation3], 64
        %v329 = vld [vmem:[%s328] sm:$0xf]
        %v330 = vld [vmem:[%s328 + $0x4] sm:$0xf]
        %v331 = vld [vmem:[%s328 + $0x8] sm:$0xf]
        %v332 = vld [vmem:[%s328 + $0xc] sm:$0xf]
        %v333 = vld [vmem:[%s328 + $0x10] sm:$0xf]
        %v334 = vld [vmem:[%s328 + $0x14] sm:$0xf]
        %v335 = vld [vmem:[%s328 + $0x18] sm:$0xf]
        %v336 = vld [vmem:[%s328 + $0x1c] sm:$0xf]
        %v337 = vld [vmem:[%s328 + $0x20] sm:$0xf]
        %v338 = vld [vmem:[%s328 + $0x24] sm:$0xf]
        %v339 = vld [vmem:[%s328 + $0x28] sm:$0xf]
        %v340 = vld [vmem:[%s328 + $0x2c] sm:$0xf]
        %v341 = vld [vmem:[%s328 + $0x30] sm:$0xf]
        %v342 = vld [vmem:[%s328 + $0x34] sm:$0xf]
        %v343 = vld [vmem:[%s328 + $0x38] sm:$0xf]
        %v344 = vld [vmem:[%s328 + $0x3c] sm:$0xf]
        %v361 = vunpack.c.l.b16 %v329
        %v362 = vunpack.c.l.b16 %v330
        %v363 = vunpack.c.l.b16 %v331
        %v364 = vunpack.c.l.b16 %v332
        %v365 = vunpack.c.l.b16 %v333
        %v366 = vunpack.c.l.b16 %v334
        %v367 = vunpack.c.l.b16 %v335
        %v368 = vunpack.c.l.b16 %v336
        %v369 = vunpack.c.l.b16 %v337
        %v370 = vunpack.c.l.b16 %v338
        %v371 = vunpack.c.l.b16 %v339
        %v372 = vunpack.c.l.b16 %v340
        %v373 = vunpack.c.l.b16 %v341
        %v374 = vunpack.c.l.b16 %v342
        %v375 = vunpack.c.l.b16 %v343
        %v376 = vunpack.c.l.b16 %v344
        %v377 = vpack.c.b16 %v362, %v361
        %v378 = vpack.c.b16 %v364, %v363
        %v379 = vpack.c.b16 %v366, %v365
        %v380 = vpack.c.b16 %v368, %v367
        %v381 = vpack.c.b16 %v370, %v369
        %v382 = vpack.c.b16 %v372, %v371
        %v383 = vpack.c.b16 %v374, %v373
        %v384 = vpack.c.b16 %v376, %v375
        %393 = vmatprep.subr.bf16.mxu0 0
        %394 = vmatpush1.bf16.msra.mxu0 %v377
        %395 = vmatprep.subr.bf16.mxu0 0
        %396 = vmatpush1.bf16.msra.mxu0 %v378
        %397 = vmatprep.subr.bf16.mxu0 0
        %398 = vmatpush1.bf16.msra.mxu0 %v379
        %399 = vmatprep.subr.bf16.mxu0 0
        %400 = vmatpush1.bf16.msra.mxu0 %v380
        %401 = vmatprep.subr.bf16.mxu0 0
        %402 = vmatpush1.bf16.msra.mxu0 %v381
        %403 = vmatprep.subr.bf16.mxu0 0
        %404 = vmatpush1.bf16.msra.mxu0 %v382
        %405 = vmatprep.subr.bf16.mxu0 0
        %406 = vmatpush1.bf16.msra.mxu0 %v383
        %407 = vmatprep.subr.bf16.mxu0 0
        %408 = vmatpush1.bf16.msra.mxu0 %v384
        %409 = vmatprep.subr.bf16.mxu0 0
        %410 = vmatpush1.bf16.msra.mxu0 0
        %411 = vmatprep.subr.bf16.mxu0 0
        %412 = vmatpush1.bf16.msra.mxu0 0
        %413 = vmatprep.subr.bf16.mxu0 0
        %414 = vmatpush1.bf16.msra.mxu0 0
        %415 = vmatprep.subr.bf16.mxu0 0
        %416 = vmatpush1.bf16.msra.mxu0 0
        %417 = vmatprep.subr.bf16.mxu0 0
        %418 = vmatpush1.bf16.msra.mxu0 0
        %419 = vmatprep.subr.bf16.mxu0 0
        %420 = vmatpush1.bf16.msra.mxu0 0
        %421 = vmatprep.subr.bf16.mxu0 0
        %422 = vmatpush1.bf16.msra.mxu0 0
        %423 = vmatprep.subr.bf16.mxu0 0
        %424 = vmatpush1.bf16.msra.mxu0 0
        %425 = vmatprep.mubr.bf16.mxu0 0
        %426 = vmatmul.mubr.bf16.gmra.mrb[0].mxu0 %v320
        %v427 = vpop.f32.mrb[0].mxu0
        %v428 = vadd.f32 0.0, %v427
        %v429 = vpop.f32.mrb[0].mxu0
        %v430 = vpop.f32.mrb[0].mxu0
        %v431 = vadd.f32 0.0, %v430
        %v432 = vpop.f32.mrb[0].mxu0
        %433 = vmatprep.mubr.bf16.mxu0 0
        %434 = vmatmul.mubr.bf16.gmra.mrb[0].mxu0 %v321
        %v435 = vpop.f32.mrb[0].mxu0
        %v436 = vadd.f32 0.0, %v435
        %v437 = vpop.f32.mrb[0].mxu0
        %v438 = vpop.f32.mrb[0].mxu0
        %v439 = vadd.f32 0.0, %v438
        %v440 = vpop.f32.mrb[0].mxu0
        %441 = vmatprep.mubr.bf16.mxu0 0
        %442 = vmatmul.mubr.bf16.gmra.mrb[0].mxu0 %v322
        %v443 = vpop.f32.mrb[0].mxu0
        %v444 = vadd.f32 0.0, %v443
        %v445 = vpop.f32.mrb[0].mxu0
        %v446 = vpop.f32.mrb[0].mxu0
        %v447 = vadd.f32 0.0, %v446
        %v448 = vpop.f32.mrb[0].mxu0
        %449 = vmatprep.mubr.bf16.mxu0 0
        %450 = vmatmul.mubr.bf16.gmra.mrb[0].mxu0 %v323
        %v451 = vpop.f32.mrb[0].mxu0
        %v452 = vadd.f32 0.0, %v451
        %v453 = vpop.f32.mrb[0].mxu0
        %v454 = vpop.f32.mrb[0].mxu0
        %v455 = vadd.f32 0.0, %v454
        %v456 = vpop.f32.mrb[0].mxu0
        %457 = vmatprep.mubr.bf16.mxu0 0
        %458 = vmatmul.mubr.bf16.gmra.mrb[0].mxu0 %v324
        %v459 = vpop.f32.mrb[0].mxu0
        %v460 = vadd.f32 0.0, %v459
        %v461 = vpop.f32.mrb[0].mxu0
        %v462 = vpop.f32.mrb[0].mxu0
        %v463 = vadd.f32 0.0, %v462
        %v464 = vpop.f32.mrb[0].mxu0
        %465 = vmatprep.mubr.bf16.mxu0 0
        %466 = vmatmul.mubr.bf16.gmra.mrb[0].mxu0 %v325
        %v467 = vpop.f32.mrb[0].mxu0
        %v468 = vadd.f32 0.0, %v467
        %v469 = vpop.f32.mrb[0].mxu0
        %v470 = vpop.f32.mrb[0].mxu0
        %v471 = vadd.f32 0.0, %v470
        %v472 = vpop.f32.mrb[0].mxu0
        %473 = vmatprep.mubr.bf16.mxu0 0
        %474 = vmatmul.mubr.bf16.gmra.mrb[0].mxu0 %v326
        %v475 = vpop.f32.mrb[0].mxu0
        %v476 = vadd.f32 0.0, %v475
        %v477 = vpop.f32.mrb[0].mxu0
        %v478 = vpop.f32.mrb[0].mxu0
        %v479 = vadd.f32 0.0, %v478
        %v480 = vpop.f32.mrb[0].mxu0
        %481 = vmatprep.mubr.bf16.mxu0 0
        %482 = vmatmul.mubr.bf16.gmra.mrb[0].mxu0 %v327
        %v483 = vpop.f32.mrb[0].mxu0
        %v484 = vadd.f32 0.0, %v483
        %v485 = vpop.f32.mrb[0].mxu0
        %v486 = vpop.f32.mrb[0].mxu0
        %v487 = vadd.f32 0.0, %v486
        %v488 = vpop.f32.mrb[0].mxu0
        %489 = vdwg.mxu0
        %v506 = vunpack.c.l.b16 %v288
        %v507 = vunpack.c.l.b16 %v289
        %v508 = vunpack.c.l.b16 %v290
        %v509 = vunpack.c.l.b16 %v291
        %v510 = vunpack.c.l.b16 %v292
        %v511 = vunpack.c.l.b16 %v293
        %v512 = vunpack.c.l.b16 %v294
        %v513 = vunpack.c.l.b16 %v295
        %v514 = vunpack.c.l.b16 %v296
        %v515 = vunpack.c.l.b16 %v297
        %v516 = vunpack.c.l.b16 %v298
        %v517 = vunpack.c.l.b16 %v299
        %v518 = vunpack.c.l.b16 %v300
        %v519 = vunpack.c.l.b16 %v301
        %v520 = vunpack.c.l.b16 %v302
        %v521 = vunpack.c.l.b16 %v303
        %v522 = vpack.c.b16 %v507, %v506
        %v523 = vpack.c.b16 %v509, %v508
        %v524 = vpack.c.b16 %v511, %v510
        %v525 = vpack.c.b16 %v513, %v512
        %v526 = vpack.c.b16 %v515, %v514
        %v527 = vpack.c.b16 %v517, %v516
        %v528 = vpack.c.b16 %v519, %v518
        %v529 = vpack.c.b16 %v521, %v520
        %538 = vmatprep.subr.bf16.mxu0 0
        %539 = vmatpush1.bf16.msra.mxu0 %v522
        %540 = vmatprep.subr.bf16.mxu0 0
        %541 = vmatpush1.bf16.msra.mxu0 %v523
        %542 = vmatprep.subr.bf16.mxu0 0
        %543 = vmatpush1.bf16.msra.mxu0 %v524
        %544 = vmatprep.subr.bf16.mxu0 0
        %545 = vmatpush1.bf16.msra.mxu0 %v525
        %546 = vmatprep.subr.bf16.mxu0 0
        %547 = vmatpush1.bf16.msra.mxu0 %v526
        %548 = vmatprep.subr.bf16.mxu0 0
        %549 = vmatpush1.bf16.msra.mxu0 %v527
        %550 = vmatprep.subr.bf16.mxu0 0
        %551 = vmatpush1.bf16.msra.mxu0 %v528
        %552 = vmatprep.subr.bf16.mxu0 0
        %553 = vmatpush1.bf16.msra.mxu0 %v529
        %554 = vmatprep.subr.bf16.mxu0 0
        %555 = vmatpush1.bf16.msra.mxu0 0
        %556 = vmatprep.subr.bf16.mxu0 0
        %557 = vmatpush1.bf16.msra.mxu0 0
        %558 = vmatprep.subr.bf16.mxu0 0
        %559 = vmatpush1.bf16.msra.mxu0 0
        %560 = vmatprep.subr.bf16.mxu0 0
        %561 = vmatpush1.bf16.msra.mxu0 0
        %562 = vmatprep.subr.bf16.mxu0 0
        %563 = vmatpush1.bf16.msra.mxu0 0
        %564 = vmatprep.subr.bf16.mxu0 0
        %565 = vmatpush1.bf16.msra.mxu0 0
        %566 = vmatprep.subr.bf16.mxu0 0
        %567 = vmatpush1.bf16.msra.mxu0 0
        %568 = vmatprep.subr.bf16.mxu0 0
        %569 = vmatpush1.bf16.msra.mxu0 0
        %570 = vmatprep.mubr.bf16.mxu0 0
        %571 = vmatmul.mubr.bf16.gmra.mrb[0].mxu0 %v280
        %v572 = vpop.f32.mrb[0].mxu0
        %v573 = vadd.f32 %v428, %v572
        %v574 = vpop.f32.mrb[0].mxu0
        %v575 = vpop.f32.mrb[0].mxu0
        %v576 = vadd.f32 %v431, %v575
        %v577 = vpop.f32.mrb[0].mxu0
        %578 = vmatprep.mubr.bf16.mxu0 0
        %579 = vmatmul.mubr.bf16.gmra.mrb[0].mxu0 %v281
        %v580 = vpop.f32.mrb[0].mxu0
        %v581 = vadd.f32 %v436, %v580
        %v582 = vpop.f32.mrb[0].mxu0
        %v583 = vpop.f32.mrb[0].mxu0
        %v584 = vadd.f32 %v439, %v583
        %v585 = vpop.f32.mrb[0].mxu0
        %586 = vmatprep.mubr.bf16.mxu0 0
        %587 = vmatmul.mubr.bf16.gmra.mrb[0].mxu0 %v282
        %v588 = vpop.f32.mrb[0].mxu0
        %v589 = vadd.f32 %v444, %v588
        %v590 = vpop.f32.mrb[0].mxu0
        %v591 = vpop.f32.mrb[0].mxu0
        %v592 = vadd.f32 %v447, %v591
        %v593 = vpop.f32.mrb[0].mxu0
        %594 = vmatprep.mubr.bf16.mxu0 0
        %595 = vmatmul.mubr.bf16.gmra.mrb[0].mxu0 %v283
        %v596 = vpop.f32.mrb[0].mxu0
        %v597 = vadd.f32 %v452, %v596
        %v598 = vpop.f32.mrb[0].mxu0
        %v599 = vpop.f32.mrb[0].mxu0
        %v600 = vadd.f32 %v455, %v599
        %v601 = vpop.f32.mrb[0].mxu0
        %602 = vmatprep.mubr.bf16.mxu0 0
        %603 = vmatmul.mubr.bf16.gmra.mrb[0].mxu0 %v284
        %v604 = vpop.f32.mrb[0].mxu0
        %v605 = vadd.f32 %v460, %v604
        %v606 = vpop.f32.mrb[0].mxu0
        %v607 = vpop.f32.mrb[0].mxu0
        %v608 = vadd.f32 %v463, %v607
        %v609 = vpop.f32.mrb[0].mxu0
        %610 = vmatprep.mubr.bf16.mxu0 0
        %611 = vmatmul.mubr.bf16.gmra.mrb[0].mxu0 %v285
        %v612 = vpop.f32.mrb[0].mxu0
        %v613 = vadd.f32 %v468, %v612
        %v614 = vpop.f32.mrb[0].mxu0
        %v615 = vpop.f32.mrb[0].mxu0
        %v616 = vadd.f32 %v471, %v615
        %v617 = vpop.f32.mrb[0].mxu0
        %618 = vmatprep.mubr.bf16.mxu0 0
        %619 = vmatmul.mubr.bf16.gmra.mrb[0].mxu0 %v286
        %v620 = vpop.f32.mrb[0].mxu0
        %v621 = vadd.f32 %v476, %v620
        %v622 = vpop.f32.mrb[0].mxu0
        %v623 = vpop.f32.mrb[0].mxu0
        %v624 = vadd.f32 %v479, %v623
        %v625 = vpop.f32.mrb[0].mxu0
        %626 = vmatprep.mubr.bf16.mxu0 0
        %627 = vmatmul.mubr.bf16.gmra.mrb[0].mxu0 %v287
        %v628 = vpop.f32.mrb[0].mxu0
        %v629 = vadd.f32 %v484, %v628
        %v630 = vpop.f32.mrb[0].mxu0
        %v631 = vpop.f32.mrb[0].mxu0
        %v632 = vadd.f32 %v487, %v631
        %v633 = vpop.f32.mrb[0].mxu0
        %634 = vdwg.mxu0
        %v635 = vld [vmem:[#allocation2 + $0x2] sm:$0xff]
        %v636 = vld [vmem:[#allocation2 + $0xa] sm:$0xff]
        %v637 = vld [vmem:[#allocation2 + $0x1a] sm:$0xff]
        %v638 = vld [vmem:[#allocation2 + $0x22] sm:$0xff]
        %v639 = vld [vmem:[#allocation2 + $0x32] sm:$0xff]
        %v640 = vld [vmem:[#allocation2 + $0x3a] sm:$0xff]
        %v641 = vld [vmem:[#allocation2 + $0x4a] sm:$0xff]
        %v642 = vld [vmem:[#allocation2 + $0x52] sm:$0xff]
        %v643 = vld [vmem:[#allocation2 + $0x62] sm:$0xff]
        %v644 = vld [vmem:[#allocation2 + $0x6a] sm:$0xff]
        %v645 = vld [vmem:[#allocation2 + $0x7a] sm:$0xff]
        %v646 = vld [vmem:[#allocation2 + $0x82] sm:$0xff]
        %v647 = vld [vmem:[#allocation2 + $0x92] sm:$0xff]
        %v648 = vld [vmem:[#allocation2 + $0x9a] sm:$0xff]
        %v649 = vld [vmem:[#allocation2 + $0xaa] sm:$0xff]
        %v650 = vld [vmem:[#allocation2 + $0xb2] sm:$0xff]
        %v651 = vpack.c.bf16 %v636, %v635
        %v652 = vpack.c.bf16 %v638, %v637
        %v653 = vpack.c.bf16 %v640, %v639
        %v654 = vpack.c.bf16 %v642, %v641
        %v655 = vpack.c.bf16 %v644, %v643
        %v656 = vpack.c.bf16 %v646, %v645
        %v657 = vpack.c.bf16 %v648, %v647
        %v658 = vpack.c.bf16 %v650, %v649
        %s659 = scalar_lea.vmem [#allocation3], 128
        %v660 = vld [vmem:[%s659] sm:$0xf]
        %v661 = vld [vmem:[%s659 + $0x4] sm:$0xf]
        %v662 = vld [vmem:[%s659 + $0x8] sm:$0xf]
        %v663 = vld [vmem:[%s659 + $0xc] sm:$0xf]
        %v664 = vld [vmem:[%s659 + $0x10] sm:$0xf]
        %v665 = vld [vmem:[%s659 + $0x14] sm:$0xf]
        %v666 = vld [vmem:[%s659 + $0x18] sm:$0xf]
        %v667 = vld [vmem:[%s659 + $0x1c] sm:$0xf]
        %v668 = vld [vmem:[%s659 + $0x20] sm:$0xf]
        %v669 = vld [vmem:[%s659 + $0x24] sm:$0xf]
        %v670 = vld [vmem:[%s659 + $0x28] sm:$0xf]
        %v671 = vld [vmem:[%s659 + $0x2c] sm:$0xf]
        %v672 = vld [vmem:[%s659 + $0x30] sm:$0xf]
        %v673 = vld [vmem:[%s659 + $0x34] sm:$0xf]
        %v674 = vld [vmem:[%s659 + $0x38] sm:$0xf]
        %v675 = vld [vmem:[%s659 + $0x3c] sm:$0xf]
        %v692 = vunpack.c.l.b16 %v660
        %v693 = vunpack.c.l.b16 %v661
        %v694 = vunpack.c.l.b16 %v662
        %v695 = vunpack.c.l.b16 %v663
        %v696 = vunpack.c.l.b16 %v664
        %v697 = vunpack.c.l.b16 %v665
        %v698 = vunpack.c.l.b16 %v666
        %v699 = vunpack.c.l.b16 %v667
        %v700 = vunpack.c.l.b16 %v668
        %v701 = vunpack.c.l.b16 %v669
        %v702 = vunpack.c.l.b16 %v670
        %v703 = vunpack.c.l.b16 %v671
        %v704 = vunpack.c.l.b16 %v672
        %v705 = vunpack.c.l.b16 %v673
        %v706 = vunpack.c.l.b16 %v674
        %v707 = vunpack.c.l.b16 %v675
        %v708 = vpack.c.b16 %v693, %v692
        %v709 = vpack.c.b16 %v695, %v694
        %v710 = vpack.c.b16 %v697, %v696
        %v711 = vpack.c.b16 %v699, %v698
        %v712 = vpack.c.b16 %v701, %v700
        %v713 = vpack.c.b16 %v703, %v702
        %v714 = vpack.c.b16 %v705, %v704
        %v715 = vpack.c.b16 %v707, %v706
        %724 = vmatprep.subr.bf16.mxu0 0
        %725 = vmatpush1.bf16.msra.mxu0 %v708
        %726 = vmatprep.subr.bf16.mxu0 0
        %727 = vmatpush1.bf16.msra.mxu0 %v709
        %728 = vmatprep.subr.bf16.mxu0 0
        %729 = vmatpush1.bf16.msra.mxu0 %v710
        %730 = vmatprep.subr.bf16.mxu0 0
        %731 = vmatpush1.bf16.msra.mxu0 %v711
        %732 = vmatprep.subr.bf16.mxu0 0
        %733 = vmatpush1.bf16.msra.mxu0 %v712
        %734 = vmatprep.subr.bf16.mxu0 0
        %735 = vmatpush1.bf16.msra.mxu0 %v713
        %736 = vmatprep.subr.bf16.mxu0 0
        %737 = vmatpush1.bf16.msra.mxu0 %v714
        %738 = vmatprep.subr.bf16.mxu0 0
        %739 = vmatpush1.bf16.msra.mxu0 %v715
        %740 = vmatprep.subr.bf16.mxu0 0
        %741 = vmatpush1.bf16.msra.mxu0 0
        %742 = vmatprep.subr.bf16.mxu0 0
        %743 = vmatpush1.bf16.msra.mxu0 0
        %744 = vmatprep.subr.bf16.mxu0 0
        %745 = vmatpush1.bf16.msra.mxu0 0
        %746 = vmatprep.subr.bf16.mxu0 0
        %747 = vmatpush1.bf16.msra.mxu0 0
        %748 = vmatprep.subr.bf16.mxu0 0
        %749 = vmatpush1.bf16.msra.mxu0 0
        %750 = vmatprep.subr.bf16.mxu0 0
        %751 = vmatpush1.bf16.msra.mxu0 0
        %752 = vmatprep.subr.bf16.mxu0 0
        %753 = vmatpush1.bf16.msra.mxu0 0
        %754 = vmatprep.subr.bf16.mxu0 0
        %755 = vmatpush1.bf16.msra.mxu0 0
        %756 = vmatprep.mubr.bf16.mxu0 0
        %757 = vmatmul.mubr.bf16.gmra.mrb[0].mxu0 %v651
        %v758 = vpop.f32.mrb[0].mxu0
        %v759 = vadd.f32 0.0, %v758
        %v760 = vpop.f32.mrb[0].mxu0
        %v761 = vpop.f32.mrb[0].mxu0
        %v762 = vadd.f32 0.0, %v761
        %v763 = vpop.f32.mrb[0].mxu0
        %764 = vmatprep.mubr.bf16.mxu0 0
        %765 = vmatmul.mubr.bf16.gmra.mrb[0].mxu0 %v652
        %v766 = vpop.f32.mrb[0].mxu0
        %v767 = vadd.f32 0.0, %v766
        %v768 = vpop.f32.mrb[0].mxu0
        %v769 = vpop.f32.mrb[0].mxu0
        %v770 = vadd.f32 0.0, %v769
        %v771 = vpop.f32.mrb[0].mxu0
        %772 = vmatprep.mubr.bf16.mxu0 0
        %773 = vmatmul.mubr.bf16.gmra.mrb[0].mxu0 %v653
        %v774 = vpop.f32.mrb[0].mxu0
        %v775 = vadd.f32 0.0, %v774
        %v776 = vpop.f32.mrb[0].mxu0
        %v777 = vpop.f32.mrb[0].mxu0
        %v778 = vadd.f32 0.0, %v777
        %v779 = vpop.f32.mrb[0].mxu0
        %780 = vmatprep.mubr.bf16.mxu0 0
        %781 = vmatmul.mubr.bf16.gmra.mrb[0].mxu0 %v654
        %v782 = vpop.f32.mrb[0].mxu0
        %v783 = vadd.f32 0.0, %v782
        %v784 = vpop.f32.mrb[0].mxu0
        %v785 = vpop.f32.mrb[0].mxu0
        %v786 = vadd.f32 0.0, %v785
        %v787 = vpop.f32.mrb[0].mxu0
        %788 = vmatprep.mubr.bf16.mxu0 0
        %789 = vmatmul.mubr.bf16.gmra.mrb[0].mxu0 %v655
        %v790 = vpop.f32.mrb[0].mxu0
        %v791 = vadd.f32 0.0, %v790
        %v792 = vpop.f32.mrb[0].mxu0
        %v793 = vpop.f32.mrb[0].mxu0
        %v794 = vadd.f32 0.0, %v793
        %v795 = vpop.f32.mrb[0].mxu0
        %796 = vmatprep.mubr.bf16.mxu0 0
        %797 = vmatmul.mubr.bf16.gmra.mrb[0].mxu0 %v656
        %v798 = vpop.f32.mrb[0].mxu0
        %v799 = vadd.f32 0.0, %v798
        %v800 = vpop.f32.mrb[0].mxu0
        %v801 = vpop.f32.mrb[0].mxu0
        %v802 = vadd.f32 0.0, %v801
        %v803 = vpop.f32.mrb[0].mxu0
        %804 = vmatprep.mubr.bf16.mxu0 0
        %805 = vmatmul.mubr.bf16.gmra.mrb[0].mxu0 %v657
        %v806 = vpop.f32.mrb[0].mxu0
        %v807 = vadd.f32 0.0, %v806
        %v808 = vpop.f32.mrb[0].mxu0
        %v809 = vpop.f32.mrb[0].mxu0
        %v810 = vadd.f32 0.0, %v809
        %v811 = vpop.f32.mrb[0].mxu0
        %812 = vmatprep.mubr.bf16.mxu0 0
        %813 = vmatmul.mubr.bf16.gmra.mrb[0].mxu0 %v658
        %v814 = vpop.f32.mrb[0].mxu0
        %v815 = vadd.f32 0.0, %v814
        %v816 = vpop.f32.mrb[0].mxu0
        %v817 = vpop.f32.mrb[0].mxu0
        %v818 = vadd.f32 0.0, %v817
        %v819 = vpop.f32.mrb[0].mxu0
        %820 = vdwg.mxu0
        %v821 = vadd.f32 %v573, %v759
        %v822 = vadd.f32 %v576, %v762
        %v823 = vadd.f32 %v581, %v767
        %v824 = vadd.f32 %v584, %v770
        %v825 = vadd.f32 %v589, %v775
        %v826 = vadd.f32 %v592, %v778
        %v827 = vadd.f32 %v597, %v783
        %v828 = vadd.f32 %v600, %v786
        %v829 = vadd.f32 %v605, %v791
        %v830 = vadd.f32 %v608, %v794
        %v831 = vadd.f32 %v613, %v799
        %v832 = vadd.f32 %v616, %v802
        %v833 = vadd.f32 %v621, %v807
        %v834 = vadd.f32 %v624, %v810
        %v835 = vadd.f32 %v629, %v815
        %v836 = vadd.f32 %v632, %v818
        %v837 = vld [vmem:[%s246] sm:$0xff]
        %v838 = vld [vmem:[%s246 + $0x8] sm:$0xff]
        %v839 = vld [vmem:[%s246 + $0x18] sm:$0xff]
        %v840 = vld [vmem:[%s246 + $0x20] sm:$0xff]
        %v841 = vld [vmem:[%s246 + $0x30] sm:$0xff]
        %v842 = vld [vmem:[%s246 + $0x38] sm:$0xff]
        %v843 = vld [vmem:[%s246 + $0x48] sm:$0xff]
        %v844 = vld [vmem:[%s246 + $0x50] sm:$0xff]
        %v845 = vld [vmem:[%s246 + $0x60] sm:$0xff]
        %v846 = vld [vmem:[%s246 + $0x68] sm:$0xff]
        %v847 = vld [vmem:[%s246 + $0x78] sm:$0xff]
        %v848 = vld [vmem:[%s246 + $0x80] sm:$0xff]
        %v849 = vld [vmem:[%s246 + $0x90] sm:$0xff]
        %v850 = vld [vmem:[%s246 + $0x98] sm:$0xff]
        %v851 = vld [vmem:[%s246 + $0xa8] sm:$0xff]
        %v852 = vld [vmem:[%s246 + $0xb0] sm:$0xff]
        %v853 = vpack.c.bf16 %v838, %v837
        %v854 = vpack.c.bf16 %v840, %v839
        %v855 = vpack.c.bf16 %v842, %v841
        %v856 = vpack.c.bf16 %v844, %v843
        %v857 = vpack.c.bf16 %v846, %v845
        %v858 = vpack.c.bf16 %v848, %v847
        %v859 = vpack.c.bf16 %v850, %v849
        %v860 = vpack.c.bf16 %v852, %v851
        %s861 = scalar_lea.vmem [#allocation3], 192
        %v862 = vld [vmem:[%s861] sm:$0xf]
        %v863 = vld [vmem:[%s861 + $0x4] sm:$0xf]
        %v864 = vld [vmem:[%s861 + $0x8] sm:$0xf]
        %v865 = vld [vmem:[%s861 + $0xc] sm:$0xf]
        %v866 = vld [vmem:[%s861 + $0x10] sm:$0xf]
        %v867 = vld [vmem:[%s861 + $0x14] sm:$0xf]
        %v868 = vld [vmem:[%s861 + $0x18] sm:$0xf]
        %v869 = vld [vmem:[%s861 + $0x1c] sm:$0xf]
        %v870 = vld [vmem:[%s861 + $0x20] sm:$0xf]
        %v871 = vld [vmem:[%s861 + $0x24] sm:$0xf]
        %v872 = vld [vmem:[%s861 + $0x28] sm:$0xf]
        %v873 = vld [vmem:[%s861 + $0x2c] sm:$0xf]
        %v874 = vld [vmem:[%s861 + $0x30] sm:$0xf]
        %v875 = vld [vmem:[%s861 + $0x34] sm:$0xf]
        %v876 = vld [vmem:[%s861 + $0x38] sm:$0xf]
        %v877 = vld [vmem:[%s861 + $0x3c] sm:$0xf]
        %v894 = vunpack.c.l.b16 %v862
        %v895 = vunpack.c.l.b16 %v863
        %v896 = vunpack.c.l.b16 %v864
        %v897 = vunpack.c.l.b16 %v865
        %v898 = vunpack.c.l.b16 %v866
        %v899 = vunpack.c.l.b16 %v867
        %v900 = vunpack.c.l.b16 %v868
        %v901 = vunpack.c.l.b16 %v869
        %v902 = vunpack.c.l.b16 %v870
        %v903 = vunpack.c.l.b16 %v871
        %v904 = vunpack.c.l.b16 %v872
        %v905 = vunpack.c.l.b16 %v873
        %v906 = vunpack.c.l.b16 %v874
        %v907 = vunpack.c.l.b16 %v875
        %v908 = vunpack.c.l.b16 %v876
        %v909 = vunpack.c.l.b16 %v877
        %v910 = vpack.c.b16 %v895, %v894
        %v911 = vpack.c.b16 %v897, %v896
        %v912 = vpack.c.b16 %v899, %v898
        %v913 = vpack.c.b16 %v901, %v900
        %v914 = vpack.c.b16 %v903, %v902
        %v915 = vpack.c.b16 %v905, %v904
        %v916 = vpack.c.b16 %v907, %v906
        %v917 = vpack.c.b16 %v909, %v908
        %926 = vmatprep.subr.bf16.mxu0 0
        %927 = vmatpush1.bf16.msra.mxu0 %v910
        %928 = vmatprep.subr.bf16.mxu0 0
        %929 = vmatpush1.bf16.msra.mxu0 %v911
        %930 = vmatprep.subr.bf16.mxu0 0
        %931 = vmatpush1.bf16.msra.mxu0 %v912
        %932 = vmatprep.subr.bf16.mxu0 0
        %933 = vmatpush1.bf16.msra.mxu0 %v913
        %934 = vmatprep.subr.bf16.mxu0 0
        %935 = vmatpush1.bf16.msra.mxu0 %v914
        %936 = vmatprep.subr.bf16.mxu0 0
        %937 = vmatpush1.bf16.msra.mxu0 %v915
        %938 = vmatprep.subr.bf16.mxu0 0
        %939 = vmatpush1.bf16.msra.mxu0 %v916
        %940 = vmatprep.subr.bf16.mxu0 0
        %941 = vmatpush1.bf16.msra.mxu0 %v917
        %942 = vmatprep.subr.bf16.mxu0 0
        %943 = vmatpush1.bf16.msra.mxu0 0
        %944 = vmatprep.subr.bf16.mxu0 0
        %945 = vmatpush1.bf16.msra.mxu0 0
        %946 = vmatprep.subr.bf16.mxu0 0
        %947 = vmatpush1.bf16.msra.mxu0 0
        %948 = vmatprep.subr.bf16.mxu0 0
        %949 = vmatpush1.bf16.msra.mxu0 0
        %950 = vmatprep.subr.bf16.mxu0 0
        %951 = vmatpush1.bf16.msra.mxu0 0
        %952 = vmatprep.subr.bf16.mxu0 0
        %953 = vmatpush1.bf16.msra.mxu0 0
        %954 = vmatprep.subr.bf16.mxu0 0
        %955 = vmatpush1.bf16.msra.mxu0 0
        %956 = vmatprep.subr.bf16.mxu0 0
        %957 = vmatpush1.bf16.msra.mxu0 0
        %958 = vmatprep.mubr.bf16.mxu0 0
        %959 = vmatmul.mubr.bf16.gmra.mrb[0].mxu0 %v853
        %v960 = vpop.f32.mrb[0].mxu0
        %v961 = vadd.f32 0.0, %v960
        %v962 = vpop.f32.mrb[0].mxu0
        %v963 = vpop.f32.mrb[0].mxu0
        %v964 = vadd.f32 0.0, %v963
        %v965 = vpop.f32.mrb[0].mxu0
        %966 = vmatprep.mubr.bf16.mxu0 0
        %967 = vmatmul.mubr.bf16.gmra.mrb[0].mxu0 %v854
        %v968 = vpop.f32.mrb[0].mxu0
        %v969 = vadd.f32 0.0, %v968
        %v970 = vpop.f32.mrb[0].mxu0
        %v971 = vpop.f32.mrb[0].mxu0
        %v972 = vadd.f32 0.0, %v971
        %v973 = vpop.f32.mrb[0].mxu0
        %974 = vmatprep.mubr.bf16.mxu0 0
        %975 = vmatmul.mubr.bf16.gmra.mrb[0].mxu0 %v855
        %v976 = vpop.f32.mrb[0].mxu0
        %v977 = vadd.f32 0.0, %v976
        %v978 = vpop.f32.mrb[0].mxu0
        %v979 = vpop.f32.mrb[0].mxu0
        %v980 = vadd.f32 0.0, %v979
        %v981 = vpop.f32.mrb[0].mxu0
        %982 = vmatprep.mubr.bf16.mxu0 0
        %983 = vmatmul.mubr.bf16.gmra.mrb[0].mxu0 %v856
        %v984 = vpop.f32.mrb[0].mxu0
        %v985 = vadd.f32 0.0, %v984
        %v986 = vpop.f32.mrb[0].mxu0
        %v987 = vpop.f32.mrb[0].mxu0
        %v988 = vadd.f32 0.0, %v987
        %v989 = vpop.f32.mrb[0].mxu0
        %990 = vmatprep.mubr.bf16.mxu0 0
        %991 = vmatmul.mubr.bf16.gmra.mrb[0].mxu0 %v857
        %v992 = vpop.f32.mrb[0].mxu0
        %v993 = vadd.f32 0.0, %v992
        %v994 = vpop.f32.mrb[0].mxu0
        %v995 = vpop.f32.mrb[0].mxu0
        %v996 = vadd.f32 0.0, %v995
        %v997 = vpop.f32.mrb[0].mxu0
        %998 = vmatprep.mubr.bf16.mxu0 0
        %999 = vmatmul.mubr.bf16.gmra.mrb[0].mxu0 %v858
        %v1000 = vpop.f32.mrb[0].mxu0
        %v1001 = vadd.f32 0.0, %v1000
        %v1002 = vpop.f32.mrb[0].mxu0
        %v1003 = vpop.f32.mrb[0].mxu0
        %v1004 = vadd.f32 0.0, %v1003
        %v1005 = vpop.f32.mrb[0].mxu0
        %1006 = vmatprep.mubr.bf16.mxu0 0
        %1007 = vmatmul.mubr.bf16.gmra.mrb[0].mxu0 %v859
        %v1008 = vpop.f32.mrb[0].mxu0
        %v1009 = vadd.f32 0.0, %v1008
        %v1010 = vpop.f32.mrb[0].mxu0
        %v1011 = vpop.f32.mrb[0].mxu0
        %v1012 = vadd.f32 0.0, %v1011
        %v1013 = vpop.f32.mrb[0].mxu0
        %1014 = vmatprep.mubr.bf16.mxu0 0
        %1015 = vmatmul.mubr.bf16.gmra.mrb[0].mxu0 %v860
        %v1016 = vpop.f32.mrb[0].mxu0
        %v1017 = vadd.f32 0.0, %v1016
        %v1018 = vpop.f32.mrb[0].mxu0
        %v1019 = vpop.f32.mrb[0].mxu0
        %v1020 = vadd.f32 0.0, %v1019
        %v1021 = vpop.f32.mrb[0].mxu0
        %1022 = vdwg.mxu0
        %v1023 = vadd.f32 %v821, %v961
        %v1024 = vadd.f32 %v822, %v964
        %v1025 = vadd.f32 %v823, %v969
        %v1026 = vadd.f32 %v824, %v972
        %v1027 = vadd.f32 %v825, %v977
        %v1028 = vadd.f32 %v826, %v980
        %v1029 = vadd.f32 %v827, %v985
        %v1030 = vadd.f32 %v828, %v988
        %v1031 = vadd.f32 %v829, %v993
        %v1032 = vadd.f32 %v830, %v996
        %v1033 = vadd.f32 %v831, %v1001
        %v1034 = vadd.f32 %v832, %v1004
        %v1035 = vadd.f32 %v833, %v1009
        %v1036 = vadd.f32 %v834, %v1012
        %v1037 = vadd.f32 %v835, %v1017
        %v1038 = vadd.f32 %v836, %v1020
        %v1039 = vld [vmem:[%s246 + $0x1] sm:$0xff]
        %v1040 = vld [vmem:[%s246 + $0x9] sm:$0xff]
        %v1041 = vld [vmem:[%s246 + $0x19] sm:$0xff]
        %v1042 = vld [vmem:[%s246 + $0x21] sm:$0xff]
        %v1043 = vld [vmem:[%s246 + $0x31] sm:$0xff]
        %v1044 = vld [vmem:[%s246 + $0x39] sm:$0xff]
        %v1045 = vld [vmem:[%s246 + $0x49] sm:$0xff]
        %v1046 = vld [vmem:[%s246 + $0x51] sm:$0xff]
        %v1047 = vld [vmem:[%s246 + $0x61] sm:$0xff]
        %v1048 = vld [vmem:[%s246 + $0x69] sm:$0xff]
        %v1049 = vld [vmem:[%s246 + $0x79] sm:$0xff]
        %v1050 = vld [vmem:[%s246 + $0x81] sm:$0xff]
        %v1051 = vld [vmem:[%s246 + $0x91] sm:$0xff]
        %v1052 = vld [vmem:[%s246 + $0x99] sm:$0xff]
        %v1053 = vld [vmem:[%s246 + $0xa9] sm:$0xff]
        %v1054 = vld [vmem:[%s246 + $0xb1] sm:$0xff]
        %v1055 = vpack.c.bf16 %v1040, %v1039
        %v1056 = vpack.c.bf16 %v1042, %v1041
        %v1057 = vpack.c.bf16 %v1044, %v1043
        %v1058 = vpack.c.bf16 %v1046, %v1045
        %v1059 = vpack.c.bf16 %v1048, %v1047
        %v1060 = vpack.c.bf16 %v1050, %v1049
        %v1061 = vpack.c.bf16 %v1052, %v1051
        %v1062 = vpack.c.bf16 %v1054, %v1053
        %s1063 = scalar_lea.vmem [#allocation3], 256
        %v1064 = vld [vmem:[%s1063] sm:$0xf]
        %v1065 = vld [vmem:[%s1063 + $0x4] sm:$0xf]
        %v1066 = vld [vmem:[%s1063 + $0x8] sm:$0xf]
        %v1067 = vld [vmem:[%s1063 + $0xc] sm:$0xf]
        %v1068 = vld [vmem:[%s1063 + $0x10] sm:$0xf]
        %v1069 = vld [vmem:[%s1063 + $0x14] sm:$0xf]
        %v1070 = vld [vmem:[%s1063 + $0x18] sm:$0xf]
        %v1071 = vld [vmem:[%s1063 + $0x1c] sm:$0xf]
        %v1072 = vld [vmem:[%s1063 + $0x20] sm:$0xf]
        %v1073 = vld [vmem:[%s1063 + $0x24] sm:$0xf]
        %v1074 = vld [vmem:[%s1063 + $0x28] sm:$0xf]
        %v1075 = vld [vmem:[%s1063 + $0x2c] sm:$0xf]
        %v1076 = vld [vmem:[%s1063 + $0x30] sm:$0xf]
        %v1077 = vld [vmem:[%s1063 + $0x34] sm:$0xf]
        %v1078 = vld [vmem:[%s1063 + $0x38] sm:$0xf]
        %v1079 = vld [vmem:[%s1063 + $0x3c] sm:$0xf]
        %v1096 = vunpack.c.l.b16 %v1064
        %v1097 = vunpack.c.l.b16 %v1065
        %v1098 = vunpack.c.l.b16 %v1066
        %v1099 = vunpack.c.l.b16 %v1067
        %v1100 = vunpack.c.l.b16 %v1068
        %v1101 = vunpack.c.l.b16 %v1069
        %v1102 = vunpack.c.l.b16 %v1070
        %v1103 = vunpack.c.l.b16 %v1071
        %v1104 = vunpack.c.l.b16 %v1072
        %v1105 = vunpack.c.l.b16 %v1073
        %v1106 = vunpack.c.l.b16 %v1074
        %v1107 = vunpack.c.l.b16 %v1075
        %v1108 = vunpack.c.l.b16 %v1076
        %v1109 = vunpack.c.l.b16 %v1077
        %v1110 = vunpack.c.l.b16 %v1078
        %v1111 = vunpack.c.l.b16 %v1079
        %v1112 = vpack.c.b16 %v1097, %v1096
        %v1113 = vpack.c.b16 %v1099, %v1098
        %v1114 = vpack.c.b16 %v1101, %v1100
        %v1115 = vpack.c.b16 %v1103, %v1102
        %v1116 = vpack.c.b16 %v1105, %v1104
        %v1117 = vpack.c.b16 %v1107, %v1106
        %v1118 = vpack.c.b16 %v1109, %v1108
        %v1119 = vpack.c.b16 %v1111, %v1110
        %1128 = vmatprep.subr.bf16.mxu0 0
        %1129 = vmatpush1.bf16.msra.mxu0 %v1112
        %1130 = vmatprep.subr.bf16.mxu0 0
        %1131 = vmatpush1.bf16.msra.mxu0 %v1113
        %1132 = vmatprep.subr.bf16.mxu0 0
        %1133 = vmatpush1.bf16.msra.mxu0 %v1114
        %1134 = vmatprep.subr.bf16.mxu0 0
        %1135 = vmatpush1.bf16.msra.mxu0 %v1115
        %1136 = vmatprep.subr.bf16.mxu0 0
        %1137 = vmatpush1.bf16.msra.mxu0 %v1116
        %1138 = vmatprep.subr.bf16.mxu0 0
        %1139 = vmatpush1.bf16.msra.mxu0 %v1117
        %1140 = vmatprep.subr.bf16.mxu0 0
        %1141 = vmatpush1.bf16.msra.mxu0 %v1118
        %1142 = vmatprep.subr.bf16.mxu0 0
        %1143 = vmatpush1.bf16.msra.mxu0 %v1119
        %1144 = vmatprep.subr.bf16.mxu0 0
        %1145 = vmatpush1.bf16.msra.mxu0 0
        %1146 = vmatprep.subr.bf16.mxu0 0
        %1147 = vmatpush1.bf16.msra.mxu0 0
        %1148 = vmatprep.subr.bf16.mxu0 0
        %1149 = vmatpush1.bf16.msra.mxu0 0
        %1150 = vmatprep.subr.bf16.mxu0 0
        %1151 = vmatpush1.bf16.msra.mxu0 0
        %1152 = vmatprep.subr.bf16.mxu0 0
        %1153 = vmatpush1.bf16.msra.mxu0 0
        %1154 = vmatprep.subr.bf16.mxu0 0
        %1155 = vmatpush1.bf16.msra.mxu0 0
        %1156 = vmatprep.subr.bf16.mxu0 0
        %1157 = vmatpush1.bf16.msra.mxu0 0
        %1158 = vmatprep.subr.bf16.mxu0 0
        %1159 = vmatpush1.bf16.msra.mxu0 0
        %1160 = vmatprep.mubr.bf16.mxu0 0
        %1161 = vmatmul.mubr.bf16.gmra.mrb[0].mxu0 %v1055
        %v1162 = vpop.f32.mrb[0].mxu0
        %v1163 = vadd.f32 0.0, %v1162
        %v1164 = vpop.f32.mrb[0].mxu0
        %v1165 = vpop.f32.mrb[0].mxu0
        %v1166 = vadd.f32 0.0, %v1165
        %v1167 = vpop.f32.mrb[0].mxu0
        %1168 = vmatprep.mubr.bf16.mxu0 0
        %1169 = vmatmul.mubr.bf16.gmra.mrb[0].mxu0 %v1056
        %v1170 = vpop.f32.mrb[0].mxu0
        %v1171 = vadd.f32 0.0, %v1170
        %v1172 = vpop.f32.mrb[0].mxu0
        %v1173 = vpop.f32.mrb[0].mxu0
        %v1174 = vadd.f32 0.0, %v1173
        %v1175 = vpop.f32.mrb[0].mxu0
        %1176 = vmatprep.mubr.bf16.mxu0 0
        %1177 = vmatmul.mubr.bf16.gmra.mrb[0].mxu0 %v1057
        %v1178 = vpop.f32.mrb[0].mxu0
        %v1179 = vadd.f32 0.0, %v1178
        %v1180 = vpop.f32.mrb[0].mxu0
        %v1181 = vpop.f32.mrb[0].mxu0
        %v1182 = vadd.f32 0.0, %v1181
        %v1183 = vpop.f32.mrb[0].mxu0
        %1184 = vmatprep.mubr.bf16.mxu0 0
        %1185 = vmatmul.mubr.bf16.gmra.mrb[0].mxu0 %v1058
        %v1186 = vpop.f32.mrb[0].mxu0
        %v1187 = vadd.f32 0.0, %v1186
        %v1188 = vpop.f32.mrb[0].mxu0
        %v1189 = vpop.f32.mrb[0].mxu0
        %v1190 = vadd.f32 0.0, %v1189
        %v1191 = vpop.f32.mrb[0].mxu0
        %1192 = vmatprep.mubr.bf16.mxu0 0
        %1193 = vmatmul.mubr.bf16.gmra.mrb[0].mxu0 %v1059
        %v1194 = vpop.f32.mrb[0].mxu0
        %v1195 = vadd.f32 0.0, %v1194
        %v1196 = vpop.f32.mrb[0].mxu0
        %v1197 = vpop.f32.mrb[0].mxu0
        %v1198 = vadd.f32 0.0, %v1197
        %v1199 = vpop.f32.mrb[0].mxu0
        %1200 = vmatprep.mubr.bf16.mxu0 0
        %1201 = vmatmul.mubr.bf16.gmra.mrb[0].mxu0 %v1060
        %v1202 = vpop.f32.mrb[0].mxu0
        %v1203 = vadd.f32 0.0, %v1202
        %v1204 = vpop.f32.mrb[0].mxu0
        %v1205 = vpop.f32.mrb[0].mxu0
        %v1206 = vadd.f32 0.0, %v1205
        %v1207 = vpop.f32.mrb[0].mxu0
        %1208 = vmatprep.mubr.bf16.mxu0 0
        %1209 = vmatmul.mubr.bf16.gmra.mrb[0].mxu0 %v1061
        %v1210 = vpop.f32.mrb[0].mxu0
        %v1211 = vadd.f32 0.0, %v1210
        %v1212 = vpop.f32.mrb[0].mxu0
        %v1213 = vpop.f32.mrb[0].mxu0
        %v1214 = vadd.f32 0.0, %v1213
        %v1215 = vpop.f32.mrb[0].mxu0
        %1216 = vmatprep.mubr.bf16.mxu0 0
        %1217 = vmatmul.mubr.bf16.gmra.mrb[0].mxu0 %v1062
        %v1218 = vpop.f32.mrb[0].mxu0
        %v1219 = vadd.f32 0.0, %v1218
        %v1220 = vpop.f32.mrb[0].mxu0
        %v1221 = vpop.f32.mrb[0].mxu0
        %v1222 = vadd.f32 0.0, %v1221
        %v1223 = vpop.f32.mrb[0].mxu0
        %1224 = vdwg.mxu0
        %v1225 = vadd.f32 %v1023, %v1163
        %v1226 = vadd.f32 %v1024, %v1166
        %v1227 = vadd.f32 %v1025, %v1171
        %v1228 = vadd.f32 %v1026, %v1174
        %v1229 = vadd.f32 %v1027, %v1179
        %v1230 = vadd.f32 %v1028, %v1182
        %v1231 = vadd.f32 %v1029, %v1187
        %v1232 = vadd.f32 %v1030, %v1190
        %v1233 = vadd.f32 %v1031, %v1195
        %v1234 = vadd.f32 %v1032, %v1198
        %v1235 = vadd.f32 %v1033, %v1203
        %v1236 = vadd.f32 %v1034, %v1206
        %v1237 = vadd.f32 %v1035, %v1211
        %v1238 = vadd.f32 %v1036, %v1214
        %v1239 = vadd.f32 %v1037, %v1219
        %v1240 = vadd.f32 %v1038, %v1222
        %v1241 = vld [vmem:[%s246 + $0x2] sm:$0xff]
        %v1242 = vld [vmem:[%s246 + $0xa] sm:$0xff]
        %v1243 = vld [vmem:[%s246 + $0x1a] sm:$0xff]
        %v1244 = vld [vmem:[%s246 + $0x22] sm:$0xff]
        %v1245 = vld [vmem:[%s246 + $0x32] sm:$0xff]
        %v1246 = vld [vmem:[%s246 + $0x3a] sm:$0xff]
        %v1247 = vld [vmem:[%s246 + $0x4a] sm:$0xff]
        %v1248 = vld [vmem:[%s246 + $0x52] sm:$0xff]
        %v1249 = vld [vmem:[%s246 + $0x62] sm:$0xff]
        %v1250 = vld [vmem:[%s246 + $0x6a] sm:$0xff]
        %v1251 = vld [vmem:[%s246 + $0x7a] sm:$0xff]
        %v1252 = vld [vmem:[%s246 + $0x82] sm:$0xff]
        %v1253 = vld [vmem:[%s246 + $0x92] sm:$0xff]
        %v1254 = vld [vmem:[%s246 + $0x9a] sm:$0xff]
        %v1255 = vld [vmem:[%s246 + $0xaa] sm:$0xff]
        %v1256 = vld [vmem:[%s246 + $0xb2] sm:$0xff]
        %v1257 = vpack.c.bf16 %v1242, %v1241
        %v1258 = vpack.c.bf16 %v1244, %v1243
        %v1259 = vpack.c.bf16 %v1246, %v1245
        %v1260 = vpack.c.bf16 %v1248, %v1247
        %v1261 = vpack.c.bf16 %v1250, %v1249
        %v1262 = vpack.c.bf16 %v1252, %v1251
        %v1263 = vpack.c.bf16 %v1254, %v1253
        %v1264 = vpack.c.bf16 %v1256, %v1255
        %s1265 = scalar_lea.vmem [#allocation3], 320
        %v1266 = vld [vmem:[%s1265] sm:$0xf]
        %v1267 = vld [vmem:[%s1265 + $0x4] sm:$0xf]
        %v1268 = vld [vmem:[%s1265 + $0x8] sm:$0xf]
        %v1269 = vld [vmem:[%s1265 + $0xc] sm:$0xf]
        %v1270 = vld [vmem:[%s1265 + $0x10] sm:$0xf]
        %v1271 = vld [vmem:[%s1265 + $0x14] sm:$0xf]
        %v1272 = vld [vmem:[%s1265 + $0x18] sm:$0xf]
        %v1273 = vld [vmem:[%s1265 + $0x1c] sm:$0xf]
        %v1274 = vld [vmem:[%s1265 + $0x20] sm:$0xf]
        %v1275 = vld [vmem:[%s1265 + $0x24] sm:$0xf]
        %v1276 = vld [vmem:[%s1265 + $0x28] sm:$0xf]
        %v1277 = vld [vmem:[%s1265 + $0x2c] sm:$0xf]
        %v1278 = vld [vmem:[%s1265 + $0x30] sm:$0xf]
        %v1279 = vld [vmem:[%s1265 + $0x34] sm:$0xf]
        %v1280 = vld [vmem:[%s1265 + $0x38] sm:$0xf]
        %v1281 = vld [vmem:[%s1265 + $0x3c] sm:$0xf]
        %v1298 = vunpack.c.l.b16 %v1266
        %v1299 = vunpack.c.l.b16 %v1267
        %v1300 = vunpack.c.l.b16 %v1268
        %v1301 = vunpack.c.l.b16 %v1269
        %v1302 = vunpack.c.l.b16 %v1270
        %v1303 = vunpack.c.l.b16 %v1271
        %v1304 = vunpack.c.l.b16 %v1272
        %v1305 = vunpack.c.l.b16 %v1273
        %v1306 = vunpack.c.l.b16 %v1274
        %v1307 = vunpack.c.l.b16 %v1275
        %v1308 = vunpack.c.l.b16 %v1276
        %v1309 = vunpack.c.l.b16 %v1277
        %v1310 = vunpack.c.l.b16 %v1278
        %v1311 = vunpack.c.l.b16 %v1279
        %v1312 = vunpack.c.l.b16 %v1280
        %v1313 = vunpack.c.l.b16 %v1281
        %v1314 = vpack.c.b16 %v1299, %v1298
        %v1315 = vpack.c.b16 %v1301, %v1300
        %v1316 = vpack.c.b16 %v1303, %v1302
        %v1317 = vpack.c.b16 %v1305, %v1304
        %v1318 = vpack.c.b16 %v1307, %v1306
        %v1319 = vpack.c.b16 %v1309, %v1308
        %v1320 = vpack.c.b16 %v1311, %v1310
        %v1321 = vpack.c.b16 %v1313, %v1312
        %1330 = vmatprep.subr.bf16.mxu0 0
        %1331 = vmatpush1.bf16.msra.mxu0 %v1314
        %1332 = vmatprep.subr.bf16.mxu0 0
        %1333 = vmatpush1.bf16.msra.mxu0 %v1315
        %1334 = vmatprep.subr.bf16.mxu0 0
        %1335 = vmatpush1.bf16.msra.mxu0 %v1316
        %1336 = vmatprep.subr.bf16.mxu0 0
        %1337 = vmatpush1.bf16.msra.mxu0 %v1317
        %1338 = vmatprep.subr.bf16.mxu0 0
        %1339 = vmatpush1.bf16.msra.mxu0 %v1318
        %1340 = vmatprep.subr.bf16.mxu0 0
        %1341 = vmatpush1.bf16.msra.mxu0 %v1319
        %1342 = vmatprep.subr.bf16.mxu0 0
        %1343 = vmatpush1.bf16.msra.mxu0 %v1320
        %1344 = vmatprep.subr.bf16.mxu0 0
        %1345 = vmatpush1.bf16.msra.mxu0 %v1321
        %1346 = vmatprep.subr.bf16.mxu0 0
        %1347 = vmatpush1.bf16.msra.mxu0 0
        %1348 = vmatprep.subr.bf16.mxu0 0
        %1349 = vmatpush1.bf16.msra.mxu0 0
        %1350 = vmatprep.subr.bf16.mxu0 0
        %1351 = vmatpush1.bf16.msra.mxu0 0
        %1352 = vmatprep.subr.bf16.mxu0 0
        %1353 = vmatpush1.bf16.msra.mxu0 0
        %1354 = vmatprep.subr.bf16.mxu0 0
        %1355 = vmatpush1.bf16.msra.mxu0 0
        %1356 = vmatprep.subr.bf16.mxu0 0
        %1357 = vmatpush1.bf16.msra.mxu0 0
        %1358 = vmatprep.subr.bf16.mxu0 0
        %1359 = vmatpush1.bf16.msra.mxu0 0
        %1360 = vmatprep.subr.bf16.mxu0 0
        %1361 = vmatpush1.bf16.msra.mxu0 0
        %1362 = vmatprep.mubr.bf16.mxu0 0
        %1363 = vmatmul.mubr.bf16.gmra.mrb[0].mxu0 %v1257
        %v1364 = vpop.f32.mrb[0].mxu0
        %v1365 = vadd.f32 0.0, %v1364
        %v1366 = vpop.f32.mrb[0].mxu0
        %v1367 = vpop.f32.mrb[0].mxu0
        %v1368 = vadd.f32 0.0, %v1367
        %v1369 = vpop.f32.mrb[0].mxu0
        %1370 = vmatprep.mubr.bf16.mxu0 0
        %1371 = vmatmul.mubr.bf16.gmra.mrb[0].mxu0 %v1258
        %v1372 = vpop.f32.mrb[0].mxu0
        %v1373 = vadd.f32 0.0, %v1372
        %v1374 = vpop.f32.mrb[0].mxu0
        %v1375 = vpop.f32.mrb[0].mxu0
        %v1376 = vadd.f32 0.0, %v1375
        %v1377 = vpop.f32.mrb[0].mxu0
        %1378 = vmatprep.mubr.bf16.mxu0 0
        %1379 = vmatmul.mubr.bf16.gmra.mrb[0].mxu0 %v1259
        %v1380 = vpop.f32.mrb[0].mxu0
        %v1381 = vadd.f32 0.0, %v1380
        %v1382 = vpop.f32.mrb[0].mxu0
        %v1383 = vpop.f32.mrb[0].mxu0
        %v1384 = vadd.f32 0.0, %v1383
        %v1385 = vpop.f32.mrb[0].mxu0
        %1386 = vmatprep.mubr.bf16.mxu0 0
        %1387 = vmatmul.mubr.bf16.gmra.mrb[0].mxu0 %v1260
        %v1388 = vpop.f32.mrb[0].mxu0
        %v1389 = vadd.f32 0.0, %v1388
        %v1390 = vpop.f32.mrb[0].mxu0
        %v1391 = vpop.f32.mrb[0].mxu0
        %v1392 = vadd.f32 0.0, %v1391
        %v1393 = vpop.f32.mrb[0].mxu0
        %1394 = vmatprep.mubr.bf16.mxu0 0
        %1395 = vmatmul.mubr.bf16.gmra.mrb[0].mxu0 %v1261
        %v1396 = vpop.f32.mrb[0].mxu0
        %v1397 = vadd.f32 0.0, %v1396
        %v1398 = vpop.f32.mrb[0].mxu0
        %v1399 = vpop.f32.mrb[0].mxu0
        %v1400 = vadd.f32 0.0, %v1399
        %v1401 = vpop.f32.mrb[0].mxu0
        %1402 = vmatprep.mubr.bf16.mxu0 0
        %1403 = vmatmul.mubr.bf16.gmra.mrb[0].mxu0 %v1262
        %v1404 = vpop.f32.mrb[0].mxu0
        %v1405 = vadd.f32 0.0, %v1404
        %v1406 = vpop.f32.mrb[0].mxu0
        %v1407 = vpop.f32.mrb[0].mxu0
        %v1408 = vadd.f32 0.0, %v1407
        %v1409 = vpop.f32.mrb[0].mxu0
        %1410 = vmatprep.mubr.bf16.mxu0 0
        %1411 = vmatmul.mubr.bf16.gmra.mrb[0].mxu0 %v1263
        %v1412 = vpop.f32.mrb[0].mxu0
        %v1413 = vadd.f32 0.0, %v1412
        %v1414 = vpop.f32.mrb[0].mxu0
        %v1415 = vpop.f32.mrb[0].mxu0
        %v1416 = vadd.f32 0.0, %v1415
        %v1417 = vpop.f32.mrb[0].mxu0
        %1418 = vmatprep.mubr.bf16.mxu0 0
        %1419 = vmatmul.mubr.bf16.gmra.mrb[0].mxu0 %v1264
        %v1420 = vpop.f32.mrb[0].mxu0
        %v1421 = vadd.f32 0.0, %v1420
        %v1422 = vpop.f32.mrb[0].mxu0
        %v1423 = vpop.f32.mrb[0].mxu0
        %v1424 = vadd.f32 0.0, %v1423
        %v1425 = vpop.f32.mrb[0].mxu0
        %1426 = vdwg.mxu0
        %v1427 = vadd.f32 %v1225, %v1365
        %v1428 = vadd.f32 %v1226, %v1368
        %v1429 = vadd.f32 %v1227, %v1373
        %v1430 = vadd.f32 %v1228, %v1376
        %v1431 = vadd.f32 %v1229, %v1381
        %v1432 = vadd.f32 %v1230, %v1384
        %v1433 = vadd.f32 %v1231, %v1389
        %v1434 = vadd.f32 %v1232, %v1392
        %v1435 = vadd.f32 %v1233, %v1397
        %v1436 = vadd.f32 %v1234, %v1400
        %v1437 = vadd.f32 %v1235, %v1405
        %v1438 = vadd.f32 %v1236, %v1408
        %v1439 = vadd.f32 %v1237, %v1413
        %v1440 = vadd.f32 %v1238, %v1416
        %v1441 = vadd.f32 %v1239, %v1421
        %v1442 = vadd.f32 %v1240, %v1424
        %s1443 = scalar_lea.vmem [#allocation2], 48
        %v1444 = vld [vmem:[%s1443] sm:$0xff]
        %v1445 = vld [vmem:[%s1443 + $0x8] sm:$0xff]
        %v1446 = vld [vmem:[%s1443 + $0x18] sm:$0xff]
        %v1447 = vld [vmem:[%s1443 + $0x20] sm:$0xff]
        %v1448 = vld [vmem:[%s1443 + $0x30] sm:$0xff]
        %v1449 = vld [vmem:[%s1443 + $0x38] sm:$0xff]
        %v1450 = vld [vmem:[%s1443 + $0x48] sm:$0xff]
        %v1451 = vld [vmem:[%s1443 + $0x50] sm:$0xff]
        %v1452 = vld [vmem:[%s1443 + $0x60] sm:$0xff]
        %v1453 = vld [vmem:[%s1443 + $0x68] sm:$0xff]
        %v1454 = vld [vmem:[%s1443 + $0x78] sm:$0xff]
        %v1455 = vld [vmem:[%s1443 + $0x80] sm:$0xff]
        %v1456 = vld [vmem:[%s1443 + $0x90] sm:$0xff]
        %v1457 = vld [vmem:[%s1443 + $0x98] sm:$0xff]
        %v1458 = vld [vmem:[%s1443 + $0xa8] sm:$0xff]
        %v1459 = vld [vmem:[%s1443 + $0xb0] sm:$0xff]
        %v1460 = vpack.c.bf16 %v1445, %v1444
        %v1461 = vpack.c.bf16 %v1447, %v1446
        %v1462 = vpack.c.bf16 %v1449, %v1448
        %v1463 = vpack.c.bf16 %v1451, %v1450
        %v1464 = vpack.c.bf16 %v1453, %v1452
        %v1465 = vpack.c.bf16 %v1455, %v1454
        %v1466 = vpack.c.bf16 %v1457, %v1456
        %v1467 = vpack.c.bf16 %v1459, %v1458
        %s1468 = scalar_lea.vmem [#allocation3], 384
        %v1469 = vld [vmem:[%s1468] sm:$0xf]
        %v1470 = vld [vmem:[%s1468 + $0x4] sm:$0xf]
        %v1471 = vld [vmem:[%s1468 + $0x8] sm:$0xf]
        %v1472 = vld [vmem:[%s1468 + $0xc] sm:$0xf]
        %v1473 = vld [vmem:[%s1468 + $0x10] sm:$0xf]
        %v1474 = vld [vmem:[%s1468 + $0x14] sm:$0xf]
        %v1475 = vld [vmem:[%s1468 + $0x18] sm:$0xf]
        %v1476 = vld [vmem:[%s1468 + $0x1c] sm:$0xf]
        %v1477 = vld [vmem:[%s1468 + $0x20] sm:$0xf]
        %v1478 = vld [vmem:[%s1468 + $0x24] sm:$0xf]
        %v1479 = vld [vmem:[%s1468 + $0x28] sm:$0xf]
        %v1480 = vld [vmem:[%s1468 + $0x2c] sm:$0xf]
        %v1481 = vld [vmem:[%s1468 + $0x30] sm:$0xf]
        %v1482 = vld [vmem:[%s1468 + $0x34] sm:$0xf]
        %v1483 = vld [vmem:[%s1468 + $0x38] sm:$0xf]
        %v1484 = vld [vmem:[%s1468 + $0x3c] sm:$0xf]
        %v1501 = vunpack.c.l.b16 %v1469
        %v1502 = vunpack.c.l.b16 %v1470
        %v1503 = vunpack.c.l.b16 %v1471
        %v1504 = vunpack.c.l.b16 %v1472
        %v1505 = vunpack.c.l.b16 %v1473
        %v1506 = vunpack.c.l.b16 %v1474
        %v1507 = vunpack.c.l.b16 %v1475
        %v1508 = vunpack.c.l.b16 %v1476
        %v1509 = vunpack.c.l.b16 %v1477
        %v1510 = vunpack.c.l.b16 %v1478
        %v1511 = vunpack.c.l.b16 %v1479
        %v1512 = vunpack.c.l.b16 %v1480
        %v1513 = vunpack.c.l.b16 %v1481
        %v1514 = vunpack.c.l.b16 %v1482
        %v1515 = vunpack.c.l.b16 %v1483
        %v1516 = vunpack.c.l.b16 %v1484
        %v1517 = vpack.c.b16 %v1502, %v1501
        %v1518 = vpack.c.b16 %v1504, %v1503
        %v1519 = vpack.c.b16 %v1506, %v1505
        %v1520 = vpack.c.b16 %v1508, %v1507
        %v1521 = vpack.c.b16 %v1510, %v1509
        %v1522 = vpack.c.b16 %v1512, %v1511
        %v1523 = vpack.c.b16 %v1514, %v1513
        %v1524 = vpack.c.b16 %v1516, %v1515
        %1533 = vmatprep.subr.bf16.mxu0 0
        %1534 = vmatpush1.bf16.msra.mxu0 %v1517
        %1535 = vmatprep.subr.bf16.mxu0 0
        %1536 = vmatpush1.bf16.msra.mxu0 %v1518
        %1537 = vmatprep.subr.bf16.mxu0 0
        %1538 = vmatpush1.bf16.msra.mxu0 %v1519
        %1539 = vmatprep.subr.bf16.mxu0 0
        %1540 = vmatpush1.bf16.msra.mxu0 %v1520
        %1541 = vmatprep.subr.bf16.mxu0 0
        %1542 = vmatpush1.bf16.msra.mxu0 %v1521
        %1543 = vmatprep.subr.bf16.mxu0 0
        %1544 = vmatpush1.bf16.msra.mxu0 %v1522
        %1545 = vmatprep.subr.bf16.mxu0 0
        %1546 = vmatpush1.bf16.msra.mxu0 %v1523
        %1547 = vmatprep.subr.bf16.mxu0 0
        %1548 = vmatpush1.bf16.msra.mxu0 %v1524
        %1549 = vmatprep.subr.bf16.mxu0 0
        %1550 = vmatpush1.bf16.msra.mxu0 0
        %1551 = vmatprep.subr.bf16.mxu0 0
        %1552 = vmatpush1.bf16.msra.mxu0 0
        %1553 = vmatprep.subr.bf16.mxu0 0
        %1554 = vmatpush1.bf16.msra.mxu0 0
        %1555 = vmatprep.subr.bf16.mxu0 0
        %1556 = vmatpush1.bf16.msra.mxu0 0
        %1557 = vmatprep.subr.bf16.mxu0 0
        %1558 = vmatpush1.bf16.msra.mxu0 0
        %1559 = vmatprep.subr.bf16.mxu0 0
        %1560 = vmatpush1.bf16.msra.mxu0 0
        %1561 = vmatprep.subr.bf16.mxu0 0
        %1562 = vmatpush1.bf16.msra.mxu0 0
        %1563 = vmatprep.subr.bf16.mxu0 0
        %1564 = vmatpush1.bf16.msra.mxu0 0
        %1565 = vmatprep.mubr.bf16.mxu0 0
        %1566 = vmatmul.mubr.bf16.gmra.mrb[0].mxu0 %v1460
        %v1567 = vpop.f32.mrb[0].mxu0
        %v1568 = vadd.f32 0.0, %v1567
        %v1569 = vpop.f32.mrb[0].mxu0
        %v1570 = vpop.f32.mrb[0].mxu0
        %v1571 = vadd.f32 0.0, %v1570
        %v1572 = vpop.f32.mrb[0].mxu0
        %1573 = vmatprep.mubr.bf16.mxu0 0
        %1574 = vmatmul.mubr.bf16.gmra.mrb[0].mxu0 %v1461
        %v1575 = vpop.f32.mrb[0].mxu0
        %v1576 = vadd.f32 0.0, %v1575
        %v1577 = vpop.f32.mrb[0].mxu0
        %v1578 = vpop.f32.mrb[0].mxu0
        %v1579 = vadd.f32 0.0, %v1578
        %v1580 = vpop.f32.mrb[0].mxu0
        %1581 = vmatprep.mubr.bf16.mxu0 0
        %1582 = vmatmul.mubr.bf16.gmra.mrb[0].mxu0 %v1462
        %v1583 = vpop.f32.mrb[0].mxu0
        %v1584 = vadd.f32 0.0, %v1583
        %v1585 = vpop.f32.mrb[0].mxu0
        %v1586 = vpop.f32.mrb[0].mxu0
        %v1587 = vadd.f32 0.0, %v1586
        %v1588 = vpop.f32.mrb[0].mxu0
        %1589 = vmatprep.mubr.bf16.mxu0 0
        %1590 = vmatmul.mubr.bf16.gmra.mrb[0].mxu0 %v1463
        %v1591 = vpop.f32.mrb[0].mxu0
        %v1592 = vadd.f32 0.0, %v1591
        %v1593 = vpop.f32.mrb[0].mxu0
        %v1594 = vpop.f32.mrb[0].mxu0
        %v1595 = vadd.f32 0.0, %v1594
        %v1596 = vpop.f32.mrb[0].mxu0
        %1597 = vmatprep.mubr.bf16.mxu0 0
        %1598 = vmatmul.mubr.bf16.gmra.mrb[0].mxu0 %v1464
        %v1599 = vpop.f32.mrb[0].mxu0
        %v1600 = vadd.f32 0.0, %v1599
        %v1601 = vpop.f32.mrb[0].mxu0
        %v1602 = vpop.f32.mrb[0].mxu0
        %v1603 = vadd.f32 0.0, %v1602
        %v1604 = vpop.f32.mrb[0].mxu0
        %1605 = vmatprep.mubr.bf16.mxu0 0
        %1606 = vmatmul.mubr.bf16.gmra.mrb[0].mxu0 %v1465
        %v1607 = vpop.f32.mrb[0].mxu0
        %v1608 = vadd.f32 0.0, %v1607
        %v1609 = vpop.f32.mrb[0].mxu0
        %v1610 = vpop.f32.mrb[0].mxu0
        %v1611 = vadd.f32 0.0, %v1610
        %v1612 = vpop.f32.mrb[0].mxu0
        %1613 = vmatprep.mubr.bf16.mxu0 0
        %1614 = vmatmul.mubr.bf16.gmra.mrb[0].mxu0 %v1466
        %v1615 = vpop.f32.mrb[0].mxu0
        %v1616 = vadd.f32 0.0, %v1615
        %v1617 = vpop.f32.mrb[0].mxu0
        %v1618 = vpop.f32.mrb[0].mxu0
        %v1619 = vadd.f32 0.0, %v1618
        %v1620 = vpop.f32.mrb[0].mxu0
        %1621 = vmatprep.mubr.bf16.mxu0 0
        %1622 = vmatmul.mubr.bf16.gmra.mrb[0].mxu0 %v1467
        %v1623 = vpop.f32.mrb[0].mxu0
        %v1624 = vadd.f32 0.0, %v1623
        %v1625 = vpop.f32.mrb[0].mxu0
        %v1626 = vpop.f32.mrb[0].mxu0
        %v1627 = vadd.f32 0.0, %v1626
        %v1628 = vpop.f32.mrb[0].mxu0
        %1629 = vdwg.mxu0
        %v1630 = vadd.f32 %v1427, %v1568
        %v1631 = vadd.f32 %v1428, %v1571
        %v1632 = vadd.f32 %v1429, %v1576
        %v1633 = vadd.f32 %v1430, %v1579
        %v1634 = vadd.f32 %v1431, %v1584
        %v1635 = vadd.f32 %v1432, %v1587
        %v1636 = vadd.f32 %v1433, %v1592
        %v1637 = vadd.f32 %v1434, %v1595
        %v1638 = vadd.f32 %v1435, %v1600
        %v1639 = vadd.f32 %v1436, %v1603
        %v1640 = vadd.f32 %v1437, %v1608
        %v1641 = vadd.f32 %v1438, %v1611
        %v1642 = vadd.f32 %v1439, %v1616
        %v1643 = vadd.f32 %v1440, %v1619
        %v1644 = vadd.f32 %v1441, %v1624
        %v1645 = vadd.f32 %v1442, %v1627
        %v1646 = vld [vmem:[%s1443 + $0x1] sm:$0xff]
        %v1647 = vld [vmem:[%s1443 + $0x9] sm:$0xff]
        %v1648 = vld [vmem:[%s1443 + $0x19] sm:$0xff]
        %v1649 = vld [vmem:[%s1443 + $0x21] sm:$0xff]
        %v1650 = vld [vmem:[%s1443 + $0x31] sm:$0xff]
        %v1651 = vld [vmem:[%s1443 + $0x39] sm:$0xff]
        %v1652 = vld [vmem:[%s1443 + $0x49] sm:$0xff]
        %v1653 = vld [vmem:[%s1443 + $0x51] sm:$0xff]
        %v1654 = vld [vmem:[%s1443 + $0x61] sm:$0xff]
        %v1655 = vld [vmem:[%s1443 + $0x69] sm:$0xff]
        %v1656 = vld [vmem:[%s1443 + $0x79] sm:$0xff]
        %v1657 = vld [vmem:[%s1443 + $0x81] sm:$0xff]
        %v1658 = vld [vmem:[%s1443 + $0x91] sm:$0xff]
        %v1659 = vld [vmem:[%s1443 + $0x99] sm:$0xff]
        %v1660 = vld [vmem:[%s1443 + $0xa9] sm:$0xff]
        %v1661 = vld [vmem:[%s1443 + $0xb1] sm:$0xff]
        %v1662 = vpack.c.bf16 %v1647, %v1646
        %v1663 = vpack.c.bf16 %v1649, %v1648
        %v1664 = vpack.c.bf16 %v1651, %v1650
        %v1665 = vpack.c.bf16 %v1653, %v1652
        %v1666 = vpack.c.bf16 %v1655, %v1654
        %v1667 = vpack.c.bf16 %v1657, %v1656
        %v1668 = vpack.c.bf16 %v1659, %v1658
        %v1669 = vpack.c.bf16 %v1661, %v1660
        %s1670 = scalar_lea.vmem [#allocation3], 448
        %v1671 = vld [vmem:[%s1670] sm:$0xf]
        %v1672 = vld [vmem:[%s1670 + $0x4] sm:$0xf]
        %v1673 = vld [vmem:[%s1670 + $0x8] sm:$0xf]
        %v1674 = vld [vmem:[%s1670 + $0xc] sm:$0xf]
        %v1675 = vld [vmem:[%s1670 + $0x10] sm:$0xf]
        %v1676 = vld [vmem:[%s1670 + $0x14] sm:$0xf]
        %v1677 = vld [vmem:[%s1670 + $0x18] sm:$0xf]
        %v1678 = vld [vmem:[%s1670 + $0x1c] sm:$0xf]
        %v1679 = vld [vmem:[%s1670 + $0x20] sm:$0xf]
        %v1680 = vld [vmem:[%s1670 + $0x24] sm:$0xf]
        %v1681 = vld [vmem:[%s1670 + $0x28] sm:$0xf]
        %v1682 = vld [vmem:[%s1670 + $0x2c] sm:$0xf]
        %v1683 = vld [vmem:[%s1670 + $0x30] sm:$0xf]
        %v1684 = vld [vmem:[%s1670 + $0x34] sm:$0xf]
        %v1685 = vld [vmem:[%s1670 + $0x38] sm:$0xf]
        %v1686 = vld [vmem:[%s1670 + $0x3c] sm:$0xf]
        %v1703 = vunpack.c.l.b16 %v1671
        %v1704 = vunpack.c.l.b16 %v1672
        %v1705 = vunpack.c.l.b16 %v1673
        %v1706 = vunpack.c.l.b16 %v1674
        %v1707 = vunpack.c.l.b16 %v1675
        %v1708 = vunpack.c.l.b16 %v1676
        %v1709 = vunpack.c.l.b16 %v1677
        %v1710 = vunpack.c.l.b16 %v1678
        %v1711 = vunpack.c.l.b16 %v1679
        %v1712 = vunpack.c.l.b16 %v1680
        %v1713 = vunpack.c.l.b16 %v1681
        %v1714 = vunpack.c.l.b16 %v1682
        %v1715 = vunpack.c.l.b16 %v1683
        %v1716 = vunpack.c.l.b16 %v1684
        %v1717 = vunpack.c.l.b16 %v1685
        %v1718 = vunpack.c.l.b16 %v1686
        %v1719 = vpack.c.b16 %v1704, %v1703
        %v1720 = vpack.c.b16 %v1706, %v1705
        %v1721 = vpack.c.b16 %v1708, %v1707
        %v1722 = vpack.c.b16 %v1710, %v1709
        %v1723 = vpack.c.b16 %v1712, %v1711
        %v1724 = vpack.c.b16 %v1714, %v1713
        %v1725 = vpack.c.b16 %v1716, %v1715
        %v1726 = vpack.c.b16 %v1718, %v1717
        %1735 = vmatprep.subr.bf16.mxu0 0
        %1736 = vmatpush1.bf16.msra.mxu0 %v1719
        %1737 = vmatprep.subr.bf16.mxu0 0
        %1738 = vmatpush1.bf16.msra.mxu0 %v1720
        %1739 = vmatprep.subr.bf16.mxu0 0
        %1740 = vmatpush1.bf16.msra.mxu0 %v1721
        %1741 = vmatprep.subr.bf16.mxu0 0
        %1742 = vmatpush1.bf16.msra.mxu0 %v1722
        %1743 = vmatprep.subr.bf16.mxu0 0
        %1744 = vmatpush1.bf16.msra.mxu0 %v1723
        %1745 = vmatprep.subr.bf16.mxu0 0
        %1746 = vmatpush1.bf16.msra.mxu0 %v1724
        %1747 = vmatprep.subr.bf16.mxu0 0
        %1748 = vmatpush1.bf16.msra.mxu0 %v1725
        %1749 = vmatprep.subr.bf16.mxu0 0
        %1750 = vmatpush1.bf16.msra.mxu0 %v1726
        %1751 = vmatprep.subr.bf16.mxu0 0
        %1752 = vmatpush1.bf16.msra.mxu0 0
        %1753 = vmatprep.subr.bf16.mxu0 0
        %1754 = vmatpush1.bf16.msra.mxu0 0
        %1755 = vmatprep.subr.bf16.mxu0 0
        %1756 = vmatpush1.bf16.msra.mxu0 0
        %1757 = vmatprep.subr.bf16.mxu0 0
        %1758 = vmatpush1.bf16.msra.mxu0 0
        %1759 = vmatprep.subr.bf16.mxu0 0
        %1760 = vmatpush1.bf16.msra.mxu0 0
        %1761 = vmatprep.subr.bf16.mxu0 0
        %1762 = vmatpush1.bf16.msra.mxu0 0
        %1763 = vmatprep.subr.bf16.mxu0 0
        %1764 = vmatpush1.bf16.msra.mxu0 0
        %1765 = vmatprep.subr.bf16.mxu0 0
        %1766 = vmatpush1.bf16.msra.mxu0 0
        %1767 = vmatprep.mubr.bf16.mxu0 0
        %1768 = vmatmul.mubr.bf16.gmra.mrb[0].mxu0 %v1662
        %v1769 = vpop.f32.mrb[0].mxu0
        %v1770 = vadd.f32 0.0, %v1769
        %v1771 = vpop.f32.mrb[0].mxu0
        %v1772 = vpop.f32.mrb[0].mxu0
        %v1773 = vadd.f32 0.0, %v1772
        %v1774 = vpop.f32.mrb[0].mxu0
        %1775 = vmatprep.mubr.bf16.mxu0 0
        %1776 = vmatmul.mubr.bf16.gmra.mrb[0].mxu0 %v1663
        %v1777 = vpop.f32.mrb[0].mxu0
        %v1778 = vadd.f32 0.0, %v1777
        %v1779 = vpop.f32.mrb[0].mxu0
        %v1780 = vpop.f32.mrb[0].mxu0
        %v1781 = vadd.f32 0.0, %v1780
        %v1782 = vpop.f32.mrb[0].mxu0
        %1783 = vmatprep.mubr.bf16.mxu0 0
        %1784 = vmatmul.mubr.bf16.gmra.mrb[0].mxu0 %v1664
        %v1785 = vpop.f32.mrb[0].mxu0
        %v1786 = vadd.f32 0.0, %v1785
        %v1787 = vpop.f32.mrb[0].mxu0
        %v1788 = vpop.f32.mrb[0].mxu0
        %v1789 = vadd.f32 0.0, %v1788
        %v1790 = vpop.f32.mrb[0].mxu0
        %1791 = vmatprep.mubr.bf16.mxu0 0
        %1792 = vmatmul.mubr.bf16.gmra.mrb[0].mxu0 %v1665
        %v1793 = vpop.f32.mrb[0].mxu0
        %v1794 = vadd.f32 0.0, %v1793
        %v1795 = vpop.f32.mrb[0].mxu0
        %v1796 = vpop.f32.mrb[0].mxu0
        %v1797 = vadd.f32 0.0, %v1796
        %v1798 = vpop.f32.mrb[0].mxu0
        %1799 = vmatprep.mubr.bf16.mxu0 0
        %1800 = vmatmul.mubr.bf16.gmra.mrb[0].mxu0 %v1666
        %v1801 = vpop.f32.mrb[0].mxu0
        %v1802 = vadd.f32 0.0, %v1801
        %v1803 = vpop.f32.mrb[0].mxu0
        %v1804 = vpop.f32.mrb[0].mxu0
        %v1805 = vadd.f32 0.0, %v1804
        %v1806 = vpop.f32.mrb[0].mxu0
        %1807 = vmatprep.mubr.bf16.mxu0 0
        %1808 = vmatmul.mubr.bf16.gmra.mrb[0].mxu0 %v1667
        %v1809 = vpop.f32.mrb[0].mxu0
        %v1810 = vadd.f32 0.0, %v1809
        %v1811 = vpop.f32.mrb[0].mxu0
        %v1812 = vpop.f32.mrb[0].mxu0
        %v1813 = vadd.f32 0.0, %v1812
        %v1814 = vpop.f32.mrb[0].mxu0
        %1815 = vmatprep.mubr.bf16.mxu0 0
        %1816 = vmatmul.mubr.bf16.gmra.mrb[0].mxu0 %v1668
        %v1817 = vpop.f32.mrb[0].mxu0
        %v1818 = vadd.f32 0.0, %v1817
        %v1819 = vpop.f32.mrb[0].mxu0
        %v1820 = vpop.f32.mrb[0].mxu0
        %v1821 = vadd.f32 0.0, %v1820
        %v1822 = vpop.f32.mrb[0].mxu0
        %1823 = vmatprep.mubr.bf16.mxu0 0
        %1824 = vmatmul.mubr.bf16.gmra.mrb[0].mxu0 %v1669
        %v1825 = vpop.f32.mrb[0].mxu0
        %v1826 = vadd.f32 0.0, %v1825
        %v1827 = vpop.f32.mrb[0].mxu0
        %v1828 = vpop.f32.mrb[0].mxu0
        %v1829 = vadd.f32 0.0, %v1828
        %v1830 = vpop.f32.mrb[0].mxu0
        %1831 = vdwg.mxu0
        %v1832 = vadd.f32 %v1630, %v1770
        %v1833 = vadd.f32 %v1631, %v1773
        %v1834 = vadd.f32 %v1632, %v1778
        %v1835 = vadd.f32 %v1633, %v1781
        %v1836 = vadd.f32 %v1634, %v1786
        %v1837 = vadd.f32 %v1635, %v1789
        %v1838 = vadd.f32 %v1636, %v1794
        %v1839 = vadd.f32 %v1637, %v1797
        %v1840 = vadd.f32 %v1638, %v1802
        %v1841 = vadd.f32 %v1639, %v1805
        %v1842 = vadd.f32 %v1640, %v1810
        %v1843 = vadd.f32 %v1641, %v1813
        %v1844 = vadd.f32 %v1642, %v1818
        %v1845 = vadd.f32 %v1643, %v1821
        %v1846 = vadd.f32 %v1644, %v1826
        %v1847 = vadd.f32 %v1645, %v1829
        %v1848 = vld [vmem:[%s1443 + $0x2] sm:$0xff]
        %v1849 = vld [vmem:[%s1443 + $0xa] sm:$0xff]
        %v1850 = vld [vmem:[%s1443 + $0x1a] sm:$0xff]
        %v1851 = vld [vmem:[%s1443 + $0x22] sm:$0xff]
        %v1852 = vld [vmem:[%s1443 + $0x32] sm:$0xff]
        %v1853 = vld [vmem:[%s1443 + $0x3a] sm:$0xff]
        %v1854 = vld [vmem:[%s1443 + $0x4a] sm:$0xff]
        %v1855 = vld [vmem:[%s1443 + $0x52] sm:$0xff]
        %v1856 = vld [vmem:[%s1443 + $0x62] sm:$0xff]
        %v1857 = vld [vmem:[%s1443 + $0x6a] sm:$0xff]
        %v1858 = vld [vmem:[%s1443 + $0x7a] sm:$0xff]
        %v1859 = vld [vmem:[%s1443 + $0x82] sm:$0xff]
        %v1860 = vld [vmem:[%s1443 + $0x92] sm:$0xff]
        %v1861 = vld [vmem:[%s1443 + $0x9a] sm:$0xff]
        %v1862 = vld [vmem:[%s1443 + $0xaa] sm:$0xff]
        %v1863 = vld [vmem:[%s1443 + $0xb2] sm:$0xff]
        %v1864 = vpack.c.bf16 %v1849, %v1848
        %v1865 = vpack.c.bf16 %v1851, %v1850
        %v1866 = vpack.c.bf16 %v1853, %v1852
        %v1867 = vpack.c.bf16 %v1855, %v1854
        %v1868 = vpack.c.bf16 %v1857, %v1856
        %v1869 = vpack.c.bf16 %v1859, %v1858
        %v1870 = vpack.c.bf16 %v1861, %v1860
        %v1871 = vpack.c.bf16 %v1863, %v1862
        %s1872 = scalar_lea.vmem [#allocation3], 512
        %v1873 = vld [vmem:[%s1872] sm:$0xf]
        %v1874 = vld [vmem:[%s1872 + $0x4] sm:$0xf]
        %v1875 = vld [vmem:[%s1872 + $0x8] sm:$0xf]
        %v1876 = vld [vmem:[%s1872 + $0xc] sm:$0xf]
        %v1877 = vld [vmem:[%s1872 + $0x10] sm:$0xf]
        %v1878 = vld [vmem:[%s1872 + $0x14] sm:$0xf]
        %v1879 = vld [vmem:[%s1872 + $0x18] sm:$0xf]
        %v1880 = vld [vmem:[%s1872 + $0x1c] sm:$0xf]
        %v1881 = vld [vmem:[%s1872 + $0x20] sm:$0xf]
        %v1882 = vld [vmem:[%s1872 + $0x24] sm:$0xf]
        %v1883 = vld [vmem:[%s1872 + $0x28] sm:$0xf]
        %v1884 = vld [vmem:[%s1872 + $0x2c] sm:$0xf]
        %v1885 = vld [vmem:[%s1872 + $0x30] sm:$0xf]
        %v1886 = vld [vmem:[%s1872 + $0x34] sm:$0xf]
        %v1887 = vld [vmem:[%s1872 + $0x38] sm:$0xf]
        %v1888 = vld [vmem:[%s1872 + $0x3c] sm:$0xf]
        %v1905 = vunpack.c.l.b16 %v1873
        %v1906 = vunpack.c.l.b16 %v1874
        %v1907 = vunpack.c.l.b16 %v1875
        %v1908 = vunpack.c.l.b16 %v1876
        %v1909 = vunpack.c.l.b16 %v1877
        %v1910 = vunpack.c.l.b16 %v1878
        %v1911 = vunpack.c.l.b16 %v1879
        %v1912 = vunpack.c.l.b16 %v1880
        %v1913 = vunpack.c.l.b16 %v1881
        %v1914 = vunpack.c.l.b16 %v1882
        %v1915 = vunpack.c.l.b16 %v1883
        %v1916 = vunpack.c.l.b16 %v1884
        %v1917 = vunpack.c.l.b16 %v1885
        %v1918 = vunpack.c.l.b16 %v1886
        %v1919 = vunpack.c.l.b16 %v1887
        %v1920 = vunpack.c.l.b16 %v1888
        %v1921 = vpack.c.b16 %v1906, %v1905
        %v1922 = vpack.c.b16 %v1908, %v1907
        %v1923 = vpack.c.b16 %v1910, %v1909
        %v1924 = vpack.c.b16 %v1912, %v1911
        %v1925 = vpack.c.b16 %v1914, %v1913
        %v1926 = vpack.c.b16 %v1916, %v1915
        %v1927 = vpack.c.b16 %v1918, %v1917
        %v1928 = vpack.c.b16 %v1920, %v1919
        %1937 = vmatprep.subr.bf16.mxu0 0
        %1938 = vmatpush1.bf16.msra.mxu0 %v1921
        %1939 = vmatprep.subr.bf16.mxu0 0
        %1940 = vmatpush1.bf16.msra.mxu0 %v1922
        %1941 = vmatprep.subr.bf16.mxu0 0
        %1942 = vmatpush1.bf16.msra.mxu0 %v1923
        %1943 = vmatprep.subr.bf16.mxu0 0
        %1944 = vmatpush1.bf16.msra.mxu0 %v1924
        %1945 = vmatprep.subr.bf16.mxu0 0
        %1946 = vmatpush1.bf16.msra.mxu0 %v1925
        %1947 = vmatprep.subr.bf16.mxu0 0
        %1948 = vmatpush1.bf16.msra.mxu0 %v1926
        %1949 = vmatprep.subr.bf16.mxu0 0
        %1950 = vmatpush1.bf16.msra.mxu0 %v1927
        %1951 = vmatprep.subr.bf16.mxu0 0
        %1952 = vmatpush1.bf16.msra.mxu0 %v1928
        %1953 = vmatprep.subr.bf16.mxu0 0
        %1954 = vmatpush1.bf16.msra.mxu0 0
        %1955 = vmatprep.subr.bf16.mxu0 0
        %1956 = vmatpush1.bf16.msra.mxu0 0
        %1957 = vmatprep.subr.bf16.mxu0 0
        %1958 = vmatpush1.bf16.msra.mxu0 0
        %1959 = vmatprep.subr.bf16.mxu0 0
        %1960 = vmatpush1.bf16.msra.mxu0 0
        %1961 = vmatprep.subr.bf16.mxu0 0
        %1962 = vmatpush1.bf16.msra.mxu0 0
        %1963 = vmatprep.subr.bf16.mxu0 0
        %1964 = vmatpush1.bf16.msra.mxu0 0
        %1965 = vmatprep.subr.bf16.mxu0 0
        %1966 = vmatpush1.bf16.msra.mxu0 0
        %1967 = vmatprep.subr.bf16.mxu0 0
        %1968 = vmatpush1.bf16.msra.mxu0 0
        %1969 = vmatprep.mubr.bf16.mxu0 0
        %1970 = vmatmul.mubr.bf16.gmra.mrb[0].mxu0 %v1864
        %v1971 = vpop.f32.mrb[0].mxu0
        %v1972 = vadd.f32 0.0, %v1971
        %v1973 = vpop.f32.mrb[0].mxu0
        %v1974 = vpop.f32.mrb[0].mxu0
        %v1975 = vadd.f32 0.0, %v1974
        %v1976 = vpop.f32.mrb[0].mxu0
        %1977 = vmatprep.mubr.bf16.mxu0 0
        %1978 = vmatmul.mubr.bf16.gmra.mrb[0].mxu0 %v1865
        %v1979 = vpop.f32.mrb[0].mxu0
        %v1980 = vadd.f32 0.0, %v1979
        %v1981 = vpop.f32.mrb[0].mxu0
        %v1982 = vpop.f32.mrb[0].mxu0
        %v1983 = vadd.f32 0.0, %v1982
        %v1984 = vpop.f32.mrb[0].mxu0
        %1985 = vmatprep.mubr.bf16.mxu0 0
        %1986 = vmatmul.mubr.bf16.gmra.mrb[0].mxu0 %v1866
        %v1987 = vpop.f32.mrb[0].mxu0
        %v1988 = vadd.f32 0.0, %v1987
        %v1989 = vpop.f32.mrb[0].mxu0
        %v1990 = vpop.f32.mrb[0].mxu0
        %v1991 = vadd.f32 0.0, %v1990
        %v1992 = vpop.f32.mrb[0].mxu0
        %1993 = vmatprep.mubr.bf16.mxu0 0
        %1994 = vmatmul.mubr.bf16.gmra.mrb[0].mxu0 %v1867
        %v1995 = vpop.f32.mrb[0].mxu0
        %v1996 = vadd.f32 0.0, %v1995
        %v1997 = vpop.f32.mrb[0].mxu0
        %v1998 = vpop.f32.mrb[0].mxu0
        %v1999 = vadd.f32 0.0, %v1998
        %v2000 = vpop.f32.mrb[0].mxu0
        %2001 = vmatprep.mubr.bf16.mxu0 0
        %2002 = vmatmul.mubr.bf16.gmra.mrb[0].mxu0 %v1868
        %v2003 = vpop.f32.mrb[0].mxu0
        %v2004 = vadd.f32 0.0, %v2003
        %v2005 = vpop.f32.mrb[0].mxu0
        %v2006 = vpop.f32.mrb[0].mxu0
        %v2007 = vadd.f32 0.0, %v2006
        %v2008 = vpop.f32.mrb[0].mxu0
        %2009 = vmatprep.mubr.bf16.mxu0 0
        %2010 = vmatmul.mubr.bf16.gmra.mrb[0].mxu0 %v1869
        %v2011 = vpop.f32.mrb[0].mxu0
        %v2012 = vadd.f32 0.0, %v2011
        %v2013 = vpop.f32.mrb[0].mxu0
        %v2014 = vpop.f32.mrb[0].mxu0
        %v2015 = vadd.f32 0.0, %v2014
        %v2016 = vpop.f32.mrb[0].mxu0
        %2017 = vmatprep.mubr.bf16.mxu0 0
        %2018 = vmatmul.mubr.bf16.gmra.mrb[0].mxu0 %v1870
        %v2019 = vpop.f32.mrb[0].mxu0
        %v2020 = vadd.f32 0.0, %v2019
        %v2021 = vpop.f32.mrb[0].mxu0
        %v2022 = vpop.f32.mrb[0].mxu0
        %v2023 = vadd.f32 0.0, %v2022
        %v2024 = vpop.f32.mrb[0].mxu0
        %2025 = vmatprep.mubr.bf16.mxu0 0
        %2026 = vmatmul.mubr.bf16.gmra.mrb[0].mxu0 %v1871
        %v2027 = vpop.f32.mrb[0].mxu0
        %v2028 = vadd.f32 0.0, %v2027
        %v2029 = vpop.f32.mrb[0].mxu0
        %v2030 = vpop.f32.mrb[0].mxu0
        %v2031 = vadd.f32 0.0, %v2030
        %v2032 = vpop.f32.mrb[0].mxu0
        %2033 = vdwg.mxu0
        %v2034 = vadd.f32 %v1832, %v1972
        %v2035 = vadd.f32 %v1833, %v1975
        %v2036 = vadd.f32 %v1834, %v1980
        %v2037 = vadd.f32 %v1835, %v1983
        %v2038 = vadd.f32 %v1836, %v1988
        %v2039 = vadd.f32 %v1837, %v1991
        %v2040 = vadd.f32 %v1838, %v1996
        %v2041 = vadd.f32 %v1839, %v1999
        %v2042 = vadd.f32 %v1840, %v2004
        %v2043 = vadd.f32 %v1841, %v2007
        %v2044 = vadd.f32 %v1842, %v2012
        %v2045 = vadd.f32 %v1843, %v2015
        %v2046 = vadd.f32 %v1844, %v2020
        %v2047 = vadd.f32 %v1845, %v2023
        %v2048 = vadd.f32 %v1846, %v2028
        %v2049 = vadd.f32 %v1847, %v2031
        %v2050 = vld [vmem:[#allocation6] sm:$0x1]
        %v2052 = vlaneseq
        %v2053 = vshrl.u32 %v2052, 7
        %v2054 = vsub.s32 0, %v2053
        %v2055 = vrot.slane %v2050, %v2054
        %v2057 = vadd.f32 %v2034, %v2055
        %v2058 = vadd.f32 %v2035, %v2055
        %v2059 = vadd.f32 %v2036, %v2055
        %v2060 = vadd.f32 %v2037, %v2055
        %v2061 = vadd.f32 %v2038, %v2055
        %v2062 = vadd.f32 %v2039, %v2055
        %v2063 = vadd.f32 %v2040, %v2055
        %v2064 = vadd.f32 %v2041, %v2055
        %v2065 = vadd.f32 %v2042, %v2055
        %v2066 = vadd.f32 %v2043, %v2055
        %v2067 = vadd.f32 %v2044, %v2055
        %v2068 = vadd.f32 %v2045, %v2055
        %v2069 = vadd.f32 %v2046, %v2055
        %v2070 = vadd.f32 %v2047, %v2055
        %v2071 = vadd.f32 %v2048, %v2055
        %v2072 = vadd.f32 %v2049, %v2055
        %v2073 = vmin.f32 %v2057, 0.0
        %v2074 = vmin.f32 %v2058, 0.0
        %v2075 = vmin.f32 %v2059, 0.0
        %v2076 = vmin.f32 %v2060, 0.0
        %v2077 = vmin.f32 %v2061, 0.0
        %v2078 = vmin.f32 %v2062, 0.0
        %v2079 = vmin.f32 %v2063, 0.0
        %v2080 = vmin.f32 %v2064, 0.0
        %v2081 = vmin.f32 %v2065, 0.0
        %v2082 = vmin.f32 %v2066, 0.0
        %v2083 = vmin.f32 %v2067, 0.0
        %v2084 = vmin.f32 %v2068, 0.0
        %v2085 = vmin.f32 %v2069, 0.0
        %v2086 = vmin.f32 %v2070, 0.0
        %v2087 = vmin.f32 %v2071, 0.0
        %v2088 = vmin.f32 %v2072, 0.0
        %v2089 = vmul.f32 %v2073, 1.442695
        %v2090 = vpow.pop %v2089
        %v2091 = vmul.f32 %v2074, 1.442695
        %v2092 = vpow.pop %v2091
        %v2093 = vmul.f32 %v2075, 1.442695
        %v2094 = vpow.pop %v2093
        %v2095 = vmul.f32 %v2076, 1.442695
        %v2096 = vpow.pop %v2095
        %v2097 = vmul.f32 %v2077, 1.442695
        %v2098 = vpow.pop %v2097
        %v2099 = vmul.f32 %v2078, 1.442695
        %v2100 = vpow.pop %v2099
        %v2101 = vmul.f32 %v2079, 1.442695
        %v2102 = vpow.pop %v2101
        %v2103 = vmul.f32 %v2080, 1.442695
        %v2104 = vpow.pop %v2103
        %v2105 = vmul.f32 %v2081, 1.442695
        %v2106 = vpow.pop %v2105
        %v2107 = vmul.f32 %v2082, 1.442695
        %v2108 = vpow.pop %v2107
        %v2109 = vmul.f32 %v2083, 1.442695
        %v2110 = vpow.pop %v2109
        %v2111 = vmul.f32 %v2084, 1.442695
        %v2112 = vpow.pop %v2111
        %v2113 = vmul.f32 %v2085, 1.442695
        %v2114 = vpow.pop %v2113
        %v2115 = vmul.f32 %v2086, 1.442695
        %v2116 = vpow.pop %v2115
        %v2117 = vmul.f32 %v2087, 1.442695
        %v2118 = vpow.pop %v2117
        %v2119 = vmul.f32 %v2088, 1.442695
        %v2120 = vpow.pop %v2119
        %v2121 = vsub.f32 %v2090, 1.0
        %v2122 = vsub.f32 %v2092, 1.0
        %v2123 = vsub.f32 %v2094, 1.0
        %v2124 = vsub.f32 %v2096, 1.0
        %v2125 = vsub.f32 %v2098, 1.0
        %v2126 = vsub.f32 %v2100, 1.0
        %v2127 = vsub.f32 %v2102, 1.0
        %v2128 = vsub.f32 %v2104, 1.0
        %v2129 = vsub.f32 %v2106, 1.0
        %v2130 = vsub.f32 %v2108, 1.0
        %v2131 = vsub.f32 %v2110, 1.0
        %v2132 = vsub.f32 %v2112, 1.0
        %v2133 = vsub.f32 %v2114, 1.0
        %v2134 = vsub.f32 %v2116, 1.0
        %v2135 = vsub.f32 %v2118, 1.0
        %v2136 = vsub.f32 %v2120, 1.0
        %vm2137 = vcmp.gt.f32.partialorder %v2057, 0.0
        %vm2138 = vcmp.gt.f32.partialorder %v2058, 0.0
        %vm2139 = vcmp.gt.f32.partialorder %v2059, 0.0
        %vm2140 = vcmp.gt.f32.partialorder %v2060, 0.0
        %vm2141 = vcmp.gt.f32.partialorder %v2061, 0.0
        %vm2142 = vcmp.gt.f32.partialorder %v2062, 0.0
        %vm2143 = vcmp.gt.f32.partialorder %v2063, 0.0
        %vm2144 = vcmp.gt.f32.partialorder %v2064, 0.0
        %vm2145 = vcmp.gt.f32.partialorder %v2065, 0.0
        %vm2146 = vcmp.gt.f32.partialorder %v2066, 0.0
        %vm2147 = vcmp.gt.f32.partialorder %v2067, 0.0
        %vm2148 = vcmp.gt.f32.partialorder %v2068, 0.0
        %vm2149 = vcmp.gt.f32.partialorder %v2069, 0.0
        %vm2150 = vcmp.gt.f32.partialorder %v2070, 0.0
        %vm2151 = vcmp.gt.f32.partialorder %v2071, 0.0
        %vm2152 = vcmp.gt.f32.partialorder %v2072, 0.0
        %v2153 = vsel %vm2137, %v2057, %v2121
        %v2154 = vsel %vm2138, %v2058, %v2122
        %v2155 = vsel %vm2139, %v2059, %v2123
        %v2156 = vsel %vm2140, %v2060, %v2124
        %v2157 = vsel %vm2141, %v2061, %v2125
        %v2158 = vsel %vm2142, %v2062, %v2126
        %v2159 = vsel %vm2143, %v2063, %v2127
        %v2160 = vsel %vm2144, %v2064, %v2128
        %v2161 = vsel %vm2145, %v2065, %v2129
        %v2162 = vsel %vm2146, %v2066, %v2130
        %v2163 = vsel %vm2147, %v2067, %v2131
        %v2164 = vsel %vm2148, %v2068, %v2132
        %v2165 = vsel %vm2149, %v2069, %v2133
        %v2166 = vsel %vm2150, %v2070, %v2134
        %v2167 = vsel %vm2151, %v2071, %v2135
        %v2168 = vsel %vm2152, %v2072, %v2136
        %v2169 = vadd.f32 %v2153, %v2154
        %v2170 = vadd.f32 %v2169, %v2155
        %v2171 = vadd.f32 %v2170, %v2156
        %v2172 = vadd.f32 %v2171, %v2157
        %v2173 = vadd.f32 %v2172, %v2158
        %v2174 = vadd.f32 %v2173, %v2159
        %v2175 = vadd.f32 %v2174, %v2160
        %v2176 = vadd.f32 %v2175, %v2161
        %v2177 = vadd.f32 %v2176, %v2162
        %v2178 = vadd.f32 %v2177, %v2163
        %v2179 = vadd.f32 %v2178, %v2164
        %v2180 = vadd.f32 %v2179, %v2165
        %v2181 = vadd.f32 %v2180, %v2166
        %v2182 = vadd.f32 %v2181, %v2167
        %v2183 = vadd.f32 %v2182, %v2168
        %v2184 = vrot.slane %v2183, 4
        %v2185 = vadd.f32 %v2183, %v2184
        %v2186 = vrot.slane %v2185, 2
        %v2187 = vadd.f32 %v2185, %v2186
        %v2188 = vrot.slane %v2187, 1
        %v2189 = vadd.f32 %v2187, %v2188
        %v2190 = vmul.f32 %v2189, 0.0078125
        %v2191 = vsub.f32 %v2153, %v2190
        %v2192 = vsub.f32 %v2154, %v2190
        %v2193 = vsub.f32 %v2155, %v2190
        %v2194 = vsub.f32 %v2156, %v2190
        %v2195 = vsub.f32 %v2157, %v2190
        %v2196 = vsub.f32 %v2158, %v2190
        %v2197 = vsub.f32 %v2159, %v2190
        %v2198 = vsub.f32 %v2160, %v2190
        %v2199 = vsub.f32 %v2161, %v2190
        %v2200 = vsub.f32 %v2162, %v2190
        %v2201 = vsub.f32 %v2163, %v2190
        %v2202 = vsub.f32 %v2164, %v2190
        %v2203 = vsub.f32 %v2165, %v2190
        %v2204 = vsub.f32 %v2166, %v2190
        %v2205 = vsub.f32 %v2167, %v2190
        %v2206 = vsub.f32 %v2168, %v2190
        %v2207 = vmul.f32 %v2191, %v2191
        %v2208 = vmul.f32 %v2192, %v2192
        %v2209 = vmul.f32 %v2193, %v2193
        %v2210 = vmul.f32 %v2194, %v2194
        %v2211 = vmul.f32 %v2195, %v2195
        %v2212 = vmul.f32 %v2196, %v2196
        %v2213 = vmul.f32 %v2197, %v2197
        %v2214 = vmul.f32 %v2198, %v2198
        %v2215 = vmul.f32 %v2199, %v2199
        %v2216 = vmul.f32 %v2200, %v2200
        %v2217 = vmul.f32 %v2201, %v2201
        %v2218 = vmul.f32 %v2202, %v2202
        %v2219 = vmul.f32 %v2203, %v2203
        %v2220 = vmul.f32 %v2204, %v2204
        %v2221 = vmul.f32 %v2205, %v2205
        %v2222 = vmul.f32 %v2206, %v2206
        %v2223 = vadd.f32 %v2207, %v2208
        %v2224 = vadd.f32 %v2223, %v2209
        %v2225 = vadd.f32 %v2224, %v2210
        %v2226 = vadd.f32 %v2225, %v2211
        %v2227 = vadd.f32 %v2226, %v2212
        %v2228 = vadd.f32 %v2227, %v2213
        %v2229 = vadd.f32 %v2228, %v2214
        %v2230 = vadd.f32 %v2229, %v2215
        %v2231 = vadd.f32 %v2230, %v2216
        %v2232 = vadd.f32 %v2231, %v2217
        %v2233 = vadd.f32 %v2232, %v2218
        %v2234 = vadd.f32 %v2233, %v2219
        %v2235 = vadd.f32 %v2234, %v2220
        %v2236 = vadd.f32 %v2235, %v2221
        %v2237 = vadd.f32 %v2236, %v2222
        %v2238 = vrot.slane %v2237, 4
        %v2239 = vadd.f32 %v2237, %v2238
        %v2240 = vrot.slane %v2239, 2
        %v2241 = vadd.f32 %v2239, %v2240
        %v2242 = vrot.slane %v2241, 1
        %v2243 = vadd.f32 %v2241, %v2242
        %v2244 = vmul.f32 %v2243, 0.0078125
        %v2245 = vadd.f32 %v2244, 1e-05
        %v2246 = vrsqrt.pop %v2245
        %v2247 = vmul.f32 %v2191, %v2246
        %v2248 = vmul.f32 %v2192, %v2246
        %v2249 = vmul.f32 %v2193, %v2246
        %v2250 = vmul.f32 %v2194, %v2246
        %v2251 = vmul.f32 %v2195, %v2246
        %v2252 = vmul.f32 %v2196, %v2246
        %v2253 = vmul.f32 %v2197, %v2246
        %v2254 = vmul.f32 %v2198, %v2246
        %v2255 = vmul.f32 %v2199, %v2246
        %v2256 = vmul.f32 %v2200, %v2246
        %v2257 = vmul.f32 %v2201, %v2246
        %v2258 = vmul.f32 %v2202, %v2246
        %v2259 = vmul.f32 %v2203, %v2246
        %v2260 = vmul.f32 %v2204, %v2246
        %v2261 = vmul.f32 %v2205, %v2246
        %v2262 = vmul.f32 %v2206, %v2246
        %v2263 = vadd.f32 %v1039, %v2247
        %v2264 = vadd.f32 %v1040, %v2248
        %v2265 = vadd.f32 %v1041, %v2249
        %v2266 = vadd.f32 %v1042, %v2250
        %v2267 = vadd.f32 %v1043, %v2251
        %v2268 = vadd.f32 %v1044, %v2252
        %v2269 = vadd.f32 %v1045, %v2253
        %v2270 = vadd.f32 %v1046, %v2254
        %v2271 = vadd.f32 %v1047, %v2255
        %v2272 = vadd.f32 %v1048, %v2256
        %v2273 = vadd.f32 %v1049, %v2257
        %v2274 = vadd.f32 %v1050, %v2258
        %v2275 = vadd.f32 %v1051, %v2259
        %v2276 = vadd.f32 %v1052, %v2260
        %v2277 = vadd.f32 %v1053, %v2261
        %v2278 = vadd.f32 %v1054, %v2262
        %2279 = vst [vmem:[%s246 + $0x1] sm:$0xff] %v2263
        %2280 = vst [vmem:[%s246 + $0x9] sm:$0xff] %v2264
        %2281 = vst [vmem:[%s246 + $0x19] sm:$0xff] %v2265
        %2282 = vst [vmem:[%s246 + $0x21] sm:$0xff] %v2266
        %2283 = vst [vmem:[%s246 + $0x31] sm:$0xff] %v2267
        %2284 = vst [vmem:[%s246 + $0x39] sm:$0xff] %v2268
        %2285 = vst [vmem:[%s246 + $0x49] sm:$0xff] %v2269
        %2286 = vst [vmem:[%s246 + $0x51] sm:$0xff] %v2270
        %2287 = vst [vmem:[%s246 + $0x61] sm:$0xff] %v2271
        %2288 = vst [vmem:[%s246 + $0x69] sm:$0xff] %v2272
        %2289 = vst [vmem:[%s246 + $0x79] sm:$0xff] %v2273
        %2290 = vst [vmem:[%s246 + $0x81] sm:$0xff] %v2274
        %2291 = vst [vmem:[%s246 + $0x91] sm:$0xff] %v2275
        %2292 = vst [vmem:[%s246 + $0x99] sm:$0xff] %v2276
        %2293 = vst [vmem:[%s246 + $0xa9] sm:$0xff] %v2277
        %2294 = vst [vmem:[%s246 + $0xb1] sm:$0xff] %v2278
        %v2295 = vld [vmem:[#allocation2] sm:$0xff]
        %v2296 = vld [vmem:[#allocation2 + $0x8] sm:$0xff]
        %v2297 = vld [vmem:[#allocation2 + $0x18] sm:$0xff]
        %v2298 = vld [vmem:[#allocation2 + $0x20] sm:$0xff]
        %v2299 = vld [vmem:[#allocation2 + $0x30] sm:$0xff]
        %v2300 = vld [vmem:[#allocation2 + $0x38] sm:$0xff]
        %v2301 = vld [vmem:[#allocation2 + $0x48] sm:$0xff]
        %v2302 = vld [vmem:[#allocation2 + $0x50] sm:$0xff]
        %v2303 = vld [vmem:[#allocation2 + $0x60] sm:$0xff]
        %v2304 = vld [vmem:[#allocation2 + $0x68] sm:$0xff]
        %v2305 = vld [vmem:[#allocation2 + $0x78] sm:$0xff]
        %v2306 = vld [vmem:[#allocation2 + $0x80] sm:$0xff]
        %v2307 = vld [vmem:[#allocation2 + $0x90] sm:$0xff]
        %v2308 = vld [vmem:[#allocation2 + $0x98] sm:$0xff]
        %v2309 = vld [vmem:[#allocation2 + $0xa8] sm:$0xff]
        %v2310 = vld [vmem:[#allocation2 + $0xb0] sm:$0xff]
        %v2311 = vpack.c.bf16 %v2296, %v2295
        %v2312 = vpack.c.bf16 %v2298, %v2297
        %v2313 = vpack.c.bf16 %v2300, %v2299
        %v2314 = vpack.c.bf16 %v2302, %v2301
        %v2315 = vpack.c.bf16 %v2304, %v2303
        %v2316 = vpack.c.bf16 %v2306, %v2305
        %v2317 = vpack.c.bf16 %v2308, %v2307
        %v2318 = vpack.c.bf16 %v2310, %v2309
        %s2319 = scalar_lea.vmem [#allocation3], 576
        %v2320 = vld [vmem:[%s2319] sm:$0xf]
        %v2321 = vld [vmem:[%s2319 + $0x4] sm:$0xf]
        %v2322 = vld [vmem:[%s2319 + $0x8] sm:$0xf]
        %v2323 = vld [vmem:[%s2319 + $0xc] sm:$0xf]
        %v2324 = vld [vmem:[%s2319 + $0x10] sm:$0xf]
        %v2325 = vld [vmem:[%s2319 + $0x14] sm:$0xf]
        %v2326 = vld [vmem:[%s2319 + $0x18] sm:$0xf]
        %v2327 = vld [vmem:[%s2319 + $0x1c] sm:$0xf]
        %v2328 = vld [vmem:[%s2319 + $0x20] sm:$0xf]
        %v2329 = vld [vmem:[%s2319 + $0x24] sm:$0xf]
        %v2330 = vld [vmem:[%s2319 + $0x28] sm:$0xf]
        %v2331 = vld [vmem:[%s2319 + $0x2c] sm:$0xf]
        %v2332 = vld [vmem:[%s2319 + $0x30] sm:$0xf]
        %v2333 = vld [vmem:[%s2319 + $0x34] sm:$0xf]
        %v2334 = vld [vmem:[%s2319 + $0x38] sm:$0xf]
        %v2335 = vld [vmem:[%s2319 + $0x3c] sm:$0xf]
        %v2336 = vld [vmem:[#allocation2 + $0x1] sm:$0xff]
        %v2337 = vld [vmem:[#allocation2 + $0x9] sm:$0xff]
        %v2338 = vld [vmem:[#allocation2 + $0x19] sm:$0xff]
        %v2339 = vld [vmem:[#allocation2 + $0x21] sm:$0xff]
        %v2340 = vld [vmem:[#allocation2 + $0x31] sm:$0xff]
        %v2341 = vld [vmem:[#allocation2 + $0x39] sm:$0xff]
        %v2342 = vld [vmem:[#allocation2 + $0x49] sm:$0xff]
        %v2343 = vld [vmem:[#allocation2 + $0x51] sm:$0xff]
        %v2344 = vld [vmem:[#allocation2 + $0x61] sm:$0xff]
        %v2345 = vld [vmem:[#allocation2 + $0x69] sm:$0xff]
        %v2346 = vld [vmem:[#allocation2 + $0x79] sm:$0xff]
        %v2347 = vld [vmem:[#allocation2 + $0x81] sm:$0xff]
        %v2348 = vld [vmem:[#allocation2 + $0x91] sm:$0xff]
        %v2349 = vld [vmem:[#allocation2 + $0x99] sm:$0xff]
        %v2350 = vld [vmem:[#allocation2 + $0xa9] sm:$0xff]
        %v2351 = vld [vmem:[#allocation2 + $0xb1] sm:$0xff]
        %v2352 = vpack.c.bf16 %v2337, %v2336
        %v2353 = vpack.c.bf16 %v2339, %v2338
        %v2354 = vpack.c.bf16 %v2341, %v2340
        %v2355 = vpack.c.bf16 %v2343, %v2342
        %v2356 = vpack.c.bf16 %v2345, %v2344
        %v2357 = vpack.c.bf16 %v2347, %v2346
        %v2358 = vpack.c.bf16 %v2349, %v2348
        %v2359 = vpack.c.bf16 %v2351, %v2350
        %s2360 = scalar_lea.vmem [#allocation3], 640
        %v2361 = vld [vmem:[%s2360] sm:$0xf]
        %v2362 = vld [vmem:[%s2360 + $0x4] sm:$0xf]
        %v2363 = vld [vmem:[%s2360 + $0x8] sm:$0xf]
        %v2364 = vld [vmem:[%s2360 + $0xc] sm:$0xf]
        %v2365 = vld [vmem:[%s2360 + $0x10] sm:$0xf]
        %v2366 = vld [vmem:[%s2360 + $0x14] sm:$0xf]
        %v2367 = vld [vmem:[%s2360 + $0x18] sm:$0xf]
        %v2368 = vld [vmem:[%s2360 + $0x1c] sm:$0xf]
        %v2369 = vld [vmem:[%s2360 + $0x20] sm:$0xf]
        %v2370 = vld [vmem:[%s2360 + $0x24] sm:$0xf]
        %v2371 = vld [vmem:[%s2360 + $0x28] sm:$0xf]
        %v2372 = vld [vmem:[%s2360 + $0x2c] sm:$0xf]
        %v2373 = vld [vmem:[%s2360 + $0x30] sm:$0xf]
        %v2374 = vld [vmem:[%s2360 + $0x34] sm:$0xf]
        %v2375 = vld [vmem:[%s2360 + $0x38] sm:$0xf]
        %v2376 = vld [vmem:[%s2360 + $0x3c] sm:$0xf]
        %v2393 = vunpack.c.l.b16 %v2361
        %v2394 = vunpack.c.l.b16 %v2362
        %v2395 = vunpack.c.l.b16 %v2363
        %v2396 = vunpack.c.l.b16 %v2364
        %v2397 = vunpack.c.l.b16 %v2365
        %v2398 = vunpack.c.l.b16 %v2366
        %v2399 = vunpack.c.l.b16 %v2367
        %v2400 = vunpack.c.l.b16 %v2368
        %v2401 = vunpack.c.l.b16 %v2369
        %v2402 = vunpack.c.l.b16 %v2370
        %v2403 = vunpack.c.l.b16 %v2371
        %v2404 = vunpack.c.l.b16 %v2372
        %v2405 = vunpack.c.l.b16 %v2373
        %v2406 = vunpack.c.l.b16 %v2374
        %v2407 = vunpack.c.l.b16 %v2375
        %v2408 = vunpack.c.l.b16 %v2376
        %v2409 = vpack.c.b16 %v2394, %v2393
        %v2410 = vpack.c.b16 %v2396, %v2395
        %v2411 = vpack.c.b16 %v2398, %v2397
        %v2412 = vpack.c.b16 %v2400, %v2399
        %v2413 = vpack.c.b16 %v2402, %v2401
        %v2414 = vpack.c.b16 %v2404, %v2403
        %v2415 = vpack.c.b16 %v2406, %v2405
        %v2416 = vpack.c.b16 %v2408, %v2407
        %2425 = vmatprep.subr.bf16.mxu0 0
        %2426 = vmatpush1.bf16.msra.mxu0 %v2409
        %2427 = vmatprep.subr.bf16.mxu0 0
        %2428 = vmatpush1.bf16.msra.mxu0 %v2410
        %2429 = vmatprep.subr.bf16.mxu0 0
        %2430 = vmatpush1.bf16.msra.mxu0 %v2411
        %2431 = vmatprep.subr.bf16.mxu0 0
        %2432 = vmatpush1.bf16.msra.mxu0 %v2412
        %2433 = vmatprep.subr.bf16.mxu0 0
        %2434 = vmatpush1.bf16.msra.mxu0 %v2413
        %2435 = vmatprep.subr.bf16.mxu0 0
        %2436 = vmatpush1.bf16.msra.mxu0 %v2414
        %2437 = vmatprep.subr.bf16.mxu0 0
        %2438 = vmatpush1.bf16.msra.mxu0 %v2415
        %2439 = vmatprep.subr.bf16.mxu0 0
        %2440 = vmatpush1.bf16.msra.mxu0 %v2416
        %2441 = vmatprep.subr.bf16.mxu0 0
        %2442 = vmatpush1.bf16.msra.mxu0 0
        %2443 = vmatprep.subr.bf16.mxu0 0
        %2444 = vmatpush1.bf16.msra.mxu0 0
        %2445 = vmatprep.subr.bf16.mxu0 0
        %2446 = vmatpush1.bf16.msra.mxu0 0
        %2447 = vmatprep.subr.bf16.mxu0 0
        %2448 = vmatpush1.bf16.msra.mxu0 0
        %2449 = vmatprep.subr.bf16.mxu0 0
        %2450 = vmatpush1.bf16.msra.mxu0 0
        %2451 = vmatprep.subr.bf16.mxu0 0
        %2452 = vmatpush1.bf16.msra.mxu0 0
        %2453 = vmatprep.subr.bf16.mxu0 0
        %2454 = vmatpush1.bf16.msra.mxu0 0
        %2455 = vmatprep.subr.bf16.mxu0 0
        %2456 = vmatpush1.bf16.msra.mxu0 0
        %2457 = vmatprep.mubr.bf16.mxu0 0
        %2458 = vmatmul.mubr.bf16.gmra.mrb[0].mxu0 %v2352
        %v2459 = vpop.f32.mrb[0].mxu0
        %v2460 = vadd.f32 0.0, %v2459
        %v2461 = vpop.f32.mrb[0].mxu0
        %v2462 = vpop.f32.mrb[0].mxu0
        %v2463 = vadd.f32 0.0, %v2462
        %v2464 = vpop.f32.mrb[0].mxu0
        %2465 = vmatprep.mubr.bf16.mxu0 0
        %2466 = vmatmul.mubr.bf16.gmra.mrb[0].mxu0 %v2353
        %v2467 = vpop.f32.mrb[0].mxu0
        %v2468 = vadd.f32 0.0, %v2467
        %v2469 = vpop.f32.mrb[0].mxu0
        %v2470 = vpop.f32.mrb[0].mxu0
        %v2471 = vadd.f32 0.0, %v2470
        %v2472 = vpop.f32.mrb[0].mxu0
        %2473 = vmatprep.mubr.bf16.mxu0 0
        %2474 = vmatmul.mubr.bf16.gmra.mrb[0].mxu0 %v2354
        %v2475 = vpop.f32.mrb[0].mxu0
        %v2476 = vadd.f32 0.0, %v2475
        %v2477 = vpop.f32.mrb[0].mxu0
        %v2478 = vpop.f32.mrb[0].mxu0
        %v2479 = vadd.f32 0.0, %v2478
        %v2480 = vpop.f32.mrb[0].mxu0
        %2481 = vmatprep.mubr.bf16.mxu0 0
        %2482 = vmatmul.mubr.bf16.gmra.mrb[0].mxu0 %v2355
        %v2483 = vpop.f32.mrb[0].mxu0
        %v2484 = vadd.f32 0.0, %v2483
        %v2485 = vpop.f32.mrb[0].mxu0
        %v2486 = vpop.f32.mrb[0].mxu0
        %v2487 = vadd.f32 0.0, %v2486
        %v2488 = vpop.f32.mrb[0].mxu0
        %2489 = vmatprep.mubr.bf16.mxu0 0
        %2490 = vmatmul.mubr.bf16.gmra.mrb[0].mxu0 %v2356
        %v2491 = vpop.f32.mrb[0].mxu0
        %v2492 = vadd.f32 0.0, %v2491
        %v2493 = vpop.f32.mrb[0].mxu0
        %v2494 = vpop.f32.mrb[0].mxu0
        %v2495 = vadd.f32 0.0, %v2494
        %v2496 = vpop.f32.mrb[0].mxu0
        %2497 = vmatprep.mubr.bf16.mxu0 0
        %2498 = vmatmul.mubr.bf16.gmra.mrb[0].mxu0 %v2357
        %v2499 = vpop.f32.mrb[0].mxu0
        %v2500 = vadd.f32 0.0, %v2499
        %v2501 = vpop.f32.mrb[0].mxu0
        %v2502 = vpop.f32.mrb[0].mxu0
        %v2503 = vadd.f32 0.0, %v2502
        %v2504 = vpop.f32.mrb[0].mxu0
        %2505 = vmatprep.mubr.bf16.mxu0 0
        %2506 = vmatmul.mubr.bf16.gmra.mrb[0].mxu0 %v2358
        %v2507 = vpop.f32.mrb[0].mxu0
        %v2508 = vadd.f32 0.0, %v2507
        %v2509 = vpop.f32.mrb[0].mxu0
        %v2510 = vpop.f32.mrb[0].mxu0
        %v2511 = vadd.f32 0.0, %v2510
        %v2512 = vpop.f32.mrb[0].mxu0
        %2513 = vmatprep.mubr.bf16.mxu0 0
        %2514 = vmatmul.mubr.bf16.gmra.mrb[0].mxu0 %v2359
        %v2515 = vpop.f32.mrb[0].mxu0
        %v2516 = vadd.f32 0.0, %v2515
        %v2517 = vpop.f32.mrb[0].mxu0
        %v2518 = vpop.f32.mrb[0].mxu0
        %v2519 = vadd.f32 0.0, %v2518
        %v2520 = vpop.f32.mrb[0].mxu0
        %2521 = vdwg.mxu0
        %v2538 = vunpack.c.l.b16 %v2320
        %v2539 = vunpack.c.l.b16 %v2321
        %v2540 = vunpack.c.l.b16 %v2322
        %v2541 = vunpack.c.l.b16 %v2323
        %v2542 = vunpack.c.l.b16 %v2324
        %v2543 = vunpack.c.l.b16 %v2325
        %v2544 = vunpack.c.l.b16 %v2326
        %v2545 = vunpack.c.l.b16 %v2327
        %v2546 = vunpack.c.l.b16 %v2328
        %v2547 = vunpack.c.l.b16 %v2329
        %v2548 = vunpack.c.l.b16 %v2330
        %v2549 = vunpack.c.l.b16 %v2331
        %v2550 = vunpack.c.l.b16 %v2332
        %v2551 = vunpack.c.l.b16 %v2333
        %v2552 = vunpack.c.l.b16 %v2334
        %v2553 = vunpack.c.l.b16 %v2335
        %v2554 = vpack.c.b16 %v2539, %v2538
        %v2555 = vpack.c.b16 %v2541, %v2540
        %v2556 = vpack.c.b16 %v2543, %v2542
        %v2557 = vpack.c.b16 %v2545, %v2544
        %v2558 = vpack.c.b16 %v2547, %v2546
        %v2559 = vpack.c.b16 %v2549, %v2548
        %v2560 = vpack.c.b16 %v2551, %v2550
        %v2561 = vpack.c.b16 %v2553, %v2552
        %2570 = vmatprep.subr.bf16.mxu0 0
        %2571 = vmatpush1.bf16.msra.mxu0 %v2554
        %2572 = vmatprep.subr.bf16.mxu0 0
        %2573 = vmatpush1.bf16.msra.mxu0 %v2555
        %2574 = vmatprep.subr.bf16.mxu0 0
        %2575 = vmatpush1.bf16.msra.mxu0 %v2556
        %2576 = vmatprep.subr.bf16.mxu0 0
        %2577 = vmatpush1.bf16.msra.mxu0 %v2557
        %2578 = vmatprep.subr.bf16.mxu0 0
        %2579 = vmatpush1.bf16.msra.mxu0 %v2558
        %2580 = vmatprep.subr.bf16.mxu0 0
        %2581 = vmatpush1.bf16.msra.mxu0 %v2559
        %2582 = vmatprep.subr.bf16.mxu0 0
        %2583 = vmatpush1.bf16.msra.mxu0 %v2560
        %2584 = vmatprep.subr.bf16.mxu0 0
        %2585 = vmatpush1.bf16.msra.mxu0 %v2561
        %2586 = vmatprep.subr.bf16.mxu0 0
        %2587 = vmatpush1.bf16.msra.mxu0 0
        %2588 = vmatprep.subr.bf16.mxu0 0
        %2589 = vmatpush1.bf16.msra.mxu0 0
        %2590 = vmatprep.subr.bf16.mxu0 0
        %2591 = vmatpush1.bf16.msra.mxu0 0
        %2592 = vmatprep.subr.bf16.mxu0 0
        %2593 = vmatpush1.bf16.msra.mxu0 0
        %2594 = vmatprep.subr.bf16.mxu0 0
        %2595 = vmatpush1.bf16.msra.mxu0 0
        %2596 = vmatprep.subr.bf16.mxu0 0
        %2597 = vmatpush1.bf16.msra.mxu0 0
        %2598 = vmatprep.subr.bf16.mxu0 0
        %2599 = vmatpush1.bf16.msra.mxu0 0
        %2600 = vmatprep.subr.bf16.mxu0 0
        %2601 = vmatpush1.bf16.msra.mxu0 0
        %2602 = vmatprep.mubr.bf16.mxu0 0
        %2603 = vmatmul.mubr.bf16.gmra.mrb[0].mxu0 %v2311
        %v2604 = vpop.f32.mrb[0].mxu0
        %v2605 = vadd.f32 %v2460, %v2604
        %v2606 = vpop.f32.mrb[0].mxu0
        %v2607 = vpop.f32.mrb[0].mxu0
        %v2608 = vadd.f32 %v2463, %v2607
        %v2609 = vpop.f32.mrb[0].mxu0
        %2610 = vmatprep.mubr.bf16.mxu0 0
        %2611 = vmatmul.mubr.bf16.gmra.mrb[0].mxu0 %v2312
        %v2612 = vpop.f32.mrb[0].mxu0
        %v2613 = vadd.f32 %v2468, %v2612
        %v2614 = vpop.f32.mrb[0].mxu0
        %v2615 = vpop.f32.mrb[0].mxu0
        %v2616 = vadd.f32 %v2471, %v2615
        %v2617 = vpop.f32.mrb[0].mxu0
        %2618 = vmatprep.mubr.bf16.mxu0 0
        %2619 = vmatmul.mubr.bf16.gmra.mrb[0].mxu0 %v2313
        %v2620 = vpop.f32.mrb[0].mxu0
        %v2621 = vadd.f32 %v2476, %v2620
        %v2622 = vpop.f32.mrb[0].mxu0
        %v2623 = vpop.f32.mrb[0].mxu0
        %v2624 = vadd.f32 %v2479, %v2623
        %v2625 = vpop.f32.mrb[0].mxu0
        %2626 = vmatprep.mubr.bf16.mxu0 0
        %2627 = vmatmul.mubr.bf16.gmra.mrb[0].mxu0 %v2314
        %v2628 = vpop.f32.mrb[0].mxu0
        %v2629 = vadd.f32 %v2484, %v2628
        %v2630 = vpop.f32.mrb[0].mxu0
        %v2631 = vpop.f32.mrb[0].mxu0
        %v2632 = vadd.f32 %v2487, %v2631
        %v2633 = vpop.f32.mrb[0].mxu0
        %2634 = vmatprep.mubr.bf16.mxu0 0
        %2635 = vmatmul.mubr.bf16.gmra.mrb[0].mxu0 %v2315
        %v2636 = vpop.f32.mrb[0].mxu0
        %v2637 = vadd.f32 %v2492, %v2636
        %v2638 = vpop.f32.mrb[0].mxu0
        %v2639 = vpop.f32.mrb[0].mxu0
        %v2640 = vadd.f32 %v2495, %v2639
        %v2641 = vpop.f32.mrb[0].mxu0
        %2642 = vmatprep.mubr.bf16.mxu0 0
        %2643 = vmatmul.mubr.bf16.gmra.mrb[0].mxu0 %v2316
        %v2644 = vpop.f32.mrb[0].mxu0
        %v2645 = vadd.f32 %v2500, %v2644
        %v2646 = vpop.f32.mrb[0].mxu0
        %v2647 = vpop.f32.mrb[0].mxu0
        %v2648 = vadd.f32 %v2503, %v2647
        %v2649 = vpop.f32.mrb[0].mxu0
        %2650 = vmatprep.mubr.bf16.mxu0 0
        %2651 = vmatmul.mubr.bf16.gmra.mrb[0].mxu0 %v2317
        %v2652 = vpop.f32.mrb[0].mxu0
        %v2653 = vadd.f32 %v2508, %v2652
        %v2654 = vpop.f32.mrb[0].mxu0
        %v2655 = vpop.f32.mrb[0].mxu0
        %v2656 = vadd.f32 %v2511, %v2655
        %v2657 = vpop.f32.mrb[0].mxu0
        %2658 = vmatprep.mubr.bf16.mxu0 0
        %2659 = vmatmul.mubr.bf16.gmra.mrb[0].mxu0 %v2318
        %v2660 = vpop.f32.mrb[0].mxu0
        %v2661 = vadd.f32 %v2516, %v2660
        %v2662 = vpop.f32.mrb[0].mxu0
        %v2663 = vpop.f32.mrb[0].mxu0
        %v2664 = vadd.f32 %v2519, %v2663
        %v2665 = vpop.f32.mrb[0].mxu0
        %2666 = vdwg.mxu0
        %v2667 = vld [vmem:[#allocation2 + $0x2] sm:$0xff]
        %v2668 = vld [vmem:[#allocation2 + $0xa] sm:$0xff]
        %v2669 = vld [vmem:[#allocation2 + $0x1a] sm:$0xff]
        %v2670 = vld [vmem:[#allocation2 + $0x22] sm:$0xff]
        %v2671 = vld [vmem:[#allocation2 + $0x32] sm:$0xff]
        %v2672 = vld [vmem:[#allocation2 + $0x3a] sm:$0xff]
        %v2673 = vld [vmem:[#allocation2 + $0x4a] sm:$0xff]
        %v2674 = vld [vmem:[#allocation2 + $0x52] sm:$0xff]
        %v2675 = vld [vmem:[#allocation2 + $0x62] sm:$0xff]
        %v2676 = vld [vmem:[#allocation2 + $0x6a] sm:$0xff]
        %v2677 = vld [vmem:[#allocation2 + $0x7a] sm:$0xff]
        %v2678 = vld [vmem:[#allocation2 + $0x82] sm:$0xff]
        %v2679 = vld [vmem:[#allocation2 + $0x92] sm:$0xff]
        %v2680 = vld [vmem:[#allocation2 + $0x9a] sm:$0xff]
        %v2681 = vld [vmem:[#allocation2 + $0xaa] sm:$0xff]
        %v2682 = vld [vmem:[#allocation2 + $0xb2] sm:$0xff]
        %v2683 = vpack.c.bf16 %v2668, %v2667
        %v2684 = vpack.c.bf16 %v2670, %v2669
        %v2685 = vpack.c.bf16 %v2672, %v2671
        %v2686 = vpack.c.bf16 %v2674, %v2673
        %v2687 = vpack.c.bf16 %v2676, %v2675
        %v2688 = vpack.c.bf16 %v2678, %v2677
        %v2689 = vpack.c.bf16 %v2680, %v2679
        %v2690 = vpack.c.bf16 %v2682, %v2681
        %s2691 = scalar_lea.vmem [#allocation3], 704
        %v2692 = vld [vmem:[%s2691] sm:$0xf]
        %v2693 = vld [vmem:[%s2691 + $0x4] sm:$0xf]
        %v2694 = vld [vmem:[%s2691 + $0x8] sm:$0xf]
        %v2695 = vld [vmem:[%s2691 + $0xc] sm:$0xf]
        %v2696 = vld [vmem:[%s2691 + $0x10] sm:$0xf]
        %v2697 = vld [vmem:[%s2691 + $0x14] sm:$0xf]
        %v2698 = vld [vmem:[%s2691 + $0x18] sm:$0xf]
        %v2699 = vld [vmem:[%s2691 + $0x1c] sm:$0xf]
        %v2700 = vld [vmem:[%s2691 + $0x20] sm:$0xf]
        %v2701 = vld [vmem:[%s2691 + $0x24] sm:$0xf]
        %v2702 = vld [vmem:[%s2691 + $0x28] sm:$0xf]
        %v2703 = vld [vmem:[%s2691 + $0x2c] sm:$0xf]
        %v2704 = vld [vmem:[%s2691 + $0x30] sm:$0xf]
        %v2705 = vld [vmem:[%s2691 + $0x34] sm:$0xf]
        %v2706 = vld [vmem:[%s2691 + $0x38] sm:$0xf]
        %v2707 = vld [vmem:[%s2691 + $0x3c] sm:$0xf]
        %v2724 = vunpack.c.l.b16 %v2692
        %v2725 = vunpack.c.l.b16 %v2693
        %v2726 = vunpack.c.l.b16 %v2694
        %v2727 = vunpack.c.l.b16 %v2695
        %v2728 = vunpack.c.l.b16 %v2696
        %v2729 = vunpack.c.l.b16 %v2697
        %v2730 = vunpack.c.l.b16 %v2698
        %v2731 = vunpack.c.l.b16 %v2699
        %v2732 = vunpack.c.l.b16 %v2700
        %v2733 = vunpack.c.l.b16 %v2701
        %v2734 = vunpack.c.l.b16 %v2702
        %v2735 = vunpack.c.l.b16 %v2703
        %v2736 = vunpack.c.l.b16 %v2704
        %v2737 = vunpack.c.l.b16 %v2705
        %v2738 = vunpack.c.l.b16 %v2706
        %v2739 = vunpack.c.l.b16 %v2707
        %v2740 = vpack.c.b16 %v2725, %v2724
        %v2741 = vpack.c.b16 %v2727, %v2726
        %v2742 = vpack.c.b16 %v2729, %v2728
        %v2743 = vpack.c.b16 %v2731, %v2730
        %v2744 = vpack.c.b16 %v2733, %v2732
        %v2745 = vpack.c.b16 %v2735, %v2734
        %v2746 = vpack.c.b16 %v2737, %v2736
        %v2747 = vpack.c.b16 %v2739, %v2738
        %2756 = vmatprep.subr.bf16.mxu0 0
        %2757 = vmatpush1.bf16.msra.mxu0 %v2740
        %2758 = vmatprep.subr.bf16.mxu0 0
        %2759 = vmatpush1.bf16.msra.mxu0 %v2741
        %2760 = vmatprep.subr.bf16.mxu0 0
        %2761 = vmatpush1.bf16.msra.mxu0 %v2742
        %2762 = vmatprep.subr.bf16.mxu0 0
        %2763 = vmatpush1.bf16.msra.mxu0 %v2743
        %2764 = vmatprep.subr.bf16.mxu0 0
        %2765 = vmatpush1.bf16.msra.mxu0 %v2744
        %2766 = vmatprep.subr.bf16.mxu0 0
        %2767 = vmatpush1.bf16.msra.mxu0 %v2745
        %2768 = vmatprep.subr.bf16.mxu0 0
        %2769 = vmatpush1.bf16.msra.mxu0 %v2746
        %2770 = vmatprep.subr.bf16.mxu0 0
        %2771 = vmatpush1.bf16.msra.mxu0 %v2747
        %2772 = vmatprep.subr.bf16.mxu0 0
        %2773 = vmatpush1.bf16.msra.mxu0 0
        %2774 = vmatprep.subr.bf16.mxu0 0
        %2775 = vmatpush1.bf16.msra.mxu0 0
        %2776 = vmatprep.subr.bf16.mxu0 0
        %2777 = vmatpush1.bf16.msra.mxu0 0
        %2778 = vmatprep.subr.bf16.mxu0 0
        %2779 = vmatpush1.bf16.msra.mxu0 0
        %2780 = vmatprep.subr.bf16.mxu0 0
        %2781 = vmatpush1.bf16.msra.mxu0 0
        %2782 = vmatprep.subr.bf16.mxu0 0
        %2783 = vmatpush1.bf16.msra.mxu0 0
        %2784 = vmatprep.subr.bf16.mxu0 0
        %2785 = vmatpush1.bf16.msra.mxu0 0
        %2786 = vmatprep.subr.bf16.mxu0 0
        %2787 = vmatpush1.bf16.msra.mxu0 0
        %2788 = vmatprep.mubr.bf16.mxu0 0
        %2789 = vmatmul.mubr.bf16.gmra.mrb[0].mxu0 %v2683
        %v2790 = vpop.f32.mrb[0].mxu0
        %v2791 = vadd.f32 0.0, %v2790
        %v2792 = vpop.f32.mrb[0].mxu0
        %v2793 = vpop.f32.mrb[0].mxu0
        %v2794 = vadd.f32 0.0, %v2793
        %v2795 = vpop.f32.mrb[0].mxu0
        %2796 = vmatprep.mubr.bf16.mxu0 0
        %2797 = vmatmul.mubr.bf16.gmra.mrb[0].mxu0 %v2684
        %v2798 = vpop.f32.mrb[0].mxu0
        %v2799 = vadd.f32 0.0, %v2798
        %v2800 = vpop.f32.mrb[0].mxu0
        %v2801 = vpop.f32.mrb[0].mxu0
        %v2802 = vadd.f32 0.0, %v2801
        %v2803 = vpop.f32.mrb[0].mxu0
        %2804 = vmatprep.mubr.bf16.mxu0 0
        %2805 = vmatmul.mubr.bf16.gmra.mrb[0].mxu0 %v2685
        %v2806 = vpop.f32.mrb[0].mxu0
        %v2807 = vadd.f32 0.0, %v2806
        %v2808 = vpop.f32.mrb[0].mxu0
        %v2809 = vpop.f32.mrb[0].mxu0
        %v2810 = vadd.f32 0.0, %v2809
        %v2811 = vpop.f32.mrb[0].mxu0
        %2812 = vmatprep.mubr.bf16.mxu0 0
        %2813 = vmatmul.mubr.bf16.gmra.mrb[0].mxu0 %v2686
        %v2814 = vpop.f32.mrb[0].mxu0
        %v2815 = vadd.f32 0.0, %v2814
        %v2816 = vpop.f32.mrb[0].mxu0
        %v2817 = vpop.f32.mrb[0].mxu0
        %v2818 = vadd.f32 0.0, %v2817
        %v2819 = vpop.f32.mrb[0].mxu0
        %2820 = vmatprep.mubr.bf16.mxu0 0
        %2821 = vmatmul.mubr.bf16.gmra.mrb[0].mxu0 %v2687
        %v2822 = vpop.f32.mrb[0].mxu0
        %v2823 = vadd.f32 0.0, %v2822
        %v2824 = vpop.f32.mrb[0].mxu0
        %v2825 = vpop.f32.mrb[0].mxu0
        %v2826 = vadd.f32 0.0, %v2825
        %v2827 = vpop.f32.mrb[0].mxu0
        %2828 = vmatprep.mubr.bf16.mxu0 0
        %2829 = vmatmul.mubr.bf16.gmra.mrb[0].mxu0 %v2688
        %v2830 = vpop.f32.mrb[0].mxu0
        %v2831 = vadd.f32 0.0, %v2830
        %v2832 = vpop.f32.mrb[0].mxu0
        %v2833 = vpop.f32.mrb[0].mxu0
        %v2834 = vadd.f32 0.0, %v2833
        %v2835 = vpop.f32.mrb[0].mxu0
        %2836 = vmatprep.mubr.bf16.mxu0 0
        %2837 = vmatmul.mubr.bf16.gmra.mrb[0].mxu0 %v2689
        %v2838 = vpop.f32.mrb[0].mxu0
        %v2839 = vadd.f32 0.0, %v2838
        %v2840 = vpop.f32.mrb[0].mxu0
        %v2841 = vpop.f32.mrb[0].mxu0
        %v2842 = vadd.f32 0.0, %v2841
        %v2843 = vpop.f32.mrb[0].mxu0
        %2844 = vmatprep.mubr.bf16.mxu0 0
        %2845 = vmatmul.mubr.bf16.gmra.mrb[0].mxu0 %v2690
        %v2846 = vpop.f32.mrb[0].mxu0
        %v2847 = vadd.f32 0.0, %v2846
        %v2848 = vpop.f32.mrb[0].mxu0
        %v2849 = vpop.f32.mrb[0].mxu0
        %v2850 = vadd.f32 0.0, %v2849
        %v2851 = vpop.f32.mrb[0].mxu0
        %2852 = vdwg.mxu0
        %v2853 = vadd.f32 %v2605, %v2791
        %v2854 = vadd.f32 %v2608, %v2794
        %v2855 = vadd.f32 %v2613, %v2799
        %v2856 = vadd.f32 %v2616, %v2802
        %v2857 = vadd.f32 %v2621, %v2807
        %v2858 = vadd.f32 %v2624, %v2810
        %v2859 = vadd.f32 %v2629, %v2815
        %v2860 = vadd.f32 %v2632, %v2818
        %v2861 = vadd.f32 %v2637, %v2823
        %v2862 = vadd.f32 %v2640, %v2826
        %v2863 = vadd.f32 %v2645, %v2831
        %v2864 = vadd.f32 %v2648, %v2834
        %v2865 = vadd.f32 %v2653, %v2839
        %v2866 = vadd.f32 %v2656, %v2842
        %v2867 = vadd.f32 %v2661, %v2847
        %v2868 = vadd.f32 %v2664, %v2850
        %v2869 = vld [vmem:[%s246] sm:$0xff]
        %v2870 = vld [vmem:[%s246 + $0x8] sm:$0xff]
        %v2871 = vld [vmem:[%s246 + $0x18] sm:$0xff]
        %v2872 = vld [vmem:[%s246 + $0x20] sm:$0xff]
        %v2873 = vld [vmem:[%s246 + $0x30] sm:$0xff]
        %v2874 = vld [vmem:[%s246 + $0x38] sm:$0xff]
        %v2875 = vld [vmem:[%s246 + $0x48] sm:$0xff]
        %v2876 = vld [vmem:[%s246 + $0x50] sm:$0xff]
        %v2877 = vld [vmem:[%s246 + $0x60] sm:$0xff]
        %v2878 = vld [vmem:[%s246 + $0x68] sm:$0xff]
        %v2879 = vld [vmem:[%s246 + $0x78] sm:$0xff]
        %v2880 = vld [vmem:[%s246 + $0x80] sm:$0xff]
        %v2881 = vld [vmem:[%s246 + $0x90] sm:$0xff]
        %v2882 = vld [vmem:[%s246 + $0x98] sm:$0xff]
        %v2883 = vld [vmem:[%s246 + $0xa8] sm:$0xff]
        %v2884 = vld [vmem:[%s246 + $0xb0] sm:$0xff]
        %v2885 = vpack.c.bf16 %v2870, %v2869
        %v2886 = vpack.c.bf16 %v2872, %v2871
        %v2887 = vpack.c.bf16 %v2874, %v2873
        %v2888 = vpack.c.bf16 %v2876, %v2875
        %v2889 = vpack.c.bf16 %v2878, %v2877
        %v2890 = vpack.c.bf16 %v2880, %v2879
        %v2891 = vpack.c.bf16 %v2882, %v2881
        %v2892 = vpack.c.bf16 %v2884, %v2883
        %s2893 = scalar_lea.vmem [#allocation3], 768
        %v2894 = vld [vmem:[%s2893] sm:$0xf]
        %v2895 = vld [vmem:[%s2893 + $0x4] sm:$0xf]
        %v2896 = vld [vmem:[%s2893 + $0x8] sm:$0xf]
        %v2897 = vld [vmem:[%s2893 + $0xc] sm:$0xf]
        %v2898 = vld [vmem:[%s2893 + $0x10] sm:$0xf]
        %v2899 = vld [vmem:[%s2893 + $0x14] sm:$0xf]
        %v2900 = vld [vmem:[%s2893 + $0x18] sm:$0xf]
        %v2901 = vld [vmem:[%s2893 + $0x1c] sm:$0xf]
        %v2902 = vld [vmem:[%s2893 + $0x20] sm:$0xf]
        %v2903 = vld [vmem:[%s2893 + $0x24] sm:$0xf]
        %v2904 = vld [vmem:[%s2893 + $0x28] sm:$0xf]
        %v2905 = vld [vmem:[%s2893 + $0x2c] sm:$0xf]
        %v2906 = vld [vmem:[%s2893 + $0x30] sm:$0xf]
        %v2907 = vld [vmem:[%s2893 + $0x34] sm:$0xf]
        %v2908 = vld [vmem:[%s2893 + $0x38] sm:$0xf]
        %v2909 = vld [vmem:[%s2893 + $0x3c] sm:$0xf]
        %v2926 = vunpack.c.l.b16 %v2894
        %v2927 = vunpack.c.l.b16 %v2895
        %v2928 = vunpack.c.l.b16 %v2896
        %v2929 = vunpack.c.l.b16 %v2897
        %v2930 = vunpack.c.l.b16 %v2898
        %v2931 = vunpack.c.l.b16 %v2899
        %v2932 = vunpack.c.l.b16 %v2900
        %v2933 = vunpack.c.l.b16 %v2901
        %v2934 = vunpack.c.l.b16 %v2902
        %v2935 = vunpack.c.l.b16 %v2903
        %v2936 = vunpack.c.l.b16 %v2904
        %v2937 = vunpack.c.l.b16 %v2905
        %v2938 = vunpack.c.l.b16 %v2906
        %v2939 = vunpack.c.l.b16 %v2907
        %v2940 = vunpack.c.l.b16 %v2908
        %v2941 = vunpack.c.l.b16 %v2909
        %v2942 = vpack.c.b16 %v2927, %v2926
        %v2943 = vpack.c.b16 %v2929, %v2928
        %v2944 = vpack.c.b16 %v2931, %v2930
        %v2945 = vpack.c.b16 %v2933, %v2932
        %v2946 = vpack.c.b16 %v2935, %v2934
        %v2947 = vpack.c.b16 %v2937, %v2936
        %v2948 = vpack.c.b16 %v2939, %v2938
        %v2949 = vpack.c.b16 %v2941, %v2940
        %2958 = vmatprep.subr.bf16.mxu0 0
        %2959 = vmatpush1.bf16.msra.mxu0 %v2942
        %2960 = vmatprep.subr.bf16.mxu0 0
        %2961 = vmatpush1.bf16.msra.mxu0 %v2943
        %2962 = vmatprep.subr.bf16.mxu0 0
        %2963 = vmatpush1.bf16.msra.mxu0 %v2944
        %2964 = vmatprep.subr.bf16.mxu0 0
        %2965 = vmatpush1.bf16.msra.mxu0 %v2945
        %2966 = vmatprep.subr.bf16.mxu0 0
        %2967 = vmatpush1.bf16.msra.mxu0 %v2946
        %2968 = vmatprep.subr.bf16.mxu0 0
        %2969 = vmatpush1.bf16.msra.mxu0 %v2947
        %2970 = vmatprep.subr.bf16.mxu0 0
        %2971 = vmatpush1.bf16.msra.mxu0 %v2948
        %2972 = vmatprep.subr.bf16.mxu0 0
        %2973 = vmatpush1.bf16.msra.mxu0 %v2949
        %2974 = vmatprep.subr.bf16.mxu0 0
        %2975 = vmatpush1.bf16.msra.mxu0 0
        %2976 = vmatprep.subr.bf16.mxu0 0
        %2977 = vmatpush1.bf16.msra.mxu0 0
        %2978 = vmatprep.subr.bf16.mxu0 0
        %2979 = vmatpush1.bf16.msra.mxu0 0
        %2980 = vmatprep.subr.bf16.mxu0 0
        %2981 = vmatpush1.bf16.msra.mxu0 0
        %2982 = vmatprep.subr.bf16.mxu0 0
        %2983 = vmatpush1.bf16.msra.mxu0 0
        %2984 = vmatprep.subr.bf16.mxu0 0
        %2985 = vmatpush1.bf16.msra.mxu0 0
        %2986 = vmatprep.subr.bf16.mxu0 0
        %2987 = vmatpush1.bf16.msra.mxu0 0
        %2988 = vmatprep.subr.bf16.mxu0 0
        %2989 = vmatpush1.bf16.msra.mxu0 0
        %2990 = vmatprep.mubr.bf16.mxu0 0
        %2991 = vmatmul.mubr.bf16.gmra.mrb[0].mxu0 %v2885
        %v2992 = vpop.f32.mrb[0].mxu0
        %v2993 = vadd.f32 0.0, %v2992
        %v2994 = vpop.f32.mrb[0].mxu0
        %v2995 = vpop.f32.mrb[0].mxu0
        %v2996 = vadd.f32 0.0, %v2995
        %v2997 = vpop.f32.mrb[0].mxu0
        %2998 = vmatprep.mubr.bf16.mxu0 0
        %2999 = vmatmul.mubr.bf16.gmra.mrb[0].mxu0 %v2886
        %v3000 = vpop.f32.mrb[0].mxu0
        %v3001 = vadd.f32 0.0, %v3000
        %v3002 = vpop.f32.mrb[0].mxu0
        %v3003 = vpop.f32.mrb[0].mxu0
        %v3004 = vadd.f32 0.0, %v3003
        %v3005 = vpop.f32.mrb[0].mxu0
        %3006 = vmatprep.mubr.bf16.mxu0 0
        %3007 = vmatmul.mubr.bf16.gmra.mrb[0].mxu0 %v2887
        %v3008 = vpop.f32.mrb[0].mxu0
        %v3009 = vadd.f32 0.0, %v3008
        %v3010 = vpop.f32.mrb[0].mxu0
        %v3011 = vpop.f32.mrb[0].mxu0
        %v3012 = vadd.f32 0.0, %v3011
        %v3013 = vpop.f32.mrb[0].mxu0
        %3014 = vmatprep.mubr.bf16.mxu0 0
        %3015 = vmatmul.mubr.bf16.gmra.mrb[0].mxu0 %v2888
        %v3016 = vpop.f32.mrb[0].mxu0
        %v3017 = vadd.f32 0.0, %v3016
        %v3018 = vpop.f32.mrb[0].mxu0
        %v3019 = vpop.f32.mrb[0].mxu0
        %v3020 = vadd.f32 0.0, %v3019
        %v3021 = vpop.f32.mrb[0].mxu0
        %3022 = vmatprep.mubr.bf16.mxu0 0
        %3023 = vmatmul.mubr.bf16.gmra.mrb[0].mxu0 %v2889
        %v3024 = vpop.f32.mrb[0].mxu0
        %v3025 = vadd.f32 0.0, %v3024
        %v3026 = vpop.f32.mrb[0].mxu0
        %v3027 = vpop.f32.mrb[0].mxu0
        %v3028 = vadd.f32 0.0, %v3027
        %v3029 = vpop.f32.mrb[0].mxu0
        %3030 = vmatprep.mubr.bf16.mxu0 0
        %3031 = vmatmul.mubr.bf16.gmra.mrb[0].mxu0 %v2890
        %v3032 = vpop.f32.mrb[0].mxu0
        %v3033 = vadd.f32 0.0, %v3032
        %v3034 = vpop.f32.mrb[0].mxu0
        %v3035 = vpop.f32.mrb[0].mxu0
        %v3036 = vadd.f32 0.0, %v3035
        %v3037 = vpop.f32.mrb[0].mxu0
        %3038 = vmatprep.mubr.bf16.mxu0 0
        %3039 = vmatmul.mubr.bf16.gmra.mrb[0].mxu0 %v2891
        %v3040 = vpop.f32.mrb[0].mxu0
        %v3041 = vadd.f32 0.0, %v3040
        %v3042 = vpop.f32.mrb[0].mxu0
        %v3043 = vpop.f32.mrb[0].mxu0
        %v3044 = vadd.f32 0.0, %v3043
        %v3045 = vpop.f32.mrb[0].mxu0
        %3046 = vmatprep.mubr.bf16.mxu0 0
        %3047 = vmatmul.mubr.bf16.gmra.mrb[0].mxu0 %v2892
        %v3048 = vpop.f32.mrb[0].mxu0
        %v3049 = vadd.f32 0.0, %v3048
        %v3050 = vpop.f32.mrb[0].mxu0
        %v3051 = vpop.f32.mrb[0].mxu0
        %v3052 = vadd.f32 0.0, %v3051
        %v3053 = vpop.f32.mrb[0].mxu0
        %3054 = vdwg.mxu0
        %v3055 = vadd.f32 %v2853, %v2993
        %v3056 = vadd.f32 %v2854, %v2996
        %v3057 = vadd.f32 %v2855, %v3001
        %v3058 = vadd.f32 %v2856, %v3004
        %v3059 = vadd.f32 %v2857, %v3009
        %v3060 = vadd.f32 %v2858, %v3012
        %v3061 = vadd.f32 %v2859, %v3017
        %v3062 = vadd.f32 %v2860, %v3020
        %v3063 = vadd.f32 %v2861, %v3025
        %v3064 = vadd.f32 %v2862, %v3028
        %v3065 = vadd.f32 %v2863, %v3033
        %v3066 = vadd.f32 %v2864, %v3036
        %v3067 = vadd.f32 %v2865, %v3041
        %v3068 = vadd.f32 %v2866, %v3044
        %v3069 = vadd.f32 %v2867, %v3049
        %v3070 = vadd.f32 %v2868, %v3052
        %v3071 = vld [vmem:[%s246 + $0x1] sm:$0xff]
        %v3072 = vld [vmem:[%s246 + $0x9] sm:$0xff]
        %v3073 = vld [vmem:[%s246 + $0x19] sm:$0xff]
        %v3074 = vld [vmem:[%s246 + $0x21] sm:$0xff]
        %v3075 = vld [vmem:[%s246 + $0x31] sm:$0xff]
        %v3076 = vld [vmem:[%s246 + $0x39] sm:$0xff]
        %v3077 = vld [vmem:[%s246 + $0x49] sm:$0xff]
        %v3078 = vld [vmem:[%s246 + $0x51] sm:$0xff]
        %v3079 = vld [vmem:[%s246 + $0x61] sm:$0xff]
        %v3080 = vld [vmem:[%s246 + $0x69] sm:$0xff]
        %v3081 = vld [vmem:[%s246 + $0x79] sm:$0xff]
        %v3082 = vld [vmem:[%s246 + $0x81] sm:$0xff]
        %v3083 = vld [vmem:[%s246 + $0x91] sm:$0xff]
        %v3084 = vld [vmem:[%s246 + $0x99] sm:$0xff]
        %v3085 = vld [vmem:[%s246 + $0xa9] sm:$0xff]
        %v3086 = vld [vmem:[%s246 + $0xb1] sm:$0xff]
        %v3087 = vpack.c.bf16 %v3072, %v3071
        %v3088 = vpack.c.bf16 %v3074, %v3073
        %v3089 = vpack.c.bf16 %v3076, %v3075
        %v3090 = vpack.c.bf16 %v3078, %v3077
        %v3091 = vpack.c.bf16 %v3080, %v3079
        %v3092 = vpack.c.bf16 %v3082, %v3081
        %v3093 = vpack.c.bf16 %v3084, %v3083
        %v3094 = vpack.c.bf16 %v3086, %v3085
        %s3095 = scalar_lea.vmem [#allocation3], 832
        %v3096 = vld [vmem:[%s3095] sm:$0xf]
        %v3097 = vld [vmem:[%s3095 + $0x4] sm:$0xf]
        %v3098 = vld [vmem:[%s3095 + $0x8] sm:$0xf]
        %v3099 = vld [vmem:[%s3095 + $0xc] sm:$0xf]
        %v3100 = vld [vmem:[%s3095 + $0x10] sm:$0xf]
        %v3101 = vld [vmem:[%s3095 + $0x14] sm:$0xf]
        %v3102 = vld [vmem:[%s3095 + $0x18] sm:$0xf]
        %v3103 = vld [vmem:[%s3095 + $0x1c] sm:$0xf]
        %v3104 = vld [vmem:[%s3095 + $0x20] sm:$0xf]
        %v3105 = vld [vmem:[%s3095 + $0x24] sm:$0xf]
        %v3106 = vld [vmem:[%s3095 + $0x28] sm:$0xf]
        %v3107 = vld [vmem:[%s3095 + $0x2c] sm:$0xf]
        %v3108 = vld [vmem:[%s3095 + $0x30] sm:$0xf]
        %v3109 = vld [vmem:[%s3095 + $0x34] sm:$0xf]
        %v3110 = vld [vmem:[%s3095 + $0x38] sm:$0xf]
        %v3111 = vld [vmem:[%s3095 + $0x3c] sm:$0xf]
        %v3128 = vunpack.c.l.b16 %v3096
        %v3129 = vunpack.c.l.b16 %v3097
        %v3130 = vunpack.c.l.b16 %v3098
        %v3131 = vunpack.c.l.b16 %v3099
        %v3132 = vunpack.c.l.b16 %v3100
        %v3133 = vunpack.c.l.b16 %v3101
        %v3134 = vunpack.c.l.b16 %v3102
        %v3135 = vunpack.c.l.b16 %v3103
        %v3136 = vunpack.c.l.b16 %v3104
        %v3137 = vunpack.c.l.b16 %v3105
        %v3138 = vunpack.c.l.b16 %v3106
        %v3139 = vunpack.c.l.b16 %v3107
        %v3140 = vunpack.c.l.b16 %v3108
        %v3141 = vunpack.c.l.b16 %v3109
        %v3142 = vunpack.c.l.b16 %v3110
        %v3143 = vunpack.c.l.b16 %v3111
        %v3144 = vpack.c.b16 %v3129, %v3128
        %v3145 = vpack.c.b16 %v3131, %v3130
        %v3146 = vpack.c.b16 %v3133, %v3132
        %v3147 = vpack.c.b16 %v3135, %v3134
        %v3148 = vpack.c.b16 %v3137, %v3136
        %v3149 = vpack.c.b16 %v3139, %v3138
        %v3150 = vpack.c.b16 %v3141, %v3140
        %v3151 = vpack.c.b16 %v3143, %v3142
        %3160 = vmatprep.subr.bf16.mxu0 0
        %3161 = vmatpush1.bf16.msra.mxu0 %v3144
        %3162 = vmatprep.subr.bf16.mxu0 0
        %3163 = vmatpush1.bf16.msra.mxu0 %v3145
        %3164 = vmatprep.subr.bf16.mxu0 0
        %3165 = vmatpush1.bf16.msra.mxu0 %v3146
        %3166 = vmatprep.subr.bf16.mxu0 0
        %3167 = vmatpush1.bf16.msra.mxu0 %v3147
        %3168 = vmatprep.subr.bf16.mxu0 0
        %3169 = vmatpush1.bf16.msra.mxu0 %v3148
        %3170 = vmatprep.subr.bf16.mxu0 0
        %3171 = vmatpush1.bf16.msra.mxu0 %v3149
        %3172 = vmatprep.subr.bf16.mxu0 0
        %3173 = vmatpush1.bf16.msra.mxu0 %v3150
        %3174 = vmatprep.subr.bf16.mxu0 0
        %3175 = vmatpush1.bf16.msra.mxu0 %v3151
        %3176 = vmatprep.subr.bf16.mxu0 0
        %3177 = vmatpush1.bf16.msra.mxu0 0
        %3178 = vmatprep.subr.bf16.mxu0 0
        %3179 = vmatpush1.bf16.msra.mxu0 0
        %3180 = vmatprep.subr.bf16.mxu0 0
        %3181 = vmatpush1.bf16.msra.mxu0 0
        %3182 = vmatprep.subr.bf16.mxu0 0
        %3183 = vmatpush1.bf16.msra.mxu0 0
        %3184 = vmatprep.subr.bf16.mxu0 0
        %3185 = vmatpush1.bf16.msra.mxu0 0
        %3186 = vmatprep.subr.bf16.mxu0 0
        %3187 = vmatpush1.bf16.msra.mxu0 0
        %3188 = vmatprep.subr.bf16.mxu0 0
        %3189 = vmatpush1.bf16.msra.mxu0 0
        %3190 = vmatprep.subr.bf16.mxu0 0
        %3191 = vmatpush1.bf16.msra.mxu0 0
        %3192 = vmatprep.mubr.bf16.mxu0 0
        %3193 = vmatmul.mubr.bf16.gmra.mrb[0].mxu0 %v3087
        %v3194 = vpop.f32.mrb[0].mxu0
        %v3195 = vadd.f32 0.0, %v3194
        %v3196 = vpop.f32.mrb[0].mxu0
        %v3197 = vpop.f32.mrb[0].mxu0
        %v3198 = vadd.f32 0.0, %v3197
        %v3199 = vpop.f32.mrb[0].mxu0
        %3200 = vmatprep.mubr.bf16.mxu0 0
        %3201 = vmatmul.mubr.bf16.gmra.mrb[0].mxu0 %v3088
        %v3202 = vpop.f32.mrb[0].mxu0
        %v3203 = vadd.f32 0.0, %v3202
        %v3204 = vpop.f32.mrb[0].mxu0
        %v3205 = vpop.f32.mrb[0].mxu0
        %v3206 = vadd.f32 0.0, %v3205
        %v3207 = vpop.f32.mrb[0].mxu0
        %3208 = vmatprep.mubr.bf16.mxu0 0
        %3209 = vmatmul.mubr.bf16.gmra.mrb[0].mxu0 %v3089
        %v3210 = vpop.f32.mrb[0].mxu0
        %v3211 = vadd.f32 0.0, %v3210
        %v3212 = vpop.f32.mrb[0].mxu0
        %v3213 = vpop.f32.mrb[0].mxu0
        %v3214 = vadd.f32 0.0, %v3213
        %v3215 = vpop.f32.mrb[0].mxu0
        %3216 = vmatprep.mubr.bf16.mxu0 0
        %3217 = vmatmul.mubr.bf16.gmra.mrb[0].mxu0 %v3090
        %v3218 = vpop.f32.mrb[0].mxu0
        %v3219 = vadd.f32 0.0, %v3218
        %v3220 = vpop.f32.mrb[0].mxu0
        %v3221 = vpop.f32.mrb[0].mxu0
        %v3222 = vadd.f32 0.0, %v3221
        %v3223 = vpop.f32.mrb[0].mxu0
        %3224 = vmatprep.mubr.bf16.mxu0 0
        %3225 = vmatmul.mubr.bf16.gmra.mrb[0].mxu0 %v3091
        %v3226 = vpop.f32.mrb[0].mxu0
        %v3227 = vadd.f32 0.0, %v3226
        %v3228 = vpop.f32.mrb[0].mxu0
        %v3229 = vpop.f32.mrb[0].mxu0
        %v3230 = vadd.f32 0.0, %v3229
        %v3231 = vpop.f32.mrb[0].mxu0
        %3232 = vmatprep.mubr.bf16.mxu0 0
        %3233 = vmatmul.mubr.bf16.gmra.mrb[0].mxu0 %v3092
        %v3234 = vpop.f32.mrb[0].mxu0
        %v3235 = vadd.f32 0.0, %v3234
        %v3236 = vpop.f32.mrb[0].mxu0
        %v3237 = vpop.f32.mrb[0].mxu0
        %v3238 = vadd.f32 0.0, %v3237
        %v3239 = vpop.f32.mrb[0].mxu0
        %3240 = vmatprep.mubr.bf16.mxu0 0
        %3241 = vmatmul.mubr.bf16.gmra.mrb[0].mxu0 %v3093
        %v3242 = vpop.f32.mrb[0].mxu0
        %v3243 = vadd.f32 0.0, %v3242
        %v3244 = vpop.f32.mrb[0].mxu0
        %v3245 = vpop.f32.mrb[0].mxu0
        %v3246 = vadd.f32 0.0, %v3245
        %v3247 = vpop.f32.mrb[0].mxu0
        %3248 = vmatprep.mubr.bf16.mxu0 0
        %3249 = vmatmul.mubr.bf16.gmra.mrb[0].mxu0 %v3094
        %v3250 = vpop.f32.mrb[0].mxu0
        %v3251 = vadd.f32 0.0, %v3250
        %v3252 = vpop.f32.mrb[0].mxu0
        %v3253 = vpop.f32.mrb[0].mxu0
        %v3254 = vadd.f32 0.0, %v3253
        %v3255 = vpop.f32.mrb[0].mxu0
        %3256 = vdwg.mxu0
        %v3257 = vadd.f32 %v3055, %v3195
        %v3258 = vadd.f32 %v3056, %v3198
        %v3259 = vadd.f32 %v3057, %v3203
        %v3260 = vadd.f32 %v3058, %v3206
        %v3261 = vadd.f32 %v3059, %v3211
        %v3262 = vadd.f32 %v3060, %v3214
        %v3263 = vadd.f32 %v3061, %v3219
        %v3264 = vadd.f32 %v3062, %v3222
        %v3265 = vadd.f32 %v3063, %v3227
        %v3266 = vadd.f32 %v3064, %v3230
        %v3267 = vadd.f32 %v3065, %v3235
        %v3268 = vadd.f32 %v3066, %v3238
        %v3269 = vadd.f32 %v3067, %v3243
        %v3270 = vadd.f32 %v3068, %v3246
        %v3271 = vadd.f32 %v3069, %v3251
        %v3272 = vadd.f32 %v3070, %v3254
        %v3273 = vld [vmem:[%s246 + $0x2] sm:$0xff]
        %v3274 = vld [vmem:[%s246 + $0xa] sm:$0xff]
        %v3275 = vld [vmem:[%s246 + $0x1a] sm:$0xff]
        %v3276 = vld [vmem:[%s246 + $0x22] sm:$0xff]
        %v3277 = vld [vmem:[%s246 + $0x32] sm:$0xff]
        %v3278 = vld [vmem:[%s246 + $0x3a] sm:$0xff]
        %v3279 = vld [vmem:[%s246 + $0x4a] sm:$0xff]
        %v3280 = vld [vmem:[%s246 + $0x52] sm:$0xff]
        %v3281 = vld [vmem:[%s246 + $0x62] sm:$0xff]
        %v3282 = vld [vmem:[%s246 + $0x6a] sm:$0xff]
        %v3283 = vld [vmem:[%s246 + $0x7a] sm:$0xff]
        %v3284 = vld [vmem:[%s246 + $0x82] sm:$0xff]
        %v3285 = vld [vmem:[%s246 + $0x92] sm:$0xff]
        %v3286 = vld [vmem:[%s246 + $0x9a] sm:$0xff]
        %v3287 = vld [vmem:[%s246 + $0xaa] sm:$0xff]
        %v3288 = vld [vmem:[%s246 + $0xb2] sm:$0xff]
        %v3289 = vpack.c.bf16 %v3274, %v3273
        %v3290 = vpack.c.bf16 %v3276, %v3275
        %v3291 = vpack.c.bf16 %v3278, %v3277
        %v3292 = vpack.c.bf16 %v3280, %v3279
        %v3293 = vpack.c.bf16 %v3282, %v3281
        %v3294 = vpack.c.bf16 %v3284, %v3283
        %v3295 = vpack.c.bf16 %v3286, %v3285
        %v3296 = vpack.c.bf16 %v3288, %v3287
        %s3297 = scalar_lea.vmem [#allocation3], 896
        %v3298 = vld [vmem:[%s3297] sm:$0xf]
        %v3299 = vld [vmem:[%s3297 + $0x4] sm:$0xf]
        %v3300 = vld [vmem:[%s3297 + $0x8] sm:$0xf]
        %v3301 = vld [vmem:[%s3297 + $0xc] sm:$0xf]
        %v3302 = vld [vmem:[%s3297 + $0x10] sm:$0xf]
        %v3303 = vld [vmem:[%s3297 + $0x14] sm:$0xf]
        %v3304 = vld [vmem:[%s3297 + $0x18] sm:$0xf]
        %v3305 = vld [vmem:[%s3297 + $0x1c] sm:$0xf]
        %v3306 = vld [vmem:[%s3297 + $0x20] sm:$0xf]
        %v3307 = vld [vmem:[%s3297 + $0x24] sm:$0xf]
        %v3308 = vld [vmem:[%s3297 + $0x28] sm:$0xf]
        %v3309 = vld [vmem:[%s3297 + $0x2c] sm:$0xf]
        %v3310 = vld [vmem:[%s3297 + $0x30] sm:$0xf]
        %v3311 = vld [vmem:[%s3297 + $0x34] sm:$0xf]
        %v3312 = vld [vmem:[%s3297 + $0x38] sm:$0xf]
        %v3313 = vld [vmem:[%s3297 + $0x3c] sm:$0xf]
        %v3330 = vunpack.c.l.b16 %v3298
        %v3331 = vunpack.c.l.b16 %v3299
        %v3332 = vunpack.c.l.b16 %v3300
        %v3333 = vunpack.c.l.b16 %v3301
        %v3334 = vunpack.c.l.b16 %v3302
        %v3335 = vunpack.c.l.b16 %v3303
        %v3336 = vunpack.c.l.b16 %v3304
        %v3337 = vunpack.c.l.b16 %v3305
        %v3338 = vunpack.c.l.b16 %v3306
        %v3339 = vunpack.c.l.b16 %v3307
        %v3340 = vunpack.c.l.b16 %v3308
        %v3341 = vunpack.c.l.b16 %v3309
        %v3342 = vunpack.c.l.b16 %v3310
        %v3343 = vunpack.c.l.b16 %v3311
        %v3344 = vunpack.c.l.b16 %v3312
        %v3345 = vunpack.c.l.b16 %v3313
        %v3346 = vpack.c.b16 %v3331, %v3330
        %v3347 = vpack.c.b16 %v3333, %v3332
        %v3348 = vpack.c.b16 %v3335, %v3334
        %v3349 = vpack.c.b16 %v3337, %v3336
        %v3350 = vpack.c.b16 %v3339, %v3338
        %v3351 = vpack.c.b16 %v3341, %v3340
        %v3352 = vpack.c.b16 %v3343, %v3342
        %v3353 = vpack.c.b16 %v3345, %v3344
        %3362 = vmatprep.subr.bf16.mxu0 0
        %3363 = vmatpush1.bf16.msra.mxu0 %v3346
        %3364 = vmatprep.subr.bf16.mxu0 0
        %3365 = vmatpush1.bf16.msra.mxu0 %v3347
        %3366 = vmatprep.subr.bf16.mxu0 0
        %3367 = vmatpush1.bf16.msra.mxu0 %v3348
        %3368 = vmatprep.subr.bf16.mxu0 0
        %3369 = vmatpush1.bf16.msra.mxu0 %v3349
        %3370 = vmatprep.subr.bf16.mxu0 0
        %3371 = vmatpush1.bf16.msra.mxu0 %v3350
        %3372 = vmatprep.subr.bf16.mxu0 0
        %3373 = vmatpush1.bf16.msra.mxu0 %v3351
        %3374 = vmatprep.subr.bf16.mxu0 0
        %3375 = vmatpush1.bf16.msra.mxu0 %v3352
        %3376 = vmatprep.subr.bf16.mxu0 0
        %3377 = vmatpush1.bf16.msra.mxu0 %v3353
        %3378 = vmatprep.subr.bf16.mxu0 0
        %3379 = vmatpush1.bf16.msra.mxu0 0
        %3380 = vmatprep.subr.bf16.mxu0 0
        %3381 = vmatpush1.bf16.msra.mxu0 0
        %3382 = vmatprep.subr.bf16.mxu0 0
        %3383 = vmatpush1.bf16.msra.mxu0 0
        %3384 = vmatprep.subr.bf16.mxu0 0
        %3385 = vmatpush1.bf16.msra.mxu0 0
        %3386 = vmatprep.subr.bf16.mxu0 0
        %3387 = vmatpush1.bf16.msra.mxu0 0
        %3388 = vmatprep.subr.bf16.mxu0 0
        %3389 = vmatpush1.bf16.msra.mxu0 0
        %3390 = vmatprep.subr.bf16.mxu0 0
        %3391 = vmatpush1.bf16.msra.mxu0 0
        %3392 = vmatprep.subr.bf16.mxu0 0
        %3393 = vmatpush1.bf16.msra.mxu0 0
        %3394 = vmatprep.mubr.bf16.mxu0 0
        %3395 = vmatmul.mubr.bf16.gmra.mrb[0].mxu0 %v3289
        %v3396 = vpop.f32.mrb[0].mxu0
        %v3397 = vadd.f32 0.0, %v3396
        %v3398 = vpop.f32.mrb[0].mxu0
        %v3399 = vpop.f32.mrb[0].mxu0
        %v3400 = vadd.f32 0.0, %v3399
        %v3401 = vpop.f32.mrb[0].mxu0
        %3402 = vmatprep.mubr.bf16.mxu0 0
        %3403 = vmatmul.mubr.bf16.gmra.mrb[0].mxu0 %v3290
        %v3404 = vpop.f32.mrb[0].mxu0
        %v3405 = vadd.f32 0.0, %v3404
        %v3406 = vpop.f32.mrb[0].mxu0
        %v3407 = vpop.f32.mrb[0].mxu0
        %v3408 = vadd.f32 0.0, %v3407
        %v3409 = vpop.f32.mrb[0].mxu0
        %3410 = vmatprep.mubr.bf16.mxu0 0
        %3411 = vmatmul.mubr.bf16.gmra.mrb[0].mxu0 %v3291
        %v3412 = vpop.f32.mrb[0].mxu0
        %v3413 = vadd.f32 0.0, %v3412
        %v3414 = vpop.f32.mrb[0].mxu0
        %v3415 = vpop.f32.mrb[0].mxu0
        %v3416 = vadd.f32 0.0, %v3415
        %v3417 = vpop.f32.mrb[0].mxu0
        %3418 = vmatprep.mubr.bf16.mxu0 0
        %3419 = vmatmul.mubr.bf16.gmra.mrb[0].mxu0 %v3292
        %v3420 = vpop.f32.mrb[0].mxu0
        %v3421 = vadd.f32 0.0, %v3420
        %v3422 = vpop.f32.mrb[0].mxu0
        %v3423 = vpop.f32.mrb[0].mxu0
        %v3424 = vadd.f32 0.0, %v3423
        %v3425 = vpop.f32.mrb[0].mxu0
        %3426 = vmatprep.mubr.bf16.mxu0 0
        %3427 = vmatmul.mubr.bf16.gmra.mrb[0].mxu0 %v3293
        %v3428 = vpop.f32.mrb[0].mxu0
        %v3429 = vadd.f32 0.0, %v3428
        %v3430 = vpop.f32.mrb[0].mxu0
        %v3431 = vpop.f32.mrb[0].mxu0
        %v3432 = vadd.f32 0.0, %v3431
        %v3433 = vpop.f32.mrb[0].mxu0
        %3434 = vmatprep.mubr.bf16.mxu0 0
        %3435 = vmatmul.mubr.bf16.gmra.mrb[0].mxu0 %v3294
        %v3436 = vpop.f32.mrb[0].mxu0
        %v3437 = vadd.f32 0.0, %v3436
        %v3438 = vpop.f32.mrb[0].mxu0
        %v3439 = vpop.f32.mrb[0].mxu0
        %v3440 = vadd.f32 0.0, %v3439
        %v3441 = vpop.f32.mrb[0].mxu0
        %3442 = vmatprep.mubr.bf16.mxu0 0
        %3443 = vmatmul.mubr.bf16.gmra.mrb[0].mxu0 %v3295
        %v3444 = vpop.f32.mrb[0].mxu0
        %v3445 = vadd.f32 0.0, %v3444
        %v3446 = vpop.f32.mrb[0].mxu0
        %v3447 = vpop.f32.mrb[0].mxu0
        %v3448 = vadd.f32 0.0, %v3447
        %v3449 = vpop.f32.mrb[0].mxu0
        %3450 = vmatprep.mubr.bf16.mxu0 0
        %3451 = vmatmul.mubr.bf16.gmra.mrb[0].mxu0 %v3296
        %v3452 = vpop.f32.mrb[0].mxu0
        %v3453 = vadd.f32 0.0, %v3452
        %v3454 = vpop.f32.mrb[0].mxu0
        %v3455 = vpop.f32.mrb[0].mxu0
        %v3456 = vadd.f32 0.0, %v3455
        %v3457 = vpop.f32.mrb[0].mxu0
        %3458 = vdwg.mxu0
        %v3459 = vadd.f32 %v3257, %v3397
        %v3460 = vadd.f32 %v3258, %v3400
        %v3461 = vadd.f32 %v3259, %v3405
        %v3462 = vadd.f32 %v3260, %v3408
        %v3463 = vadd.f32 %v3261, %v3413
        %v3464 = vadd.f32 %v3262, %v3416
        %v3465 = vadd.f32 %v3263, %v3421
        %v3466 = vadd.f32 %v3264, %v3424
        %v3467 = vadd.f32 %v3265, %v3429
        %v3468 = vadd.f32 %v3266, %v3432
        %v3469 = vadd.f32 %v3267, %v3437
        %v3470 = vadd.f32 %v3268, %v3440
        %v3471 = vadd.f32 %v3269, %v3445
        %v3472 = vadd.f32 %v3270, %v3448
        %v3473 = vadd.f32 %v3271, %v3453
        %v3474 = vadd.f32 %v3272, %v3456
        %v3475 = vld [vmem:[%s1443] sm:$0xff]
        %v3476 = vld [vmem:[%s1443 + $0x8] sm:$0xff]
        %v3477 = vld [vmem:[%s1443 + $0x18] sm:$0xff]
        %v3478 = vld [vmem:[%s1443 + $0x20] sm:$0xff]
        %v3479 = vld [vmem:[%s1443 + $0x30] sm:$0xff]
        %v3480 = vld [vmem:[%s1443 + $0x38] sm:$0xff]
        %v3481 = vld [vmem:[%s1443 + $0x48] sm:$0xff]
        %v3482 = vld [vmem:[%s1443 + $0x50] sm:$0xff]
        %v3483 = vld [vmem:[%s1443 + $0x60] sm:$0xff]
        %v3484 = vld [vmem:[%s1443 + $0x68] sm:$0xff]
        %v3485 = vld [vmem:[%s1443 + $0x78] sm:$0xff]
        %v3486 = vld [vmem:[%s1443 + $0x80] sm:$0xff]
        %v3487 = vld [vmem:[%s1443 + $0x90] sm:$0xff]
        %v3488 = vld [vmem:[%s1443 + $0x98] sm:$0xff]
        %v3489 = vld [vmem:[%s1443 + $0xa8] sm:$0xff]
        %v3490 = vld [vmem:[%s1443 + $0xb0] sm:$0xff]
        %v3491 = vpack.c.bf16 %v3476, %v3475
        %v3492 = vpack.c.bf16 %v3478, %v3477
        %v3493 = vpack.c.bf16 %v3480, %v3479
        %v3494 = vpack.c.bf16 %v3482, %v3481
        %v3495 = vpack.c.bf16 %v3484, %v3483
        %v3496 = vpack.c.bf16 %v3486, %v3485
        %v3497 = vpack.c.bf16 %v3488, %v3487
        %v3498 = vpack.c.bf16 %v3490, %v3489
        %s3499 = scalar_lea.vmem [#allocation3], 960
        %v3500 = vld [vmem:[%s3499] sm:$0xf]
        %v3501 = vld [vmem:[%s3499 + $0x4] sm:$0xf]
        %v3502 = vld [vmem:[%s3499 + $0x8] sm:$0xf]
        %v3503 = vld [vmem:[%s3499 + $0xc] sm:$0xf]
        %v3504 = vld [vmem:[%s3499 + $0x10] sm:$0xf]
        %v3505 = vld [vmem:[%s3499 + $0x14] sm:$0xf]
        %v3506 = vld [vmem:[%s3499 + $0x18] sm:$0xf]
        %v3507 = vld [vmem:[%s3499 + $0x1c] sm:$0xf]
        %v3508 = vld [vmem:[%s3499 + $0x20] sm:$0xf]
        %v3509 = vld [vmem:[%s3499 + $0x24] sm:$0xf]
        %v3510 = vld [vmem:[%s3499 + $0x28] sm:$0xf]
        %v3511 = vld [vmem:[%s3499 + $0x2c] sm:$0xf]
        %v3512 = vld [vmem:[%s3499 + $0x30] sm:$0xf]
        %v3513 = vld [vmem:[%s3499 + $0x34] sm:$0xf]
        %v3514 = vld [vmem:[%s3499 + $0x38] sm:$0xf]
        %v3515 = vld [vmem:[%s3499 + $0x3c] sm:$0xf]
        %v3532 = vunpack.c.l.b16 %v3500
        %v3533 = vunpack.c.l.b16 %v3501
        %v3534 = vunpack.c.l.b16 %v3502
        %v3535 = vunpack.c.l.b16 %v3503
        %v3536 = vunpack.c.l.b16 %v3504
        %v3537 = vunpack.c.l.b16 %v3505
        %v3538 = vunpack.c.l.b16 %v3506
        %v3539 = vunpack.c.l.b16 %v3507
        %v3540 = vunpack.c.l.b16 %v3508
        %v3541 = vunpack.c.l.b16 %v3509
        %v3542 = vunpack.c.l.b16 %v3510
        %v3543 = vunpack.c.l.b16 %v3511
        %v3544 = vunpack.c.l.b16 %v3512
        %v3545 = vunpack.c.l.b16 %v3513
        %v3546 = vunpack.c.l.b16 %v3514
        %v3547 = vunpack.c.l.b16 %v3515
        %v3548 = vpack.c.b16 %v3533, %v3532
        %v3549 = vpack.c.b16 %v3535, %v3534
        %v3550 = vpack.c.b16 %v3537, %v3536
        %v3551 = vpack.c.b16 %v3539, %v3538
        %v3552 = vpack.c.b16 %v3541, %v3540
        %v3553 = vpack.c.b16 %v3543, %v3542
        %v3554 = vpack.c.b16 %v3545, %v3544
        %v3555 = vpack.c.b16 %v3547, %v3546
        %3564 = vmatprep.subr.bf16.mxu0 0
        %3565 = vmatpush1.bf16.msra.mxu0 %v3548
        %3566 = vmatprep.subr.bf16.mxu0 0
        %3567 = vmatpush1.bf16.msra.mxu0 %v3549
        %3568 = vmatprep.subr.bf16.mxu0 0
        %3569 = vmatpush1.bf16.msra.mxu0 %v3550
        %3570 = vmatprep.subr.bf16.mxu0 0
        %3571 = vmatpush1.bf16.msra.mxu0 %v3551
        %3572 = vmatprep.subr.bf16.mxu0 0
        %3573 = vmatpush1.bf16.msra.mxu0 %v3552
        %3574 = vmatprep.subr.bf16.mxu0 0
        %3575 = vmatpush1.bf16.msra.mxu0 %v3553
        %3576 = vmatprep.subr.bf16.mxu0 0
        %3577 = vmatpush1.bf16.msra.mxu0 %v3554
        %3578 = vmatprep.subr.bf16.mxu0 0
        %3579 = vmatpush1.bf16.msra.mxu0 %v3555
        %3580 = vmatprep.subr.bf16.mxu0 0
        %3581 = vmatpush1.bf16.msra.mxu0 0
        %3582 = vmatprep.subr.bf16.mxu0 0
        %3583 = vmatpush1.bf16.msra.mxu0 0
        %3584 = vmatprep.subr.bf16.mxu0 0
        %3585 = vmatpush1.bf16.msra.mxu0 0
        %3586 = vmatprep.subr.bf16.mxu0 0
        %3587 = vmatpush1.bf16.msra.mxu0 0
        %3588 = vmatprep.subr.bf16.mxu0 0
        %3589 = vmatpush1.bf16.msra.mxu0 0
        %3590 = vmatprep.subr.bf16.mxu0 0
        %3591 = vmatpush1.bf16.msra.mxu0 0
        %3592 = vmatprep.subr.bf16.mxu0 0
        %3593 = vmatpush1.bf16.msra.mxu0 0
        %3594 = vmatprep.subr.bf16.mxu0 0
        %3595 = vmatpush1.bf16.msra.mxu0 0
        %3596 = vmatprep.mubr.bf16.mxu0 0
        %3597 = vmatmul.mubr.bf16.gmra.mrb[0].mxu0 %v3491
        %v3598 = vpop.f32.mrb[0].mxu0
        %v3599 = vadd.f32 0.0, %v3598
        %v3600 = vpop.f32.mrb[0].mxu0
        %v3601 = vpop.f32.mrb[0].mxu0
        %v3602 = vadd.f32 0.0, %v3601
        %v3603 = vpop.f32.mrb[0].mxu0
        %3604 = vmatprep.mubr.bf16.mxu0 0
        %3605 = vmatmul.mubr.bf16.gmra.mrb[0].mxu0 %v3492
        %v3606 = vpop.f32.mrb[0].mxu0
        %v3607 = vadd.f32 0.0, %v3606
        %v3608 = vpop.f32.mrb[0].mxu0
        %v3609 = vpop.f32.mrb[0].mxu0
        %v3610 = vadd.f32 0.0, %v3609
        %v3611 = vpop.f32.mrb[0].mxu0
        %3612 = vmatprep.mubr.bf16.mxu0 0
        %3613 = vmatmul.mubr.bf16.gmra.mrb[0].mxu0 %v3493
        %v3614 = vpop.f32.mrb[0].mxu0
        %v3615 = vadd.f32 0.0, %v3614
        %v3616 = vpop.f32.mrb[0].mxu0
        %v3617 = vpop.f32.mrb[0].mxu0
        %v3618 = vadd.f32 0.0, %v3617
        %v3619 = vpop.f32.mrb[0].mxu0
        %3620 = vmatprep.mubr.bf16.mxu0 0
        %3621 = vmatmul.mubr.bf16.gmra.mrb[0].mxu0 %v3494
        %v3622 = vpop.f32.mrb[0].mxu0
        %v3623 = vadd.f32 0.0, %v3622
        %v3624 = vpop.f32.mrb[0].mxu0
        %v3625 = vpop.f32.mrb[0].mxu0
        %v3626 = vadd.f32 0.0, %v3625
        %v3627 = vpop.f32.mrb[0].mxu0
        %3628 = vmatprep.mubr.bf16.mxu0 0
        %3629 = vmatmul.mubr.bf16.gmra.mrb[0].mxu0 %v3495
        %v3630 = vpop.f32.mrb[0].mxu0
        %v3631 = vadd.f32 0.0, %v3630
        %v3632 = vpop.f32.mrb[0].mxu0
        %v3633 = vpop.f32.mrb[0].mxu0
        %v3634 = vadd.f32 0.0, %v3633
        %v3635 = vpop.f32.mrb[0].mxu0
        %3636 = vmatprep.mubr.bf16.mxu0 0
        %3637 = vmatmul.mubr.bf16.gmra.mrb[0].mxu0 %v3496
        %v3638 = vpop.f32.mrb[0].mxu0
        %v3639 = vadd.f32 0.0, %v3638
        %v3640 = vpop.f32.mrb[0].mxu0
        %v3641 = vpop.f32.mrb[0].mxu0
        %v3642 = vadd.f32 0.0, %v3641
        %v3643 = vpop.f32.mrb[0].mxu0
        %3644 = vmatprep.mubr.bf16.mxu0 0
        %3645 = vmatmul.mubr.bf16.gmra.mrb[0].mxu0 %v3497
        %v3646 = vpop.f32.mrb[0].mxu0
        %v3647 = vadd.f32 0.0, %v3646
        %v3648 = vpop.f32.mrb[0].mxu0
        %v3649 = vpop.f32.mrb[0].mxu0
        %v3650 = vadd.f32 0.0, %v3649
        %v3651 = vpop.f32.mrb[0].mxu0
        %3652 = vmatprep.mubr.bf16.mxu0 0
        %3653 = vmatmul.mubr.bf16.gmra.mrb[0].mxu0 %v3498
        %v3654 = vpop.f32.mrb[0].mxu0
        %v3655 = vadd.f32 0.0, %v3654
        %v3656 = vpop.f32.mrb[0].mxu0
        %v3657 = vpop.f32.mrb[0].mxu0
        %v3658 = vadd.f32 0.0, %v3657
        %v3659 = vpop.f32.mrb[0].mxu0
        %3660 = vdwg.mxu0
        %v3661 = vadd.f32 %v3459, %v3599
        %v3662 = vadd.f32 %v3460, %v3602
        %v3663 = vadd.f32 %v3461, %v3607
        %v3664 = vadd.f32 %v3462, %v3610
        %v3665 = vadd.f32 %v3463, %v3615
        %v3666 = vadd.f32 %v3464, %v3618
        %v3667 = vadd.f32 %v3465, %v3623
        %v3668 = vadd.f32 %v3466, %v3626
        %v3669 = vadd.f32 %v3467, %v3631
        %v3670 = vadd.f32 %v3468, %v3634
        %v3671 = vadd.f32 %v3469, %v3639
        %v3672 = vadd.f32 %v3470, %v3642
        %v3673 = vadd.f32 %v3471, %v3647
        %v3674 = vadd.f32 %v3472, %v3650
        %v3675 = vadd.f32 %v3473, %v3655
        %v3676 = vadd.f32 %v3474, %v3658
        %v3677 = vld [vmem:[%s1443 + $0x1] sm:$0xff]
        %v3678 = vld [vmem:[%s1443 + $0x9] sm:$0xff]
        %v3679 = vld [vmem:[%s1443 + $0x19] sm:$0xff]
        %v3680 = vld [vmem:[%s1443 + $0x21] sm:$0xff]
        %v3681 = vld [vmem:[%s1443 + $0x31] sm:$0xff]
        %v3682 = vld [vmem:[%s1443 + $0x39] sm:$0xff]
        %v3683 = vld [vmem:[%s1443 + $0x49] sm:$0xff]
        %v3684 = vld [vmem:[%s1443 + $0x51] sm:$0xff]
        %v3685 = vld [vmem:[%s1443 + $0x61] sm:$0xff]
        %v3686 = vld [vmem:[%s1443 + $0x69] sm:$0xff]
        %v3687 = vld [vmem:[%s1443 + $0x79] sm:$0xff]
        %v3688 = vld [vmem:[%s1443 + $0x81] sm:$0xff]
        %v3689 = vld [vmem:[%s1443 + $0x91] sm:$0xff]
        %v3690 = vld [vmem:[%s1443 + $0x99] sm:$0xff]
        %v3691 = vld [vmem:[%s1443 + $0xa9] sm:$0xff]
        %v3692 = vld [vmem:[%s1443 + $0xb1] sm:$0xff]
        %v3693 = vpack.c.bf16 %v3678, %v3677
        %v3694 = vpack.c.bf16 %v3680, %v3679
        %v3695 = vpack.c.bf16 %v3682, %v3681
        %v3696 = vpack.c.bf16 %v3684, %v3683
        %v3697 = vpack.c.bf16 %v3686, %v3685
        %v3698 = vpack.c.bf16 %v3688, %v3687
        %v3699 = vpack.c.bf16 %v3690, %v3689
        %v3700 = vpack.c.bf16 %v3692, %v3691
        %s3701 = scalar_lea.vmem [#allocation3], 1024
        %v3702 = vld [vmem:[%s3701] sm:$0xf]
        %v3703 = vld [vmem:[%s3701 + $0x4] sm:$0xf]
        %v3704 = vld [vmem:[%s3701 + $0x8] sm:$0xf]
        %v3705 = vld [vmem:[%s3701 + $0xc] sm:$0xf]
        %v3706 = vld [vmem:[%s3701 + $0x10] sm:$0xf]
        %v3707 = vld [vmem:[%s3701 + $0x14] sm:$0xf]
        %v3708 = vld [vmem:[%s3701 + $0x18] sm:$0xf]
        %v3709 = vld [vmem:[%s3701 + $0x1c] sm:$0xf]
        %v3710 = vld [vmem:[%s3701 + $0x20] sm:$0xf]
        %v3711 = vld [vmem:[%s3701 + $0x24] sm:$0xf]
        %v3712 = vld [vmem:[%s3701 + $0x28] sm:$0xf]
        %v3713 = vld [vmem:[%s3701 + $0x2c] sm:$0xf]
        %v3714 = vld [vmem:[%s3701 + $0x30] sm:$0xf]
        %v3715 = vld [vmem:[%s3701 + $0x34] sm:$0xf]
        %v3716 = vld [vmem:[%s3701 + $0x38] sm:$0xf]
        %v3717 = vld [vmem:[%s3701 + $0x3c] sm:$0xf]
        %v3734 = vunpack.c.l.b16 %v3702
        %v3735 = vunpack.c.l.b16 %v3703
        %v3736 = vunpack.c.l.b16 %v3704
        %v3737 = vunpack.c.l.b16 %v3705
        %v3738 = vunpack.c.l.b16 %v3706
        %v3739 = vunpack.c.l.b16 %v3707
        %v3740 = vunpack.c.l.b16 %v3708
        %v3741 = vunpack.c.l.b16 %v3709
        %v3742 = vunpack.c.l.b16 %v3710
        %v3743 = vunpack.c.l.b16 %v3711
        %v3744 = vunpack.c.l.b16 %v3712
        %v3745 = vunpack.c.l.b16 %v3713
        %v3746 = vunpack.c.l.b16 %v3714
        %v3747 = vunpack.c.l.b16 %v3715
        %v3748 = vunpack.c.l.b16 %v3716
        %v3749 = vunpack.c.l.b16 %v3717
        %v3750 = vpack.c.b16 %v3735, %v3734
        %v3751 = vpack.c.b16 %v3737, %v3736
        %v3752 = vpack.c.b16 %v3739, %v3738
        %v3753 = vpack.c.b16 %v3741, %v3740
        %v3754 = vpack.c.b16 %v3743, %v3742
        %v3755 = vpack.c.b16 %v3745, %v3744
        %v3756 = vpack.c.b16 %v3747, %v3746
        %v3757 = vpack.c.b16 %v3749, %v3748
        %3766 = vmatprep.subr.bf16.mxu0 0
        %3767 = vmatpush1.bf16.msra.mxu0 %v3750
        %3768 = vmatprep.subr.bf16.mxu0 0
        %3769 = vmatpush1.bf16.msra.mxu0 %v3751
        %3770 = vmatprep.subr.bf16.mxu0 0
        %3771 = vmatpush1.bf16.msra.mxu0 %v3752
        %3772 = vmatprep.subr.bf16.mxu0 0
        %3773 = vmatpush1.bf16.msra.mxu0 %v3753
        %3774 = vmatprep.subr.bf16.mxu0 0
        %3775 = vmatpush1.bf16.msra.mxu0 %v3754
        %3776 = vmatprep.subr.bf16.mxu0 0
        %3777 = vmatpush1.bf16.msra.mxu0 %v3755
        %3778 = vmatprep.subr.bf16.mxu0 0
        %3779 = vmatpush1.bf16.msra.mxu0 %v3756
        %3780 = vmatprep.subr.bf16.mxu0 0
        %3781 = vmatpush1.bf16.msra.mxu0 %v3757
        %3782 = vmatprep.subr.bf16.mxu0 0
        %3783 = vmatpush1.bf16.msra.mxu0 0
        %3784 = vmatprep.subr.bf16.mxu0 0
        %3785 = vmatpush1.bf16.msra.mxu0 0
        %3786 = vmatprep.subr.bf16.mxu0 0
        %3787 = vmatpush1.bf16.msra.mxu0 0
        %3788 = vmatprep.subr.bf16.mxu0 0
        %3789 = vmatpush1.bf16.msra.mxu0 0
        %3790 = vmatprep.subr.bf16.mxu0 0
        %3791 = vmatpush1.bf16.msra.mxu0 0
        %3792 = vmatprep.subr.bf16.mxu0 0
        %3793 = vmatpush1.bf16.msra.mxu0 0
        %3794 = vmatprep.subr.bf16.mxu0 0
        %3795 = vmatpush1.bf16.msra.mxu0 0
        %3796 = vmatprep.subr.bf16.mxu0 0
        %3797 = vmatpush1.bf16.msra.mxu0 0
        %3798 = vmatprep.mubr.bf16.mxu0 0
        %3799 = vmatmul.mubr.bf16.gmra.mrb[0].mxu0 %v3693
        %v3800 = vpop.f32.mrb[0].mxu0
        %v3801 = vadd.f32 0.0, %v3800
        %v3802 = vpop.f32.mrb[0].mxu0
        %v3803 = vpop.f32.mrb[0].mxu0
        %v3804 = vadd.f32 0.0, %v3803
        %v3805 = vpop.f32.mrb[0].mxu0
        %3806 = vmatprep.mubr.bf16.mxu0 0
        %3807 = vmatmul.mubr.bf16.gmra.mrb[0].mxu0 %v3694
        %v3808 = vpop.f32.mrb[0].mxu0
        %v3809 = vadd.f32 0.0, %v3808
        %v3810 = vpop.f32.mrb[0].mxu0
        %v3811 = vpop.f32.mrb[0].mxu0
        %v3812 = vadd.f32 0.0, %v3811
        %v3813 = vpop.f32.mrb[0].mxu0
        %3814 = vmatprep.mubr.bf16.mxu0 0
        %3815 = vmatmul.mubr.bf16.gmra.mrb[0].mxu0 %v3695
        %v3816 = vpop.f32.mrb[0].mxu0
        %v3817 = vadd.f32 0.0, %v3816
        %v3818 = vpop.f32.mrb[0].mxu0
        %v3819 = vpop.f32.mrb[0].mxu0
        %v3820 = vadd.f32 0.0, %v3819
        %v3821 = vpop.f32.mrb[0].mxu0
        %3822 = vmatprep.mubr.bf16.mxu0 0
        %3823 = vmatmul.mubr.bf16.gmra.mrb[0].mxu0 %v3696
        %v3824 = vpop.f32.mrb[0].mxu0
        %v3825 = vadd.f32 0.0, %v3824
        %v3826 = vpop.f32.mrb[0].mxu0
        %v3827 = vpop.f32.mrb[0].mxu0
        %v3828 = vadd.f32 0.0, %v3827
        %v3829 = vpop.f32.mrb[0].mxu0
        %3830 = vmatprep.mubr.bf16.mxu0 0
        %3831 = vmatmul.mubr.bf16.gmra.mrb[0].mxu0 %v3697
        %v3832 = vpop.f32.mrb[0].mxu0
        %v3833 = vadd.f32 0.0, %v3832
        %v3834 = vpop.f32.mrb[0].mxu0
        %v3835 = vpop.f32.mrb[0].mxu0
        %v3836 = vadd.f32 0.0, %v3835
        %v3837 = vpop.f32.mrb[0].mxu0
        %3838 = vmatprep.mubr.bf16.mxu0 0
        %3839 = vmatmul.mubr.bf16.gmra.mrb[0].mxu0 %v3698
        %v3840 = vpop.f32.mrb[0].mxu0
        %v3841 = vadd.f32 0.0, %v3840
        %v3842 = vpop.f32.mrb[0].mxu0
        %v3843 = vpop.f32.mrb[0].mxu0
        %v3844 = vadd.f32 0.0, %v3843
        %v3845 = vpop.f32.mrb[0].mxu0
        %3846 = vmatprep.mubr.bf16.mxu0 0
        %3847 = vmatmul.mubr.bf16.gmra.mrb[0].mxu0 %v3699
        %v3848 = vpop.f32.mrb[0].mxu0
        %v3849 = vadd.f32 0.0, %v3848
        %v3850 = vpop.f32.mrb[0].mxu0
        %v3851 = vpop.f32.mrb[0].mxu0
        %v3852 = vadd.f32 0.0, %v3851
        %v3853 = vpop.f32.mrb[0].mxu0
        %3854 = vmatprep.mubr.bf16.mxu0 0
        %3855 = vmatmul.mubr.bf16.gmra.mrb[0].mxu0 %v3700
        %v3856 = vpop.f32.mrb[0].mxu0
        %v3857 = vadd.f32 0.0, %v3856
        %v3858 = vpop.f32.mrb[0].mxu0
        %v3859 = vpop.f32.mrb[0].mxu0
        %v3860 = vadd.f32 0.0, %v3859
        %v3861 = vpop.f32.mrb[0].mxu0
        %3862 = vdwg.mxu0
        %v3863 = vadd.f32 %v3661, %v3801
        %v3864 = vadd.f32 %v3662, %v3804
        %v3865 = vadd.f32 %v3663, %v3809
        %v3866 = vadd.f32 %v3664, %v3812
        %v3867 = vadd.f32 %v3665, %v3817
        %v3868 = vadd.f32 %v3666, %v3820
        %v3869 = vadd.f32 %v3667, %v3825
        %v3870 = vadd.f32 %v3668, %v3828
        %v3871 = vadd.f32 %v3669, %v3833
        %v3872 = vadd.f32 %v3670, %v3836
        %v3873 = vadd.f32 %v3671, %v3841
        %v3874 = vadd.f32 %v3672, %v3844
        %v3875 = vadd.f32 %v3673, %v3849
        %v3876 = vadd.f32 %v3674, %v3852
        %v3877 = vadd.f32 %v3675, %v3857
        %v3878 = vadd.f32 %v3676, %v3860
        %v3879 = vld [vmem:[%s1443 + $0x2] sm:$0xff]
        %v3880 = vld [vmem:[%s1443 + $0xa] sm:$0xff]
        %v3881 = vld [vmem:[%s1443 + $0x1a] sm:$0xff]
        %v3882 = vld [vmem:[%s1443 + $0x22] sm:$0xff]
        %v3883 = vld [vmem:[%s1443 + $0x32] sm:$0xff]
        %v3884 = vld [vmem:[%s1443 + $0x3a] sm:$0xff]
        %v3885 = vld [vmem:[%s1443 + $0x4a] sm:$0xff]
        %v3886 = vld [vmem:[%s1443 + $0x52] sm:$0xff]
        %v3887 = vld [vmem:[%s1443 + $0x62] sm:$0xff]
        %v3888 = vld [vmem:[%s1443 + $0x6a] sm:$0xff]
        %v3889 = vld [vmem:[%s1443 + $0x7a] sm:$0xff]
        %v3890 = vld [vmem:[%s1443 + $0x82] sm:$0xff]
        %v3891 = vld [vmem:[%s1443 + $0x92] sm:$0xff]
        %v3892 = vld [vmem:[%s1443 + $0x9a] sm:$0xff]
        %v3893 = vld [vmem:[%s1443 + $0xaa] sm:$0xff]
        %v3894 = vld [vmem:[%s1443 + $0xb2] sm:$0xff]
        %v3895 = vpack.c.bf16 %v3880, %v3879
        %v3896 = vpack.c.bf16 %v3882, %v3881
        %v3897 = vpack.c.bf16 %v3884, %v3883
        %v3898 = vpack.c.bf16 %v3886, %v3885
        %v3899 = vpack.c.bf16 %v3888, %v3887
        %v3900 = vpack.c.bf16 %v3890, %v3889
        %v3901 = vpack.c.bf16 %v3892, %v3891
        %v3902 = vpack.c.bf16 %v3894, %v3893
        %s3903 = scalar_lea.vmem [#allocation3], 1088
        %v3904 = vld [vmem:[%s3903] sm:$0xf]
        %v3905 = vld [vmem:[%s3903 + $0x4] sm:$0xf]
        %v3906 = vld [vmem:[%s3903 + $0x8] sm:$0xf]
        %v3907 = vld [vmem:[%s3903 + $0xc] sm:$0xf]
        %v3908 = vld [vmem:[%s3903 + $0x10] sm:$0xf]
        %v3909 = vld [vmem:[%s3903 + $0x14] sm:$0xf]
        %v3910 = vld [vmem:[%s3903 + $0x18] sm:$0xf]
        %v3911 = vld [vmem:[%s3903 + $0x1c] sm:$0xf]
        %v3912 = vld [vmem:[%s3903 + $0x20] sm:$0xf]
        %v3913 = vld [vmem:[%s3903 + $0x24] sm:$0xf]
        %v3914 = vld [vmem:[%s3903 + $0x28] sm:$0xf]
        %v3915 = vld [vmem:[%s3903 + $0x2c] sm:$0xf]
        %v3916 = vld [vmem:[%s3903 + $0x30] sm:$0xf]
        %v3917 = vld [vmem:[%s3903 + $0x34] sm:$0xf]
        %v3918 = vld [vmem:[%s3903 + $0x38] sm:$0xf]
        %v3919 = vld [vmem:[%s3903 + $0x3c] sm:$0xf]
        %v3936 = vunpack.c.l.b16 %v3904
        %v3937 = vunpack.c.l.b16 %v3905
        %v3938 = vunpack.c.l.b16 %v3906
        %v3939 = vunpack.c.l.b16 %v3907
        %v3940 = vunpack.c.l.b16 %v3908
        %v3941 = vunpack.c.l.b16 %v3909
        %v3942 = vunpack.c.l.b16 %v3910
        %v3943 = vunpack.c.l.b16 %v3911
        %v3944 = vunpack.c.l.b16 %v3912
        %v3945 = vunpack.c.l.b16 %v3913
        %v3946 = vunpack.c.l.b16 %v3914
        %v3947 = vunpack.c.l.b16 %v3915
        %v3948 = vunpack.c.l.b16 %v3916
        %v3949 = vunpack.c.l.b16 %v3917
        %v3950 = vunpack.c.l.b16 %v3918
        %v3951 = vunpack.c.l.b16 %v3919
        %v3952 = vpack.c.b16 %v3937, %v3936
        %v3953 = vpack.c.b16 %v3939, %v3938
        %v3954 = vpack.c.b16 %v3941, %v3940
        %v3955 = vpack.c.b16 %v3943, %v3942
        %v3956 = vpack.c.b16 %v3945, %v3944
        %v3957 = vpack.c.b16 %v3947, %v3946
        %v3958 = vpack.c.b16 %v3949, %v3948
        %v3959 = vpack.c.b16 %v3951, %v3950
        %3968 = vmatprep.subr.bf16.mxu0 0
        %3969 = vmatpush1.bf16.msra.mxu0 %v3952
        %3970 = vmatprep.subr.bf16.mxu0 0
        %3971 = vmatpush1.bf16.msra.mxu0 %v3953
        %3972 = vmatprep.subr.bf16.mxu0 0
        %3973 = vmatpush1.bf16.msra.mxu0 %v3954
        %3974 = vmatprep.subr.bf16.mxu0 0
        %3975 = vmatpush1.bf16.msra.mxu0 %v3955
        %3976 = vmatprep.subr.bf16.mxu0 0
        %3977 = vmatpush1.bf16.msra.mxu0 %v3956
        %3978 = vmatprep.subr.bf16.mxu0 0
        %3979 = vmatpush1.bf16.msra.mxu0 %v3957
        %3980 = vmatprep.subr.bf16.mxu0 0
        %3981 = vmatpush1.bf16.msra.mxu0 %v3958
        %3982 = vmatprep.subr.bf16.mxu0 0
        %3983 = vmatpush1.bf16.msra.mxu0 %v3959
        %3984 = vmatprep.subr.bf16.mxu0 0
        %3985 = vmatpush1.bf16.msra.mxu0 0
        %3986 = vmatprep.subr.bf16.mxu0 0
        %3987 = vmatpush1.bf16.msra.mxu0 0
        %3988 = vmatprep.subr.bf16.mxu0 0
        %3989 = vmatpush1.bf16.msra.mxu0 0
        %3990 = vmatprep.subr.bf16.mxu0 0
        %3991 = vmatpush1.bf16.msra.mxu0 0
        %3992 = vmatprep.subr.bf16.mxu0 0
        %3993 = vmatpush1.bf16.msra.mxu0 0
        %3994 = vmatprep.subr.bf16.mxu0 0
        %3995 = vmatpush1.bf16.msra.mxu0 0
        %3996 = vmatprep.subr.bf16.mxu0 0
        %3997 = vmatpush1.bf16.msra.mxu0 0
        %3998 = vmatprep.subr.bf16.mxu0 0
        %3999 = vmatpush1.bf16.msra.mxu0 0
        %4000 = vmatprep.mubr.bf16.mxu0 0
        %4001 = vmatmul.mubr.bf16.gmra.mrb[0].mxu0 %v3895
        %v4002 = vpop.f32.mrb[0].mxu0
        %v4003 = vadd.f32 0.0, %v4002
        %v4004 = vpop.f32.mrb[0].mxu0
        %v4005 = vpop.f32.mrb[0].mxu0
        %v4006 = vadd.f32 0.0, %v4005
        %v4007 = vpop.f32.mrb[0].mxu0
        %4008 = vmatprep.mubr.bf16.mxu0 0
        %4009 = vmatmul.mubr.bf16.gmra.mrb[0].mxu0 %v3896
        %v4010 = vpop.f32.mrb[0].mxu0
        %v4011 = vadd.f32 0.0, %v4010
        %v4012 = vpop.f32.mrb[0].mxu0
        %v4013 = vpop.f32.mrb[0].mxu0
        %v4014 = vadd.f32 0.0, %v4013
        %v4015 = vpop.f32.mrb[0].mxu0
        %4016 = vmatprep.mubr.bf16.mxu0 0
        %4017 = vmatmul.mubr.bf16.gmra.mrb[0].mxu0 %v3897
        %v4018 = vpop.f32.mrb[0].mxu0
        %v4019 = vadd.f32 0.0, %v4018
        %v4020 = vpop.f32.mrb[0].mxu0
        %v4021 = vpop.f32.mrb[0].mxu0
        %v4022 = vadd.f32 0.0, %v4021
        %v4023 = vpop.f32.mrb[0].mxu0
        %4024 = vmatprep.mubr.bf16.mxu0 0
        %4025 = vmatmul.mubr.bf16.gmra.mrb[0].mxu0 %v3898
        %v4026 = vpop.f32.mrb[0].mxu0
        %v4027 = vadd.f32 0.0, %v4026
        %v4028 = vpop.f32.mrb[0].mxu0
        %v4029 = vpop.f32.mrb[0].mxu0
        %v4030 = vadd.f32 0.0, %v4029
        %v4031 = vpop.f32.mrb[0].mxu0
        %4032 = vmatprep.mubr.bf16.mxu0 0
        %4033 = vmatmul.mubr.bf16.gmra.mrb[0].mxu0 %v3899
        %v4034 = vpop.f32.mrb[0].mxu0
        %v4035 = vadd.f32 0.0, %v4034
        %v4036 = vpop.f32.mrb[0].mxu0
        %v4037 = vpop.f32.mrb[0].mxu0
        %v4038 = vadd.f32 0.0, %v4037
        %v4039 = vpop.f32.mrb[0].mxu0
        %4040 = vmatprep.mubr.bf16.mxu0 0
        %4041 = vmatmul.mubr.bf16.gmra.mrb[0].mxu0 %v3900
        %v4042 = vpop.f32.mrb[0].mxu0
        %v4043 = vadd.f32 0.0, %v4042
        %v4044 = vpop.f32.mrb[0].mxu0
        %v4045 = vpop.f32.mrb[0].mxu0
        %v4046 = vadd.f32 0.0, %v4045
        %v4047 = vpop.f32.mrb[0].mxu0
        %4048 = vmatprep.mubr.bf16.mxu0 0
        %4049 = vmatmul.mubr.bf16.gmra.mrb[0].mxu0 %v3901
        %v4050 = vpop.f32.mrb[0].mxu0
        %v4051 = vadd.f32 0.0, %v4050
        %v4052 = vpop.f32.mrb[0].mxu0
        %v4053 = vpop.f32.mrb[0].mxu0
        %v4054 = vadd.f32 0.0, %v4053
        %v4055 = vpop.f32.mrb[0].mxu0
        %4056 = vmatprep.mubr.bf16.mxu0 0
        %4057 = vmatmul.mubr.bf16.gmra.mrb[0].mxu0 %v3902
        %v4058 = vpop.f32.mrb[0].mxu0
        %v4059 = vadd.f32 0.0, %v4058
        %v4060 = vpop.f32.mrb[0].mxu0
        %v4061 = vpop.f32.mrb[0].mxu0
        %v4062 = vadd.f32 0.0, %v4061
        %v4063 = vpop.f32.mrb[0].mxu0
        %4064 = vdwg.mxu0
        %v4065 = vadd.f32 %v3863, %v4003
        %v4066 = vadd.f32 %v3864, %v4006
        %v4067 = vadd.f32 %v3865, %v4011
        %v4068 = vadd.f32 %v3866, %v4014
        %v4069 = vadd.f32 %v3867, %v4019
        %v4070 = vadd.f32 %v3868, %v4022
        %v4071 = vadd.f32 %v3869, %v4027
        %v4072 = vadd.f32 %v3870, %v4030
        %v4073 = vadd.f32 %v3871, %v4035
        %v4074 = vadd.f32 %v3872, %v4038
        %v4075 = vadd.f32 %v3873, %v4043
        %v4076 = vadd.f32 %v3874, %v4046
        %v4077 = vadd.f32 %v3875, %v4051
        %v4078 = vadd.f32 %v3876, %v4054
        %v4079 = vadd.f32 %v3877, %v4059
        %v4080 = vadd.f32 %v3878, %v4062
        %s4081 = scalar_lea.vmem [#allocation6], 1
        %v4082 = vld [vmem:[%s4081] sm:$0x1]
        %v4084 = vlaneseq
        %v4085 = vshrl.u32 %v4084, 7
        %v4086 = vsub.s32 0, %v4085
        %v4087 = vrot.slane %v4082, %v4086
        %v4089 = vadd.f32 %v4065, %v4087
        %v4090 = vadd.f32 %v4066, %v4087
        %v4091 = vadd.f32 %v4067, %v4087
        %v4092 = vadd.f32 %v4068, %v4087
        %v4093 = vadd.f32 %v4069, %v4087
        %v4094 = vadd.f32 %v4070, %v4087
        %v4095 = vadd.f32 %v4071, %v4087
        %v4096 = vadd.f32 %v4072, %v4087
        %v4097 = vadd.f32 %v4073, %v4087
        %v4098 = vadd.f32 %v4074, %v4087
        %v4099 = vadd.f32 %v4075, %v4087
        %v4100 = vadd.f32 %v4076, %v4087
        %v4101 = vadd.f32 %v4077, %v4087
        %v4102 = vadd.f32 %v4078, %v4087
        %v4103 = vadd.f32 %v4079, %v4087
        %v4104 = vadd.f32 %v4080, %v4087
        %v4105 = vmin.f32 %v4089, 0.0
        %v4106 = vmin.f32 %v4090, 0.0
        %v4107 = vmin.f32 %v4091, 0.0
        %v4108 = vmin.f32 %v4092, 0.0
        %v4109 = vmin.f32 %v4093, 0.0
        %v4110 = vmin.f32 %v4094, 0.0
        %v4111 = vmin.f32 %v4095, 0.0
        %v4112 = vmin.f32 %v4096, 0.0
        %v4113 = vmin.f32 %v4097, 0.0
        %v4114 = vmin.f32 %v4098, 0.0
        %v4115 = vmin.f32 %v4099, 0.0
        %v4116 = vmin.f32 %v4100, 0.0
        %v4117 = vmin.f32 %v4101, 0.0
        %v4118 = vmin.f32 %v4102, 0.0
        %v4119 = vmin.f32 %v4103, 0.0
        %v4120 = vmin.f32 %v4104, 0.0
        %v4121 = vmul.f32 %v4105, 1.442695
        %v4122 = vpow.pop %v4121
        %v4123 = vmul.f32 %v4106, 1.442695
        %v4124 = vpow.pop %v4123
        %v4125 = vmul.f32 %v4107, 1.442695
        %v4126 = vpow.pop %v4125
        %v4127 = vmul.f32 %v4108, 1.442695
        %v4128 = vpow.pop %v4127
        %v4129 = vmul.f32 %v4109, 1.442695
        %v4130 = vpow.pop %v4129
        %v4131 = vmul.f32 %v4110, 1.442695
        %v4132 = vpow.pop %v4131
        %v4133 = vmul.f32 %v4111, 1.442695
        %v4134 = vpow.pop %v4133
        %v4135 = vmul.f32 %v4112, 1.442695
        %v4136 = vpow.pop %v4135
        %v4137 = vmul.f32 %v4113, 1.442695
        %v4138 = vpow.pop %v4137
        %v4139 = vmul.f32 %v4114, 1.442695
        %v4140 = vpow.pop %v4139
        %v4141 = vmul.f32 %v4115, 1.442695
        %v4142 = vpow.pop %v4141
        %v4143 = vmul.f32 %v4116, 1.442695
        %v4144 = vpow.pop %v4143
        %v4145 = vmul.f32 %v4117, 1.442695
        %v4146 = vpow.pop %v4145
        %v4147 = vmul.f32 %v4118, 1.442695
        %v4148 = vpow.pop %v4147
        %v4149 = vmul.f32 %v4119, 1.442695
        %v4150 = vpow.pop %v4149
        %v4151 = vmul.f32 %v4120, 1.442695
        %v4152 = vpow.pop %v4151
        %v4153 = vsub.f32 %v4122, 1.0
        %v4154 = vsub.f32 %v4124, 1.0
        %v4155 = vsub.f32 %v4126, 1.0
        %v4156 = vsub.f32 %v4128, 1.0
        %v4157 = vsub.f32 %v4130, 1.0
        %v4158 = vsub.f32 %v4132, 1.0
        %v4159 = vsub.f32 %v4134, 1.0
        %v4160 = vsub.f32 %v4136, 1.0
        %v4161 = vsub.f32 %v4138, 1.0
        %v4162 = vsub.f32 %v4140, 1.0
        %v4163 = vsub.f32 %v4142, 1.0
        %v4164 = vsub.f32 %v4144, 1.0
        %v4165 = vsub.f32 %v4146, 1.0
        %v4166 = vsub.f32 %v4148, 1.0
        %v4167 = vsub.f32 %v4150, 1.0
        %v4168 = vsub.f32 %v4152, 1.0
        %vm4169 = vcmp.gt.f32.partialorder %v4089, 0.0
        %vm4170 = vcmp.gt.f32.partialorder %v4090, 0.0
        %vm4171 = vcmp.gt.f32.partialorder %v4091, 0.0
        %vm4172 = vcmp.gt.f32.partialorder %v4092, 0.0
        %vm4173 = vcmp.gt.f32.partialorder %v4093, 0.0
        %vm4174 = vcmp.gt.f32.partialorder %v4094, 0.0
        %vm4175 = vcmp.gt.f32.partialorder %v4095, 0.0
        %vm4176 = vcmp.gt.f32.partialorder %v4096, 0.0
        %vm4177 = vcmp.gt.f32.partialorder %v4097, 0.0
        %vm4178 = vcmp.gt.f32.partialorder %v4098, 0.0
        %vm4179 = vcmp.gt.f32.partialorder %v4099, 0.0
        %vm4180 = vcmp.gt.f32.partialorder %v4100, 0.0
        %vm4181 = vcmp.gt.f32.partialorder %v4101, 0.0
        %vm4182 = vcmp.gt.f32.partialorder %v4102, 0.0
        %vm4183 = vcmp.gt.f32.partialorder %v4103, 0.0
        %vm4184 = vcmp.gt.f32.partialorder %v4104, 0.0
        %v4185 = vsel %vm4169, %v4089, %v4153
        %v4186 = vsel %vm4170, %v4090, %v4154
        %v4187 = vsel %vm4171, %v4091, %v4155
        %v4188 = vsel %vm4172, %v4092, %v4156
        %v4189 = vsel %vm4173, %v4093, %v4157
        %v4190 = vsel %vm4174, %v4094, %v4158
        %v4191 = vsel %vm4175, %v4095, %v4159
        %v4192 = vsel %vm4176, %v4096, %v4160
        %v4193 = vsel %vm4177, %v4097, %v4161
        %v4194 = vsel %vm4178, %v4098, %v4162
        %v4195 = vsel %vm4179, %v4099, %v4163
        %v4196 = vsel %vm4180, %v4100, %v4164
        %v4197 = vsel %vm4181, %v4101, %v4165
        %v4198 = vsel %vm4182, %v4102, %v4166
        %v4199 = vsel %vm4183, %v4103, %v4167
        %v4200 = vsel %vm4184, %v4104, %v4168
        %v4201 = vadd.f32 %v4185, %v4186
        %v4202 = vadd.f32 %v4201, %v4187
        %v4203 = vadd.f32 %v4202, %v4188
        %v4204 = vadd.f32 %v4203, %v4189
        %v4205 = vadd.f32 %v4204, %v4190
        %v4206 = vadd.f32 %v4205, %v4191
        %v4207 = vadd.f32 %v4206, %v4192
        %v4208 = vadd.f32 %v4207, %v4193
        %v4209 = vadd.f32 %v4208, %v4194
        %v4210 = vadd.f32 %v4209, %v4195
        %v4211 = vadd.f32 %v4210, %v4196
        %v4212 = vadd.f32 %v4211, %v4197
        %v4213 = vadd.f32 %v4212, %v4198
        %v4214 = vadd.f32 %v4213, %v4199
        %v4215 = vadd.f32 %v4214, %v4200
        %v4216 = vrot.slane %v4215, 4
        %v4217 = vadd.f32 %v4215, %v4216
        %v4218 = vrot.slane %v4217, 2
        %v4219 = vadd.f32 %v4217, %v4218
        %v4220 = vrot.slane %v4219, 1
        %v4221 = vadd.f32 %v4219, %v4220
        %v4222 = vmul.f32 %v4221, 0.0078125
        %v4223 = vsub.f32 %v4185, %v4222
        %v4224 = vsub.f32 %v4186, %v4222
        %v4225 = vsub.f32 %v4187, %v4222
        %v4226 = vsub.f32 %v4188, %v4222
        %v4227 = vsub.f32 %v4189, %v4222
        %v4228 = vsub.f32 %v4190, %v4222
        %v4229 = vsub.f32 %v4191, %v4222
        %v4230 = vsub.f32 %v4192, %v4222
        %v4231 = vsub.f32 %v4193, %v4222
        %v4232 = vsub.f32 %v4194, %v4222
        %v4233 = vsub.f32 %v4195, %v4222
        %v4234 = vsub.f32 %v4196, %v4222
        %v4235 = vsub.f32 %v4197, %v4222
        %v4236 = vsub.f32 %v4198, %v4222
        %v4237 = vsub.f32 %v4199, %v4222
        %v4238 = vsub.f32 %v4200, %v4222
        %v4239 = vmul.f32 %v4223, %v4223
        %v4240 = vmul.f32 %v4224, %v4224
        %v4241 = vmul.f32 %v4225, %v4225
        %v4242 = vmul.f32 %v4226, %v4226
        %v4243 = vmul.f32 %v4227, %v4227
        %v4244 = vmul.f32 %v4228, %v4228
        %v4245 = vmul.f32 %v4229, %v4229
        %v4246 = vmul.f32 %v4230, %v4230
        %v4247 = vmul.f32 %v4231, %v4231
        %v4248 = vmul.f32 %v4232, %v4232
        %v4249 = vmul.f32 %v4233, %v4233
        %v4250 = vmul.f32 %v4234, %v4234
        %v4251 = vmul.f32 %v4235, %v4235
        %v4252 = vmul.f32 %v4236, %v4236
        %v4253 = vmul.f32 %v4237, %v4237
        %v4254 = vmul.f32 %v4238, %v4238
        %v4255 = vadd.f32 %v4239, %v4240
        %v4256 = vadd.f32 %v4255, %v4241
        %v4257 = vadd.f32 %v4256, %v4242
        %v4258 = vadd.f32 %v4257, %v4243
        %v4259 = vadd.f32 %v4258, %v4244
        %v4260 = vadd.f32 %v4259, %v4245
        %v4261 = vadd.f32 %v4260, %v4246
        %v4262 = vadd.f32 %v4261, %v4247
        %v4263 = vadd.f32 %v4262, %v4248
        %v4264 = vadd.f32 %v4263, %v4249
        %v4265 = vadd.f32 %v4264, %v4250
        %v4266 = vadd.f32 %v4265, %v4251
        %v4267 = vadd.f32 %v4266, %v4252
        %v4268 = vadd.f32 %v4267, %v4253
        %v4269 = vadd.f32 %v4268, %v4254
        %v4270 = vrot.slane %v4269, 4
        %v4271 = vadd.f32 %v4269, %v4270
        %v4272 = vrot.slane %v4271, 2
        %v4273 = vadd.f32 %v4271, %v4272
        %v4274 = vrot.slane %v4273, 1
        %v4275 = vadd.f32 %v4273, %v4274
        %v4276 = vmul.f32 %v4275, 0.0078125
        %v4277 = vadd.f32 %v4276, 1e-05
        %v4278 = vrsqrt.pop %v4277
        %v4279 = vmul.f32 %v4223, %v4278
        %v4280 = vmul.f32 %v4224, %v4278
        %v4281 = vmul.f32 %v4225, %v4278
        %v4282 = vmul.f32 %v4226, %v4278
        %v4283 = vmul.f32 %v4227, %v4278
        %v4284 = vmul.f32 %v4228, %v4278
        %v4285 = vmul.f32 %v4229, %v4278
        %v4286 = vmul.f32 %v4230, %v4278
        %v4287 = vmul.f32 %v4231, %v4278
        %v4288 = vmul.f32 %v4232, %v4278
        %v4289 = vmul.f32 %v4233, %v4278
        %v4290 = vmul.f32 %v4234, %v4278
        %v4291 = vmul.f32 %v4235, %v4278
        %v4292 = vmul.f32 %v4236, %v4278
        %v4293 = vmul.f32 %v4237, %v4278
        %v4294 = vmul.f32 %v4238, %v4278
        %v4295 = vadd.f32 %v3071, %v4279
        %v4296 = vadd.f32 %v3072, %v4280
        %v4297 = vadd.f32 %v3073, %v4281
        %v4298 = vadd.f32 %v3074, %v4282
        %v4299 = vadd.f32 %v3075, %v4283
        %v4300 = vadd.f32 %v3076, %v4284
        %v4301 = vadd.f32 %v3077, %v4285
        %v4302 = vadd.f32 %v3078, %v4286
        %v4303 = vadd.f32 %v3079, %v4287
        %v4304 = vadd.f32 %v3080, %v4288
        %v4305 = vadd.f32 %v3081, %v4289
        %v4306 = vadd.f32 %v3082, %v4290
        %v4307 = vadd.f32 %v3083, %v4291
        %v4308 = vadd.f32 %v3084, %v4292
        %v4309 = vadd.f32 %v3085, %v4293
        %v4310 = vadd.f32 %v3086, %v4294
        %4311 = vst [vmem:[%s246 + $0x1] sm:$0xff] %v4295
        %4312 = vst [vmem:[%s246 + $0x9] sm:$0xff] %v4296
        %4313 = vst [vmem:[%s246 + $0x19] sm:$0xff] %v4297
        %4314 = vst [vmem:[%s246 + $0x21] sm:$0xff] %v4298
        %4315 = vst [vmem:[%s246 + $0x31] sm:$0xff] %v4299
        %4316 = vst [vmem:[%s246 + $0x39] sm:$0xff] %v4300
        %4317 = vst [vmem:[%s246 + $0x49] sm:$0xff] %v4301
        %4318 = vst [vmem:[%s246 + $0x51] sm:$0xff] %v4302
        %4319 = vst [vmem:[%s246 + $0x61] sm:$0xff] %v4303
        %4320 = vst [vmem:[%s246 + $0x69] sm:$0xff] %v4304
        %4321 = vst [vmem:[%s246 + $0x79] sm:$0xff] %v4305
        %4322 = vst [vmem:[%s246 + $0x81] sm:$0xff] %v4306
        %4323 = vst [vmem:[%s246 + $0x91] sm:$0xff] %v4307
        %4324 = vst [vmem:[%s246 + $0x99] sm:$0xff] %v4308
        %4325 = vst [vmem:[%s246 + $0xa9] sm:$0xff] %v4309
        %4326 = vst [vmem:[%s246 + $0xb1] sm:$0xff] %v4310
        %v4327 = vld [vmem:[#allocation2] sm:$0xff]
        %v4328 = vld [vmem:[#allocation2 + $0x8] sm:$0xff]
        %v4329 = vld [vmem:[#allocation2 + $0x18] sm:$0xff]
        %v4330 = vld [vmem:[#allocation2 + $0x20] sm:$0xff]
        %v4331 = vld [vmem:[#allocation2 + $0x30] sm:$0xff]
        %v4332 = vld [vmem:[#allocation2 + $0x38] sm:$0xff]
        %v4333 = vld [vmem:[#allocation2 + $0x48] sm:$0xff]
        %v4334 = vld [vmem:[#allocation2 + $0x50] sm:$0xff]
        %v4335 = vld [vmem:[#allocation2 + $0x60] sm:$0xff]
        %v4336 = vld [vmem:[#allocation2 + $0x68] sm:$0xff]
        %v4337 = vld [vmem:[#allocation2 + $0x78] sm:$0xff]
        %v4338 = vld [vmem:[#allocation2 + $0x80] sm:$0xff]
        %v4339 = vld [vmem:[#allocation2 + $0x90] sm:$0xff]
        %v4340 = vld [vmem:[#allocation2 + $0x98] sm:$0xff]
        %v4341 = vld [vmem:[#allocation2 + $0xa8] sm:$0xff]
        %v4342 = vld [vmem:[#allocation2 + $0xb0] sm:$0xff]
        %v4343 = vpack.c.bf16 %v4328, %v4327
        %v4344 = vpack.c.bf16 %v4330, %v4329
        %v4345 = vpack.c.bf16 %v4332, %v4331
        %v4346 = vpack.c.bf16 %v4334, %v4333
        %v4347 = vpack.c.bf16 %v4336, %v4335
        %v4348 = vpack.c.bf16 %v4338, %v4337
        %v4349 = vpack.c.bf16 %v4340, %v4339
        %v4350 = vpack.c.bf16 %v4342, %v4341
        %s4351 = scalar_lea.vmem [#allocation3], 1152
        %v4352 = vld [vmem:[%s4351] sm:$0xf]
        %v4353 = vld [vmem:[%s4351 + $0x4] sm:$0xf]
        %v4354 = vld [vmem:[%s4351 + $0x8] sm:$0xf]
        %v4355 = vld [vmem:[%s4351 + $0xc] sm:$0xf]
        %v4356 = vld [vmem:[%s4351 + $0x10] sm:$0xf]
        %v4357 = vld [vmem:[%s4351 + $0x14] sm:$0xf]
        %v4358 = vld [vmem:[%s4351 + $0x18] sm:$0xf]
        %v4359 = vld [vmem:[%s4351 + $0x1c] sm:$0xf]
        %v4360 = vld [vmem:[%s4351 + $0x20] sm:$0xf]
        %v4361 = vld [vmem:[%s4351 + $0x24] sm:$0xf]
        %v4362 = vld [vmem:[%s4351 + $0x28] sm:$0xf]
        %v4363 = vld [vmem:[%s4351 + $0x2c] sm:$0xf]
        %v4364 = vld [vmem:[%s4351 + $0x30] sm:$0xf]
        %v4365 = vld [vmem:[%s4351 + $0x34] sm:$0xf]
        %v4366 = vld [vmem:[%s4351 + $0x38] sm:$0xf]
        %v4367 = vld [vmem:[%s4351 + $0x3c] sm:$0xf]
        %v4368 = vld [vmem:[#allocation2 + $0x1] sm:$0xff]
        %v4369 = vld [vmem:[#allocation2 + $0x9] sm:$0xff]
        %v4370 = vld [vmem:[#allocation2 + $0x19] sm:$0xff]
        %v4371 = vld [vmem:[#allocation2 + $0x21] sm:$0xff]
        %v4372 = vld [vmem:[#allocation2 + $0x31] sm:$0xff]
        %v4373 = vld [vmem:[#allocation2 + $0x39] sm:$0xff]
        %v4374 = vld [vmem:[#allocation2 + $0x49] sm:$0xff]
        %v4375 = vld [vmem:[#allocation2 + $0x51] sm:$0xff]
        %v4376 = vld [vmem:[#allocation2 + $0x61] sm:$0xff]
        %v4377 = vld [vmem:[#allocation2 + $0x69] sm:$0xff]
        %v4378 = vld [vmem:[#allocation2 + $0x79] sm:$0xff]
        %v4379 = vld [vmem:[#allocation2 + $0x81] sm:$0xff]
        %v4380 = vld [vmem:[#allocation2 + $0x91] sm:$0xff]
        %v4381 = vld [vmem:[#allocation2 + $0x99] sm:$0xff]
        %v4382 = vld [vmem:[#allocation2 + $0xa9] sm:$0xff]
        %v4383 = vld [vmem:[#allocation2 + $0xb1] sm:$0xff]
        %v4384 = vpack.c.bf16 %v4369, %v4368
        %v4385 = vpack.c.bf16 %v4371, %v4370
        %v4386 = vpack.c.bf16 %v4373, %v4372
        %v4387 = vpack.c.bf16 %v4375, %v4374
        %v4388 = vpack.c.bf16 %v4377, %v4376
        %v4389 = vpack.c.bf16 %v4379, %v4378
        %v4390 = vpack.c.bf16 %v4381, %v4380
        %v4391 = vpack.c.bf16 %v4383, %v4382
        %s4392 = scalar_lea.vmem [#allocation3], 1216
        %v4393 = vld [vmem:[%s4392] sm:$0xf]
        %v4394 = vld [vmem:[%s4392 + $0x4] sm:$0xf]
        %v4395 = vld [vmem:[%s4392 + $0x8] sm:$0xf]
        %v4396 = vld [vmem:[%s4392 + $0xc] sm:$0xf]
        %v4397 = vld [vmem:[%s4392 + $0x10] sm:$0xf]
        %v4398 = vld [vmem:[%s4392 + $0x14] sm:$0xf]
        %v4399 = vld [vmem:[%s4392 + $0x18] sm:$0xf]
        %v4400 = vld [vmem:[%s4392 + $0x1c] sm:$0xf]
        %v4401 = vld [vmem:[%s4392 + $0x20] sm:$0xf]
        %v4402 = vld [vmem:[%s4392 + $0x24] sm:$0xf]
        %v4403 = vld [vmem:[%s4392 + $0x28] sm:$0xf]
        %v4404 = vld [vmem:[%s4392 + $0x2c] sm:$0xf]
        %v4405 = vld [vmem:[%s4392 + $0x30] sm:$0xf]
        %v4406 = vld [vmem:[%s4392 + $0x34] sm:$0xf]
        %v4407 = vld [vmem:[%s4392 + $0x38] sm:$0xf]
        %v4408 = vld [vmem:[%s4392 + $0x3c] sm:$0xf]
        %v4425 = vunpack.c.l.b16 %v4393
        %v4426 = vunpack.c.l.b16 %v4394
        %v4427 = vunpack.c.l.b16 %v4395
        %v4428 = vunpack.c.l.b16 %v4396
        %v4429 = vunpack.c.l.b16 %v4397
        %v4430 = vunpack.c.l.b16 %v4398
        %v4431 = vunpack.c.l.b16 %v4399
        %v4432 = vunpack.c.l.b16 %v4400
        %v4433 = vunpack.c.l.b16 %v4401
        %v4434 = vunpack.c.l.b16 %v4402
        %v4435 = vunpack.c.l.b16 %v4403
        %v4436 = vunpack.c.l.b16 %v4404
        %v4437 = vunpack.c.l.b16 %v4405
        %v4438 = vunpack.c.l.b16 %v4406
        %v4439 = vunpack.c.l.b16 %v4407
        %v4440 = vunpack.c.l.b16 %v4408
        %v4441 = vpack.c.b16 %v4426, %v4425
        %v4442 = vpack.c.b16 %v4428, %v4427
        %v4443 = vpack.c.b16 %v4430, %v4429
        %v4444 = vpack.c.b16 %v4432, %v4431
        %v4445 = vpack.c.b16 %v4434, %v4433
        %v4446 = vpack.c.b16 %v4436, %v4435
        %v4447 = vpack.c.b16 %v4438, %v4437
        %v4448 = vpack.c.b16 %v4440, %v4439
        %4457 = vmatprep.subr.bf16.mxu0 0
        %4458 = vmatpush1.bf16.msra.mxu0 %v4441
        %4459 = vmatprep.subr.bf16.mxu0 0
        %4460 = vmatpush1.bf16.msra.mxu0 %v4442
        %4461 = vmatprep.subr.bf16.mxu0 0
        %4462 = vmatpush1.bf16.msra.mxu0 %v4443
        %4463 = vmatprep.subr.bf16.mxu0 0
        %4464 = vmatpush1.bf16.msra.mxu0 %v4444
        %4465 = vmatprep.subr.bf16.mxu0 0
        %4466 = vmatpush1.bf16.msra.mxu0 %v4445
        %4467 = vmatprep.subr.bf16.mxu0 0
        %4468 = vmatpush1.bf16.msra.mxu0 %v4446
        %4469 = vmatprep.subr.bf16.mxu0 0
        %4470 = vmatpush1.bf16.msra.mxu0 %v4447
        %4471 = vmatprep.subr.bf16.mxu0 0
        %4472 = vmatpush1.bf16.msra.mxu0 %v4448
        %4473 = vmatprep.subr.bf16.mxu0 0
        %4474 = vmatpush1.bf16.msra.mxu0 0
        %4475 = vmatprep.subr.bf16.mxu0 0
        %4476 = vmatpush1.bf16.msra.mxu0 0
        %4477 = vmatprep.subr.bf16.mxu0 0
        %4478 = vmatpush1.bf16.msra.mxu0 0
        %4479 = vmatprep.subr.bf16.mxu0 0
        %4480 = vmatpush1.bf16.msra.mxu0 0
        %4481 = vmatprep.subr.bf16.mxu0 0
        %4482 = vmatpush1.bf16.msra.mxu0 0
        %4483 = vmatprep.subr.bf16.mxu0 0
        %4484 = vmatpush1.bf16.msra.mxu0 0
        %4485 = vmatprep.subr.bf16.mxu0 0
        %4486 = vmatpush1.bf16.msra.mxu0 0
        %4487 = vmatprep.subr.bf16.mxu0 0
        %4488 = vmatpush1.bf16.msra.mxu0 0
        %4489 = vmatprep.mubr.bf16.mxu0 0
        %4490 = vmatmul.mubr.bf16.gmra.mrb[0].mxu0 %v4384
        %v4491 = vpop.f32.mrb[0].mxu0
        %v4492 = vadd.f32 0.0, %v4491
        %v4493 = vpop.f32.mrb[0].mxu0
        %v4494 = vpop.f32.mrb[0].mxu0
        %v4495 = vadd.f32 0.0, %v4494
        %v4496 = vpop.f32.mrb[0].mxu0
        %4497 = vmatprep.mubr.bf16.mxu0 0
        %4498 = vmatmul.mubr.bf16.gmra.mrb[0].mxu0 %v4385
        %v4499 = vpop.f32.mrb[0].mxu0
        %v4500 = vadd.f32 0.0, %v4499
        %v4501 = vpop.f32.mrb[0].mxu0
        %v4502 = vpop.f32.mrb[0].mxu0
        %v4503 = vadd.f32 0.0, %v4502
        %v4504 = vpop.f32.mrb[0].mxu0
        %4505 = vmatprep.mubr.bf16.mxu0 0
        %4506 = vmatmul.mubr.bf16.gmra.mrb[0].mxu0 %v4386
        %v4507 = vpop.f32.mrb[0].mxu0
        %v4508 = vadd.f32 0.0, %v4507
        %v4509 = vpop.f32.mrb[0].mxu0
        %v4510 = vpop.f32.mrb[0].mxu0
        %v4511 = vadd.f32 0.0, %v4510
        %v4512 = vpop.f32.mrb[0].mxu0
        %4513 = vmatprep.mubr.bf16.mxu0 0
        %4514 = vmatmul.mubr.bf16.gmra.mrb[0].mxu0 %v4387
        %v4515 = vpop.f32.mrb[0].mxu0
        %v4516 = vadd.f32 0.0, %v4515
        %v4517 = vpop.f32.mrb[0].mxu0
        %v4518 = vpop.f32.mrb[0].mxu0
        %v4519 = vadd.f32 0.0, %v4518
        %v4520 = vpop.f32.mrb[0].mxu0
        %4521 = vmatprep.mubr.bf16.mxu0 0
        %4522 = vmatmul.mubr.bf16.gmra.mrb[0].mxu0 %v4388
        %v4523 = vpop.f32.mrb[0].mxu0
        %v4524 = vadd.f32 0.0, %v4523
        %v4525 = vpop.f32.mrb[0].mxu0
        %v4526 = vpop.f32.mrb[0].mxu0
        %v4527 = vadd.f32 0.0, %v4526
        %v4528 = vpop.f32.mrb[0].mxu0
        %4529 = vmatprep.mubr.bf16.mxu0 0
        %4530 = vmatmul.mubr.bf16.gmra.mrb[0].mxu0 %v4389
        %v4531 = vpop.f32.mrb[0].mxu0
        %v4532 = vadd.f32 0.0, %v4531
        %v4533 = vpop.f32.mrb[0].mxu0
        %v4534 = vpop.f32.mrb[0].mxu0
        %v4535 = vadd.f32 0.0, %v4534
        %v4536 = vpop.f32.mrb[0].mxu0
        %4537 = vmatprep.mubr.bf16.mxu0 0
        %4538 = vmatmul.mubr.bf16.gmra.mrb[0].mxu0 %v4390
        %v4539 = vpop.f32.mrb[0].mxu0
        %v4540 = vadd.f32 0.0, %v4539
        %v4541 = vpop.f32.mrb[0].mxu0
        %v4542 = vpop.f32.mrb[0].mxu0
        %v4543 = vadd.f32 0.0, %v4542
        %v4544 = vpop.f32.mrb[0].mxu0
        %4545 = vmatprep.mubr.bf16.mxu0 0
        %4546 = vmatmul.mubr.bf16.gmra.mrb[0].mxu0 %v4391
        %v4547 = vpop.f32.mrb[0].mxu0
        %v4548 = vadd.f32 0.0, %v4547
        %v4549 = vpop.f32.mrb[0].mxu0
        %v4550 = vpop.f32.mrb[0].mxu0
        %v4551 = vadd.f32 0.0, %v4550
        %v4552 = vpop.f32.mrb[0].mxu0
        %4553 = vdwg.mxu0
        %v4570 = vunpack.c.l.b16 %v4352
        %v4571 = vunpack.c.l.b16 %v4353
        %v4572 = vunpack.c.l.b16 %v4354
        %v4573 = vunpack.c.l.b16 %v4355
        %v4574 = vunpack.c.l.b16 %v4356
        %v4575 = vunpack.c.l.b16 %v4357
        %v4576 = vunpack.c.l.b16 %v4358
        %v4577 = vunpack.c.l.b16 %v4359
        %v4578 = vunpack.c.l.b16 %v4360
        %v4579 = vunpack.c.l.b16 %v4361
        %v4580 = vunpack.c.l.b16 %v4362
        %v4581 = vunpack.c.l.b16 %v4363
        %v4582 = vunpack.c.l.b16 %v4364
        %v4583 = vunpack.c.l.b16 %v4365
        %v4584 = vunpack.c.l.b16 %v4366
        %v4585 = vunpack.c.l.b16 %v4367
        %v4586 = vpack.c.b16 %v4571, %v4570
        %v4587 = vpack.c.b16 %v4573, %v4572
        %v4588 = vpack.c.b16 %v4575, %v4574
        %v4589 = vpack.c.b16 %v4577, %v4576
        %v4590 = vpack.c.b16 %v4579, %v4578
        %v4591 = vpack.c.b16 %v4581, %v4580
        %v4592 = vpack.c.b16 %v4583, %v4582
        %v4593 = vpack.c.b16 %v4585, %v4584
        %4602 = vmatprep.subr.bf16.mxu0 0
        %4603 = vmatpush1.bf16.msra.mxu0 %v4586
        %4604 = vmatprep.subr.bf16.mxu0 0
        %4605 = vmatpush1.bf16.msra.mxu0 %v4587
        %4606 = vmatprep.subr.bf16.mxu0 0
        %4607 = vmatpush1.bf16.msra.mxu0 %v4588
        %4608 = vmatprep.subr.bf16.mxu0 0
        %4609 = vmatpush1.bf16.msra.mxu0 %v4589
        %4610 = vmatprep.subr.bf16.mxu0 0
        %4611 = vmatpush1.bf16.msra.mxu0 %v4590
        %4612 = vmatprep.subr.bf16.mxu0 0
        %4613 = vmatpush1.bf16.msra.mxu0 %v4591
        %4614 = vmatprep.subr.bf16.mxu0 0
        %4615 = vmatpush1.bf16.msra.mxu0 %v4592
        %4616 = vmatprep.subr.bf16.mxu0 0
        %4617 = vmatpush1.bf16.msra.mxu0 %v4593
        %4618 = vmatprep.subr.bf16.mxu0 0
        %4619 = vmatpush1.bf16.msra.mxu0 0
        %4620 = vmatprep.subr.bf16.mxu0 0
        %4621 = vmatpush1.bf16.msra.mxu0 0
        %4622 = vmatprep.subr.bf16.mxu0 0
        %4623 = vmatpush1.bf16.msra.mxu0 0
        %4624 = vmatprep.subr.bf16.mxu0 0
        %4625 = vmatpush1.bf16.msra.mxu0 0
        %4626 = vmatprep.subr.bf16.mxu0 0
        %4627 = vmatpush1.bf16.msra.mxu0 0
        %4628 = vmatprep.subr.bf16.mxu0 0
        %4629 = vmatpush1.bf16.msra.mxu0 0
        %4630 = vmatprep.subr.bf16.mxu0 0
        %4631 = vmatpush1.bf16.msra.mxu0 0
        %4632 = vmatprep.subr.bf16.mxu0 0
        %4633 = vmatpush1.bf16.msra.mxu0 0
        %4634 = vmatprep.mubr.bf16.mxu0 0
        %4635 = vmatmul.mubr.bf16.gmra.mrb[0].mxu0 %v4343
        %v4636 = vpop.f32.mrb[0].mxu0
        %v4637 = vadd.f32 %v4492, %v4636
        %v4638 = vpop.f32.mrb[0].mxu0
        %v4639 = vpop.f32.mrb[0].mxu0
        %v4640 = vadd.f32 %v4495, %v4639
        %v4641 = vpop.f32.mrb[0].mxu0
        %4642 = vmatprep.mubr.bf16.mxu0 0
        %4643 = vmatmul.mubr.bf16.gmra.mrb[0].mxu0 %v4344
        %v4644 = vpop.f32.mrb[0].mxu0
        %v4645 = vadd.f32 %v4500, %v4644
        %v4646 = vpop.f32.mrb[0].mxu0
        %v4647 = vpop.f32.mrb[0].mxu0
        %v4648 = vadd.f32 %v4503, %v4647
        %v4649 = vpop.f32.mrb[0].mxu0
        %4650 = vmatprep.mubr.bf16.mxu0 0
        %4651 = vmatmul.mubr.bf16.gmra.mrb[0].mxu0 %v4345
        %v4652 = vpop.f32.mrb[0].mxu0
        %v4653 = vadd.f32 %v4508, %v4652
        %v4654 = vpop.f32.mrb[0].mxu0
        %v4655 = vpop.f32.mrb[0].mxu0
        %v4656 = vadd.f32 %v4511, %v4655
        %v4657 = vpop.f32.mrb[0].mxu0
        %4658 = vmatprep.mubr.bf16.mxu0 0
        %4659 = vmatmul.mubr.bf16.gmra.mrb[0].mxu0 %v4346
        %v4660 = vpop.f32.mrb[0].mxu0
        %v4661 = vadd.f32 %v4516, %v4660
        %v4662 = vpop.f32.mrb[0].mxu0
        %v4663 = vpop.f32.mrb[0].mxu0
        %v4664 = vadd.f32 %v4519, %v4663
        %v4665 = vpop.f32.mrb[0].mxu0
        %4666 = vmatprep.mubr.bf16.mxu0 0
        %4667 = vmatmul.mubr.bf16.gmra.mrb[0].mxu0 %v4347
        %v4668 = vpop.f32.mrb[0].mxu0
        %v4669 = vadd.f32 %v4524, %v4668
        %v4670 = vpop.f32.mrb[0].mxu0
        %v4671 = vpop.f32.mrb[0].mxu0
        %v4672 = vadd.f32 %v4527, %v4671
        %v4673 = vpop.f32.mrb[0].mxu0
        %4674 = vmatprep.mubr.bf16.mxu0 0
        %4675 = vmatmul.mubr.bf16.gmra.mrb[0].mxu0 %v4348
        %v4676 = vpop.f32.mrb[0].mxu0
        %v4677 = vadd.f32 %v4532, %v4676
        %v4678 = vpop.f32.mrb[0].mxu0
        %v4679 = vpop.f32.mrb[0].mxu0
        %v4680 = vadd.f32 %v4535, %v4679
        %v4681 = vpop.f32.mrb[0].mxu0
        %4682 = vmatprep.mubr.bf16.mxu0 0
        %4683 = vmatmul.mubr.bf16.gmra.mrb[0].mxu0 %v4349
        %v4684 = vpop.f32.mrb[0].mxu0
        %v4685 = vadd.f32 %v4540, %v4684
        %v4686 = vpop.f32.mrb[0].mxu0
        %v4687 = vpop.f32.mrb[0].mxu0
        %v4688 = vadd.f32 %v4543, %v4687
        %v4689 = vpop.f32.mrb[0].mxu0
        %4690 = vmatprep.mubr.bf16.mxu0 0
        %4691 = vmatmul.mubr.bf16.gmra.mrb[0].mxu0 %v4350
        %v4692 = vpop.f32.mrb[0].mxu0
        %v4693 = vadd.f32 %v4548, %v4692
        %v4694 = vpop.f32.mrb[0].mxu0
        %v4695 = vpop.f32.mrb[0].mxu0
        %v4696 = vadd.f32 %v4551, %v4695
        %v4697 = vpop.f32.mrb[0].mxu0
        %4698 = vdwg.mxu0
        %v4699 = vld [vmem:[#allocation2 + $0x2] sm:$0xff]
        %v4700 = vld [vmem:[#allocation2 + $0xa] sm:$0xff]
        %v4701 = vld [vmem:[#allocation2 + $0x1a] sm:$0xff]
        %v4702 = vld [vmem:[#allocation2 + $0x22] sm:$0xff]
        %v4703 = vld [vmem:[#allocation2 + $0x32] sm:$0xff]
        %v4704 = vld [vmem:[#allocation2 + $0x3a] sm:$0xff]
        %v4705 = vld [vmem:[#allocation2 + $0x4a] sm:$0xff]
        %v4706 = vld [vmem:[#allocation2 + $0x52] sm:$0xff]
        %v4707 = vld [vmem:[#allocation2 + $0x62] sm:$0xff]
        %v4708 = vld [vmem:[#allocation2 + $0x6a] sm:$0xff]
        %v4709 = vld [vmem:[#allocation2 + $0x7a] sm:$0xff]
        %v4710 = vld [vmem:[#allocation2 + $0x82] sm:$0xff]
        %v4711 = vld [vmem:[#allocation2 + $0x92] sm:$0xff]
        %v4712 = vld [vmem:[#allocation2 + $0x9a] sm:$0xff]
        %v4713 = vld [vmem:[#allocation2 + $0xaa] sm:$0xff]
        %v4714 = vld [vmem:[#allocation2 + $0xb2] sm:$0xff]
        %v4715 = vpack.c.bf16 %v4700, %v4699
        %v4716 = vpack.c.bf16 %v4702, %v4701
        %v4717 = vpack.c.bf16 %v4704, %v4703
        %v4718 = vpack.c.bf16 %v4706, %v4705
        %v4719 = vpack.c.bf16 %v4708, %v4707
        %v4720 = vpack.c.bf16 %v4710, %v4709
        %v4721 = vpack.c.bf16 %v4712, %v4711
        %v4722 = vpack.c.bf16 %v4714, %v4713
        %s4723 = scalar_lea.vmem [#allocation3], 1280
        %v4724 = vld [vmem:[%s4723] sm:$0xf]
        %v4725 = vld [vmem:[%s4723 + $0x4] sm:$0xf]
        %v4726 = vld [vmem:[%s4723 + $0x8] sm:$0xf]
        %v4727 = vld [vmem:[%s4723 + $0xc] sm:$0xf]
        %v4728 = vld [vmem:[%s4723 + $0x10] sm:$0xf]
        %v4729 = vld [vmem:[%s4723 + $0x14] sm:$0xf]
        %v4730 = vld [vmem:[%s4723 + $0x18] sm:$0xf]
        %v4731 = vld [vmem:[%s4723 + $0x1c] sm:$0xf]
        %v4732 = vld [vmem:[%s4723 + $0x20] sm:$0xf]
        %v4733 = vld [vmem:[%s4723 + $0x24] sm:$0xf]
        %v4734 = vld [vmem:[%s4723 + $0x28] sm:$0xf]
        %v4735 = vld [vmem:[%s4723 + $0x2c] sm:$0xf]
        %v4736 = vld [vmem:[%s4723 + $0x30] sm:$0xf]
        %v4737 = vld [vmem:[%s4723 + $0x34] sm:$0xf]
        %v4738 = vld [vmem:[%s4723 + $0x38] sm:$0xf]
        %v4739 = vld [vmem:[%s4723 + $0x3c] sm:$0xf]
        %v4756 = vunpack.c.l.b16 %v4724
        %v4757 = vunpack.c.l.b16 %v4725
        %v4758 = vunpack.c.l.b16 %v4726
        %v4759 = vunpack.c.l.b16 %v4727
        %v4760 = vunpack.c.l.b16 %v4728
        %v4761 = vunpack.c.l.b16 %v4729
        %v4762 = vunpack.c.l.b16 %v4730
        %v4763 = vunpack.c.l.b16 %v4731
        %v4764 = vunpack.c.l.b16 %v4732
        %v4765 = vunpack.c.l.b16 %v4733
        %v4766 = vunpack.c.l.b16 %v4734
        %v4767 = vunpack.c.l.b16 %v4735
        %v4768 = vunpack.c.l.b16 %v4736
        %v4769 = vunpack.c.l.b16 %v4737
        %v4770 = vunpack.c.l.b16 %v4738
        %v4771 = vunpack.c.l.b16 %v4739
        %v4772 = vpack.c.b16 %v4757, %v4756
        %v4773 = vpack.c.b16 %v4759, %v4758
        %v4774 = vpack.c.b16 %v4761, %v4760
        %v4775 = vpack.c.b16 %v4763, %v4762
        %v4776 = vpack.c.b16 %v4765, %v4764
        %v4777 = vpack.c.b16 %v4767, %v4766
        %v4778 = vpack.c.b16 %v4769, %v4768
        %v4779 = vpack.c.b16 %v4771, %v4770
        %4788 = vmatprep.subr.bf16.mxu0 0
        %4789 = vmatpush1.bf16.msra.mxu0 %v4772
        %4790 = vmatprep.subr.bf16.mxu0 0
        %4791 = vmatpush1.bf16.msra.mxu0 %v4773
        %4792 = vmatprep.subr.bf16.mxu0 0
        %4793 = vmatpush1.bf16.msra.mxu0 %v4774
        %4794 = vmatprep.subr.bf16.mxu0 0
        %4795 = vmatpush1.bf16.msra.mxu0 %v4775
        %4796 = vmatprep.subr.bf16.mxu0 0
        %4797 = vmatpush1.bf16.msra.mxu0 %v4776
        %4798 = vmatprep.subr.bf16.mxu0 0
        %4799 = vmatpush1.bf16.msra.mxu0 %v4777
        %4800 = vmatprep.subr.bf16.mxu0 0
        %4801 = vmatpush1.bf16.msra.mxu0 %v4778
        %4802 = vmatprep.subr.bf16.mxu0 0
        %4803 = vmatpush1.bf16.msra.mxu0 %v4779
        %4804 = vmatprep.subr.bf16.mxu0 0
        %4805 = vmatpush1.bf16.msra.mxu0 0
        %4806 = vmatprep.subr.bf16.mxu0 0
        %4807 = vmatpush1.bf16.msra.mxu0 0
        %4808 = vmatprep.subr.bf16.mxu0 0
        %4809 = vmatpush1.bf16.msra.mxu0 0
        %4810 = vmatprep.subr.bf16.mxu0 0
        %4811 = vmatpush1.bf16.msra.mxu0 0
        %4812 = vmatprep.subr.bf16.mxu0 0
        %4813 = vmatpush1.bf16.msra.mxu0 0
        %4814 = vmatprep.subr.bf16.mxu0 0
        %4815 = vmatpush1.bf16.msra.mxu0 0
        %4816 = vmatprep.subr.bf16.mxu0 0
        %4817 = vmatpush1.bf16.msra.mxu0 0
        %4818 = vmatprep.subr.bf16.mxu0 0
        %4819 = vmatpush1.bf16.msra.mxu0 0
        %4820 = vmatprep.mubr.bf16.mxu0 0
        %4821 = vmatmul.mubr.bf16.gmra.mrb[0].mxu0 %v4715
        %v4822 = vpop.f32.mrb[0].mxu0
        %v4823 = vadd.f32 0.0, %v4822
        %v4824 = vpop.f32.mrb[0].mxu0
        %v4825 = vpop.f32.mrb[0].mxu0
        %v4826 = vadd.f32 0.0, %v4825
        %v4827 = vpop.f32.mrb[0].mxu0
        %4828 = vmatprep.mubr.bf16.mxu0 0
        %4829 = vmatmul.mubr.bf16.gmra.mrb[0].mxu0 %v4716
        %v4830 = vpop.f32.mrb[0].mxu0
        %v4831 = vadd.f32 0.0, %v4830
        %v4832 = vpop.f32.mrb[0].mxu0
        %v4833 = vpop.f32.mrb[0].mxu0
        %v4834 = vadd.f32 0.0, %v4833
        %v4835 = vpop.f32.mrb[0].mxu0
        %4836 = vmatprep.mubr.bf16.mxu0 0
        %4837 = vmatmul.mubr.bf16.gmra.mrb[0].mxu0 %v4717
        %v4838 = vpop.f32.mrb[0].mxu0
        %v4839 = vadd.f32 0.0, %v4838
        %v4840 = vpop.f32.mrb[0].mxu0
        %v4841 = vpop.f32.mrb[0].mxu0
        %v4842 = vadd.f32 0.0, %v4841
        %v4843 = vpop.f32.mrb[0].mxu0
        %4844 = vmatprep.mubr.bf16.mxu0 0
        %4845 = vmatmul.mubr.bf16.gmra.mrb[0].mxu0 %v4718
        %v4846 = vpop.f32.mrb[0].mxu0
        %v4847 = vadd.f32 0.0, %v4846
        %v4848 = vpop.f32.mrb[0].mxu0
        %v4849 = vpop.f32.mrb[0].mxu0
        %v4850 = vadd.f32 0.0, %v4849
        %v4851 = vpop.f32.mrb[0].mxu0
        %4852 = vmatprep.mubr.bf16.mxu0 0
        %4853 = vmatmul.mubr.bf16.gmra.mrb[0].mxu0 %v4719
        %v4854 = vpop.f32.mrb[0].mxu0
        %v4855 = vadd.f32 0.0, %v4854
        %v4856 = vpop.f32.mrb[0].mxu0
        %v4857 = vpop.f32.mrb[0].mxu0
        %v4858 = vadd.f32 0.0, %v4857
        %v4859 = vpop.f32.mrb[0].mxu0
        %4860 = vmatprep.mubr.bf16.mxu0 0
        %4861 = vmatmul.mubr.bf16.gmra.mrb[0].mxu0 %v4720
        %v4862 = vpop.f32.mrb[0].mxu0
        %v4863 = vadd.f32 0.0, %v4862
        %v4864 = vpop.f32.mrb[0].mxu0
        %v4865 = vpop.f32.mrb[0].mxu0
        %v4866 = vadd.f32 0.0, %v4865
        %v4867 = vpop.f32.mrb[0].mxu0
        %4868 = vmatprep.mubr.bf16.mxu0 0
        %4869 = vmatmul.mubr.bf16.gmra.mrb[0].mxu0 %v4721
        %v4870 = vpop.f32.mrb[0].mxu0
        %v4871 = vadd.f32 0.0, %v4870
        %v4872 = vpop.f32.mrb[0].mxu0
        %v4873 = vpop.f32.mrb[0].mxu0
        %v4874 = vadd.f32 0.0, %v4873
        %v4875 = vpop.f32.mrb[0].mxu0
        %4876 = vmatprep.mubr.bf16.mxu0 0
        %4877 = vmatmul.mubr.bf16.gmra.mrb[0].mxu0 %v4722
        %v4878 = vpop.f32.mrb[0].mxu0
        %v4879 = vadd.f32 0.0, %v4878
        %v4880 = vpop.f32.mrb[0].mxu0
        %v4881 = vpop.f32.mrb[0].mxu0
        %v4882 = vadd.f32 0.0, %v4881
        %v4883 = vpop.f32.mrb[0].mxu0
        %4884 = vdwg.mxu0
        %v4885 = vadd.f32 %v4637, %v4823
        %v4886 = vadd.f32 %v4640, %v4826
        %v4887 = vadd.f32 %v4645, %v4831
        %v4888 = vadd.f32 %v4648, %v4834
        %v4889 = vadd.f32 %v4653, %v4839
        %v4890 = vadd.f32 %v4656, %v4842
        %v4891 = vadd.f32 %v4661, %v4847
        %v4892 = vadd.f32 %v4664, %v4850
        %v4893 = vadd.f32 %v4669, %v4855
        %v4894 = vadd.f32 %v4672, %v4858
        %v4895 = vadd.f32 %v4677, %v4863
        %v4896 = vadd.f32 %v4680, %v4866
        %v4897 = vadd.f32 %v4685, %v4871
        %v4898 = vadd.f32 %v4688, %v4874
        %v4899 = vadd.f32 %v4693, %v4879
        %v4900 = vadd.f32 %v4696, %v4882
        %v4901 = vld [vmem:[%s246] sm:$0xff]
        %v4902 = vld [vmem:[%s246 + $0x8] sm:$0xff]
        %v4903 = vld [vmem:[%s246 + $0x18] sm:$0xff]
        %v4904 = vld [vmem:[%s246 + $0x20] sm:$0xff]
        %v4905 = vld [vmem:[%s246 + $0x30] sm:$0xff]
        %v4906 = vld [vmem:[%s246 + $0x38] sm:$0xff]
        %v4907 = vld [vmem:[%s246 + $0x48] sm:$0xff]
        %v4908 = vld [vmem:[%s246 + $0x50] sm:$0xff]
        %v4909 = vld [vmem:[%s246 + $0x60] sm:$0xff]
        %v4910 = vld [vmem:[%s246 + $0x68] sm:$0xff]
        %v4911 = vld [vmem:[%s246 + $0x78] sm:$0xff]
        %v4912 = vld [vmem:[%s246 + $0x80] sm:$0xff]
        %v4913 = vld [vmem:[%s246 + $0x90] sm:$0xff]
        %v4914 = vld [vmem:[%s246 + $0x98] sm:$0xff]
        %v4915 = vld [vmem:[%s246 + $0xa8] sm:$0xff]
        %v4916 = vld [vmem:[%s246 + $0xb0] sm:$0xff]
        %v4917 = vpack.c.bf16 %v4902, %v4901
        %v4918 = vpack.c.bf16 %v4904, %v4903
        %v4919 = vpack.c.bf16 %v4906, %v4905
        %v4920 = vpack.c.bf16 %v4908, %v4907
        %v4921 = vpack.c.bf16 %v4910, %v4909
        %v4922 = vpack.c.bf16 %v4912, %v4911
        %v4923 = vpack.c.bf16 %v4914, %v4913
        %v4924 = vpack.c.bf16 %v4916, %v4915
        %s4925 = scalar_lea.vmem [#allocation3], 1344
        %v4926 = vld [vmem:[%s4925] sm:$0xf]
        %v4927 = vld [vmem:[%s4925 + $0x4] sm:$0xf]
        %v4928 = vld [vmem:[%s4925 + $0x8] sm:$0xf]
        %v4929 = vld [vmem:[%s4925 + $0xc] sm:$0xf]
        %v4930 = vld [vmem:[%s4925 + $0x10] sm:$0xf]
        %v4931 = vld [vmem:[%s4925 + $0x14] sm:$0xf]
        %v4932 = vld [vmem:[%s4925 + $0x18] sm:$0xf]
        %v4933 = vld [vmem:[%s4925 + $0x1c] sm:$0xf]
        %v4934 = vld [vmem:[%s4925 + $0x20] sm:$0xf]
        %v4935 = vld [vmem:[%s4925 + $0x24] sm:$0xf]
        %v4936 = vld [vmem:[%s4925 + $0x28] sm:$0xf]
        %v4937 = vld [vmem:[%s4925 + $0x2c] sm:$0xf]
        %v4938 = vld [vmem:[%s4925 + $0x30] sm:$0xf]
        %v4939 = vld [vmem:[%s4925 + $0x34] sm:$0xf]
        %v4940 = vld [vmem:[%s4925 + $0x38] sm:$0xf]
        %v4941 = vld [vmem:[%s4925 + $0x3c] sm:$0xf]
        %v4958 = vunpack.c.l.b16 %v4926
        %v4959 = vunpack.c.l.b16 %v4927
        %v4960 = vunpack.c.l.b16 %v4928
        %v4961 = vunpack.c.l.b16 %v4929
        %v4962 = vunpack.c.l.b16 %v4930
        %v4963 = vunpack.c.l.b16 %v4931
        %v4964 = vunpack.c.l.b16 %v4932
        %v4965 = vunpack.c.l.b16 %v4933
        %v4966 = vunpack.c.l.b16 %v4934
        %v4967 = vunpack.c.l.b16 %v4935
        %v4968 = vunpack.c.l.b16 %v4936
        %v4969 = vunpack.c.l.b16 %v4937
        %v4970 = vunpack.c.l.b16 %v4938
        %v4971 = vunpack.c.l.b16 %v4939
        %v4972 = vunpack.c.l.b16 %v4940
        %v4973 = vunpack.c.l.b16 %v4941
        %v4974 = vpack.c.b16 %v4959, %v4958
        %v4975 = vpack.c.b16 %v4961, %v4960
        %v4976 = vpack.c.b16 %v4963, %v4962
        %v4977 = vpack.c.b16 %v4965, %v4964
        %v4978 = vpack.c.b16 %v4967, %v4966
        %v4979 = vpack.c.b16 %v4969, %v4968
        %v4980 = vpack.c.b16 %v4971, %v4970
        %v4981 = vpack.c.b16 %v4973, %v4972
        %4990 = vmatprep.subr.bf16.mxu0 0
        %4991 = vmatpush1.bf16.msra.mxu0 %v4974
        %4992 = vmatprep.subr.bf16.mxu0 0
        %4993 = vmatpush1.bf16.msra.mxu0 %v4975
        %4994 = vmatprep.subr.bf16.mxu0 0
        %4995 = vmatpush1.bf16.msra.mxu0 %v4976
        %4996 = vmatprep.subr.bf16.mxu0 0
        %4997 = vmatpush1.bf16.msra.mxu0 %v4977
        %4998 = vmatprep.subr.bf16.mxu0 0
        %4999 = vmatpush1.bf16.msra.mxu0 %v4978
        %5000 = vmatprep.subr.bf16.mxu0 0
        %5001 = vmatpush1.bf16.msra.mxu0 %v4979
        %5002 = vmatprep.subr.bf16.mxu0 0
        %5003 = vmatpush1.bf16.msra.mxu0 %v4980
        %5004 = vmatprep.subr.bf16.mxu0 0
        %5005 = vmatpush1.bf16.msra.mxu0 %v4981
        %5006 = vmatprep.subr.bf16.mxu0 0
        %5007 = vmatpush1.bf16.msra.mxu0 0
        %5008 = vmatprep.subr.bf16.mxu0 0
        %5009 = vmatpush1.bf16.msra.mxu0 0
        %5010 = vmatprep.subr.bf16.mxu0 0
        %5011 = vmatpush1.bf16.msra.mxu0 0
        %5012 = vmatprep.subr.bf16.mxu0 0
        %5013 = vmatpush1.bf16.msra.mxu0 0
        %5014 = vmatprep.subr.bf16.mxu0 0
        %5015 = vmatpush1.bf16.msra.mxu0 0
        %5016 = vmatprep.subr.bf16.mxu0 0
        %5017 = vmatpush1.bf16.msra.mxu0 0
        %5018 = vmatprep.subr.bf16.mxu0 0
        %5019 = vmatpush1.bf16.msra.mxu0 0
        %5020 = vmatprep.subr.bf16.mxu0 0
        %5021 = vmatpush1.bf16.msra.mxu0 0
        %5022 = vmatprep.mubr.bf16.mxu0 0
        %5023 = vmatmul.mubr.bf16.gmra.mrb[0].mxu0 %v4917
        %v5024 = vpop.f32.mrb[0].mxu0
        %v5025 = vadd.f32 0.0, %v5024
        %v5026 = vpop.f32.mrb[0].mxu0
        %v5027 = vpop.f32.mrb[0].mxu0
        %v5028 = vadd.f32 0.0, %v5027
        %v5029 = vpop.f32.mrb[0].mxu0
        %5030 = vmatprep.mubr.bf16.mxu0 0
        %5031 = vmatmul.mubr.bf16.gmra.mrb[0].mxu0 %v4918
        %v5032 = vpop.f32.mrb[0].mxu0
        %v5033 = vadd.f32 0.0, %v5032
        %v5034 = vpop.f32.mrb[0].mxu0
        %v5035 = vpop.f32.mrb[0].mxu0
        %v5036 = vadd.f32 0.0, %v5035
        %v5037 = vpop.f32.mrb[0].mxu0
        %5038 = vmatprep.mubr.bf16.mxu0 0
        %5039 = vmatmul.mubr.bf16.gmra.mrb[0].mxu0 %v4919
        %v5040 = vpop.f32.mrb[0].mxu0
        %v5041 = vadd.f32 0.0, %v5040
        %v5042 = vpop.f32.mrb[0].mxu0
        %v5043 = vpop.f32.mrb[0].mxu0
        %v5044 = vadd.f32 0.0, %v5043
        %v5045 = vpop.f32.mrb[0].mxu0
        %5046 = vmatprep.mubr.bf16.mxu0 0
        %5047 = vmatmul.mubr.bf16.gmra.mrb[0].mxu0 %v4920
        %v5048 = vpop.f32.mrb[0].mxu0
        %v5049 = vadd.f32 0.0, %v5048
        %v5050 = vpop.f32.mrb[0].mxu0
        %v5051 = vpop.f32.mrb[0].mxu0
        %v5052 = vadd.f32 0.0, %v5051
        %v5053 = vpop.f32.mrb[0].mxu0
        %5054 = vmatprep.mubr.bf16.mxu0 0
        %5055 = vmatmul.mubr.bf16.gmra.mrb[0].mxu0 %v4921
        %v5056 = vpop.f32.mrb[0].mxu0
        %v5057 = vadd.f32 0.0, %v5056
        %v5058 = vpop.f32.mrb[0].mxu0
        %v5059 = vpop.f32.mrb[0].mxu0
        %v5060 = vadd.f32 0.0, %v5059
        %v5061 = vpop.f32.mrb[0].mxu0
        %5062 = vmatprep.mubr.bf16.mxu0 0
        %5063 = vmatmul.mubr.bf16.gmra.mrb[0].mxu0 %v4922
        %v5064 = vpop.f32.mrb[0].mxu0
        %v5065 = vadd.f32 0.0, %v5064
        %v5066 = vpop.f32.mrb[0].mxu0
        %v5067 = vpop.f32.mrb[0].mxu0
        %v5068 = vadd.f32 0.0, %v5067
        %v5069 = vpop.f32.mrb[0].mxu0
        %5070 = vmatprep.mubr.bf16.mxu0 0
        %5071 = vmatmul.mubr.bf16.gmra.mrb[0].mxu0 %v4923
        %v5072 = vpop.f32.mrb[0].mxu0
        %v5073 = vadd.f32 0.0, %v5072
        %v5074 = vpop.f32.mrb[0].mxu0
        %v5075 = vpop.f32.mrb[0].mxu0
        %v5076 = vadd.f32 0.0, %v5075
        %v5077 = vpop.f32.mrb[0].mxu0
        %5078 = vmatprep.mubr.bf16.mxu0 0
        %5079 = vmatmul.mubr.bf16.gmra.mrb[0].mxu0 %v4924
        %v5080 = vpop.f32.mrb[0].mxu0
        %v5081 = vadd.f32 0.0, %v5080
        %v5082 = vpop.f32.mrb[0].mxu0
        %v5083 = vpop.f32.mrb[0].mxu0
        %v5084 = vadd.f32 0.0, %v5083
        %v5085 = vpop.f32.mrb[0].mxu0
        %5086 = vdwg.mxu0
        %v5087 = vadd.f32 %v4885, %v5025
        %v5088 = vadd.f32 %v4886, %v5028
        %v5089 = vadd.f32 %v4887, %v5033
        %v5090 = vadd.f32 %v4888, %v5036
        %v5091 = vadd.f32 %v4889, %v5041
        %v5092 = vadd.f32 %v4890, %v5044
        %v5093 = vadd.f32 %v4891, %v5049
        %v5094 = vadd.f32 %v4892, %v5052
        %v5095 = vadd.f32 %v4893, %v5057
        %v5096 = vadd.f32 %v4894, %v5060
        %v5097 = vadd.f32 %v4895, %v5065
        %v5098 = vadd.f32 %v4896, %v5068
        %v5099 = vadd.f32 %v4897, %v5073
        %v5100 = vadd.f32 %v4898, %v5076
        %v5101 = vadd.f32 %v4899, %v5081
        %v5102 = vadd.f32 %v4900, %v5084
        %v5103 = vld [vmem:[%s246 + $0x1] sm:$0xff]
        %v5104 = vld [vmem:[%s246 + $0x9] sm:$0xff]
        %v5105 = vld [vmem:[%s246 + $0x19] sm:$0xff]
        %v5106 = vld [vmem:[%s246 + $0x21] sm:$0xff]
        %v5107 = vld [vmem:[%s246 + $0x31] sm:$0xff]
        %v5108 = vld [vmem:[%s246 + $0x39] sm:$0xff]
        %v5109 = vld [vmem:[%s246 + $0x49] sm:$0xff]
        %v5110 = vld [vmem:[%s246 + $0x51] sm:$0xff]
        %v5111 = vld [vmem:[%s246 + $0x61] sm:$0xff]
        %v5112 = vld [vmem:[%s246 + $0x69] sm:$0xff]
        %v5113 = vld [vmem:[%s246 + $0x79] sm:$0xff]
        %v5114 = vld [vmem:[%s246 + $0x81] sm:$0xff]
        %v5115 = vld [vmem:[%s246 + $0x91] sm:$0xff]
        %v5116 = vld [vmem:[%s246 + $0x99] sm:$0xff]
        %v5117 = vld [vmem:[%s246 + $0xa9] sm:$0xff]
        %v5118 = vld [vmem:[%s246 + $0xb1] sm:$0xff]
        %v5119 = vpack.c.bf16 %v5104, %v5103
        %v5120 = vpack.c.bf16 %v5106, %v5105
        %v5121 = vpack.c.bf16 %v5108, %v5107
        %v5122 = vpack.c.bf16 %v5110, %v5109
        %v5123 = vpack.c.bf16 %v5112, %v5111
        %v5124 = vpack.c.bf16 %v5114, %v5113
        %v5125 = vpack.c.bf16 %v5116, %v5115
        %v5126 = vpack.c.bf16 %v5118, %v5117
        %s5127 = scalar_lea.vmem [#allocation3], 1408
        %v5128 = vld [vmem:[%s5127] sm:$0xf]
        %v5129 = vld [vmem:[%s5127 + $0x4] sm:$0xf]
        %v5130 = vld [vmem:[%s5127 + $0x8] sm:$0xf]
        %v5131 = vld [vmem:[%s5127 + $0xc] sm:$0xf]
        %v5132 = vld [vmem:[%s5127 + $0x10] sm:$0xf]
        %v5133 = vld [vmem:[%s5127 + $0x14] sm:$0xf]
        %v5134 = vld [vmem:[%s5127 + $0x18] sm:$0xf]
        %v5135 = vld [vmem:[%s5127 + $0x1c] sm:$0xf]
        %v5136 = vld [vmem:[%s5127 + $0x20] sm:$0xf]
        %v5137 = vld [vmem:[%s5127 + $0x24] sm:$0xf]
        %v5138 = vld [vmem:[%s5127 + $0x28] sm:$0xf]
        %v5139 = vld [vmem:[%s5127 + $0x2c] sm:$0xf]
        %v5140 = vld [vmem:[%s5127 + $0x30] sm:$0xf]
        %v5141 = vld [vmem:[%s5127 + $0x34] sm:$0xf]
        %v5142 = vld [vmem:[%s5127 + $0x38] sm:$0xf]
        %v5143 = vld [vmem:[%s5127 + $0x3c] sm:$0xf]
        %v5160 = vunpack.c.l.b16 %v5128
        %v5161 = vunpack.c.l.b16 %v5129
        %v5162 = vunpack.c.l.b16 %v5130
        %v5163 = vunpack.c.l.b16 %v5131
        %v5164 = vunpack.c.l.b16 %v5132
        %v5165 = vunpack.c.l.b16 %v5133
        %v5166 = vunpack.c.l.b16 %v5134
        %v5167 = vunpack.c.l.b16 %v5135
        %v5168 = vunpack.c.l.b16 %v5136
        %v5169 = vunpack.c.l.b16 %v5137
        %v5170 = vunpack.c.l.b16 %v5138
        %v5171 = vunpack.c.l.b16 %v5139
        %v5172 = vunpack.c.l.b16 %v5140
        %v5173 = vunpack.c.l.b16 %v5141
        %v5174 = vunpack.c.l.b16 %v5142
        %v5175 = vunpack.c.l.b16 %v5143
        %v5176 = vpack.c.b16 %v5161, %v5160
        %v5177 = vpack.c.b16 %v5163, %v5162
        %v5178 = vpack.c.b16 %v5165, %v5164
        %v5179 = vpack.c.b16 %v5167, %v5166
        %v5180 = vpack.c.b16 %v5169, %v5168
        %v5181 = vpack.c.b16 %v5171, %v5170
        %v5182 = vpack.c.b16 %v5173, %v5172
        %v5183 = vpack.c.b16 %v5175, %v5174
        %5192 = vmatprep.subr.bf16.mxu0 0
        %5193 = vmatpush1.bf16.msra.mxu0 %v5176
        %5194 = vmatprep.subr.bf16.mxu0 0
        %5195 = vmatpush1.bf16.msra.mxu0 %v5177
        %5196 = vmatprep.subr.bf16.mxu0 0
        %5197 = vmatpush1.bf16.msra.mxu0 %v5178
        %5198 = vmatprep.subr.bf16.mxu0 0
        %5199 = vmatpush1.bf16.msra.mxu0 %v5179
        %5200 = vmatprep.subr.bf16.mxu0 0
        %5201 = vmatpush1.bf16.msra.mxu0 %v5180
        %5202 = vmatprep.subr.bf16.mxu0 0
        %5203 = vmatpush1.bf16.msra.mxu0 %v5181
        %5204 = vmatprep.subr.bf16.mxu0 0
        %5205 = vmatpush1.bf16.msra.mxu0 %v5182
        %5206 = vmatprep.subr.bf16.mxu0 0
        %5207 = vmatpush1.bf16.msra.mxu0 %v5183
        %5208 = vmatprep.subr.bf16.mxu0 0
        %5209 = vmatpush1.bf16.msra.mxu0 0
        %5210 = vmatprep.subr.bf16.mxu0 0
        %5211 = vmatpush1.bf16.msra.mxu0 0
        %5212 = vmatprep.subr.bf16.mxu0 0
        %5213 = vmatpush1.bf16.msra.mxu0 0
        %5214 = vmatprep.subr.bf16.mxu0 0
        %5215 = vmatpush1.bf16.msra.mxu0 0
        %5216 = vmatprep.subr.bf16.mxu0 0
        %5217 = vmatpush1.bf16.msra.mxu0 0
        %5218 = vmatprep.subr.bf16.mxu0 0
        %5219 = vmatpush1.bf16.msra.mxu0 0
        %5220 = vmatprep.subr.bf16.mxu0 0
        %5221 = vmatpush1.bf16.msra.mxu0 0
        %5222 = vmatprep.subr.bf16.mxu0 0
        %5223 = vmatpush1.bf16.msra.mxu0 0
        %5224 = vmatprep.mubr.bf16.mxu0 0
        %5225 = vmatmul.mubr.bf16.gmra.mrb[0].mxu0 %v5119
        %v5226 = vpop.f32.mrb[0].mxu0
        %v5227 = vadd.f32 0.0, %v5226
        %v5228 = vpop.f32.mrb[0].mxu0
        %v5229 = vpop.f32.mrb[0].mxu0
        %v5230 = vadd.f32 0.0, %v5229
        %v5231 = vpop.f32.mrb[0].mxu0
        %5232 = vmatprep.mubr.bf16.mxu0 0
        %5233 = vmatmul.mubr.bf16.gmra.mrb[0].mxu0 %v5120
        %v5234 = vpop.f32.mrb[0].mxu0
        %v5235 = vadd.f32 0.0, %v5234
        %v5236 = vpop.f32.mrb[0].mxu0
        %v5237 = vpop.f32.mrb[0].mxu0
        %v5238 = vadd.f32 0.0, %v5237
        %v5239 = vpop.f32.mrb[0].mxu0
        %5240 = vmatprep.mubr.bf16.mxu0 0
        %5241 = vmatmul.mubr.bf16.gmra.mrb[0].mxu0 %v5121
        %v5242 = vpop.f32.mrb[0].mxu0
        %v5243 = vadd.f32 0.0, %v5242
        %v5244 = vpop.f32.mrb[0].mxu0
        %v5245 = vpop.f32.mrb[0].mxu0
        %v5246 = vadd.f32 0.0, %v5245
        %v5247 = vpop.f32.mrb[0].mxu0
        %5248 = vmatprep.mubr.bf16.mxu0 0
        %5249 = vmatmul.mubr.bf16.gmra.mrb[0].mxu0 %v5122
        %v5250 = vpop.f32.mrb[0].mxu0
        %v5251 = vadd.f32 0.0, %v5250
        %v5252 = vpop.f32.mrb[0].mxu0
        %v5253 = vpop.f32.mrb[0].mxu0
        %v5254 = vadd.f32 0.0, %v5253
        %v5255 = vpop.f32.mrb[0].mxu0
        %5256 = vmatprep.mubr.bf16.mxu0 0
        %5257 = vmatmul.mubr.bf16.gmra.mrb[0].mxu0 %v5123
        %v5258 = vpop.f32.mrb[0].mxu0
        %v5259 = vadd.f32 0.0, %v5258
        %v5260 = vpop.f32.mrb[0].mxu0
        %v5261 = vpop.f32.mrb[0].mxu0
        %v5262 = vadd.f32 0.0, %v5261
        %v5263 = vpop.f32.mrb[0].mxu0
        %5264 = vmatprep.mubr.bf16.mxu0 0
        %5265 = vmatmul.mubr.bf16.gmra.mrb[0].mxu0 %v5124
        %v5266 = vpop.f32.mrb[0].mxu0
        %v5267 = vadd.f32 0.0, %v5266
        %v5268 = vpop.f32.mrb[0].mxu0
        %v5269 = vpop.f32.mrb[0].mxu0
        %v5270 = vadd.f32 0.0, %v5269
        %v5271 = vpop.f32.mrb[0].mxu0
        %5272 = vmatprep.mubr.bf16.mxu0 0
        %5273 = vmatmul.mubr.bf16.gmra.mrb[0].mxu0 %v5125
        %v5274 = vpop.f32.mrb[0].mxu0
        %v5275 = vadd.f32 0.0, %v5274
        %v5276 = vpop.f32.mrb[0].mxu0
        %v5277 = vpop.f32.mrb[0].mxu0
        %v5278 = vadd.f32 0.0, %v5277
        %v5279 = vpop.f32.mrb[0].mxu0
        %5280 = vmatprep.mubr.bf16.mxu0 0
        %5281 = vmatmul.mubr.bf16.gmra.mrb[0].mxu0 %v5126
        %v5282 = vpop.f32.mrb[0].mxu0
        %v5283 = vadd.f32 0.0, %v5282
        %v5284 = vpop.f32.mrb[0].mxu0
        %v5285 = vpop.f32.mrb[0].mxu0
        %v5286 = vadd.f32 0.0, %v5285
        %v5287 = vpop.f32.mrb[0].mxu0
        %5288 = vdwg.mxu0
        %v5289 = vadd.f32 %v5087, %v5227
        %v5290 = vadd.f32 %v5088, %v5230
        %v5291 = vadd.f32 %v5089, %v5235
        %v5292 = vadd.f32 %v5090, %v5238
        %v5293 = vadd.f32 %v5091, %v5243
        %v5294 = vadd.f32 %v5092, %v5246
        %v5295 = vadd.f32 %v5093, %v5251
        %v5296 = vadd.f32 %v5094, %v5254
        %v5297 = vadd.f32 %v5095, %v5259
        %v5298 = vadd.f32 %v5096, %v5262
        %v5299 = vadd.f32 %v5097, %v5267
        %v5300 = vadd.f32 %v5098, %v5270
        %v5301 = vadd.f32 %v5099, %v5275
        %v5302 = vadd.f32 %v5100, %v5278
        %v5303 = vadd.f32 %v5101, %v5283
        %v5304 = vadd.f32 %v5102, %v5286
        %v5305 = vld [vmem:[%s246 + $0x2] sm:$0xff]
        %v5306 = vld [vmem:[%s246 + $0xa] sm:$0xff]
        %v5307 = vld [vmem:[%s246 + $0x1a] sm:$0xff]
        %v5308 = vld [vmem:[%s246 + $0x22] sm:$0xff]
        %v5309 = vld [vmem:[%s246 + $0x32] sm:$0xff]
        %v5310 = vld [vmem:[%s246 + $0x3a] sm:$0xff]
        %v5311 = vld [vmem:[%s246 + $0x4a] sm:$0xff]
        %v5312 = vld [vmem:[%s246 + $0x52] sm:$0xff]
        %v5313 = vld [vmem:[%s246 + $0x62] sm:$0xff]
        %v5314 = vld [vmem:[%s246 + $0x6a] sm:$0xff]
        %v5315 = vld [vmem:[%s246 + $0x7a] sm:$0xff]
        %v5316 = vld [vmem:[%s246 + $0x82] sm:$0xff]
        %v5317 = vld [vmem:[%s246 + $0x92] sm:$0xff]
        %v5318 = vld [vmem:[%s246 + $0x9a] sm:$0xff]
        %v5319 = vld [vmem:[%s246 + $0xaa] sm:$0xff]
        %v5320 = vld [vmem:[%s246 + $0xb2] sm:$0xff]
        %v5321 = vpack.c.bf16 %v5306, %v5305
        %v5322 = vpack.c.bf16 %v5308, %v5307
        %v5323 = vpack.c.bf16 %v5310, %v5309
        %v5324 = vpack.c.bf16 %v5312, %v5311
        %v5325 = vpack.c.bf16 %v5314, %v5313
        %v5326 = vpack.c.bf16 %v5316, %v5315
        %v5327 = vpack.c.bf16 %v5318, %v5317
        %v5328 = vpack.c.bf16 %v5320, %v5319
        %s5329 = scalar_lea.vmem [#allocation3], 1472
        %v5330 = vld [vmem:[%s5329] sm:$0xf]
        %v5331 = vld [vmem:[%s5329 + $0x4] sm:$0xf]
        %v5332 = vld [vmem:[%s5329 + $0x8] sm:$0xf]
        %v5333 = vld [vmem:[%s5329 + $0xc] sm:$0xf]
        %v5334 = vld [vmem:[%s5329 + $0x10] sm:$0xf]
        %v5335 = vld [vmem:[%s5329 + $0x14] sm:$0xf]
        %v5336 = vld [vmem:[%s5329 + $0x18] sm:$0xf]
        %v5337 = vld [vmem:[%s5329 + $0x1c] sm:$0xf]
        %v5338 = vld [vmem:[%s5329 + $0x20] sm:$0xf]
        %v5339 = vld [vmem:[%s5329 + $0x24] sm:$0xf]
        %v5340 = vld [vmem:[%s5329 + $0x28] sm:$0xf]
        %v5341 = vld [vmem:[%s5329 + $0x2c] sm:$0xf]
        %v5342 = vld [vmem:[%s5329 + $0x30] sm:$0xf]
        %v5343 = vld [vmem:[%s5329 + $0x34] sm:$0xf]
        %v5344 = vld [vmem:[%s5329 + $0x38] sm:$0xf]
        %v5345 = vld [vmem:[%s5329 + $0x3c] sm:$0xf]
        %v5362 = vunpack.c.l.b16 %v5330
        %v5363 = vunpack.c.l.b16 %v5331
        %v5364 = vunpack.c.l.b16 %v5332
        %v5365 = vunpack.c.l.b16 %v5333
        %v5366 = vunpack.c.l.b16 %v5334
        %v5367 = vunpack.c.l.b16 %v5335
        %v5368 = vunpack.c.l.b16 %v5336
        %v5369 = vunpack.c.l.b16 %v5337
        %v5370 = vunpack.c.l.b16 %v5338
        %v5371 = vunpack.c.l.b16 %v5339
        %v5372 = vunpack.c.l.b16 %v5340
        %v5373 = vunpack.c.l.b16 %v5341
        %v5374 = vunpack.c.l.b16 %v5342
        %v5375 = vunpack.c.l.b16 %v5343
        %v5376 = vunpack.c.l.b16 %v5344
        %v5377 = vunpack.c.l.b16 %v5345
        %v5378 = vpack.c.b16 %v5363, %v5362
        %v5379 = vpack.c.b16 %v5365, %v5364
        %v5380 = vpack.c.b16 %v5367, %v5366
        %v5381 = vpack.c.b16 %v5369, %v5368
        %v5382 = vpack.c.b16 %v5371, %v5370
        %v5383 = vpack.c.b16 %v5373, %v5372
        %v5384 = vpack.c.b16 %v5375, %v5374
        %v5385 = vpack.c.b16 %v5377, %v5376
        %5394 = vmatprep.subr.bf16.mxu0 0
        %5395 = vmatpush1.bf16.msra.mxu0 %v5378
        %5396 = vmatprep.subr.bf16.mxu0 0
        %5397 = vmatpush1.bf16.msra.mxu0 %v5379
        %5398 = vmatprep.subr.bf16.mxu0 0
        %5399 = vmatpush1.bf16.msra.mxu0 %v5380
        %5400 = vmatprep.subr.bf16.mxu0 0
        %5401 = vmatpush1.bf16.msra.mxu0 %v5381
        %5402 = vmatprep.subr.bf16.mxu0 0
        %5403 = vmatpush1.bf16.msra.mxu0 %v5382
        %5404 = vmatprep.subr.bf16.mxu0 0
        %5405 = vmatpush1.bf16.msra.mxu0 %v5383
        %5406 = vmatprep.subr.bf16.mxu0 0
        %5407 = vmatpush1.bf16.msra.mxu0 %v5384
        %5408 = vmatprep.subr.bf16.mxu0 0
        %5409 = vmatpush1.bf16.msra.mxu0 %v5385
        %5410 = vmatprep.subr.bf16.mxu0 0
        %5411 = vmatpush1.bf16.msra.mxu0 0
        %5412 = vmatprep.subr.bf16.mxu0 0
        %5413 = vmatpush1.bf16.msra.mxu0 0
        %5414 = vmatprep.subr.bf16.mxu0 0
        %5415 = vmatpush1.bf16.msra.mxu0 0
        %5416 = vmatprep.subr.bf16.mxu0 0
        %5417 = vmatpush1.bf16.msra.mxu0 0
        %5418 = vmatprep.subr.bf16.mxu0 0
        %5419 = vmatpush1.bf16.msra.mxu0 0
        %5420 = vmatprep.subr.bf16.mxu0 0
        %5421 = vmatpush1.bf16.msra.mxu0 0
        %5422 = vmatprep.subr.bf16.mxu0 0
        %5423 = vmatpush1.bf16.msra.mxu0 0
        %5424 = vmatprep.subr.bf16.mxu0 0
        %5425 = vmatpush1.bf16.msra.mxu0 0
        %5426 = vmatprep.mubr.bf16.mxu0 0
        %5427 = vmatmul.mubr.bf16.gmra.mrb[0].mxu0 %v5321
        %v5428 = vpop.f32.mrb[0].mxu0
        %v5429 = vadd.f32 0.0, %v5428
        %v5430 = vpop.f32.mrb[0].mxu0
        %v5431 = vpop.f32.mrb[0].mxu0
        %v5432 = vadd.f32 0.0, %v5431
        %v5433 = vpop.f32.mrb[0].mxu0
        %5434 = vmatprep.mubr.bf16.mxu0 0
        %5435 = vmatmul.mubr.bf16.gmra.mrb[0].mxu0 %v5322
        %v5436 = vpop.f32.mrb[0].mxu0
        %v5437 = vadd.f32 0.0, %v5436
        %v5438 = vpop.f32.mrb[0].mxu0
        %v5439 = vpop.f32.mrb[0].mxu0
        %v5440 = vadd.f32 0.0, %v5439
        %v5441 = vpop.f32.mrb[0].mxu0
        %5442 = vmatprep.mubr.bf16.mxu0 0
        %5443 = vmatmul.mubr.bf16.gmra.mrb[0].mxu0 %v5323
        %v5444 = vpop.f32.mrb[0].mxu0
        %v5445 = vadd.f32 0.0, %v5444
        %v5446 = vpop.f32.mrb[0].mxu0
        %v5447 = vpop.f32.mrb[0].mxu0
        %v5448 = vadd.f32 0.0, %v5447
        %v5449 = vpop.f32.mrb[0].mxu0
        %5450 = vmatprep.mubr.bf16.mxu0 0
        %5451 = vmatmul.mubr.bf16.gmra.mrb[0].mxu0 %v5324
        %v5452 = vpop.f32.mrb[0].mxu0
        %v5453 = vadd.f32 0.0, %v5452
        %v5454 = vpop.f32.mrb[0].mxu0
        %v5455 = vpop.f32.mrb[0].mxu0
        %v5456 = vadd.f32 0.0, %v5455
        %v5457 = vpop.f32.mrb[0].mxu0
        %5458 = vmatprep.mubr.bf16.mxu0 0
        %5459 = vmatmul.mubr.bf16.gmra.mrb[0].mxu0 %v5325
        %v5460 = vpop.f32.mrb[0].mxu0
        %v5461 = vadd.f32 0.0, %v5460
        %v5462 = vpop.f32.mrb[0].mxu0
        %v5463 = vpop.f32.mrb[0].mxu0
        %v5464 = vadd.f32 0.0, %v5463
        %v5465 = vpop.f32.mrb[0].mxu0
        %5466 = vmatprep.mubr.bf16.mxu0 0
        %5467 = vmatmul.mubr.bf16.gmra.mrb[0].mxu0 %v5326
        %v5468 = vpop.f32.mrb[0].mxu0
        %v5469 = vadd.f32 0.0, %v5468
        %v5470 = vpop.f32.mrb[0].mxu0
        %v5471 = vpop.f32.mrb[0].mxu0
        %v5472 = vadd.f32 0.0, %v5471
        %v5473 = vpop.f32.mrb[0].mxu0
        %5474 = vmatprep.mubr.bf16.mxu0 0
        %5475 = vmatmul.mubr.bf16.gmra.mrb[0].mxu0 %v5327
        %v5476 = vpop.f32.mrb[0].mxu0
        %v5477 = vadd.f32 0.0, %v5476
        %v5478 = vpop.f32.mrb[0].mxu0
        %v5479 = vpop.f32.mrb[0].mxu0
        %v5480 = vadd.f32 0.0, %v5479
        %v5481 = vpop.f32.mrb[0].mxu0
        %5482 = vmatprep.mubr.bf16.mxu0 0
        %5483 = vmatmul.mubr.bf16.gmra.mrb[0].mxu0 %v5328
        %v5484 = vpop.f32.mrb[0].mxu0
        %v5485 = vadd.f32 0.0, %v5484
        %v5486 = vpop.f32.mrb[0].mxu0
        %v5487 = vpop.f32.mrb[0].mxu0
        %v5488 = vadd.f32 0.0, %v5487
        %v5489 = vpop.f32.mrb[0].mxu0
        %5490 = vdwg.mxu0
        %v5491 = vadd.f32 %v5289, %v5429
        %v5492 = vadd.f32 %v5290, %v5432
        %v5493 = vadd.f32 %v5291, %v5437
        %v5494 = vadd.f32 %v5292, %v5440
        %v5495 = vadd.f32 %v5293, %v5445
        %v5496 = vadd.f32 %v5294, %v5448
        %v5497 = vadd.f32 %v5295, %v5453
        %v5498 = vadd.f32 %v5296, %v5456
        %v5499 = vadd.f32 %v5297, %v5461
        %v5500 = vadd.f32 %v5298, %v5464
        %v5501 = vadd.f32 %v5299, %v5469
        %v5502 = vadd.f32 %v5300, %v5472
        %v5503 = vadd.f32 %v5301, %v5477
        %v5504 = vadd.f32 %v5302, %v5480
        %v5505 = vadd.f32 %v5303, %v5485
        %v5506 = vadd.f32 %v5304, %v5488
        %v5507 = vld [vmem:[%s1443] sm:$0xff]
        %v5508 = vld [vmem:[%s1443 + $0x8] sm:$0xff]
        %v5509 = vld [vmem:[%s1443 + $0x18] sm:$0xff]
        %v5510 = vld [vmem:[%s1443 + $0x20] sm:$0xff]
        %v5511 = vld [vmem:[%s1443 + $0x30] sm:$0xff]
        %v5512 = vld [vmem:[%s1443 + $0x38] sm:$0xff]
        %v5513 = vld [vmem:[%s1443 + $0x48] sm:$0xff]
        %v5514 = vld [vmem:[%s1443 + $0x50] sm:$0xff]
        %v5515 = vld [vmem:[%s1443 + $0x60] sm:$0xff]
        %v5516 = vld [vmem:[%s1443 + $0x68] sm:$0xff]
        %v5517 = vld [vmem:[%s1443 + $0x78] sm:$0xff]
        %v5518 = vld [vmem:[%s1443 + $0x80] sm:$0xff]
        %v5519 = vld [vmem:[%s1443 + $0x90] sm:$0xff]
        %v5520 = vld [vmem:[%s1443 + $0x98] sm:$0xff]
        %v5521 = vld [vmem:[%s1443 + $0xa8] sm:$0xff]
        %v5522 = vld [vmem:[%s1443 + $0xb0] sm:$0xff]
        %v5523 = vpack.c.bf16 %v5508, %v5507
        %v5524 = vpack.c.bf16 %v5510, %v5509
        %v5525 = vpack.c.bf16 %v5512, %v5511
        %v5526 = vpack.c.bf16 %v5514, %v5513
        %v5527 = vpack.c.bf16 %v5516, %v5515
        %v5528 = vpack.c.bf16 %v5518, %v5517
        %v5529 = vpack.c.bf16 %v5520, %v5519
        %v5530 = vpack.c.bf16 %v5522, %v5521
        %s5531 = scalar_lea.vmem [#allocation3], 1536
        %v5532 = vld [vmem:[%s5531] sm:$0xf]
        %v5533 = vld [vmem:[%s5531 + $0x4] sm:$0xf]
        %v5534 = vld [vmem:[%s5531 + $0x8] sm:$0xf]
        %v5535 = vld [vmem:[%s5531 + $0xc] sm:$0xf]
        %v5536 = vld [vmem:[%s5531 + $0x10] sm:$0xf]
        %v5537 = vld [vmem:[%s5531 + $0x14] sm:$0xf]
        %v5538 = vld [vmem:[%s5531 + $0x18] sm:$0xf]
        %v5539 = vld [vmem:[%s5531 + $0x1c] sm:$0xf]
        %v5540 = vld [vmem:[%s5531 + $0x20] sm:$0xf]
        %v5541 = vld [vmem:[%s5531 + $0x24] sm:$0xf]
        %v5542 = vld [vmem:[%s5531 + $0x28] sm:$0xf]
        %v5543 = vld [vmem:[%s5531 + $0x2c] sm:$0xf]
        %v5544 = vld [vmem:[%s5531 + $0x30] sm:$0xf]
        %v5545 = vld [vmem:[%s5531 + $0x34] sm:$0xf]
        %v5546 = vld [vmem:[%s5531 + $0x38] sm:$0xf]
        %v5547 = vld [vmem:[%s5531 + $0x3c] sm:$0xf]
        %v5564 = vunpack.c.l.b16 %v5532
        %v5565 = vunpack.c.l.b16 %v5533
        %v5566 = vunpack.c.l.b16 %v5534
        %v5567 = vunpack.c.l.b16 %v5535
        %v5568 = vunpack.c.l.b16 %v5536
        %v5569 = vunpack.c.l.b16 %v5537
        %v5570 = vunpack.c.l.b16 %v5538
        %v5571 = vunpack.c.l.b16 %v5539
        %v5572 = vunpack.c.l.b16 %v5540
        %v5573 = vunpack.c.l.b16 %v5541
        %v5574 = vunpack.c.l.b16 %v5542
        %v5575 = vunpack.c.l.b16 %v5543
        %v5576 = vunpack.c.l.b16 %v5544
        %v5577 = vunpack.c.l.b16 %v5545
        %v5578 = vunpack.c.l.b16 %v5546
        %v5579 = vunpack.c.l.b16 %v5547
        %v5580 = vpack.c.b16 %v5565, %v5564
        %v5581 = vpack.c.b16 %v5567, %v5566
        %v5582 = vpack.c.b16 %v5569, %v5568
        %v5583 = vpack.c.b16 %v5571, %v5570
        %v5584 = vpack.c.b16 %v5573, %v5572
        %v5585 = vpack.c.b16 %v5575, %v5574
        %v5586 = vpack.c.b16 %v5577, %v5576
        %v5587 = vpack.c.b16 %v5579, %v5578
        %5596 = vmatprep.subr.bf16.mxu0 0
        %5597 = vmatpush1.bf16.msra.mxu0 %v5580
        %5598 = vmatprep.subr.bf16.mxu0 0
        %5599 = vmatpush1.bf16.msra.mxu0 %v5581
        %5600 = vmatprep.subr.bf16.mxu0 0
        %5601 = vmatpush1.bf16.msra.mxu0 %v5582
        %5602 = vmatprep.subr.bf16.mxu0 0
        %5603 = vmatpush1.bf16.msra.mxu0 %v5583
        %5604 = vmatprep.subr.bf16.mxu0 0
        %5605 = vmatpush1.bf16.msra.mxu0 %v5584
        %5606 = vmatprep.subr.bf16.mxu0 0
        %5607 = vmatpush1.bf16.msra.mxu0 %v5585
        %5608 = vmatprep.subr.bf16.mxu0 0
        %5609 = vmatpush1.bf16.msra.mxu0 %v5586
        %5610 = vmatprep.subr.bf16.mxu0 0
        %5611 = vmatpush1.bf16.msra.mxu0 %v5587
        %5612 = vmatprep.subr.bf16.mxu0 0
        %5613 = vmatpush1.bf16.msra.mxu0 0
        %5614 = vmatprep.subr.bf16.mxu0 0
        %5615 = vmatpush1.bf16.msra.mxu0 0
        %5616 = vmatprep.subr.bf16.mxu0 0
        %5617 = vmatpush1.bf16.msra.mxu0 0
        %5618 = vmatprep.subr.bf16.mxu0 0
        %5619 = vmatpush1.bf16.msra.mxu0 0
        %5620 = vmatprep.subr.bf16.mxu0 0
        %5621 = vmatpush1.bf16.msra.mxu0 0
        %5622 = vmatprep.subr.bf16.mxu0 0
        %5623 = vmatpush1.bf16.msra.mxu0 0
        %5624 = vmatprep.subr.bf16.mxu0 0
        %5625 = vmatpush1.bf16.msra.mxu0 0
        %5626 = vmatprep.subr.bf16.mxu0 0
        %5627 = vmatpush1.bf16.msra.mxu0 0
        %5628 = vmatprep.mubr.bf16.mxu0 0
        %5629 = vmatmul.mubr.bf16.gmra.mrb[0].mxu0 %v5523
        %v5630 = vpop.f32.mrb[0].mxu0
        %v5631 = vadd.f32 0.0, %v5630
        %v5632 = vpop.f32.mrb[0].mxu0
        %v5633 = vpop.f32.mrb[0].mxu0
        %v5634 = vadd.f32 0.0, %v5633
        %v5635 = vpop.f32.mrb[0].mxu0
        %5636 = vmatprep.mubr.bf16.mxu0 0
        %5637 = vmatmul.mubr.bf16.gmra.mrb[0].mxu0 %v5524
        %v5638 = vpop.f32.mrb[0].mxu0
        %v5639 = vadd.f32 0.0, %v5638
        %v5640 = vpop.f32.mrb[0].mxu0
        %v5641 = vpop.f32.mrb[0].mxu0
        %v5642 = vadd.f32 0.0, %v5641
        %v5643 = vpop.f32.mrb[0].mxu0
        %5644 = vmatprep.mubr.bf16.mxu0 0
        %5645 = vmatmul.mubr.bf16.gmra.mrb[0].mxu0 %v5525
        %v5646 = vpop.f32.mrb[0].mxu0
        %v5647 = vadd.f32 0.0, %v5646
        %v5648 = vpop.f32.mrb[0].mxu0
        %v5649 = vpop.f32.mrb[0].mxu0
        %v5650 = vadd.f32 0.0, %v5649
        %v5651 = vpop.f32.mrb[0].mxu0
        %5652 = vmatprep.mubr.bf16.mxu0 0
        %5653 = vmatmul.mubr.bf16.gmra.mrb[0].mxu0 %v5526
        %v5654 = vpop.f32.mrb[0].mxu0
        %v5655 = vadd.f32 0.0, %v5654
        %v5656 = vpop.f32.mrb[0].mxu0
        %v5657 = vpop.f32.mrb[0].mxu0
        %v5658 = vadd.f32 0.0, %v5657
        %v5659 = vpop.f32.mrb[0].mxu0
        %5660 = vmatprep.mubr.bf16.mxu0 0
        %5661 = vmatmul.mubr.bf16.gmra.mrb[0].mxu0 %v5527
        %v5662 = vpop.f32.mrb[0].mxu0
        %v5663 = vadd.f32 0.0, %v5662
        %v5664 = vpop.f32.mrb[0].mxu0
        %v5665 = vpop.f32.mrb[0].mxu0
        %v5666 = vadd.f32 0.0, %v5665
        %v5667 = vpop.f32.mrb[0].mxu0
        %5668 = vmatprep.mubr.bf16.mxu0 0
        %5669 = vmatmul.mubr.bf16.gmra.mrb[0].mxu0 %v5528
        %v5670 = vpop.f32.mrb[0].mxu0
        %v5671 = vadd.f32 0.0, %v5670
        %v5672 = vpop.f32.mrb[0].mxu0
        %v5673 = vpop.f32.mrb[0].mxu0
        %v5674 = vadd.f32 0.0, %v5673
        %v5675 = vpop.f32.mrb[0].mxu0
        %5676 = vmatprep.mubr.bf16.mxu0 0
        %5677 = vmatmul.mubr.bf16.gmra.mrb[0].mxu0 %v5529
        %v5678 = vpop.f32.mrb[0].mxu0
        %v5679 = vadd.f32 0.0, %v5678
        %v5680 = vpop.f32.mrb[0].mxu0
        %v5681 = vpop.f32.mrb[0].mxu0
        %v5682 = vadd.f32 0.0, %v5681
        %v5683 = vpop.f32.mrb[0].mxu0
        %5684 = vmatprep.mubr.bf16.mxu0 0
        %5685 = vmatmul.mubr.bf16.gmra.mrb[0].mxu0 %v5530
        %v5686 = vpop.f32.mrb[0].mxu0
        %v5687 = vadd.f32 0.0, %v5686
        %v5688 = vpop.f32.mrb[0].mxu0
        %v5689 = vpop.f32.mrb[0].mxu0
        %v5690 = vadd.f32 0.0, %v5689
        %v5691 = vpop.f32.mrb[0].mxu0
        %5692 = vdwg.mxu0
        %v5693 = vadd.f32 %v5491, %v5631
        %v5694 = vadd.f32 %v5492, %v5634
        %v5695 = vadd.f32 %v5493, %v5639
        %v5696 = vadd.f32 %v5494, %v5642
        %v5697 = vadd.f32 %v5495, %v5647
        %v5698 = vadd.f32 %v5496, %v5650
        %v5699 = vadd.f32 %v5497, %v5655
        %v5700 = vadd.f32 %v5498, %v5658
        %v5701 = vadd.f32 %v5499, %v5663
        %v5702 = vadd.f32 %v5500, %v5666
        %v5703 = vadd.f32 %v5501, %v5671
        %v5704 = vadd.f32 %v5502, %v5674
        %v5705 = vadd.f32 %v5503, %v5679
        %v5706 = vadd.f32 %v5504, %v5682
        %v5707 = vadd.f32 %v5505, %v5687
        %v5708 = vadd.f32 %v5506, %v5690
        %v5709 = vld [vmem:[%s1443 + $0x1] sm:$0xff]
        %v5710 = vld [vmem:[%s1443 + $0x9] sm:$0xff]
        %v5711 = vld [vmem:[%s1443 + $0x19] sm:$0xff]
        %v5712 = vld [vmem:[%s1443 + $0x21] sm:$0xff]
        %v5713 = vld [vmem:[%s1443 + $0x31] sm:$0xff]
        %v5714 = vld [vmem:[%s1443 + $0x39] sm:$0xff]
        %v5715 = vld [vmem:[%s1443 + $0x49] sm:$0xff]
        %v5716 = vld [vmem:[%s1443 + $0x51] sm:$0xff]
        %v5717 = vld [vmem:[%s1443 + $0x61] sm:$0xff]
        %v5718 = vld [vmem:[%s1443 + $0x69] sm:$0xff]
        %v5719 = vld [vmem:[%s1443 + $0x79] sm:$0xff]
        %v5720 = vld [vmem:[%s1443 + $0x81] sm:$0xff]
        %v5721 = vld [vmem:[%s1443 + $0x91] sm:$0xff]
        %v5722 = vld [vmem:[%s1443 + $0x99] sm:$0xff]
        %v5723 = vld [vmem:[%s1443 + $0xa9] sm:$0xff]
        %v5724 = vld [vmem:[%s1443 + $0xb1] sm:$0xff]
        %v5725 = vpack.c.bf16 %v5710, %v5709
        %v5726 = vpack.c.bf16 %v5712, %v5711
        %v5727 = vpack.c.bf16 %v5714, %v5713
        %v5728 = vpack.c.bf16 %v5716, %v5715
        %v5729 = vpack.c.bf16 %v5718, %v5717
        %v5730 = vpack.c.bf16 %v5720, %v5719
        %v5731 = vpack.c.bf16 %v5722, %v5721
        %v5732 = vpack.c.bf16 %v5724, %v5723
        %s5733 = scalar_lea.vmem [#allocation3], 1600
        %v5734 = vld [vmem:[%s5733] sm:$0xf]
        %v5735 = vld [vmem:[%s5733 + $0x4] sm:$0xf]
        %v5736 = vld [vmem:[%s5733 + $0x8] sm:$0xf]
        %v5737 = vld [vmem:[%s5733 + $0xc] sm:$0xf]
        %v5738 = vld [vmem:[%s5733 + $0x10] sm:$0xf]
        %v5739 = vld [vmem:[%s5733 + $0x14] sm:$0xf]
        %v5740 = vld [vmem:[%s5733 + $0x18] sm:$0xf]
        %v5741 = vld [vmem:[%s5733 + $0x1c] sm:$0xf]
        %v5742 = vld [vmem:[%s5733 + $0x20] sm:$0xf]
        %v5743 = vld [vmem:[%s5733 + $0x24] sm:$0xf]
        %v5744 = vld [vmem:[%s5733 + $0x28] sm:$0xf]
        %v5745 = vld [vmem:[%s5733 + $0x2c] sm:$0xf]
        %v5746 = vld [vmem:[%s5733 + $0x30] sm:$0xf]
        %v5747 = vld [vmem:[%s5733 + $0x34] sm:$0xf]
        %v5748 = vld [vmem:[%s5733 + $0x38] sm:$0xf]
        %v5749 = vld [vmem:[%s5733 + $0x3c] sm:$0xf]
        %v5766 = vunpack.c.l.b16 %v5734
        %v5767 = vunpack.c.l.b16 %v5735
        %v5768 = vunpack.c.l.b16 %v5736
        %v5769 = vunpack.c.l.b16 %v5737
        %v5770 = vunpack.c.l.b16 %v5738
        %v5771 = vunpack.c.l.b16 %v5739
        %v5772 = vunpack.c.l.b16 %v5740
        %v5773 = vunpack.c.l.b16 %v5741
        %v5774 = vunpack.c.l.b16 %v5742
        %v5775 = vunpack.c.l.b16 %v5743
        %v5776 = vunpack.c.l.b16 %v5744
        %v5777 = vunpack.c.l.b16 %v5745
        %v5778 = vunpack.c.l.b16 %v5746
        %v5779 = vunpack.c.l.b16 %v5747
        %v5780 = vunpack.c.l.b16 %v5748
        %v5781 = vunpack.c.l.b16 %v5749
        %v5782 = vpack.c.b16 %v5767, %v5766
        %v5783 = vpack.c.b16 %v5769, %v5768
        %v5784 = vpack.c.b16 %v5771, %v5770
        %v5785 = vpack.c.b16 %v5773, %v5772
        %v5786 = vpack.c.b16 %v5775, %v5774
        %v5787 = vpack.c.b16 %v5777, %v5776
        %v5788 = vpack.c.b16 %v5779, %v5778
        %v5789 = vpack.c.b16 %v5781, %v5780
        %5798 = vmatprep.subr.bf16.mxu0 0
        %5799 = vmatpush1.bf16.msra.mxu0 %v5782
        %5800 = vmatprep.subr.bf16.mxu0 0
        %5801 = vmatpush1.bf16.msra.mxu0 %v5783
        %5802 = vmatprep.subr.bf16.mxu0 0
        %5803 = vmatpush1.bf16.msra.mxu0 %v5784
        %5804 = vmatprep.subr.bf16.mxu0 0
        %5805 = vmatpush1.bf16.msra.mxu0 %v5785
        %5806 = vmatprep.subr.bf16.mxu0 0
        %5807 = vmatpush1.bf16.msra.mxu0 %v5786
        %5808 = vmatprep.subr.bf16.mxu0 0
        %5809 = vmatpush1.bf16.msra.mxu0 %v5787
        %5810 = vmatprep.subr.bf16.mxu0 0
        %5811 = vmatpush1.bf16.msra.mxu0 %v5788
        %5812 = vmatprep.subr.bf16.mxu0 0
        %5813 = vmatpush1.bf16.msra.mxu0 %v5789
        %5814 = vmatprep.subr.bf16.mxu0 0
        %5815 = vmatpush1.bf16.msra.mxu0 0
        %5816 = vmatprep.subr.bf16.mxu0 0
        %5817 = vmatpush1.bf16.msra.mxu0 0
        %5818 = vmatprep.subr.bf16.mxu0 0
        %5819 = vmatpush1.bf16.msra.mxu0 0
        %5820 = vmatprep.subr.bf16.mxu0 0
        %5821 = vmatpush1.bf16.msra.mxu0 0
        %5822 = vmatprep.subr.bf16.mxu0 0
        %5823 = vmatpush1.bf16.msra.mxu0 0
        %5824 = vmatprep.subr.bf16.mxu0 0
        %5825 = vmatpush1.bf16.msra.mxu0 0
        %5826 = vmatprep.subr.bf16.mxu0 0
        %5827 = vmatpush1.bf16.msra.mxu0 0
        %5828 = vmatprep.subr.bf16.mxu0 0
        %5829 = vmatpush1.bf16.msra.mxu0 0
        %5830 = vmatprep.mubr.bf16.mxu0 0
        %5831 = vmatmul.mubr.bf16.gmra.mrb[0].mxu0 %v5725
        %v5832 = vpop.f32.mrb[0].mxu0
        %v5833 = vadd.f32 0.0, %v5832
        %v5834 = vpop.f32.mrb[0].mxu0
        %v5835 = vpop.f32.mrb[0].mxu0
        %v5836 = vadd.f32 0.0, %v5835
        %v5837 = vpop.f32.mrb[0].mxu0
        %5838 = vmatprep.mubr.bf16.mxu0 0
        %5839 = vmatmul.mubr.bf16.gmra.mrb[0].mxu0 %v5726
        %v5840 = vpop.f32.mrb[0].mxu0
        %v5841 = vadd.f32 0.0, %v5840
        %v5842 = vpop.f32.mrb[0].mxu0
        %v5843 = vpop.f32.mrb[0].mxu0
        %v5844 = vadd.f32 0.0, %v5843
        %v5845 = vpop.f32.mrb[0].mxu0
        %5846 = vmatprep.mubr.bf16.mxu0 0
        %5847 = vmatmul.mubr.bf16.gmra.mrb[0].mxu0 %v5727
        %v5848 = vpop.f32.mrb[0].mxu0
        %v5849 = vadd.f32 0.0, %v5848
        %v5850 = vpop.f32.mrb[0].mxu0
        %v5851 = vpop.f32.mrb[0].mxu0
        %v5852 = vadd.f32 0.0, %v5851
        %v5853 = vpop.f32.mrb[0].mxu0
        %5854 = vmatprep.mubr.bf16.mxu0 0
        %5855 = vmatmul.mubr.bf16.gmra.mrb[0].mxu0 %v5728
        %v5856 = vpop.f32.mrb[0].mxu0
        %v5857 = vadd.f32 0.0, %v5856
        %v5858 = vpop.f32.mrb[0].mxu0
        %v5859 = vpop.f32.mrb[0].mxu0
        %v5860 = vadd.f32 0.0, %v5859
        %v5861 = vpop.f32.mrb[0].mxu0
        %5862 = vmatprep.mubr.bf16.mxu0 0
        %5863 = vmatmul.mubr.bf16.gmra.mrb[0].mxu0 %v5729
        %v5864 = vpop.f32.mrb[0].mxu0
        %v5865 = vadd.f32 0.0, %v5864
        %v5866 = vpop.f32.mrb[0].mxu0
        %v5867 = vpop.f32.mrb[0].mxu0
        %v5868 = vadd.f32 0.0, %v5867
        %v5869 = vpop.f32.mrb[0].mxu0
        %5870 = vmatprep.mubr.bf16.mxu0 0
        %5871 = vmatmul.mubr.bf16.gmra.mrb[0].mxu0 %v5730
        %v5872 = vpop.f32.mrb[0].mxu0
        %v5873 = vadd.f32 0.0, %v5872
        %v5874 = vpop.f32.mrb[0].mxu0
        %v5875 = vpop.f32.mrb[0].mxu0
        %v5876 = vadd.f32 0.0, %v5875
        %v5877 = vpop.f32.mrb[0].mxu0
        %5878 = vmatprep.mubr.bf16.mxu0 0
        %5879 = vmatmul.mubr.bf16.gmra.mrb[0].mxu0 %v5731
        %v5880 = vpop.f32.mrb[0].mxu0
        %v5881 = vadd.f32 0.0, %v5880
        %v5882 = vpop.f32.mrb[0].mxu0
        %v5883 = vpop.f32.mrb[0].mxu0
        %v5884 = vadd.f32 0.0, %v5883
        %v5885 = vpop.f32.mrb[0].mxu0
        %5886 = vmatprep.mubr.bf16.mxu0 0
        %5887 = vmatmul.mubr.bf16.gmra.mrb[0].mxu0 %v5732
        %v5888 = vpop.f32.mrb[0].mxu0
        %v5889 = vadd.f32 0.0, %v5888
        %v5890 = vpop.f32.mrb[0].mxu0
        %v5891 = vpop.f32.mrb[0].mxu0
        %v5892 = vadd.f32 0.0, %v5891
        %v5893 = vpop.f32.mrb[0].mxu0
        %5894 = vdwg.mxu0
        %v5895 = vadd.f32 %v5693, %v5833
        %v5896 = vadd.f32 %v5694, %v5836
        %v5897 = vadd.f32 %v5695, %v5841
        %v5898 = vadd.f32 %v5696, %v5844
        %v5899 = vadd.f32 %v5697, %v5849
        %v5900 = vadd.f32 %v5698, %v5852
        %v5901 = vadd.f32 %v5699, %v5857
        %v5902 = vadd.f32 %v5700, %v5860
        %v5903 = vadd.f32 %v5701, %v5865
        %v5904 = vadd.f32 %v5702, %v5868
        %v5905 = vadd.f32 %v5703, %v5873
        %v5906 = vadd.f32 %v5704, %v5876
        %v5907 = vadd.f32 %v5705, %v5881
        %v5908 = vadd.f32 %v5706, %v5884
        %v5909 = vadd.f32 %v5707, %v5889
        %v5910 = vadd.f32 %v5708, %v5892
        %v5911 = vld [vmem:[%s1443 + $0x2] sm:$0xff]
        %v5912 = vld [vmem:[%s1443 + $0xa] sm:$0xff]
        %v5913 = vld [vmem:[%s1443 + $0x1a] sm:$0xff]
        %v5914 = vld [vmem:[%s1443 + $0x22] sm:$0xff]
        %v5915 = vld [vmem:[%s1443 + $0x32] sm:$0xff]
        %v5916 = vld [vmem:[%s1443 + $0x3a] sm:$0xff]
        %v5917 = vld [vmem:[%s1443 + $0x4a] sm:$0xff]
        %v5918 = vld [vmem:[%s1443 + $0x52] sm:$0xff]
        %v5919 = vld [vmem:[%s1443 + $0x62] sm:$0xff]
        %v5920 = vld [vmem:[%s1443 + $0x6a] sm:$0xff]
        %v5921 = vld [vmem:[%s1443 + $0x7a] sm:$0xff]
        %v5922 = vld [vmem:[%s1443 + $0x82] sm:$0xff]
        %v5923 = vld [vmem:[%s1443 + $0x92] sm:$0xff]
        %v5924 = vld [vmem:[%s1443 + $0x9a] sm:$0xff]
        %v5925 = vld [vmem:[%s1443 + $0xaa] sm:$0xff]
        %v5926 = vld [vmem:[%s1443 + $0xb2] sm:$0xff]
        %v5927 = vpack.c.bf16 %v5912, %v5911
        %v5928 = vpack.c.bf16 %v5914, %v5913
        %v5929 = vpack.c.bf16 %v5916, %v5915
        %v5930 = vpack.c.bf16 %v5918, %v5917
        %v5931 = vpack.c.bf16 %v5920, %v5919
        %v5932 = vpack.c.bf16 %v5922, %v5921
        %v5933 = vpack.c.bf16 %v5924, %v5923
        %v5934 = vpack.c.bf16 %v5926, %v5925
        %s5935 = scalar_lea.vmem [#allocation3], 1664
        %v5936 = vld [vmem:[%s5935] sm:$0xf]
        %v5937 = vld [vmem:[%s5935 + $0x4] sm:$0xf]
        %v5938 = vld [vmem:[%s5935 + $0x8] sm:$0xf]
        %v5939 = vld [vmem:[%s5935 + $0xc] sm:$0xf]
        %v5940 = vld [vmem:[%s5935 + $0x10] sm:$0xf]
        %v5941 = vld [vmem:[%s5935 + $0x14] sm:$0xf]
        %v5942 = vld [vmem:[%s5935 + $0x18] sm:$0xf]
        %v5943 = vld [vmem:[%s5935 + $0x1c] sm:$0xf]
        %v5944 = vld [vmem:[%s5935 + $0x20] sm:$0xf]
        %v5945 = vld [vmem:[%s5935 + $0x24] sm:$0xf]
        %v5946 = vld [vmem:[%s5935 + $0x28] sm:$0xf]
        %v5947 = vld [vmem:[%s5935 + $0x2c] sm:$0xf]
        %v5948 = vld [vmem:[%s5935 + $0x30] sm:$0xf]
        %v5949 = vld [vmem:[%s5935 + $0x34] sm:$0xf]
        %v5950 = vld [vmem:[%s5935 + $0x38] sm:$0xf]
        %v5951 = vld [vmem:[%s5935 + $0x3c] sm:$0xf]
        %v5968 = vunpack.c.l.b16 %v5936
        %v5969 = vunpack.c.l.b16 %v5937
        %v5970 = vunpack.c.l.b16 %v5938
        %v5971 = vunpack.c.l.b16 %v5939
        %v5972 = vunpack.c.l.b16 %v5940
        %v5973 = vunpack.c.l.b16 %v5941
        %v5974 = vunpack.c.l.b16 %v5942
        %v5975 = vunpack.c.l.b16 %v5943
        %v5976 = vunpack.c.l.b16 %v5944
        %v5977 = vunpack.c.l.b16 %v5945
        %v5978 = vunpack.c.l.b16 %v5946
        %v5979 = vunpack.c.l.b16 %v5947
        %v5980 = vunpack.c.l.b16 %v5948
        %v5981 = vunpack.c.l.b16 %v5949
        %v5982 = vunpack.c.l.b16 %v5950
        %v5983 = vunpack.c.l.b16 %v5951
        %v5984 = vpack.c.b16 %v5969, %v5968
        %v5985 = vpack.c.b16 %v5971, %v5970
        %v5986 = vpack.c.b16 %v5973, %v5972
        %v5987 = vpack.c.b16 %v5975, %v5974
        %v5988 = vpack.c.b16 %v5977, %v5976
        %v5989 = vpack.c.b16 %v5979, %v5978
        %v5990 = vpack.c.b16 %v5981, %v5980
        %v5991 = vpack.c.b16 %v5983, %v5982
        %6000 = vmatprep.subr.bf16.mxu0 0
        %6001 = vmatpush1.bf16.msra.mxu0 %v5984
        %6002 = vmatprep.subr.bf16.mxu0 0
        %6003 = vmatpush1.bf16.msra.mxu0 %v5985
        %6004 = vmatprep.subr.bf16.mxu0 0
        %6005 = vmatpush1.bf16.msra.mxu0 %v5986
        %6006 = vmatprep.subr.bf16.mxu0 0
        %6007 = vmatpush1.bf16.msra.mxu0 %v5987
        %6008 = vmatprep.subr.bf16.mxu0 0
        %6009 = vmatpush1.bf16.msra.mxu0 %v5988
        %6010 = vmatprep.subr.bf16.mxu0 0
        %6011 = vmatpush1.bf16.msra.mxu0 %v5989
        %6012 = vmatprep.subr.bf16.mxu0 0
        %6013 = vmatpush1.bf16.msra.mxu0 %v5990
        %6014 = vmatprep.subr.bf16.mxu0 0
        %6015 = vmatpush1.bf16.msra.mxu0 %v5991
        %6016 = vmatprep.subr.bf16.mxu0 0
        %6017 = vmatpush1.bf16.msra.mxu0 0
        %6018 = vmatprep.subr.bf16.mxu0 0
        %6019 = vmatpush1.bf16.msra.mxu0 0
        %6020 = vmatprep.subr.bf16.mxu0 0
        %6021 = vmatpush1.bf16.msra.mxu0 0
        %6022 = vmatprep.subr.bf16.mxu0 0
        %6023 = vmatpush1.bf16.msra.mxu0 0
        %6024 = vmatprep.subr.bf16.mxu0 0
        %6025 = vmatpush1.bf16.msra.mxu0 0
        %6026 = vmatprep.subr.bf16.mxu0 0
        %6027 = vmatpush1.bf16.msra.mxu0 0
        %6028 = vmatprep.subr.bf16.mxu0 0
        %6029 = vmatpush1.bf16.msra.mxu0 0
        %6030 = vmatprep.subr.bf16.mxu0 0
        %6031 = vmatpush1.bf16.msra.mxu0 0
        %6032 = vmatprep.mubr.bf16.mxu0 0
        %6033 = vmatmul.mubr.bf16.gmra.mrb[0].mxu0 %v5927
        %v6034 = vpop.f32.mrb[0].mxu0
        %v6035 = vadd.f32 0.0, %v6034
        %v6036 = vpop.f32.mrb[0].mxu0
        %v6037 = vpop.f32.mrb[0].mxu0
        %v6038 = vadd.f32 0.0, %v6037
        %v6039 = vpop.f32.mrb[0].mxu0
        %6040 = vmatprep.mubr.bf16.mxu0 0
        %6041 = vmatmul.mubr.bf16.gmra.mrb[0].mxu0 %v5928
        %v6042 = vpop.f32.mrb[0].mxu0
        %v6043 = vadd.f32 0.0, %v6042
        %v6044 = vpop.f32.mrb[0].mxu0
        %v6045 = vpop.f32.mrb[0].mxu0
        %v6046 = vadd.f32 0.0, %v6045
        %v6047 = vpop.f32.mrb[0].mxu0
        %6048 = vmatprep.mubr.bf16.mxu0 0
        %6049 = vmatmul.mubr.bf16.gmra.mrb[0].mxu0 %v5929
        %v6050 = vpop.f32.mrb[0].mxu0
        %v6051 = vadd.f32 0.0, %v6050
        %v6052 = vpop.f32.mrb[0].mxu0
        %v6053 = vpop.f32.mrb[0].mxu0
        %v6054 = vadd.f32 0.0, %v6053
        %v6055 = vpop.f32.mrb[0].mxu0
        %6056 = vmatprep.mubr.bf16.mxu0 0
        %6057 = vmatmul.mubr.bf16.gmra.mrb[0].mxu0 %v5930
        %v6058 = vpop.f32.mrb[0].mxu0
        %v6059 = vadd.f32 0.0, %v6058
        %v6060 = vpop.f32.mrb[0].mxu0
        %v6061 = vpop.f32.mrb[0].mxu0
        %v6062 = vadd.f32 0.0, %v6061
        %v6063 = vpop.f32.mrb[0].mxu0
        %6064 = vmatprep.mubr.bf16.mxu0 0
        %6065 = vmatmul.mubr.bf16.gmra.mrb[0].mxu0 %v5931
        %v6066 = vpop.f32.mrb[0].mxu0
        %v6067 = vadd.f32 0.0, %v6066
        %v6068 = vpop.f32.mrb[0].mxu0
        %v6069 = vpop.f32.mrb[0].mxu0
        %v6070 = vadd.f32 0.0, %v6069
        %v6071 = vpop.f32.mrb[0].mxu0
        %6072 = vmatprep.mubr.bf16.mxu0 0
        %6073 = vmatmul.mubr.bf16.gmra.mrb[0].mxu0 %v5932
        %v6074 = vpop.f32.mrb[0].mxu0
        %v6075 = vadd.f32 0.0, %v6074
        %v6076 = vpop.f32.mrb[0].mxu0
        %v6077 = vpop.f32.mrb[0].mxu0
        %v6078 = vadd.f32 0.0, %v6077
        %v6079 = vpop.f32.mrb[0].mxu0
        %6080 = vmatprep.mubr.bf16.mxu0 0
        %6081 = vmatmul.mubr.bf16.gmra.mrb[0].mxu0 %v5933
        %v6082 = vpop.f32.mrb[0].mxu0
        %v6083 = vadd.f32 0.0, %v6082
        %v6084 = vpop.f32.mrb[0].mxu0
        %v6085 = vpop.f32.mrb[0].mxu0
        %v6086 = vadd.f32 0.0, %v6085
        %v6087 = vpop.f32.mrb[0].mxu0
        %6088 = vmatprep.mubr.bf16.mxu0 0
        %6089 = vmatmul.mubr.bf16.gmra.mrb[0].mxu0 %v5934
        %v6090 = vpop.f32.mrb[0].mxu0
        %v6091 = vadd.f32 0.0, %v6090
        %v6092 = vpop.f32.mrb[0].mxu0
        %v6093 = vpop.f32.mrb[0].mxu0
        %v6094 = vadd.f32 0.0, %v6093
        %v6095 = vpop.f32.mrb[0].mxu0
        %6096 = vdwg.mxu0
        %v6097 = vadd.f32 %v5895, %v6035
        %v6098 = vadd.f32 %v5896, %v6038
        %v6099 = vadd.f32 %v5897, %v6043
        %v6100 = vadd.f32 %v5898, %v6046
        %v6101 = vadd.f32 %v5899, %v6051
        %v6102 = vadd.f32 %v5900, %v6054
        %v6103 = vadd.f32 %v5901, %v6059
        %v6104 = vadd.f32 %v5902, %v6062
        %v6105 = vadd.f32 %v5903, %v6067
        %v6106 = vadd.f32 %v5904, %v6070
        %v6107 = vadd.f32 %v5905, %v6075
        %v6108 = vadd.f32 %v5906, %v6078
        %v6109 = vadd.f32 %v5907, %v6083
        %v6110 = vadd.f32 %v5908, %v6086
        %v6111 = vadd.f32 %v5909, %v6091
        %v6112 = vadd.f32 %v5910, %v6094
        %s6113 = scalar_lea.vmem [#allocation6], 2
        %v6114 = vld [vmem:[%s6113] sm:$0x1]
        %v6116 = vlaneseq
        %v6117 = vshrl.u32 %v6116, 7
        %v6118 = vsub.s32 0, %v6117
        %v6119 = vrot.slane %v6114, %v6118
        %v6121 = vadd.f32 %v6097, %v6119
        %v6122 = vadd.f32 %v6098, %v6119
        %v6123 = vadd.f32 %v6099, %v6119
        %v6124 = vadd.f32 %v6100, %v6119
        %v6125 = vadd.f32 %v6101, %v6119
        %v6126 = vadd.f32 %v6102, %v6119
        %v6127 = vadd.f32 %v6103, %v6119
        %v6128 = vadd.f32 %v6104, %v6119
        %v6129 = vadd.f32 %v6105, %v6119
        %v6130 = vadd.f32 %v6106, %v6119
        %v6131 = vadd.f32 %v6107, %v6119
        %v6132 = vadd.f32 %v6108, %v6119
        %v6133 = vadd.f32 %v6109, %v6119
        %v6134 = vadd.f32 %v6110, %v6119
        %v6135 = vadd.f32 %v6111, %v6119
        %v6136 = vadd.f32 %v6112, %v6119
        %v6137 = vmin.f32 %v6121, 0.0
        %v6138 = vmin.f32 %v6122, 0.0
        %v6139 = vmin.f32 %v6123, 0.0
        %v6140 = vmin.f32 %v6124, 0.0
        %v6141 = vmin.f32 %v6125, 0.0
        %v6142 = vmin.f32 %v6126, 0.0
        %v6143 = vmin.f32 %v6127, 0.0
        %v6144 = vmin.f32 %v6128, 0.0
        %v6145 = vmin.f32 %v6129, 0.0
        %v6146 = vmin.f32 %v6130, 0.0
        %v6147 = vmin.f32 %v6131, 0.0
        %v6148 = vmin.f32 %v6132, 0.0
        %v6149 = vmin.f32 %v6133, 0.0
        %v6150 = vmin.f32 %v6134, 0.0
        %v6151 = vmin.f32 %v6135, 0.0
        %v6152 = vmin.f32 %v6136, 0.0
        %v6153 = vmul.f32 %v6137, 1.442695
        %v6154 = vpow.pop %v6153
        %v6155 = vmul.f32 %v6138, 1.442695
        %v6156 = vpow.pop %v6155
        %v6157 = vmul.f32 %v6139, 1.442695
        %v6158 = vpow.pop %v6157
        %v6159 = vmul.f32 %v6140, 1.442695
        %v6160 = vpow.pop %v6159
        %v6161 = vmul.f32 %v6141, 1.442695
        %v6162 = vpow.pop %v6161
        %v6163 = vmul.f32 %v6142, 1.442695
        %v6164 = vpow.pop %v6163
        %v6165 = vmul.f32 %v6143, 1.442695
        %v6166 = vpow.pop %v6165
        %v6167 = vmul.f32 %v6144, 1.442695
        %v6168 = vpow.pop %v6167
        %v6169 = vmul.f32 %v6145, 1.442695
        %v6170 = vpow.pop %v6169
        %v6171 = vmul.f32 %v6146, 1.442695
        %v6172 = vpow.pop %v6171
        %v6173 = vmul.f32 %v6147, 1.442695
        %v6174 = vpow.pop %v6173
        %v6175 = vmul.f32 %v6148, 1.442695
        %v6176 = vpow.pop %v6175
        %v6177 = vmul.f32 %v6149, 1.442695
        %v6178 = vpow.pop %v6177
        %v6179 = vmul.f32 %v6150, 1.442695
        %v6180 = vpow.pop %v6179
        %v6181 = vmul.f32 %v6151, 1.442695
        %v6182 = vpow.pop %v6181
        %v6183 = vmul.f32 %v6152, 1.442695
        %v6184 = vpow.pop %v6183
        %v6185 = vsub.f32 %v6154, 1.0
        %v6186 = vsub.f32 %v6156, 1.0
        %v6187 = vsub.f32 %v6158, 1.0
        %v6188 = vsub.f32 %v6160, 1.0
        %v6189 = vsub.f32 %v6162, 1.0
        %v6190 = vsub.f32 %v6164, 1.0
        %v6191 = vsub.f32 %v6166, 1.0
        %v6192 = vsub.f32 %v6168, 1.0
        %v6193 = vsub.f32 %v6170, 1.0
        %v6194 = vsub.f32 %v6172, 1.0
        %v6195 = vsub.f32 %v6174, 1.0
        %v6196 = vsub.f32 %v6176, 1.0
        %v6197 = vsub.f32 %v6178, 1.0
        %v6198 = vsub.f32 %v6180, 1.0
        %v6199 = vsub.f32 %v6182, 1.0
        %v6200 = vsub.f32 %v6184, 1.0
        %vm6201 = vcmp.gt.f32.partialorder %v6121, 0.0
        %vm6202 = vcmp.gt.f32.partialorder %v6122, 0.0
        %vm6203 = vcmp.gt.f32.partialorder %v6123, 0.0
        %vm6204 = vcmp.gt.f32.partialorder %v6124, 0.0
        %vm6205 = vcmp.gt.f32.partialorder %v6125, 0.0
        %vm6206 = vcmp.gt.f32.partialorder %v6126, 0.0
        %vm6207 = vcmp.gt.f32.partialorder %v6127, 0.0
        %vm6208 = vcmp.gt.f32.partialorder %v6128, 0.0
        %vm6209 = vcmp.gt.f32.partialorder %v6129, 0.0
        %vm6210 = vcmp.gt.f32.partialorder %v6130, 0.0
        %vm6211 = vcmp.gt.f32.partialorder %v6131, 0.0
        %vm6212 = vcmp.gt.f32.partialorder %v6132, 0.0
        %vm6213 = vcmp.gt.f32.partialorder %v6133, 0.0
        %vm6214 = vcmp.gt.f32.partialorder %v6134, 0.0
        %vm6215 = vcmp.gt.f32.partialorder %v6135, 0.0
        %vm6216 = vcmp.gt.f32.partialorder %v6136, 0.0
        %v6217 = vsel %vm6201, %v6121, %v6185
        %v6218 = vsel %vm6202, %v6122, %v6186
        %v6219 = vsel %vm6203, %v6123, %v6187
        %v6220 = vsel %vm6204, %v6124, %v6188
        %v6221 = vsel %vm6205, %v6125, %v6189
        %v6222 = vsel %vm6206, %v6126, %v6190
        %v6223 = vsel %vm6207, %v6127, %v6191
        %v6224 = vsel %vm6208, %v6128, %v6192
        %v6225 = vsel %vm6209, %v6129, %v6193
        %v6226 = vsel %vm6210, %v6130, %v6194
        %v6227 = vsel %vm6211, %v6131, %v6195
        %v6228 = vsel %vm6212, %v6132, %v6196
        %v6229 = vsel %vm6213, %v6133, %v6197
        %v6230 = vsel %vm6214, %v6134, %v6198
        %v6231 = vsel %vm6215, %v6135, %v6199
        %v6232 = vsel %vm6216, %v6136, %v6200
        %v6233 = vadd.f32 %v6217, %v6218
        %v6234 = vadd.f32 %v6233, %v6219
        %v6235 = vadd.f32 %v6234, %v6220
        %v6236 = vadd.f32 %v6235, %v6221
        %v6237 = vadd.f32 %v6236, %v6222
        %v6238 = vadd.f32 %v6237, %v6223
        %v6239 = vadd.f32 %v6238, %v6224
        %v6240 = vadd.f32 %v6239, %v6225
        %v6241 = vadd.f32 %v6240, %v6226
        %v6242 = vadd.f32 %v6241, %v6227
        %v6243 = vadd.f32 %v6242, %v6228
        %v6244 = vadd.f32 %v6243, %v6229
        %v6245 = vadd.f32 %v6244, %v6230
        %v6246 = vadd.f32 %v6245, %v6231
        %v6247 = vadd.f32 %v6246, %v6232
        %v6248 = vrot.slane %v6247, 4
        %v6249 = vadd.f32 %v6247, %v6248
        %v6250 = vrot.slane %v6249, 2
        %v6251 = vadd.f32 %v6249, %v6250
        %v6252 = vrot.slane %v6251, 1
        %v6253 = vadd.f32 %v6251, %v6252
        %v6254 = vmul.f32 %v6253, 0.0078125
        %v6255 = vsub.f32 %v6217, %v6254
        %v6256 = vsub.f32 %v6218, %v6254
        %v6257 = vsub.f32 %v6219, %v6254
        %v6258 = vsub.f32 %v6220, %v6254
        %v6259 = vsub.f32 %v6221, %v6254
        %v6260 = vsub.f32 %v6222, %v6254
        %v6261 = vsub.f32 %v6223, %v6254
        %v6262 = vsub.f32 %v6224, %v6254
        %v6263 = vsub.f32 %v6225, %v6254
        %v6264 = vsub.f32 %v6226, %v6254
        %v6265 = vsub.f32 %v6227, %v6254
        %v6266 = vsub.f32 %v6228, %v6254
        %v6267 = vsub.f32 %v6229, %v6254
        %v6268 = vsub.f32 %v6230, %v6254
        %v6269 = vsub.f32 %v6231, %v6254
        %v6270 = vsub.f32 %v6232, %v6254
        %v6271 = vmul.f32 %v6255, %v6255
        %v6272 = vmul.f32 %v6256, %v6256
        %v6273 = vmul.f32 %v6257, %v6257
        %v6274 = vmul.f32 %v6258, %v6258
        %v6275 = vmul.f32 %v6259, %v6259
        %v6276 = vmul.f32 %v6260, %v6260
        %v6277 = vmul.f32 %v6261, %v6261
        %v6278 = vmul.f32 %v6262, %v6262
        %v6279 = vmul.f32 %v6263, %v6263
        %v6280 = vmul.f32 %v6264, %v6264
        %v6281 = vmul.f32 %v6265, %v6265
        %v6282 = vmul.f32 %v6266, %v6266
        %v6283 = vmul.f32 %v6267, %v6267
        %v6284 = vmul.f32 %v6268, %v6268
        %v6285 = vmul.f32 %v6269, %v6269
        %v6286 = vmul.f32 %v6270, %v6270
        %v6287 = vadd.f32 %v6271, %v6272
        %v6288 = vadd.f32 %v6287, %v6273
        %v6289 = vadd.f32 %v6288, %v6274
        %v6290 = vadd.f32 %v6289, %v6275
        %v6291 = vadd.f32 %v6290, %v6276
        %v6292 = vadd.f32 %v6291, %v6277
        %v6293 = vadd.f32 %v6292, %v6278
        %v6294 = vadd.f32 %v6293, %v6279
        %v6295 = vadd.f32 %v6294, %v6280
        %v6296 = vadd.f32 %v6295, %v6281
        %v6297 = vadd.f32 %v6296, %v6282
        %v6298 = vadd.f32 %v6297, %v6283
        %v6299 = vadd.f32 %v6298, %v6284
        %v6300 = vadd.f32 %v6299, %v6285
        %v6301 = vadd.f32 %v6300, %v6286
        %v6302 = vrot.slane %v6301, 4
        %v6303 = vadd.f32 %v6301, %v6302
        %v6304 = vrot.slane %v6303, 2
        %v6305 = vadd.f32 %v6303, %v6304
        %v6306 = vrot.slane %v6305, 1
        %v6307 = vadd.f32 %v6305, %v6306
        %v6308 = vmul.f32 %v6307, 0.0078125
        %v6309 = vadd.f32 %v6308, 1e-05
        %v6310 = vrsqrt.pop %v6309
        %v6311 = vmul.f32 %v6255, %v6310
        %v6312 = vmul.f32 %v6256, %v6310
        %v6313 = vmul.f32 %v6257, %v6310
        %v6314 = vmul.f32 %v6258, %v6310
        %v6315 = vmul.f32 %v6259, %v6310
        %v6316 = vmul.f32 %v6260, %v6310
        %v6317 = vmul.f32 %v6261, %v6310
        %v6318 = vmul.f32 %v6262, %v6310
        %v6319 = vmul.f32 %v6263, %v6310
        %v6320 = vmul.f32 %v6264, %v6310
        %v6321 = vmul.f32 %v6265, %v6310
        %v6322 = vmul.f32 %v6266, %v6310
        %v6323 = vmul.f32 %v6267, %v6310
        %v6324 = vmul.f32 %v6268, %v6310
        %v6325 = vmul.f32 %v6269, %v6310
        %v6326 = vmul.f32 %v6270, %v6310
        %v6327 = vadd.f32 %v5103, %v6311
        %v6328 = vadd.f32 %v5104, %v6312
        %v6329 = vadd.f32 %v5105, %v6313
        %v6330 = vadd.f32 %v5106, %v6314
        %v6331 = vadd.f32 %v5107, %v6315
        %v6332 = vadd.f32 %v5108, %v6316
        %v6333 = vadd.f32 %v5109, %v6317
        %v6334 = vadd.f32 %v5110, %v6318
        %v6335 = vadd.f32 %v5111, %v6319
        %v6336 = vadd.f32 %v5112, %v6320
        %v6337 = vadd.f32 %v5113, %v6321
        %v6338 = vadd.f32 %v5114, %v6322
        %v6339 = vadd.f32 %v5115, %v6323
        %v6340 = vadd.f32 %v5116, %v6324
        %v6341 = vadd.f32 %v5117, %v6325
        %v6342 = vadd.f32 %v5118, %v6326
        %6343 = vst [vmem:[%s246 + $0x1] sm:$0xff] %v6327
        %6344 = vst [vmem:[%s246 + $0x9] sm:$0xff] %v6328
        %6345 = vst [vmem:[%s246 + $0x19] sm:$0xff] %v6329
        %6346 = vst [vmem:[%s246 + $0x21] sm:$0xff] %v6330
        %6347 = vst [vmem:[%s246 + $0x31] sm:$0xff] %v6331
        %6348 = vst [vmem:[%s246 + $0x39] sm:$0xff] %v6332
        %6349 = vst [vmem:[%s246 + $0x49] sm:$0xff] %v6333
        %6350 = vst [vmem:[%s246 + $0x51] sm:$0xff] %v6334
        %6351 = vst [vmem:[%s246 + $0x61] sm:$0xff] %v6335
        %6352 = vst [vmem:[%s246 + $0x69] sm:$0xff] %v6336
        %6353 = vst [vmem:[%s246 + $0x79] sm:$0xff] %v6337
        %6354 = vst [vmem:[%s246 + $0x81] sm:$0xff] %v6338
        %6355 = vst [vmem:[%s246 + $0x91] sm:$0xff] %v6339
        %6356 = vst [vmem:[%s246 + $0x99] sm:$0xff] %v6340
        %6357 = vst [vmem:[%s246 + $0xa9] sm:$0xff] %v6341
        %6358 = vst [vmem:[%s246 + $0xb1] sm:$0xff] %v6342
        %v6359 = vld [vmem:[#allocation2] sm:$0xff]
        %v6360 = vld [vmem:[#allocation2 + $0x8] sm:$0xff]
        %v6361 = vld [vmem:[#allocation2 + $0x18] sm:$0xff]
        %v6362 = vld [vmem:[#allocation2 + $0x20] sm:$0xff]
        %v6363 = vld [vmem:[#allocation2 + $0x30] sm:$0xff]
        %v6364 = vld [vmem:[#allocation2 + $0x38] sm:$0xff]
        %v6365 = vld [vmem:[#allocation2 + $0x48] sm:$0xff]
        %v6366 = vld [vmem:[#allocation2 + $0x50] sm:$0xff]
        %v6367 = vld [vmem:[#allocation2 + $0x60] sm:$0xff]
        %v6368 = vld [vmem:[#allocation2 + $0x68] sm:$0xff]
        %v6369 = vld [vmem:[#allocation2 + $0x78] sm:$0xff]
        %v6370 = vld [vmem:[#allocation2 + $0x80] sm:$0xff]
        %v6371 = vld [vmem:[#allocation2 + $0x90] sm:$0xff]
        %v6372 = vld [vmem:[#allocation2 + $0x98] sm:$0xff]
        %v6373 = vld [vmem:[#allocation2 + $0xa8] sm:$0xff]
        %v6374 = vld [vmem:[#allocation2 + $0xb0] sm:$0xff]
        %v6375 = vpack.c.bf16 %v6360, %v6359
        %v6376 = vpack.c.bf16 %v6362, %v6361
        %v6377 = vpack.c.bf16 %v6364, %v6363
        %v6378 = vpack.c.bf16 %v6366, %v6365
        %v6379 = vpack.c.bf16 %v6368, %v6367
        %v6380 = vpack.c.bf16 %v6370, %v6369
        %v6381 = vpack.c.bf16 %v6372, %v6371
        %v6382 = vpack.c.bf16 %v6374, %v6373
        %s6383 = scalar_lea.vmem [#allocation3], 1728
        %v6384 = vld [vmem:[%s6383] sm:$0xf]
        %v6385 = vld [vmem:[%s6383 + $0x4] sm:$0xf]
        %v6386 = vld [vmem:[%s6383 + $0x8] sm:$0xf]
        %v6387 = vld [vmem:[%s6383 + $0xc] sm:$0xf]
        %v6388 = vld [vmem:[%s6383 + $0x10] sm:$0xf]
        %v6389 = vld [vmem:[%s6383 + $0x14] sm:$0xf]
        %v6390 = vld [vmem:[%s6383 + $0x18] sm:$0xf]
        %v6391 = vld [vmem:[%s6383 + $0x1c] sm:$0xf]
        %v6392 = vld [vmem:[%s6383 + $0x20] sm:$0xf]
        %v6393 = vld [vmem:[%s6383 + $0x24] sm:$0xf]
        %v6394 = vld [vmem:[%s6383 + $0x28] sm:$0xf]
        %v6395 = vld [vmem:[%s6383 + $0x2c] sm:$0xf]
        %v6396 = vld [vmem:[%s6383 + $0x30] sm:$0xf]
        %v6397 = vld [vmem:[%s6383 + $0x34] sm:$0xf]
        %v6398 = vld [vmem:[%s6383 + $0x38] sm:$0xf]
        %v6399 = vld [vmem:[%s6383 + $0x3c] sm:$0xf]
        %v6400 = vld [vmem:[#allocation2 + $0x1] sm:$0xff]
        %v6401 = vld [vmem:[#allocation2 + $0x9] sm:$0xff]
        %v6402 = vld [vmem:[#allocation2 + $0x19] sm:$0xff]
        %v6403 = vld [vmem:[#allocation2 + $0x21] sm:$0xff]
        %v6404 = vld [vmem:[#allocation2 + $0x31] sm:$0xff]
        %v6405 = vld [vmem:[#allocation2 + $0x39] sm:$0xff]
        %v6406 = vld [vmem:[#allocation2 + $0x49] sm:$0xff]
        %v6407 = vld [vmem:[#allocation2 + $0x51] sm:$0xff]
        %v6408 = vld [vmem:[#allocation2 + $0x61] sm:$0xff]
        %v6409 = vld [vmem:[#allocation2 + $0x69] sm:$0xff]
        %v6410 = vld [vmem:[#allocation2 + $0x79] sm:$0xff]
        %v6411 = vld [vmem:[#allocation2 + $0x81] sm:$0xff]
        %v6412 = vld [vmem:[#allocation2 + $0x91] sm:$0xff]
        %v6413 = vld [vmem:[#allocation2 + $0x99] sm:$0xff]
        %v6414 = vld [vmem:[#allocation2 + $0xa9] sm:$0xff]
        %v6415 = vld [vmem:[#allocation2 + $0xb1] sm:$0xff]
        %v6416 = vpack.c.bf16 %v6401, %v6400
        %v6417 = vpack.c.bf16 %v6403, %v6402
        %v6418 = vpack.c.bf16 %v6405, %v6404
        %v6419 = vpack.c.bf16 %v6407, %v6406
        %v6420 = vpack.c.bf16 %v6409, %v6408
        %v6421 = vpack.c.bf16 %v6411, %v6410
        %v6422 = vpack.c.bf16 %v6413, %v6412
        %v6423 = vpack.c.bf16 %v6415, %v6414
        %s6424 = scalar_lea.vmem [#allocation3], 1792
        %v6425 = vld [vmem:[%s6424] sm:$0xf]
        %v6426 = vld [vmem:[%s6424 + $0x4] sm:$0xf]
        %v6427 = vld [vmem:[%s6424 + $0x8] sm:$0xf]
        %v6428 = vld [vmem:[%s6424 + $0xc] sm:$0xf]
        %v6429 = vld [vmem:[%s6424 + $0x10] sm:$0xf]
        %v6430 = vld [vmem:[%s6424 + $0x14] sm:$0xf]
        %v6431 = vld [vmem:[%s6424 + $0x18] sm:$0xf]
        %v6432 = vld [vmem:[%s6424 + $0x1c] sm:$0xf]
        %v6433 = vld [vmem:[%s6424 + $0x20] sm:$0xf]
        %v6434 = vld [vmem:[%s6424 + $0x24] sm:$0xf]
        %v6435 = vld [vmem:[%s6424 + $0x28] sm:$0xf]
        %v6436 = vld [vmem:[%s6424 + $0x2c] sm:$0xf]
        %v6437 = vld [vmem:[%s6424 + $0x30] sm:$0xf]
        %v6438 = vld [vmem:[%s6424 + $0x34] sm:$0xf]
        %v6439 = vld [vmem:[%s6424 + $0x38] sm:$0xf]
        %v6440 = vld [vmem:[%s6424 + $0x3c] sm:$0xf]
        %v6457 = vunpack.c.l.b16 %v6425
        %v6458 = vunpack.c.l.b16 %v6426
        %v6459 = vunpack.c.l.b16 %v6427
        %v6460 = vunpack.c.l.b16 %v6428
        %v6461 = vunpack.c.l.b16 %v6429
        %v6462 = vunpack.c.l.b16 %v6430
        %v6463 = vunpack.c.l.b16 %v6431
        %v6464 = vunpack.c.l.b16 %v6432
        %v6465 = vunpack.c.l.b16 %v6433
        %v6466 = vunpack.c.l.b16 %v6434
        %v6467 = vunpack.c.l.b16 %v6435
        %v6468 = vunpack.c.l.b16 %v6436
        %v6469 = vunpack.c.l.b16 %v6437
        %v6470 = vunpack.c.l.b16 %v6438
        %v6471 = vunpack.c.l.b16 %v6439
        %v6472 = vunpack.c.l.b16 %v6440
        %v6473 = vpack.c.b16 %v6458, %v6457
        %v6474 = vpack.c.b16 %v6460, %v6459
        %v6475 = vpack.c.b16 %v6462, %v6461
        %v6476 = vpack.c.b16 %v6464, %v6463
        %v6477 = vpack.c.b16 %v6466, %v6465
        %v6478 = vpack.c.b16 %v6468, %v6467
        %v6479 = vpack.c.b16 %v6470, %v6469
        %v6480 = vpack.c.b16 %v6472, %v6471
        %6489 = vmatprep.subr.bf16.mxu0 0
        %6490 = vmatpush1.bf16.msra.mxu0 %v6473
        %6491 = vmatprep.subr.bf16.mxu0 0
        %6492 = vmatpush1.bf16.msra.mxu0 %v6474
        %6493 = vmatprep.subr.bf16.mxu0 0
        %6494 = vmatpush1.bf16.msra.mxu0 %v6475
        %6495 = vmatprep.subr.bf16.mxu0 0
        %6496 = vmatpush1.bf16.msra.mxu0 %v6476
        %6497 = vmatprep.subr.bf16.mxu0 0
        %6498 = vmatpush1.bf16.msra.mxu0 %v6477
        %6499 = vmatprep.subr.bf16.mxu0 0
        %6500 = vmatpush1.bf16.msra.mxu0 %v6478
        %6501 = vmatprep.subr.bf16.mxu0 0
        %6502 = vmatpush1.bf16.msra.mxu0 %v6479
        %6503 = vmatprep.subr.bf16.mxu0 0
        %6504 = vmatpush1.bf16.msra.mxu0 %v6480
        %6505 = vmatprep.subr.bf16.mxu0 0
        %6506 = vmatpush1.bf16.msra.mxu0 0
        %6507 = vmatprep.subr.bf16.mxu0 0
        %6508 = vmatpush1.bf16.msra.mxu0 0
        %6509 = vmatprep.subr.bf16.mxu0 0
        %6510 = vmatpush1.bf16.msra.mxu0 0
        %6511 = vmatprep.subr.bf16.mxu0 0
        %6512 = vmatpush1.bf16.msra.mxu0 0
        %6513 = vmatprep.subr.bf16.mxu0 0
        %6514 = vmatpush1.bf16.msra.mxu0 0
        %6515 = vmatprep.subr.bf16.mxu0 0
        %6516 = vmatpush1.bf16.msra.mxu0 0
        %6517 = vmatprep.subr.bf16.mxu0 0
        %6518 = vmatpush1.bf16.msra.mxu0 0
        %6519 = vmatprep.subr.bf16.mxu0 0
        %6520 = vmatpush1.bf16.msra.mxu0 0
        %6521 = vmatprep.mubr.bf16.mxu0 0
        %6522 = vmatmul.mubr.bf16.gmra.mrb[0].mxu0 %v6416
        %v6523 = vpop.f32.mrb[0].mxu0
        %v6524 = vadd.f32 0.0, %v6523
        %v6525 = vpop.f32.mrb[0].mxu0
        %v6526 = vpop.f32.mrb[0].mxu0
        %v6527 = vadd.f32 0.0, %v6526
        %v6528 = vpop.f32.mrb[0].mxu0
        %6529 = vmatprep.mubr.bf16.mxu0 0
        %6530 = vmatmul.mubr.bf16.gmra.mrb[0].mxu0 %v6417
        %v6531 = vpop.f32.mrb[0].mxu0
        %v6532 = vadd.f32 0.0, %v6531
        %v6533 = vpop.f32.mrb[0].mxu0
        %v6534 = vpop.f32.mrb[0].mxu0
        %v6535 = vadd.f32 0.0, %v6534
        %v6536 = vpop.f32.mrb[0].mxu0
        %6537 = vmatprep.mubr.bf16.mxu0 0
        %6538 = vmatmul.mubr.bf16.gmra.mrb[0].mxu0 %v6418
        %v6539 = vpop.f32.mrb[0].mxu0
        %v6540 = vadd.f32 0.0, %v6539
        %v6541 = vpop.f32.mrb[0].mxu0
        %v6542 = vpop.f32.mrb[0].mxu0
        %v6543 = vadd.f32 0.0, %v6542
        %v6544 = vpop.f32.mrb[0].mxu0
        %6545 = vmatprep.mubr.bf16.mxu0 0
        %6546 = vmatmul.mubr.bf16.gmra.mrb[0].mxu0 %v6419
        %v6547 = vpop.f32.mrb[0].mxu0
        %v6548 = vadd.f32 0.0, %v6547
        %v6549 = vpop.f32.mrb[0].mxu0
        %v6550 = vpop.f32.mrb[0].mxu0
        %v6551 = vadd.f32 0.0, %v6550
        %v6552 = vpop.f32.mrb[0].mxu0
        %6553 = vmatprep.mubr.bf16.mxu0 0
        %6554 = vmatmul.mubr.bf16.gmra.mrb[0].mxu0 %v6420
        %v6555 = vpop.f32.mrb[0].mxu0
        %v6556 = vadd.f32 0.0, %v6555
        %v6557 = vpop.f32.mrb[0].mxu0
        %v6558 = vpop.f32.mrb[0].mxu0
        %v6559 = vadd.f32 0.0, %v6558
        %v6560 = vpop.f32.mrb[0].mxu0
        %6561 = vmatprep.mubr.bf16.mxu0 0
        %6562 = vmatmul.mubr.bf16.gmra.mrb[0].mxu0 %v6421
        %v6563 = vpop.f32.mrb[0].mxu0
        %v6564 = vadd.f32 0.0, %v6563
        %v6565 = vpop.f32.mrb[0].mxu0
        %v6566 = vpop.f32.mrb[0].mxu0
        %v6567 = vadd.f32 0.0, %v6566
        %v6568 = vpop.f32.mrb[0].mxu0
        %6569 = vmatprep.mubr.bf16.mxu0 0
        %6570 = vmatmul.mubr.bf16.gmra.mrb[0].mxu0 %v6422
        %v6571 = vpop.f32.mrb[0].mxu0
        %v6572 = vadd.f32 0.0, %v6571
        %v6573 = vpop.f32.mrb[0].mxu0
        %v6574 = vpop.f32.mrb[0].mxu0
        %v6575 = vadd.f32 0.0, %v6574
        %v6576 = vpop.f32.mrb[0].mxu0
        %6577 = vmatprep.mubr.bf16.mxu0 0
        %6578 = vmatmul.mubr.bf16.gmra.mrb[0].mxu0 %v6423
        %v6579 = vpop.f32.mrb[0].mxu0
        %v6580 = vadd.f32 0.0, %v6579
        %v6581 = vpop.f32.mrb[0].mxu0
        %v6582 = vpop.f32.mrb[0].mxu0
        %v6583 = vadd.f32 0.0, %v6582
        %v6584 = vpop.f32.mrb[0].mxu0
        %6585 = vdwg.mxu0
        %v6602 = vunpack.c.l.b16 %v6384
        %v6603 = vunpack.c.l.b16 %v6385
        %v6604 = vunpack.c.l.b16 %v6386
        %v6605 = vunpack.c.l.b16 %v6387
        %v6606 = vunpack.c.l.b16 %v6388
        %v6607 = vunpack.c.l.b16 %v6389
        %v6608 = vunpack.c.l.b16 %v6390
        %v6609 = vunpack.c.l.b16 %v6391
        %v6610 = vunpack.c.l.b16 %v6392
        %v6611 = vunpack.c.l.b16 %v6393
        %v6612 = vunpack.c.l.b16 %v6394
        %v6613 = vunpack.c.l.b16 %v6395
        %v6614 = vunpack.c.l.b16 %v6396
        %v6615 = vunpack.c.l.b16 %v6397
        %v6616 = vunpack.c.l.b16 %v6398
        %v6617 = vunpack.c.l.b16 %v6399
        %v6618 = vpack.c.b16 %v6603, %v6602
        %v6619 = vpack.c.b16 %v6605, %v6604
        %v6620 = vpack.c.b16 %v6607, %v6606
        %v6621 = vpack.c.b16 %v6609, %v6608
        %v6622 = vpack.c.b16 %v6611, %v6610
        %v6623 = vpack.c.b16 %v6613, %v6612
        %v6624 = vpack.c.b16 %v6615, %v6614
        %v6625 = vpack.c.b16 %v6617, %v6616
        %6634 = vmatprep.subr.bf16.mxu0 0
        %6635 = vmatpush1.bf16.msra.mxu0 %v6618
        %6636 = vmatprep.subr.bf16.mxu0 0
        %6637 = vmatpush1.bf16.msra.mxu0 %v6619
        %6638 = vmatprep.subr.bf16.mxu0 0
        %6639 = vmatpush1.bf16.msra.mxu0 %v6620
        %6640 = vmatprep.subr.bf16.mxu0 0
        %6641 = vmatpush1.bf16.msra.mxu0 %v6621
        %6642 = vmatprep.subr.bf16.mxu0 0
        %6643 = vmatpush1.bf16.msra.mxu0 %v6622
        %6644 = vmatprep.subr.bf16.mxu0 0
        %6645 = vmatpush1.bf16.msra.mxu0 %v6623
        %6646 = vmatprep.subr.bf16.mxu0 0
        %6647 = vmatpush1.bf16.msra.mxu0 %v6624
        %6648 = vmatprep.subr.bf16.mxu0 0
        %6649 = vmatpush1.bf16.msra.mxu0 %v6625
        %6650 = vmatprep.subr.bf16.mxu0 0
        %6651 = vmatpush1.bf16.msra.mxu0 0
        %6652 = vmatprep.subr.bf16.mxu0 0
        %6653 = vmatpush1.bf16.msra.mxu0 0
        %6654 = vmatprep.subr.bf16.mxu0 0
        %6655 = vmatpush1.bf16.msra.mxu0 0
        %6656 = vmatprep.subr.bf16.mxu0 0
        %6657 = vmatpush1.bf16.msra.mxu0 0
        %6658 = vmatprep.subr.bf16.mxu0 0
        %6659 = vmatpush1.bf16.msra.mxu0 0
        %6660 = vmatprep.subr.bf16.mxu0 0
        %6661 = vmatpush1.bf16.msra.mxu0 0
        %6662 = vmatprep.subr.bf16.mxu0 0
        %6663 = vmatpush1.bf16.msra.mxu0 0
        %6664 = vmatprep.subr.bf16.mxu0 0
        %6665 = vmatpush1.bf16.msra.mxu0 0
        %6666 = vmatprep.mubr.bf16.mxu0 0
        %6667 = vmatmul.mubr.bf16.gmra.mrb[0].mxu0 %v6375
        %v6668 = vpop.f32.mrb[0].mxu0
        %v6669 = vadd.f32 %v6524, %v6668
        %v6670 = vpop.f32.mrb[0].mxu0
        %v6671 = vpop.f32.mrb[0].mxu0
        %v6672 = vadd.f32 %v6527, %v6671
        %v6673 = vpop.f32.mrb[0].mxu0
        %6674 = vmatprep.mubr.bf16.mxu0 0
        %6675 = vmatmul.mubr.bf16.gmra.mrb[0].mxu0 %v6376
        %v6676 = vpop.f32.mrb[0].mxu0
        %v6677 = vadd.f32 %v6532, %v6676
        %v6678 = vpop.f32.mrb[0].mxu0
        %v6679 = vpop.f32.mrb[0].mxu0
        %v6680 = vadd.f32 %v6535, %v6679
        %v6681 = vpop.f32.mrb[0].mxu0
        %6682 = vmatprep.mubr.bf16.mxu0 0
        %6683 = vmatmul.mubr.bf16.gmra.mrb[0].mxu0 %v6377
        %v6684 = vpop.f32.mrb[0].mxu0
        %v6685 = vadd.f32 %v6540, %v6684
        %v6686 = vpop.f32.mrb[0].mxu0
        %v6687 = vpop.f32.mrb[0].mxu0
        %v6688 = vadd.f32 %v6543, %v6687
        %v6689 = vpop.f32.mrb[0].mxu0
        %6690 = vmatprep.mubr.bf16.mxu0 0
        %6691 = vmatmul.mubr.bf16.gmra.mrb[0].mxu0 %v6378
        %v6692 = vpop.f32.mrb[0].mxu0
        %v6693 = vadd.f32 %v6548, %v6692
        %v6694 = vpop.f32.mrb[0].mxu0
        %v6695 = vpop.f32.mrb[0].mxu0
        %v6696 = vadd.f32 %v6551, %v6695
        %v6697 = vpop.f32.mrb[0].mxu0
        %6698 = vmatprep.mubr.bf16.mxu0 0
        %6699 = vmatmul.mubr.bf16.gmra.mrb[0].mxu0 %v6379
        %v6700 = vpop.f32.mrb[0].mxu0
        %v6701 = vadd.f32 %v6556, %v6700
        %v6702 = vpop.f32.mrb[0].mxu0
        %v6703 = vpop.f32.mrb[0].mxu0
        %v6704 = vadd.f32 %v6559, %v6703
        %v6705 = vpop.f32.mrb[0].mxu0
        %6706 = vmatprep.mubr.bf16.mxu0 0
        %6707 = vmatmul.mubr.bf16.gmra.mrb[0].mxu0 %v6380
        %v6708 = vpop.f32.mrb[0].mxu0
        %v6709 = vadd.f32 %v6564, %v6708
        %v6710 = vpop.f32.mrb[0].mxu0
        %v6711 = vpop.f32.mrb[0].mxu0
        %v6712 = vadd.f32 %v6567, %v6711
        %v6713 = vpop.f32.mrb[0].mxu0
        %6714 = vmatprep.mubr.bf16.mxu0 0
        %6715 = vmatmul.mubr.bf16.gmra.mrb[0].mxu0 %v6381
        %v6716 = vpop.f32.mrb[0].mxu0
        %v6717 = vadd.f32 %v6572, %v6716
        %v6718 = vpop.f32.mrb[0].mxu0
        %v6719 = vpop.f32.mrb[0].mxu0
        %v6720 = vadd.f32 %v6575, %v6719
        %v6721 = vpop.f32.mrb[0].mxu0
        %6722 = vmatprep.mubr.bf16.mxu0 0
        %6723 = vmatmul.mubr.bf16.gmra.mrb[0].mxu0 %v6382
        %v6724 = vpop.f32.mrb[0].mxu0
        %v6725 = vadd.f32 %v6580, %v6724
        %v6726 = vpop.f32.mrb[0].mxu0
        %v6727 = vpop.f32.mrb[0].mxu0
        %v6728 = vadd.f32 %v6583, %v6727
        %v6729 = vpop.f32.mrb[0].mxu0
        %6730 = vdwg.mxu0
        %v6731 = vld [vmem:[#allocation2 + $0x2] sm:$0xff]
        %v6732 = vld [vmem:[#allocation2 + $0xa] sm:$0xff]
        %v6733 = vld [vmem:[#allocation2 + $0x1a] sm:$0xff]
        %v6734 = vld [vmem:[#allocation2 + $0x22] sm:$0xff]
        %v6735 = vld [vmem:[#allocation2 + $0x32] sm:$0xff]
        %v6736 = vld [vmem:[#allocation2 + $0x3a] sm:$0xff]
        %v6737 = vld [vmem:[#allocation2 + $0x4a] sm:$0xff]
        %v6738 = vld [vmem:[#allocation2 + $0x52] sm:$0xff]
        %v6739 = vld [vmem:[#allocation2 + $0x62] sm:$0xff]
        %v6740 = vld [vmem:[#allocation2 + $0x6a] sm:$0xff]
        %v6741 = vld [vmem:[#allocation2 + $0x7a] sm:$0xff]
        %v6742 = vld [vmem:[#allocation2 + $0x82] sm:$0xff]
        %v6743 = vld [vmem:[#allocation2 + $0x92] sm:$0xff]
        %v6744 = vld [vmem:[#allocation2 + $0x9a] sm:$0xff]
        %v6745 = vld [vmem:[#allocation2 + $0xaa] sm:$0xff]
        %v6746 = vld [vmem:[#allocation2 + $0xb2] sm:$0xff]
        %v6747 = vpack.c.bf16 %v6732, %v6731
        %v6748 = vpack.c.bf16 %v6734, %v6733
        %v6749 = vpack.c.bf16 %v6736, %v6735
        %v6750 = vpack.c.bf16 %v6738, %v6737
        %v6751 = vpack.c.bf16 %v6740, %v6739
        %v6752 = vpack.c.bf16 %v6742, %v6741
        %v6753 = vpack.c.bf16 %v6744, %v6743
        %v6754 = vpack.c.bf16 %v6746, %v6745
        %s6755 = scalar_lea.vmem [#allocation3], 1856
        %v6756 = vld [vmem:[%s6755] sm:$0xf]
        %v6757 = vld [vmem:[%s6755 + $0x4] sm:$0xf]
        %v6758 = vld [vmem:[%s6755 + $0x8] sm:$0xf]
        %v6759 = vld [vmem:[%s6755 + $0xc] sm:$0xf]
        %v6760 = vld [vmem:[%s6755 + $0x10] sm:$0xf]
        %v6761 = vld [vmem:[%s6755 + $0x14] sm:$0xf]
        %v6762 = vld [vmem:[%s6755 + $0x18] sm:$0xf]
        %v6763 = vld [vmem:[%s6755 + $0x1c] sm:$0xf]
        %v6764 = vld [vmem:[%s6755 + $0x20] sm:$0xf]
        %v6765 = vld [vmem:[%s6755 + $0x24] sm:$0xf]
        %v6766 = vld [vmem:[%s6755 + $0x28] sm:$0xf]
        %v6767 = vld [vmem:[%s6755 + $0x2c] sm:$0xf]
        %v6768 = vld [vmem:[%s6755 + $0x30] sm:$0xf]
        %v6769 = vld [vmem:[%s6755 + $0x34] sm:$0xf]
        %v6770 = vld [vmem:[%s6755 + $0x38] sm:$0xf]
        %v6771 = vld [vmem:[%s6755 + $0x3c] sm:$0xf]
        %v6788 = vunpack.c.l.b16 %v6756
        %v6789 = vunpack.c.l.b16 %v6757
        %v6790 = vunpack.c.l.b16 %v6758
        %v6791 = vunpack.c.l.b16 %v6759
        %v6792 = vunpack.c.l.b16 %v6760
        %v6793 = vunpack.c.l.b16 %v6761
        %v6794 = vunpack.c.l.b16 %v6762
        %v6795 = vunpack.c.l.b16 %v6763
        %v6796 = vunpack.c.l.b16 %v6764
        %v6797 = vunpack.c.l.b16 %v6765
        %v6798 = vunpack.c.l.b16 %v6766
        %v6799 = vunpack.c.l.b16 %v6767
        %v6800 = vunpack.c.l.b16 %v6768
        %v6801 = vunpack.c.l.b16 %v6769
        %v6802 = vunpack.c.l.b16 %v6770
        %v6803 = vunpack.c.l.b16 %v6771
        %v6804 = vpack.c.b16 %v6789, %v6788
        %v6805 = vpack.c.b16 %v6791, %v6790
        %v6806 = vpack.c.b16 %v6793, %v6792
        %v6807 = vpack.c.b16 %v6795, %v6794
        %v6808 = vpack.c.b16 %v6797, %v6796
        %v6809 = vpack.c.b16 %v6799, %v6798
        %v6810 = vpack.c.b16 %v6801, %v6800
        %v6811 = vpack.c.b16 %v6803, %v6802
        %6820 = vmatprep.subr.bf16.mxu0 0
        %6821 = vmatpush1.bf16.msra.mxu0 %v6804
        %6822 = vmatprep.subr.bf16.mxu0 0
        %6823 = vmatpush1.bf16.msra.mxu0 %v6805
        %6824 = vmatprep.subr.bf16.mxu0 0
        %6825 = vmatpush1.bf16.msra.mxu0 %v6806
        %6826 = vmatprep.subr.bf16.mxu0 0
        %6827 = vmatpush1.bf16.msra.mxu0 %v6807
        %6828 = vmatprep.subr.bf16.mxu0 0
        %6829 = vmatpush1.bf16.msra.mxu0 %v6808
        %6830 = vmatprep.subr.bf16.mxu0 0
        %6831 = vmatpush1.bf16.msra.mxu0 %v6809
        %6832 = vmatprep.subr.bf16.mxu0 0
        %6833 = vmatpush1.bf16.msra.mxu0 %v6810
        %6834 = vmatprep.subr.bf16.mxu0 0
        %6835 = vmatpush1.bf16.msra.mxu0 %v6811
        %6836 = vmatprep.subr.bf16.mxu0 0
        %6837 = vmatpush1.bf16.msra.mxu0 0
        %6838 = vmatprep.subr.bf16.mxu0 0
        %6839 = vmatpush1.bf16.msra.mxu0 0
        %6840 = vmatprep.subr.bf16.mxu0 0
        %6841 = vmatpush1.bf16.msra.mxu0 0
        %6842 = vmatprep.subr.bf16.mxu0 0
        %6843 = vmatpush1.bf16.msra.mxu0 0
        %6844 = vmatprep.subr.bf16.mxu0 0
        %6845 = vmatpush1.bf16.msra.mxu0 0
        %6846 = vmatprep.subr.bf16.mxu0 0
        %6847 = vmatpush1.bf16.msra.mxu0 0
        %6848 = vmatprep.subr.bf16.mxu0 0
        %6849 = vmatpush1.bf16.msra.mxu0 0
        %6850 = vmatprep.subr.bf16.mxu0 0
        %6851 = vmatpush1.bf16.msra.mxu0 0
        %6852 = vmatprep.mubr.bf16.mxu0 0
        %6853 = vmatmul.mubr.bf16.gmra.mrb[0].mxu0 %v6747
        %v6854 = vpop.f32.mrb[0].mxu0
        %v6855 = vadd.f32 0.0, %v6854
        %v6856 = vpop.f32.mrb[0].mxu0
        %v6857 = vpop.f32.mrb[0].mxu0
        %v6858 = vadd.f32 0.0, %v6857
        %v6859 = vpop.f32.mrb[0].mxu0
        %6860 = vmatprep.mubr.bf16.mxu0 0
        %6861 = vmatmul.mubr.bf16.gmra.mrb[0].mxu0 %v6748
        %v6862 = vpop.f32.mrb[0].mxu0
        %v6863 = vadd.f32 0.0, %v6862
        %v6864 = vpop.f32.mrb[0].mxu0
        %v6865 = vpop.f32.mrb[0].mxu0
        %v6866 = vadd.f32 0.0, %v6865
        %v6867 = vpop.f32.mrb[0].mxu0
        %6868 = vmatprep.mubr.bf16.mxu0 0
        %6869 = vmatmul.mubr.bf16.gmra.mrb[0].mxu0 %v6749
        %v6870 = vpop.f32.mrb[0].mxu0
        %v6871 = vadd.f32 0.0, %v6870
        %v6872 = vpop.f32.mrb[0].mxu0
        %v6873 = vpop.f32.mrb[0].mxu0
        %v6874 = vadd.f32 0.0, %v6873
        %v6875 = vpop.f32.mrb[0].mxu0
        %6876 = vmatprep.mubr.bf16.mxu0 0
        %6877 = vmatmul.mubr.bf16.gmra.mrb[0].mxu0 %v6750
        %v6878 = vpop.f32.mrb[0].mxu0
        %v6879 = vadd.f32 0.0, %v6878
        %v6880 = vpop.f32.mrb[0].mxu0
        %v6881 = vpop.f32.mrb[0].mxu0
        %v6882 = vadd.f32 0.0, %v6881
        %v6883 = vpop.f32.mrb[0].mxu0
        %6884 = vmatprep.mubr.bf16.mxu0 0
        %6885 = vmatmul.mubr.bf16.gmra.mrb[0].mxu0 %v6751
        %v6886 = vpop.f32.mrb[0].mxu0
        %v6887 = vadd.f32 0.0, %v6886
        %v6888 = vpop.f32.mrb[0].mxu0
        %v6889 = vpop.f32.mrb[0].mxu0
        %v6890 = vadd.f32 0.0, %v6889
        %v6891 = vpop.f32.mrb[0].mxu0
        %6892 = vmatprep.mubr.bf16.mxu0 0
        %6893 = vmatmul.mubr.bf16.gmra.mrb[0].mxu0 %v6752
        %v6894 = vpop.f32.mrb[0].mxu0
        %v6895 = vadd.f32 0.0, %v6894
        %v6896 = vpop.f32.mrb[0].mxu0
        %v6897 = vpop.f32.mrb[0].mxu0
        %v6898 = vadd.f32 0.0, %v6897
        %v6899 = vpop.f32.mrb[0].mxu0
        %6900 = vmatprep.mubr.bf16.mxu0 0
        %6901 = vmatmul.mubr.bf16.gmra.mrb[0].mxu0 %v6753
        %v6902 = vpop.f32.mrb[0].mxu0
        %v6903 = vadd.f32 0.0, %v6902
        %v6904 = vpop.f32.mrb[0].mxu0
        %v6905 = vpop.f32.mrb[0].mxu0
        %v6906 = vadd.f32 0.0, %v6905
        %v6907 = vpop.f32.mrb[0].mxu0
        %6908 = vmatprep.mubr.bf16.mxu0 0
        %6909 = vmatmul.mubr.bf16.gmra.mrb[0].mxu0 %v6754
        %v6910 = vpop.f32.mrb[0].mxu0
        %v6911 = vadd.f32 0.0, %v6910
        %v6912 = vpop.f32.mrb[0].mxu0
        %v6913 = vpop.f32.mrb[0].mxu0
        %v6914 = vadd.f32 0.0, %v6913
        %v6915 = vpop.f32.mrb[0].mxu0
        %6916 = vdwg.mxu0
        %v6917 = vadd.f32 %v6669, %v6855
        %v6918 = vadd.f32 %v6672, %v6858
        %v6919 = vadd.f32 %v6677, %v6863
        %v6920 = vadd.f32 %v6680, %v6866
        %v6921 = vadd.f32 %v6685, %v6871
        %v6922 = vadd.f32 %v6688, %v6874
        %v6923 = vadd.f32 %v6693, %v6879
        %v6924 = vadd.f32 %v6696, %v6882
        %v6925 = vadd.f32 %v6701, %v6887
        %v6926 = vadd.f32 %v6704, %v6890
        %v6927 = vadd.f32 %v6709, %v6895
        %v6928 = vadd.f32 %v6712, %v6898
        %v6929 = vadd.f32 %v6717, %v6903
        %v6930 = vadd.f32 %v6720, %v6906
        %v6931 = vadd.f32 %v6725, %v6911
        %v6932 = vadd.f32 %v6728, %v6914
        %v6933 = vld [vmem:[%s246] sm:$0xff]
        %v6934 = vld [vmem:[%s246 + $0x8] sm:$0xff]
        %v6935 = vld [vmem:[%s246 + $0x18] sm:$0xff]
        %v6936 = vld [vmem:[%s246 + $0x20] sm:$0xff]
        %v6937 = vld [vmem:[%s246 + $0x30] sm:$0xff]
        %v6938 = vld [vmem:[%s246 + $0x38] sm:$0xff]
        %v6939 = vld [vmem:[%s246 + $0x48] sm:$0xff]
        %v6940 = vld [vmem:[%s246 + $0x50] sm:$0xff]
        %v6941 = vld [vmem:[%s246 + $0x60] sm:$0xff]
        %v6942 = vld [vmem:[%s246 + $0x68] sm:$0xff]
        %v6943 = vld [vmem:[%s246 + $0x78] sm:$0xff]
        %v6944 = vld [vmem:[%s246 + $0x80] sm:$0xff]
        %v6945 = vld [vmem:[%s246 + $0x90] sm:$0xff]
        %v6946 = vld [vmem:[%s246 + $0x98] sm:$0xff]
        %v6947 = vld [vmem:[%s246 + $0xa8] sm:$0xff]
        %v6948 = vld [vmem:[%s246 + $0xb0] sm:$0xff]
        %v6949 = vpack.c.bf16 %v6934, %v6933
        %v6950 = vpack.c.bf16 %v6936, %v6935
        %v6951 = vpack.c.bf16 %v6938, %v6937
        %v6952 = vpack.c.bf16 %v6940, %v6939
        %v6953 = vpack.c.bf16 %v6942, %v6941
        %v6954 = vpack.c.bf16 %v6944, %v6943
        %v6955 = vpack.c.bf16 %v6946, %v6945
        %v6956 = vpack.c.bf16 %v6948, %v6947
        %s6957 = scalar_lea.vmem [#allocation3], 1920
        %v6958 = vld [vmem:[%s6957] sm:$0xf]
        %v6959 = vld [vmem:[%s6957 + $0x4] sm:$0xf]
        %v6960 = vld [vmem:[%s6957 + $0x8] sm:$0xf]
        %v6961 = vld [vmem:[%s6957 + $0xc] sm:$0xf]
        %v6962 = vld [vmem:[%s6957 + $0x10] sm:$0xf]
        %v6963 = vld [vmem:[%s6957 + $0x14] sm:$0xf]
        %v6964 = vld [vmem:[%s6957 + $0x18] sm:$0xf]
        %v6965 = vld [vmem:[%s6957 + $0x1c] sm:$0xf]
        %v6966 = vld [vmem:[%s6957 + $0x20] sm:$0xf]
        %v6967 = vld [vmem:[%s6957 + $0x24] sm:$0xf]
        %v6968 = vld [vmem:[%s6957 + $0x28] sm:$0xf]
        %v6969 = vld [vmem:[%s6957 + $0x2c] sm:$0xf]
        %v6970 = vld [vmem:[%s6957 + $0x30] sm:$0xf]
        %v6971 = vld [vmem:[%s6957 + $0x34] sm:$0xf]
        %v6972 = vld [vmem:[%s6957 + $0x38] sm:$0xf]
        %v6973 = vld [vmem:[%s6957 + $0x3c] sm:$0xf]
        %v6990 = vunpack.c.l.b16 %v6958
        %v6991 = vunpack.c.l.b16 %v6959
        %v6992 = vunpack.c.l.b16 %v6960
        %v6993 = vunpack.c.l.b16 %v6961
        %v6994 = vunpack.c.l.b16 %v6962
        %v6995 = vunpack.c.l.b16 %v6963
        %v6996 = vunpack.c.l.b16 %v6964
        %v6997 = vunpack.c.l.b16 %v6965
        %v6998 = vunpack.c.l.b16 %v6966
        %v6999 = vunpack.c.l.b16 %v6967
        %v7000 = vunpack.c.l.b16 %v6968
        %v7001 = vunpack.c.l.b16 %v6969
        %v7002 = vunpack.c.l.b16 %v6970
        %v7003 = vunpack.c.l.b16 %v6971
        %v7004 = vunpack.c.l.b16 %v6972
        %v7005 = vunpack.c.l.b16 %v6973
        %v7006 = vpack.c.b16 %v6991, %v6990
        %v7007 = vpack.c.b16 %v6993, %v6992
        %v7008 = vpack.c.b16 %v6995, %v6994
        %v7009 = vpack.c.b16 %v6997, %v6996
        %v7010 = vpack.c.b16 %v6999, %v6998
        %v7011 = vpack.c.b16 %v7001, %v7000
        %v7012 = vpack.c.b16 %v7003, %v7002
        %v7013 = vpack.c.b16 %v7005, %v7004
        %7022 = vmatprep.subr.bf16.mxu0 0
        %7023 = vmatpush1.bf16.msra.mxu0 %v7006
        %7024 = vmatprep.subr.bf16.mxu0 0
        %7025 = vmatpush1.bf16.msra.mxu0 %v7007
        %7026 = vmatprep.subr.bf16.mxu0 0
        %7027 = vmatpush1.bf16.msra.mxu0 %v7008
        %7028 = vmatprep.subr.bf16.mxu0 0
        %7029 = vmatpush1.bf16.msra.mxu0 %v7009
        %7030 = vmatprep.subr.bf16.mxu0 0
        %7031 = vmatpush1.bf16.msra.mxu0 %v7010
        %7032 = vmatprep.subr.bf16.mxu0 0
        %7033 = vmatpush1.bf16.msra.mxu0 %v7011
        %7034 = vmatprep.subr.bf16.mxu0 0
        %7035 = vmatpush1.bf16.msra.mxu0 %v7012
        %7036 = vmatprep.subr.bf16.mxu0 0
        %7037 = vmatpush1.bf16.msra.mxu0 %v7013
        %7038 = vmatprep.subr.bf16.mxu0 0
        %7039 = vmatpush1.bf16.msra.mxu0 0
        %7040 = vmatprep.subr.bf16.mxu0 0
        %7041 = vmatpush1.bf16.msra.mxu0 0
        %7042 = vmatprep.subr.bf16.mxu0 0
        %7043 = vmatpush1.bf16.msra.mxu0 0
        %7044 = vmatprep.subr.bf16.mxu0 0
        %7045 = vmatpush1.bf16.msra.mxu0 0
        %7046 = vmatprep.subr.bf16.mxu0 0
        %7047 = vmatpush1.bf16.msra.mxu0 0
        %7048 = vmatprep.subr.bf16.mxu0 0
        %7049 = vmatpush1.bf16.msra.mxu0 0
        %7050 = vmatprep.subr.bf16.mxu0 0
        %7051 = vmatpush1.bf16.msra.mxu0 0
        %7052 = vmatprep.subr.bf16.mxu0 0
        %7053 = vmatpush1.bf16.msra.mxu0 0
        %7054 = vmatprep.mubr.bf16.mxu0 0
        %7055 = vmatmul.mubr.bf16.gmra.mrb[0].mxu0 %v6949
        %v7056 = vpop.f32.mrb[0].mxu0
        %v7057 = vadd.f32 0.0, %v7056
        %v7058 = vpop.f32.mrb[0].mxu0
        %v7059 = vpop.f32.mrb[0].mxu0
        %v7060 = vadd.f32 0.0, %v7059
        %v7061 = vpop.f32.mrb[0].mxu0
        %7062 = vmatprep.mubr.bf16.mxu0 0
        %7063 = vmatmul.mubr.bf16.gmra.mrb[0].mxu0 %v6950
        %v7064 = vpop.f32.mrb[0].mxu0
        %v7065 = vadd.f32 0.0, %v7064
        %v7066 = vpop.f32.mrb[0].mxu0
        %v7067 = vpop.f32.mrb[0].mxu0
        %v7068 = vadd.f32 0.0, %v7067
        %v7069 = vpop.f32.mrb[0].mxu0
        %7070 = vmatprep.mubr.bf16.mxu0 0
        %7071 = vmatmul.mubr.bf16.gmra.mrb[0].mxu0 %v6951
        %v7072 = vpop.f32.mrb[0].mxu0
        %v7073 = vadd.f32 0.0, %v7072
        %v7074 = vpop.f32.mrb[0].mxu0
        %v7075 = vpop.f32.mrb[0].mxu0
        %v7076 = vadd.f32 0.0, %v7075
        %v7077 = vpop.f32.mrb[0].mxu0
        %7078 = vmatprep.mubr.bf16.mxu0 0
        %7079 = vmatmul.mubr.bf16.gmra.mrb[0].mxu0 %v6952
        %v7080 = vpop.f32.mrb[0].mxu0
        %v7081 = vadd.f32 0.0, %v7080
        %v7082 = vpop.f32.mrb[0].mxu0
        %v7083 = vpop.f32.mrb[0].mxu0
        %v7084 = vadd.f32 0.0, %v7083
        %v7085 = vpop.f32.mrb[0].mxu0
        %7086 = vmatprep.mubr.bf16.mxu0 0
        %7087 = vmatmul.mubr.bf16.gmra.mrb[0].mxu0 %v6953
        %v7088 = vpop.f32.mrb[0].mxu0
        %v7089 = vadd.f32 0.0, %v7088
        %v7090 = vpop.f32.mrb[0].mxu0
        %v7091 = vpop.f32.mrb[0].mxu0
        %v7092 = vadd.f32 0.0, %v7091
        %v7093 = vpop.f32.mrb[0].mxu0
        %7094 = vmatprep.mubr.bf16.mxu0 0
        %7095 = vmatmul.mubr.bf16.gmra.mrb[0].mxu0 %v6954
        %v7096 = vpop.f32.mrb[0].mxu0
        %v7097 = vadd.f32 0.0, %v7096
        %v7098 = vpop.f32.mrb[0].mxu0
        %v7099 = vpop.f32.mrb[0].mxu0
        %v7100 = vadd.f32 0.0, %v7099
        %v7101 = vpop.f32.mrb[0].mxu0
        %7102 = vmatprep.mubr.bf16.mxu0 0
        %7103 = vmatmul.mubr.bf16.gmra.mrb[0].mxu0 %v6955
        %v7104 = vpop.f32.mrb[0].mxu0
        %v7105 = vadd.f32 0.0, %v7104
        %v7106 = vpop.f32.mrb[0].mxu0
        %v7107 = vpop.f32.mrb[0].mxu0
        %v7108 = vadd.f32 0.0, %v7107
        %v7109 = vpop.f32.mrb[0].mxu0
        %7110 = vmatprep.mubr.bf16.mxu0 0
        %7111 = vmatmul.mubr.bf16.gmra.mrb[0].mxu0 %v6956
        %v7112 = vpop.f32.mrb[0].mxu0
        %v7113 = vadd.f32 0.0, %v7112
        %v7114 = vpop.f32.mrb[0].mxu0
        %v7115 = vpop.f32.mrb[0].mxu0
        %v7116 = vadd.f32 0.0, %v7115
        %v7117 = vpop.f32.mrb[0].mxu0
        %7118 = vdwg.mxu0
        %v7119 = vadd.f32 %v6917, %v7057
        %v7120 = vadd.f32 %v6918, %v7060
        %v7121 = vadd.f32 %v6919, %v7065
        %v7122 = vadd.f32 %v6920, %v7068
        %v7123 = vadd.f32 %v6921, %v7073
        %v7124 = vadd.f32 %v6922, %v7076
        %v7125 = vadd.f32 %v6923, %v7081
        %v7126 = vadd.f32 %v6924, %v7084
        %v7127 = vadd.f32 %v6925, %v7089
        %v7128 = vadd.f32 %v6926, %v7092
        %v7129 = vadd.f32 %v6927, %v7097
        %v7130 = vadd.f32 %v6928, %v7100
        %v7131 = vadd.f32 %v6929, %v7105
        %v7132 = vadd.f32 %v6930, %v7108
        %v7133 = vadd.f32 %v6931, %v7113
        %v7134 = vadd.f32 %v6932, %v7116
        %v7135 = vld [vmem:[%s246 + $0x1] sm:$0xff]
        %v7136 = vld [vmem:[%s246 + $0x9] sm:$0xff]
        %v7137 = vld [vmem:[%s246 + $0x19] sm:$0xff]
        %v7138 = vld [vmem:[%s246 + $0x21] sm:$0xff]
        %v7139 = vld [vmem:[%s246 + $0x31] sm:$0xff]
        %v7140 = vld [vmem:[%s246 + $0x39] sm:$0xff]
        %v7141 = vld [vmem:[%s246 + $0x49] sm:$0xff]
        %v7142 = vld [vmem:[%s246 + $0x51] sm:$0xff]
        %v7143 = vld [vmem:[%s246 + $0x61] sm:$0xff]
        %v7144 = vld [vmem:[%s246 + $0x69] sm:$0xff]
        %v7145 = vld [vmem:[%s246 + $0x79] sm:$0xff]
        %v7146 = vld [vmem:[%s246 + $0x81] sm:$0xff]
        %v7147 = vld [vmem:[%s246 + $0x91] sm:$0xff]
        %v7148 = vld [vmem:[%s246 + $0x99] sm:$0xff]
        %v7149 = vld [vmem:[%s246 + $0xa9] sm:$0xff]
        %v7150 = vld [vmem:[%s246 + $0xb1] sm:$0xff]
        %v7151 = vpack.c.bf16 %v7136, %v7135
        %v7152 = vpack.c.bf16 %v7138, %v7137
        %v7153 = vpack.c.bf16 %v7140, %v7139
        %v7154 = vpack.c.bf16 %v7142, %v7141
        %v7155 = vpack.c.bf16 %v7144, %v7143
        %v7156 = vpack.c.bf16 %v7146, %v7145
        %v7157 = vpack.c.bf16 %v7148, %v7147
        %v7158 = vpack.c.bf16 %v7150, %v7149
        %s7159 = scalar_lea.vmem [#allocation3], 1984
        %v7160 = vld [vmem:[%s7159] sm:$0xf]
        %v7161 = vld [vmem:[%s7159 + $0x4] sm:$0xf]
        %v7162 = vld [vmem:[%s7159 + $0x8] sm:$0xf]
        %v7163 = vld [vmem:[%s7159 + $0xc] sm:$0xf]
        %v7164 = vld [vmem:[%s7159 + $0x10] sm:$0xf]
        %v7165 = vld [vmem:[%s7159 + $0x14] sm:$0xf]
        %v7166 = vld [vmem:[%s7159 + $0x18] sm:$0xf]
        %v7167 = vld [vmem:[%s7159 + $0x1c] sm:$0xf]
        %v7168 = vld [vmem:[%s7159 + $0x20] sm:$0xf]
        %v7169 = vld [vmem:[%s7159 + $0x24] sm:$0xf]
        %v7170 = vld [vmem:[%s7159 + $0x28] sm:$0xf]
        %v7171 = vld [vmem:[%s7159 + $0x2c] sm:$0xf]
        %v7172 = vld [vmem:[%s7159 + $0x30] sm:$0xf]
        %v7173 = vld [vmem:[%s7159 + $0x34] sm:$0xf]
        %v7174 = vld [vmem:[%s7159 + $0x38] sm:$0xf]
        %v7175 = vld [vmem:[%s7159 + $0x3c] sm:$0xf]
        %v7192 = vunpack.c.l.b16 %v7160
        %v7193 = vunpack.c.l.b16 %v7161
        %v7194 = vunpack.c.l.b16 %v7162
        %v7195 = vunpack.c.l.b16 %v7163
        %v7196 = vunpack.c.l.b16 %v7164
        %v7197 = vunpack.c.l.b16 %v7165
        %v7198 = vunpack.c.l.b16 %v7166
        %v7199 = vunpack.c.l.b16 %v7167
        %v7200 = vunpack.c.l.b16 %v7168
        %v7201 = vunpack.c.l.b16 %v7169
        %v7202 = vunpack.c.l.b16 %v7170
        %v7203 = vunpack.c.l.b16 %v7171
        %v7204 = vunpack.c.l.b16 %v7172
        %v7205 = vunpack.c.l.b16 %v7173
        %v7206 = vunpack.c.l.b16 %v7174
        %v7207 = vunpack.c.l.b16 %v7175
        %v7208 = vpack.c.b16 %v7193, %v7192
        %v7209 = vpack.c.b16 %v7195, %v7194
        %v7210 = vpack.c.b16 %v7197, %v7196
        %v7211 = vpack.c.b16 %v7199, %v7198
        %v7212 = vpack.c.b16 %v7201, %v7200
        %v7213 = vpack.c.b16 %v7203, %v7202
        %v7214 = vpack.c.b16 %v7205, %v7204
        %v7215 = vpack.c.b16 %v7207, %v7206
        %7224 = vmatprep.subr.bf16.mxu0 0
        %7225 = vmatpush1.bf16.msra.mxu0 %v7208
        %7226 = vmatprep.subr.bf16.mxu0 0
        %7227 = vmatpush1.bf16.msra.mxu0 %v7209
        %7228 = vmatprep.subr.bf16.mxu0 0
        %7229 = vmatpush1.bf16.msra.mxu0 %v7210
        %7230 = vmatprep.subr.bf16.mxu0 0
        %7231 = vmatpush1.bf16.msra.mxu0 %v7211
        %7232 = vmatprep.subr.bf16.mxu0 0
        %7233 = vmatpush1.bf16.msra.mxu0 %v7212
        %7234 = vmatprep.subr.bf16.mxu0 0
        %7235 = vmatpush1.bf16.msra.mxu0 %v7213
        %7236 = vmatprep.subr.bf16.mxu0 0
        %7237 = vmatpush1.bf16.msra.mxu0 %v7214
        %7238 = vmatprep.subr.bf16.mxu0 0
        %7239 = vmatpush1.bf16.msra.mxu0 %v7215
        %7240 = vmatprep.subr.bf16.mxu0 0
        %7241 = vmatpush1.bf16.msra.mxu0 0
        %7242 = vmatprep.subr.bf16.mxu0 0
        %7243 = vmatpush1.bf16.msra.mxu0 0
        %7244 = vmatprep.subr.bf16.mxu0 0
        %7245 = vmatpush1.bf16.msra.mxu0 0
        %7246 = vmatprep.subr.bf16.mxu0 0
        %7247 = vmatpush1.bf16.msra.mxu0 0
        %7248 = vmatprep.subr.bf16.mxu0 0
        %7249 = vmatpush1.bf16.msra.mxu0 0
        %7250 = vmatprep.subr.bf16.mxu0 0
        %7251 = vmatpush1.bf16.msra.mxu0 0
        %7252 = vmatprep.subr.bf16.mxu0 0
        %7253 = vmatpush1.bf16.msra.mxu0 0
        %7254 = vmatprep.subr.bf16.mxu0 0
        %7255 = vmatpush1.bf16.msra.mxu0 0
        %7256 = vmatprep.mubr.bf16.mxu0 0
        %7257 = vmatmul.mubr.bf16.gmra.mrb[0].mxu0 %v7151
        %v7258 = vpop.f32.mrb[0].mxu0
        %v7259 = vadd.f32 0.0, %v7258
        %v7260 = vpop.f32.mrb[0].mxu0
        %v7261 = vpop.f32.mrb[0].mxu0
        %v7262 = vadd.f32 0.0, %v7261
        %v7263 = vpop.f32.mrb[0].mxu0
        %7264 = vmatprep.mubr.bf16.mxu0 0
        %7265 = vmatmul.mubr.bf16.gmra.mrb[0].mxu0 %v7152
        %v7266 = vpop.f32.mrb[0].mxu0
        %v7267 = vadd.f32 0.0, %v7266
        %v7268 = vpop.f32.mrb[0].mxu0
        %v7269 = vpop.f32.mrb[0].mxu0
        %v7270 = vadd.f32 0.0, %v7269
        %v7271 = vpop.f32.mrb[0].mxu0
        %7272 = vmatprep.mubr.bf16.mxu0 0
        %7273 = vmatmul.mubr.bf16.gmra.mrb[0].mxu0 %v7153
        %v7274 = vpop.f32.mrb[0].mxu0
        %v7275 = vadd.f32 0.0, %v7274
        %v7276 = vpop.f32.mrb[0].mxu0
        %v7277 = vpop.f32.mrb[0].mxu0
        %v7278 = vadd.f32 0.0, %v7277
        %v7279 = vpop.f32.mrb[0].mxu0
        %7280 = vmatprep.mubr.bf16.mxu0 0
        %7281 = vmatmul.mubr.bf16.gmra.mrb[0].mxu0 %v7154
        %v7282 = vpop.f32.mrb[0].mxu0
        %v7283 = vadd.f32 0.0, %v7282
        %v7284 = vpop.f32.mrb[0].mxu0
        %v7285 = vpop.f32.mrb[0].mxu0
        %v7286 = vadd.f32 0.0, %v7285
        %v7287 = vpop.f32.mrb[0].mxu0
        %7288 = vmatprep.mubr.bf16.mxu0 0
        %7289 = vmatmul.mubr.bf16.gmra.mrb[0].mxu0 %v7155
        %v7290 = vpop.f32.mrb[0].mxu0
        %v7291 = vadd.f32 0.0, %v7290
        %v7292 = vpop.f32.mrb[0].mxu0
        %v7293 = vpop.f32.mrb[0].mxu0
        %v7294 = vadd.f32 0.0, %v7293
        %v7295 = vpop.f32.mrb[0].mxu0
        %7296 = vmatprep.mubr.bf16.mxu0 0
        %7297 = vmatmul.mubr.bf16.gmra.mrb[0].mxu0 %v7156
        %v7298 = vpop.f32.mrb[0].mxu0
        %v7299 = vadd.f32 0.0, %v7298
        %v7300 = vpop.f32.mrb[0].mxu0
        %v7301 = vpop.f32.mrb[0].mxu0
        %v7302 = vadd.f32 0.0, %v7301
        %v7303 = vpop.f32.mrb[0].mxu0
        %7304 = vmatprep.mubr.bf16.mxu0 0
        %7305 = vmatmul.mubr.bf16.gmra.mrb[0].mxu0 %v7157
        %v7306 = vpop.f32.mrb[0].mxu0
        %v7307 = vadd.f32 0.0, %v7306
        %v7308 = vpop.f32.mrb[0].mxu0
        %v7309 = vpop.f32.mrb[0].mxu0
        %v7310 = vadd.f32 0.0, %v7309
        %v7311 = vpop.f32.mrb[0].mxu0
        %7312 = vmatprep.mubr.bf16.mxu0 0
        %7313 = vmatmul.mubr.bf16.gmra.mrb[0].mxu0 %v7158
        %v7314 = vpop.f32.mrb[0].mxu0
        %v7315 = vadd.f32 0.0, %v7314
        %v7316 = vpop.f32.mrb[0].mxu0
        %v7317 = vpop.f32.mrb[0].mxu0
        %v7318 = vadd.f32 0.0, %v7317
        %v7319 = vpop.f32.mrb[0].mxu0
        %7320 = vdwg.mxu0
        %v7321 = vadd.f32 %v7119, %v7259
        %v7322 = vadd.f32 %v7120, %v7262
        %v7323 = vadd.f32 %v7121, %v7267
        %v7324 = vadd.f32 %v7122, %v7270
        %v7325 = vadd.f32 %v7123, %v7275
        %v7326 = vadd.f32 %v7124, %v7278
        %v7327 = vadd.f32 %v7125, %v7283
        %v7328 = vadd.f32 %v7126, %v7286
        %v7329 = vadd.f32 %v7127, %v7291
        %v7330 = vadd.f32 %v7128, %v7294
        %v7331 = vadd.f32 %v7129, %v7299
        %v7332 = vadd.f32 %v7130, %v7302
        %v7333 = vadd.f32 %v7131, %v7307
        %v7334 = vadd.f32 %v7132, %v7310
        %v7335 = vadd.f32 %v7133, %v7315
        %v7336 = vadd.f32 %v7134, %v7318
        %v7337 = vld [vmem:[%s246 + $0x2] sm:$0xff]
        %v7338 = vld [vmem:[%s246 + $0xa] sm:$0xff]
        %v7339 = vld [vmem:[%s246 + $0x1a] sm:$0xff]
        %v7340 = vld [vmem:[%s246 + $0x22] sm:$0xff]
        %v7341 = vld [vmem:[%s246 + $0x32] sm:$0xff]
        %v7342 = vld [vmem:[%s246 + $0x3a] sm:$0xff]
        %v7343 = vld [vmem:[%s246 + $0x4a] sm:$0xff]
        %v7344 = vld [vmem:[%s246 + $0x52] sm:$0xff]
        %v7345 = vld [vmem:[%s246 + $0x62] sm:$0xff]
        %v7346 = vld [vmem:[%s246 + $0x6a] sm:$0xff]
        %v7347 = vld [vmem:[%s246 + $0x7a] sm:$0xff]
        %v7348 = vld [vmem:[%s246 + $0x82] sm:$0xff]
        %v7349 = vld [vmem:[%s246 + $0x92] sm:$0xff]
        %v7350 = vld [vmem:[%s246 + $0x9a] sm:$0xff]
        %v7351 = vld [vmem:[%s246 + $0xaa] sm:$0xff]
        %v7352 = vld [vmem:[%s246 + $0xb2] sm:$0xff]
        %v7353 = vpack.c.bf16 %v7338, %v7337
        %v7354 = vpack.c.bf16 %v7340, %v7339
        %v7355 = vpack.c.bf16 %v7342, %v7341
        %v7356 = vpack.c.bf16 %v7344, %v7343
        %v7357 = vpack.c.bf16 %v7346, %v7345
        %v7358 = vpack.c.bf16 %v7348, %v7347
        %v7359 = vpack.c.bf16 %v7350, %v7349
        %v7360 = vpack.c.bf16 %v7352, %v7351
        %s7361 = scalar_lea.vmem [#allocation3], 2048
        %v7362 = vld [vmem:[%s7361] sm:$0xf]
        %v7363 = vld [vmem:[%s7361 + $0x4] sm:$0xf]
        %v7364 = vld [vmem:[%s7361 + $0x8] sm:$0xf]
        %v7365 = vld [vmem:[%s7361 + $0xc] sm:$0xf]
        %v7366 = vld [vmem:[%s7361 + $0x10] sm:$0xf]
        %v7367 = vld [vmem:[%s7361 + $0x14] sm:$0xf]
        %v7368 = vld [vmem:[%s7361 + $0x18] sm:$0xf]
        %v7369 = vld [vmem:[%s7361 + $0x1c] sm:$0xf]
        %v7370 = vld [vmem:[%s7361 + $0x20] sm:$0xf]
        %v7371 = vld [vmem:[%s7361 + $0x24] sm:$0xf]
        %v7372 = vld [vmem:[%s7361 + $0x28] sm:$0xf]
        %v7373 = vld [vmem:[%s7361 + $0x2c] sm:$0xf]
        %v7374 = vld [vmem:[%s7361 + $0x30] sm:$0xf]
        %v7375 = vld [vmem:[%s7361 + $0x34] sm:$0xf]
        %v7376 = vld [vmem:[%s7361 + $0x38] sm:$0xf]
        %v7377 = vld [vmem:[%s7361 + $0x3c] sm:$0xf]
        %v7394 = vunpack.c.l.b16 %v7362
        %v7395 = vunpack.c.l.b16 %v7363
        %v7396 = vunpack.c.l.b16 %v7364
        %v7397 = vunpack.c.l.b16 %v7365
        %v7398 = vunpack.c.l.b16 %v7366
        %v7399 = vunpack.c.l.b16 %v7367
        %v7400 = vunpack.c.l.b16 %v7368
        %v7401 = vunpack.c.l.b16 %v7369
        %v7402 = vunpack.c.l.b16 %v7370
        %v7403 = vunpack.c.l.b16 %v7371
        %v7404 = vunpack.c.l.b16 %v7372
        %v7405 = vunpack.c.l.b16 %v7373
        %v7406 = vunpack.c.l.b16 %v7374
        %v7407 = vunpack.c.l.b16 %v7375
        %v7408 = vunpack.c.l.b16 %v7376
        %v7409 = vunpack.c.l.b16 %v7377
        %v7410 = vpack.c.b16 %v7395, %v7394
        %v7411 = vpack.c.b16 %v7397, %v7396
        %v7412 = vpack.c.b16 %v7399, %v7398
        %v7413 = vpack.c.b16 %v7401, %v7400
        %v7414 = vpack.c.b16 %v7403, %v7402
        %v7415 = vpack.c.b16 %v7405, %v7404
        %v7416 = vpack.c.b16 %v7407, %v7406
        %v7417 = vpack.c.b16 %v7409, %v7408
        %7426 = vmatprep.subr.bf16.mxu0 0
        %7427 = vmatpush1.bf16.msra.mxu0 %v7410
        %7428 = vmatprep.subr.bf16.mxu0 0
        %7429 = vmatpush1.bf16.msra.mxu0 %v7411
        %7430 = vmatprep.subr.bf16.mxu0 0
        %7431 = vmatpush1.bf16.msra.mxu0 %v7412
        %7432 = vmatprep.subr.bf16.mxu0 0
        %7433 = vmatpush1.bf16.msra.mxu0 %v7413
        %7434 = vmatprep.subr.bf16.mxu0 0
        %7435 = vmatpush1.bf16.msra.mxu0 %v7414
        %7436 = vmatprep.subr.bf16.mxu0 0
        %7437 = vmatpush1.bf16.msra.mxu0 %v7415
        %7438 = vmatprep.subr.bf16.mxu0 0
        %7439 = vmatpush1.bf16.msra.mxu0 %v7416
        %7440 = vmatprep.subr.bf16.mxu0 0
        %7441 = vmatpush1.bf16.msra.mxu0 %v7417
        %7442 = vmatprep.subr.bf16.mxu0 0
        %7443 = vmatpush1.bf16.msra.mxu0 0
        %7444 = vmatprep.subr.bf16.mxu0 0
        %7445 = vmatpush1.bf16.msra.mxu0 0
        %7446 = vmatprep.subr.bf16.mxu0 0
        %7447 = vmatpush1.bf16.msra.mxu0 0
        %7448 = vmatprep.subr.bf16.mxu0 0
        %7449 = vmatpush1.bf16.msra.mxu0 0
        %7450 = vmatprep.subr.bf16.mxu0 0
        %7451 = vmatpush1.bf16.msra.mxu0 0
        %7452 = vmatprep.subr.bf16.mxu0 0
        %7453 = vmatpush1.bf16.msra.mxu0 0
        %7454 = vmatprep.subr.bf16.mxu0 0
        %7455 = vmatpush1.bf16.msra.mxu0 0
        %7456 = vmatprep.subr.bf16.mxu0 0
        %7457 = vmatpush1.bf16.msra.mxu0 0
        %7458 = vmatprep.mubr.bf16.mxu0 0
        %7459 = vmatmul.mubr.bf16.gmra.mrb[0].mxu0 %v7353
        %v7460 = vpop.f32.mrb[0].mxu0
        %v7461 = vadd.f32 0.0, %v7460
        %v7462 = vpop.f32.mrb[0].mxu0
        %v7463 = vpop.f32.mrb[0].mxu0
        %v7464 = vadd.f32 0.0, %v7463
        %v7465 = vpop.f32.mrb[0].mxu0
        %7466 = vmatprep.mubr.bf16.mxu0 0
        %7467 = vmatmul.mubr.bf16.gmra.mrb[0].mxu0 %v7354
        %v7468 = vpop.f32.mrb[0].mxu0
        %v7469 = vadd.f32 0.0, %v7468
        %v7470 = vpop.f32.mrb[0].mxu0
        %v7471 = vpop.f32.mrb[0].mxu0
        %v7472 = vadd.f32 0.0, %v7471
        %v7473 = vpop.f32.mrb[0].mxu0
        %7474 = vmatprep.mubr.bf16.mxu0 0
        %7475 = vmatmul.mubr.bf16.gmra.mrb[0].mxu0 %v7355
        %v7476 = vpop.f32.mrb[0].mxu0
        %v7477 = vadd.f32 0.0, %v7476
        %v7478 = vpop.f32.mrb[0].mxu0
        %v7479 = vpop.f32.mrb[0].mxu0
        %v7480 = vadd.f32 0.0, %v7479
        %v7481 = vpop.f32.mrb[0].mxu0
        %7482 = vmatprep.mubr.bf16.mxu0 0
        %7483 = vmatmul.mubr.bf16.gmra.mrb[0].mxu0 %v7356
        %v7484 = vpop.f32.mrb[0].mxu0
        %v7485 = vadd.f32 0.0, %v7484
        %v7486 = vpop.f32.mrb[0].mxu0
        %v7487 = vpop.f32.mrb[0].mxu0
        %v7488 = vadd.f32 0.0, %v7487
        %v7489 = vpop.f32.mrb[0].mxu0
        %7490 = vmatprep.mubr.bf16.mxu0 0
        %7491 = vmatmul.mubr.bf16.gmra.mrb[0].mxu0 %v7357
        %v7492 = vpop.f32.mrb[0].mxu0
        %v7493 = vadd.f32 0.0, %v7492
        %v7494 = vpop.f32.mrb[0].mxu0
        %v7495 = vpop.f32.mrb[0].mxu0
        %v7496 = vadd.f32 0.0, %v7495
        %v7497 = vpop.f32.mrb[0].mxu0
        %7498 = vmatprep.mubr.bf16.mxu0 0
        %7499 = vmatmul.mubr.bf16.gmra.mrb[0].mxu0 %v7358
        %v7500 = vpop.f32.mrb[0].mxu0
        %v7501 = vadd.f32 0.0, %v7500
        %v7502 = vpop.f32.mrb[0].mxu0
        %v7503 = vpop.f32.mrb[0].mxu0
        %v7504 = vadd.f32 0.0, %v7503
        %v7505 = vpop.f32.mrb[0].mxu0
        %7506 = vmatprep.mubr.bf16.mxu0 0
        %7507 = vmatmul.mubr.bf16.gmra.mrb[0].mxu0 %v7359
        %v7508 = vpop.f32.mrb[0].mxu0
        %v7509 = vadd.f32 0.0, %v7508
        %v7510 = vpop.f32.mrb[0].mxu0
        %v7511 = vpop.f32.mrb[0].mxu0
        %v7512 = vadd.f32 0.0, %v7511
        %v7513 = vpop.f32.mrb[0].mxu0
        %7514 = vmatprep.mubr.bf16.mxu0 0
        %7515 = vmatmul.mubr.bf16.gmra.mrb[0].mxu0 %v7360
        %v7516 = vpop.f32.mrb[0].mxu0
        %v7517 = vadd.f32 0.0, %v7516
        %v7518 = vpop.f32.mrb[0].mxu0
        %v7519 = vpop.f32.mrb[0].mxu0
        %v7520 = vadd.f32 0.0, %v7519
        %v7521 = vpop.f32.mrb[0].mxu0
        %7522 = vdwg.mxu0
        %v7523 = vadd.f32 %v7321, %v7461
        %v7524 = vadd.f32 %v7322, %v7464
        %v7525 = vadd.f32 %v7323, %v7469
        %v7526 = vadd.f32 %v7324, %v7472
        %v7527 = vadd.f32 %v7325, %v7477
        %v7528 = vadd.f32 %v7326, %v7480
        %v7529 = vadd.f32 %v7327, %v7485
        %v7530 = vadd.f32 %v7328, %v7488
        %v7531 = vadd.f32 %v7329, %v7493
        %v7532 = vadd.f32 %v7330, %v7496
        %v7533 = vadd.f32 %v7331, %v7501
        %v7534 = vadd.f32 %v7332, %v7504
        %v7535 = vadd.f32 %v7333, %v7509
        %v7536 = vadd.f32 %v7334, %v7512
        %v7537 = vadd.f32 %v7335, %v7517
        %v7538 = vadd.f32 %v7336, %v7520
        %v7539 = vld [vmem:[%s1443] sm:$0xff]
        %v7540 = vld [vmem:[%s1443 + $0x8] sm:$0xff]
        %v7541 = vld [vmem:[%s1443 + $0x18] sm:$0xff]
        %v7542 = vld [vmem:[%s1443 + $0x20] sm:$0xff]
        %v7543 = vld [vmem:[%s1443 + $0x30] sm:$0xff]
        %v7544 = vld [vmem:[%s1443 + $0x38] sm:$0xff]
        %v7545 = vld [vmem:[%s1443 + $0x48] sm:$0xff]
        %v7546 = vld [vmem:[%s1443 + $0x50] sm:$0xff]
        %v7547 = vld [vmem:[%s1443 + $0x60] sm:$0xff]
        %v7548 = vld [vmem:[%s1443 + $0x68] sm:$0xff]
        %v7549 = vld [vmem:[%s1443 + $0x78] sm:$0xff]
        %v7550 = vld [vmem:[%s1443 + $0x80] sm:$0xff]
        %v7551 = vld [vmem:[%s1443 + $0x90] sm:$0xff]
        %v7552 = vld [vmem:[%s1443 + $0x98] sm:$0xff]
        %v7553 = vld [vmem:[%s1443 + $0xa8] sm:$0xff]
        %v7554 = vld [vmem:[%s1443 + $0xb0] sm:$0xff]
        %v7555 = vpack.c.bf16 %v7540, %v7539
        %v7556 = vpack.c.bf16 %v7542, %v7541
        %v7557 = vpack.c.bf16 %v7544, %v7543
        %v7558 = vpack.c.bf16 %v7546, %v7545
        %v7559 = vpack.c.bf16 %v7548, %v7547
        %v7560 = vpack.c.bf16 %v7550, %v7549
        %v7561 = vpack.c.bf16 %v7552, %v7551
        %v7562 = vpack.c.bf16 %v7554, %v7553
        %s7563 = scalar_lea.vmem [#allocation3], 2112
        %v7564 = vld [vmem:[%s7563] sm:$0xf]
        %v7565 = vld [vmem:[%s7563 + $0x4] sm:$0xf]
        %v7566 = vld [vmem:[%s7563 + $0x8] sm:$0xf]
        %v7567 = vld [vmem:[%s7563 + $0xc] sm:$0xf]
        %v7568 = vld [vmem:[%s7563 + $0x10] sm:$0xf]
        %v7569 = vld [vmem:[%s7563 + $0x14] sm:$0xf]
        %v7570 = vld [vmem:[%s7563 + $0x18] sm:$0xf]
        %v7571 = vld [vmem:[%s7563 + $0x1c] sm:$0xf]
        %v7572 = vld [vmem:[%s7563 + $0x20] sm:$0xf]
        %v7573 = vld [vmem:[%s7563 + $0x24] sm:$0xf]
        %v7574 = vld [vmem:[%s7563 + $0x28] sm:$0xf]
        %v7575 = vld [vmem:[%s7563 + $0x2c] sm:$0xf]
        %v7576 = vld [vmem:[%s7563 + $0x30] sm:$0xf]
        %v7577 = vld [vmem:[%s7563 + $0x34] sm:$0xf]
        %v7578 = vld [vmem:[%s7563 + $0x38] sm:$0xf]
        %v7579 = vld [vmem:[%s7563 + $0x3c] sm:$0xf]
        %v7596 = vunpack.c.l.b16 %v7564
        %v7597 = vunpack.c.l.b16 %v7565
        %v7598 = vunpack.c.l.b16 %v7566
        %v7599 = vunpack.c.l.b16 %v7567
        %v7600 = vunpack.c.l.b16 %v7568
        %v7601 = vunpack.c.l.b16 %v7569
        %v7602 = vunpack.c.l.b16 %v7570
        %v7603 = vunpack.c.l.b16 %v7571
        %v7604 = vunpack.c.l.b16 %v7572
        %v7605 = vunpack.c.l.b16 %v7573
        %v7606 = vunpack.c.l.b16 %v7574
        %v7607 = vunpack.c.l.b16 %v7575
        %v7608 = vunpack.c.l.b16 %v7576
        %v7609 = vunpack.c.l.b16 %v7577
        %v7610 = vunpack.c.l.b16 %v7578
        %v7611 = vunpack.c.l.b16 %v7579
        %v7612 = vpack.c.b16 %v7597, %v7596
        %v7613 = vpack.c.b16 %v7599, %v7598
        %v7614 = vpack.c.b16 %v7601, %v7600
        %v7615 = vpack.c.b16 %v7603, %v7602
        %v7616 = vpack.c.b16 %v7605, %v7604
        %v7617 = vpack.c.b16 %v7607, %v7606
        %v7618 = vpack.c.b16 %v7609, %v7608
        %v7619 = vpack.c.b16 %v7611, %v7610
        %7628 = vmatprep.subr.bf16.mxu0 0
        %7629 = vmatpush1.bf16.msra.mxu0 %v7612
        %7630 = vmatprep.subr.bf16.mxu0 0
        %7631 = vmatpush1.bf16.msra.mxu0 %v7613
        %7632 = vmatprep.subr.bf16.mxu0 0
        %7633 = vmatpush1.bf16.msra.mxu0 %v7614
        %7634 = vmatprep.subr.bf16.mxu0 0
        %7635 = vmatpush1.bf16.msra.mxu0 %v7615
        %7636 = vmatprep.subr.bf16.mxu0 0
        %7637 = vmatpush1.bf16.msra.mxu0 %v7616
        %7638 = vmatprep.subr.bf16.mxu0 0
        %7639 = vmatpush1.bf16.msra.mxu0 %v7617
        %7640 = vmatprep.subr.bf16.mxu0 0
        %7641 = vmatpush1.bf16.msra.mxu0 %v7618
        %7642 = vmatprep.subr.bf16.mxu0 0
        %7643 = vmatpush1.bf16.msra.mxu0 %v7619
        %7644 = vmatprep.subr.bf16.mxu0 0
        %7645 = vmatpush1.bf16.msra.mxu0 0
        %7646 = vmatprep.subr.bf16.mxu0 0
        %7647 = vmatpush1.bf16.msra.mxu0 0
        %7648 = vmatprep.subr.bf16.mxu0 0
        %7649 = vmatpush1.bf16.msra.mxu0 0
        %7650 = vmatprep.subr.bf16.mxu0 0
        %7651 = vmatpush1.bf16.msra.mxu0 0
        %7652 = vmatprep.subr.bf16.mxu0 0
        %7653 = vmatpush1.bf16.msra.mxu0 0
        %7654 = vmatprep.subr.bf16.mxu0 0
        %7655 = vmatpush1.bf16.msra.mxu0 0
        %7656 = vmatprep.subr.bf16.mxu0 0
        %7657 = vmatpush1.bf16.msra.mxu0 0
        %7658 = vmatprep.subr.bf16.mxu0 0
        %7659 = vmatpush1.bf16.msra.mxu0 0
        %7660 = vmatprep.mubr.bf16.mxu0 0
        %7661 = vmatmul.mubr.bf16.gmra.mrb[0].mxu0 %v7555
        %v7662 = vpop.f32.mrb[0].mxu0
        %v7663 = vadd.f32 0.0, %v7662
        %v7664 = vpop.f32.mrb[0].mxu0
        %v7665 = vpop.f32.mrb[0].mxu0
        %v7666 = vadd.f32 0.0, %v7665
        %v7667 = vpop.f32.mrb[0].mxu0
        %7668 = vmatprep.mubr.bf16.mxu0 0
        %7669 = vmatmul.mubr.bf16.gmra.mrb[0].mxu0 %v7556
        %v7670 = vpop.f32.mrb[0].mxu0
        %v7671 = vadd.f32 0.0, %v7670
        %v7672 = vpop.f32.mrb[0].mxu0
        %v7673 = vpop.f32.mrb[0].mxu0
        %v7674 = vadd.f32 0.0, %v7673
        %v7675 = vpop.f32.mrb[0].mxu0
        %7676 = vmatprep.mubr.bf16.mxu0 0
        %7677 = vmatmul.mubr.bf16.gmra.mrb[0].mxu0 %v7557
        %v7678 = vpop.f32.mrb[0].mxu0
        %v7679 = vadd.f32 0.0, %v7678
        %v7680 = vpop.f32.mrb[0].mxu0
        %v7681 = vpop.f32.mrb[0].mxu0
        %v7682 = vadd.f32 0.0, %v7681
        %v7683 = vpop.f32.mrb[0].mxu0
        %7684 = vmatprep.mubr.bf16.mxu0 0
        %7685 = vmatmul.mubr.bf16.gmra.mrb[0].mxu0 %v7558
        %v7686 = vpop.f32.mrb[0].mxu0
        %v7687 = vadd.f32 0.0, %v7686
        %v7688 = vpop.f32.mrb[0].mxu0
        %v7689 = vpop.f32.mrb[0].mxu0
        %v7690 = vadd.f32 0.0, %v7689
        %v7691 = vpop.f32.mrb[0].mxu0
        %7692 = vmatprep.mubr.bf16.mxu0 0
        %7693 = vmatmul.mubr.bf16.gmra.mrb[0].mxu0 %v7559
        %v7694 = vpop.f32.mrb[0].mxu0
        %v7695 = vadd.f32 0.0, %v7694
        %v7696 = vpop.f32.mrb[0].mxu0
        %v7697 = vpop.f32.mrb[0].mxu0
        %v7698 = vadd.f32 0.0, %v7697
        %v7699 = vpop.f32.mrb[0].mxu0
        %7700 = vmatprep.mubr.bf16.mxu0 0
        %7701 = vmatmul.mubr.bf16.gmra.mrb[0].mxu0 %v7560
        %v7702 = vpop.f32.mrb[0].mxu0
        %v7703 = vadd.f32 0.0, %v7702
        %v7704 = vpop.f32.mrb[0].mxu0
        %v7705 = vpop.f32.mrb[0].mxu0
        %v7706 = vadd.f32 0.0, %v7705
        %v7707 = vpop.f32.mrb[0].mxu0
        %7708 = vmatprep.mubr.bf16.mxu0 0
        %7709 = vmatmul.mubr.bf16.gmra.mrb[0].mxu0 %v7561
        %v7710 = vpop.f32.mrb[0].mxu0
        %v7711 = vadd.f32 0.0, %v7710
        %v7712 = vpop.f32.mrb[0].mxu0
        %v7713 = vpop.f32.mrb[0].mxu0
        %v7714 = vadd.f32 0.0, %v7713
        %v7715 = vpop.f32.mrb[0].mxu0
        %7716 = vmatprep.mubr.bf16.mxu0 0
        %7717 = vmatmul.mubr.bf16.gmra.mrb[0].mxu0 %v7562
        %v7718 = vpop.f32.mrb[0].mxu0
        %v7719 = vadd.f32 0.0, %v7718
        %v7720 = vpop.f32.mrb[0].mxu0
        %v7721 = vpop.f32.mrb[0].mxu0
        %v7722 = vadd.f32 0.0, %v7721
        %v7723 = vpop.f32.mrb[0].mxu0
        %7724 = vdwg.mxu0
        %v7725 = vadd.f32 %v7523, %v7663
        %v7726 = vadd.f32 %v7524, %v7666
        %v7727 = vadd.f32 %v7525, %v7671
        %v7728 = vadd.f32 %v7526, %v7674
        %v7729 = vadd.f32 %v7527, %v7679
        %v7730 = vadd.f32 %v7528, %v7682
        %v7731 = vadd.f32 %v7529, %v7687
        %v7732 = vadd.f32 %v7530, %v7690
        %v7733 = vadd.f32 %v7531, %v7695
        %v7734 = vadd.f32 %v7532, %v7698
        %v7735 = vadd.f32 %v7533, %v7703
        %v7736 = vadd.f32 %v7534, %v7706
        %v7737 = vadd.f32 %v7535, %v7711
        %v7738 = vadd.f32 %v7536, %v7714
        %v7739 = vadd.f32 %v7537, %v7719
        %v7740 = vadd.f32 %v7538, %v7722
        %v7741 = vld [vmem:[%s1443 + $0x1] sm:$0xff]
        %v7742 = vld [vmem:[%s1443 + $0x9] sm:$0xff]
        %v7743 = vld [vmem:[%s1443 + $0x19] sm:$0xff]
        %v7744 = vld [vmem:[%s1443 + $0x21] sm:$0xff]
        %v7745 = vld [vmem:[%s1443 + $0x31] sm:$0xff]
        %v7746 = vld [vmem:[%s1443 + $0x39] sm:$0xff]
        %v7747 = vld [vmem:[%s1443 + $0x49] sm:$0xff]
        %v7748 = vld [vmem:[%s1443 + $0x51] sm:$0xff]
        %v7749 = vld [vmem:[%s1443 + $0x61] sm:$0xff]
        %v7750 = vld [vmem:[%s1443 + $0x69] sm:$0xff]
        %v7751 = vld [vmem:[%s1443 + $0x79] sm:$0xff]
        %v7752 = vld [vmem:[%s1443 + $0x81] sm:$0xff]
        %v7753 = vld [vmem:[%s1443 + $0x91] sm:$0xff]
        %v7754 = vld [vmem:[%s1443 + $0x99] sm:$0xff]
        %v7755 = vld [vmem:[%s1443 + $0xa9] sm:$0xff]
        %v7756 = vld [vmem:[%s1443 + $0xb1] sm:$0xff]
        %v7757 = vpack.c.bf16 %v7742, %v7741
        %v7758 = vpack.c.bf16 %v7744, %v7743
        %v7759 = vpack.c.bf16 %v7746, %v7745
        %v7760 = vpack.c.bf16 %v7748, %v7747
        %v7761 = vpack.c.bf16 %v7750, %v7749
        %v7762 = vpack.c.bf16 %v7752, %v7751
        %v7763 = vpack.c.bf16 %v7754, %v7753
        %v7764 = vpack.c.bf16 %v7756, %v7755
        %s7765 = scalar_lea.vmem [#allocation3], 2176
        %v7766 = vld [vmem:[%s7765] sm:$0xf]
        %v7767 = vld [vmem:[%s7765 + $0x4] sm:$0xf]
        %v7768 = vld [vmem:[%s7765 + $0x8] sm:$0xf]
        %v7769 = vld [vmem:[%s7765 + $0xc] sm:$0xf]
        %v7770 = vld [vmem:[%s7765 + $0x10] sm:$0xf]
        %v7771 = vld [vmem:[%s7765 + $0x14] sm:$0xf]
        %v7772 = vld [vmem:[%s7765 + $0x18] sm:$0xf]
        %v7773 = vld [vmem:[%s7765 + $0x1c] sm:$0xf]
        %v7774 = vld [vmem:[%s7765 + $0x20] sm:$0xf]
        %v7775 = vld [vmem:[%s7765 + $0x24] sm:$0xf]
        %v7776 = vld [vmem:[%s7765 + $0x28] sm:$0xf]
        %v7777 = vld [vmem:[%s7765 + $0x2c] sm:$0xf]
        %v7778 = vld [vmem:[%s7765 + $0x30] sm:$0xf]
        %v7779 = vld [vmem:[%s7765 + $0x34] sm:$0xf]
        %v7780 = vld [vmem:[%s7765 + $0x38] sm:$0xf]
        %v7781 = vld [vmem:[%s7765 + $0x3c] sm:$0xf]
        %v7798 = vunpack.c.l.b16 %v7766
        %v7799 = vunpack.c.l.b16 %v7767
        %v7800 = vunpack.c.l.b16 %v7768
        %v7801 = vunpack.c.l.b16 %v7769
        %v7802 = vunpack.c.l.b16 %v7770
        %v7803 = vunpack.c.l.b16 %v7771
        %v7804 = vunpack.c.l.b16 %v7772
        %v7805 = vunpack.c.l.b16 %v7773
        %v7806 = vunpack.c.l.b16 %v7774
        %v7807 = vunpack.c.l.b16 %v7775
        %v7808 = vunpack.c.l.b16 %v7776
        %v7809 = vunpack.c.l.b16 %v7777
        %v7810 = vunpack.c.l.b16 %v7778
        %v7811 = vunpack.c.l.b16 %v7779
        %v7812 = vunpack.c.l.b16 %v7780
        %v7813 = vunpack.c.l.b16 %v7781
        %v7814 = vpack.c.b16 %v7799, %v7798
        %v7815 = vpack.c.b16 %v7801, %v7800
        %v7816 = vpack.c.b16 %v7803, %v7802
        %v7817 = vpack.c.b16 %v7805, %v7804
        %v7818 = vpack.c.b16 %v7807, %v7806
        %v7819 = vpack.c.b16 %v7809, %v7808
        %v7820 = vpack.c.b16 %v7811, %v7810
        %v7821 = vpack.c.b16 %v7813, %v7812
        %7830 = vmatprep.subr.bf16.mxu0 0
        %7831 = vmatpush1.bf16.msra.mxu0 %v7814
        %7832 = vmatprep.subr.bf16.mxu0 0
        %7833 = vmatpush1.bf16.msra.mxu0 %v7815
        %7834 = vmatprep.subr.bf16.mxu0 0
        %7835 = vmatpush1.bf16.msra.mxu0 %v7816
        %7836 = vmatprep.subr.bf16.mxu0 0
        %7837 = vmatpush1.bf16.msra.mxu0 %v7817
        %7838 = vmatprep.subr.bf16.mxu0 0
        %7839 = vmatpush1.bf16.msra.mxu0 %v7818
        %7840 = vmatprep.subr.bf16.mxu0 0
        %7841 = vmatpush1.bf16.msra.mxu0 %v7819
        %7842 = vmatprep.subr.bf16.mxu0 0
        %7843 = vmatpush1.bf16.msra.mxu0 %v7820
        %7844 = vmatprep.subr.bf16.mxu0 0
        %7845 = vmatpush1.bf16.msra.mxu0 %v7821
        %7846 = vmatprep.subr.bf16.mxu0 0
        %7847 = vmatpush1.bf16.msra.mxu0 0
        %7848 = vmatprep.subr.bf16.mxu0 0
        %7849 = vmatpush1.bf16.msra.mxu0 0
        %7850 = vmatprep.subr.bf16.mxu0 0
        %7851 = vmatpush1.bf16.msra.mxu0 0
        %7852 = vmatprep.subr.bf16.mxu0 0
        %7853 = vmatpush1.bf16.msra.mxu0 0
        %7854 = vmatprep.subr.bf16.mxu0 0
        %7855 = vmatpush1.bf16.msra.mxu0 0
        %7856 = vmatprep.subr.bf16.mxu0 0
        %7857 = vmatpush1.bf16.msra.mxu0 0
        %7858 = vmatprep.subr.bf16.mxu0 0
        %7859 = vmatpush1.bf16.msra.mxu0 0
        %7860 = vmatprep.subr.bf16.mxu0 0
        %7861 = vmatpush1.bf16.msra.mxu0 0
        %7862 = vmatprep.mubr.bf16.mxu0 0
        %7863 = vmatmul.mubr.bf16.gmra.mrb[0].mxu0 %v7757
        %v7864 = vpop.f32.mrb[0].mxu0
        %v7865 = vadd.f32 0.0, %v7864
        %v7866 = vpop.f32.mrb[0].mxu0
        %v7867 = vpop.f32.mrb[0].mxu0
        %v7868 = vadd.f32 0.0, %v7867
        %v7869 = vpop.f32.mrb[0].mxu0
        %7870 = vmatprep.mubr.bf16.mxu0 0
        %7871 = vmatmul.mubr.bf16.gmra.mrb[0].mxu0 %v7758
        %v7872 = vpop.f32.mrb[0].mxu0
        %v7873 = vadd.f32 0.0, %v7872
        %v7874 = vpop.f32.mrb[0].mxu0
        %v7875 = vpop.f32.mrb[0].mxu0
        %v7876 = vadd.f32 0.0, %v7875
        %v7877 = vpop.f32.mrb[0].mxu0
        %7878 = vmatprep.mubr.bf16.mxu0 0
        %7879 = vmatmul.mubr.bf16.gmra.mrb[0].mxu0 %v7759
        %v7880 = vpop.f32.mrb[0].mxu0
        %v7881 = vadd.f32 0.0, %v7880
        %v7882 = vpop.f32.mrb[0].mxu0
        %v7883 = vpop.f32.mrb[0].mxu0
        %v7884 = vadd.f32 0.0, %v7883
        %v7885 = vpop.f32.mrb[0].mxu0
        %7886 = vmatprep.mubr.bf16.mxu0 0
        %7887 = vmatmul.mubr.bf16.gmra.mrb[0].mxu0 %v7760
        %v7888 = vpop.f32.mrb[0].mxu0
        %v7889 = vadd.f32 0.0, %v7888
        %v7890 = vpop.f32.mrb[0].mxu0
        %v7891 = vpop.f32.mrb[0].mxu0
        %v7892 = vadd.f32 0.0, %v7891
        %v7893 = vpop.f32.mrb[0].mxu0
        %7894 = vmatprep.mubr.bf16.mxu0 0
        %7895 = vmatmul.mubr.bf16.gmra.mrb[0].mxu0 %v7761
        %v7896 = vpop.f32.mrb[0].mxu0
        %v7897 = vadd.f32 0.0, %v7896
        %v7898 = vpop.f32.mrb[0].mxu0
        %v7899 = vpop.f32.mrb[0].mxu0
        %v7900 = vadd.f32 0.0, %v7899
        %v7901 = vpop.f32.mrb[0].mxu0
        %7902 = vmatprep.mubr.bf16.mxu0 0
        %7903 = vmatmul.mubr.bf16.gmra.mrb[0].mxu0 %v7762
        %v7904 = vpop.f32.mrb[0].mxu0
        %v7905 = vadd.f32 0.0, %v7904
        %v7906 = vpop.f32.mrb[0].mxu0
        %v7907 = vpop.f32.mrb[0].mxu0
        %v7908 = vadd.f32 0.0, %v7907
        %v7909 = vpop.f32.mrb[0].mxu0
        %7910 = vmatprep.mubr.bf16.mxu0 0
        %7911 = vmatmul.mubr.bf16.gmra.mrb[0].mxu0 %v7763
        %v7912 = vpop.f32.mrb[0].mxu0
        %v7913 = vadd.f32 0.0, %v7912
        %v7914 = vpop.f32.mrb[0].mxu0
        %v7915 = vpop.f32.mrb[0].mxu0
        %v7916 = vadd.f32 0.0, %v7915
        %v7917 = vpop.f32.mrb[0].mxu0
        %7918 = vmatprep.mubr.bf16.mxu0 0
        %7919 = vmatmul.mubr.bf16.gmra.mrb[0].mxu0 %v7764
        %v7920 = vpop.f32.mrb[0].mxu0
        %v7921 = vadd.f32 0.0, %v7920
        %v7922 = vpop.f32.mrb[0].mxu0
        %v7923 = vpop.f32.mrb[0].mxu0
        %v7924 = vadd.f32 0.0, %v7923
        %v7925 = vpop.f32.mrb[0].mxu0
        %7926 = vdwg.mxu0
        %v7927 = vadd.f32 %v7725, %v7865
        %v7928 = vadd.f32 %v7726, %v7868
        %v7929 = vadd.f32 %v7727, %v7873
        %v7930 = vadd.f32 %v7728, %v7876
        %v7931 = vadd.f32 %v7729, %v7881
        %v7932 = vadd.f32 %v7730, %v7884
        %v7933 = vadd.f32 %v7731, %v7889
        %v7934 = vadd.f32 %v7732, %v7892
        %v7935 = vadd.f32 %v7733, %v7897
        %v7936 = vadd.f32 %v7734, %v7900
        %v7937 = vadd.f32 %v7735, %v7905
        %v7938 = vadd.f32 %v7736, %v7908
        %v7939 = vadd.f32 %v7737, %v7913
        %v7940 = vadd.f32 %v7738, %v7916
        %v7941 = vadd.f32 %v7739, %v7921
        %v7942 = vadd.f32 %v7740, %v7924
        %v7943 = vld [vmem:[%s1443 + $0x2] sm:$0xff]
        %v7944 = vld [vmem:[%s1443 + $0xa] sm:$0xff]
        %v7945 = vld [vmem:[%s1443 + $0x1a] sm:$0xff]
        %v7946 = vld [vmem:[%s1443 + $0x22] sm:$0xff]
        %v7947 = vld [vmem:[%s1443 + $0x32] sm:$0xff]
        %v7948 = vld [vmem:[%s1443 + $0x3a] sm:$0xff]
        %v7949 = vld [vmem:[%s1443 + $0x4a] sm:$0xff]
        %v7950 = vld [vmem:[%s1443 + $0x52] sm:$0xff]
        %v7951 = vld [vmem:[%s1443 + $0x62] sm:$0xff]
        %v7952 = vld [vmem:[%s1443 + $0x6a] sm:$0xff]
        %v7953 = vld [vmem:[%s1443 + $0x7a] sm:$0xff]
        %v7954 = vld [vmem:[%s1443 + $0x82] sm:$0xff]
        %v7955 = vld [vmem:[%s1443 + $0x92] sm:$0xff]
        %v7956 = vld [vmem:[%s1443 + $0x9a] sm:$0xff]
        %v7957 = vld [vmem:[%s1443 + $0xaa] sm:$0xff]
        %v7958 = vld [vmem:[%s1443 + $0xb2] sm:$0xff]
        %v7959 = vpack.c.bf16 %v7944, %v7943
        %v7960 = vpack.c.bf16 %v7946, %v7945
        %v7961 = vpack.c.bf16 %v7948, %v7947
        %v7962 = vpack.c.bf16 %v7950, %v7949
        %v7963 = vpack.c.bf16 %v7952, %v7951
        %v7964 = vpack.c.bf16 %v7954, %v7953
        %v7965 = vpack.c.bf16 %v7956, %v7955
        %v7966 = vpack.c.bf16 %v7958, %v7957
        %s7967 = scalar_lea.vmem [#allocation3], 2240
        %v7968 = vld [vmem:[%s7967] sm:$0xf]
        %v7969 = vld [vmem:[%s7967 + $0x4] sm:$0xf]
        %v7970 = vld [vmem:[%s7967 + $0x8] sm:$0xf]
        %v7971 = vld [vmem:[%s7967 + $0xc] sm:$0xf]
        %v7972 = vld [vmem:[%s7967 + $0x10] sm:$0xf]
        %v7973 = vld [vmem:[%s7967 + $0x14] sm:$0xf]
        %v7974 = vld [vmem:[%s7967 + $0x18] sm:$0xf]
        %v7975 = vld [vmem:[%s7967 + $0x1c] sm:$0xf]
        %v7976 = vld [vmem:[%s7967 + $0x20] sm:$0xf]
        %v7977 = vld [vmem:[%s7967 + $0x24] sm:$0xf]
        %v7978 = vld [vmem:[%s7967 + $0x28] sm:$0xf]
        %v7979 = vld [vmem:[%s7967 + $0x2c] sm:$0xf]
        %v7980 = vld [vmem:[%s7967 + $0x30] sm:$0xf]
        %v7981 = vld [vmem:[%s7967 + $0x34] sm:$0xf]
        %v7982 = vld [vmem:[%s7967 + $0x38] sm:$0xf]
        %v7983 = vld [vmem:[%s7967 + $0x3c] sm:$0xf]
        %v8000 = vunpack.c.l.b16 %v7968
        %v8001 = vunpack.c.l.b16 %v7969
        %v8002 = vunpack.c.l.b16 %v7970
        %v8003 = vunpack.c.l.b16 %v7971
        %v8004 = vunpack.c.l.b16 %v7972
        %v8005 = vunpack.c.l.b16 %v7973
        %v8006 = vunpack.c.l.b16 %v7974
        %v8007 = vunpack.c.l.b16 %v7975
        %v8008 = vunpack.c.l.b16 %v7976
        %v8009 = vunpack.c.l.b16 %v7977
        %v8010 = vunpack.c.l.b16 %v7978
        %v8011 = vunpack.c.l.b16 %v7979
        %v8012 = vunpack.c.l.b16 %v7980
        %v8013 = vunpack.c.l.b16 %v7981
        %v8014 = vunpack.c.l.b16 %v7982
        %v8015 = vunpack.c.l.b16 %v7983
        %v8016 = vpack.c.b16 %v8001, %v8000
        %v8017 = vpack.c.b16 %v8003, %v8002
        %v8018 = vpack.c.b16 %v8005, %v8004
        %v8019 = vpack.c.b16 %v8007, %v8006
        %v8020 = vpack.c.b16 %v8009, %v8008
        %v8021 = vpack.c.b16 %v8011, %v8010
        %v8022 = vpack.c.b16 %v8013, %v8012
        %v8023 = vpack.c.b16 %v8015, %v8014
        %8032 = vmatprep.subr.bf16.mxu0 0
        %8033 = vmatpush1.bf16.msra.mxu0 %v8016
        %8034 = vmatprep.subr.bf16.mxu0 0
        %8035 = vmatpush1.bf16.msra.mxu0 %v8017
        %8036 = vmatprep.subr.bf16.mxu0 0
        %8037 = vmatpush1.bf16.msra.mxu0 %v8018
        %8038 = vmatprep.subr.bf16.mxu0 0
        %8039 = vmatpush1.bf16.msra.mxu0 %v8019
        %8040 = vmatprep.subr.bf16.mxu0 0
        %8041 = vmatpush1.bf16.msra.mxu0 %v8020
        %8042 = vmatprep.subr.bf16.mxu0 0
        %8043 = vmatpush1.bf16.msra.mxu0 %v8021
        %8044 = vmatprep.subr.bf16.mxu0 0
        %8045 = vmatpush1.bf16.msra.mxu0 %v8022
        %8046 = vmatprep.subr.bf16.mxu0 0
        %8047 = vmatpush1.bf16.msra.mxu0 %v8023
        %8048 = vmatprep.subr.bf16.mxu0 0
        %8049 = vmatpush1.bf16.msra.mxu0 0
        %8050 = vmatprep.subr.bf16.mxu0 0
        %8051 = vmatpush1.bf16.msra.mxu0 0
        %8052 = vmatprep.subr.bf16.mxu0 0
        %8053 = vmatpush1.bf16.msra.mxu0 0
        %8054 = vmatprep.subr.bf16.mxu0 0
        %8055 = vmatpush1.bf16.msra.mxu0 0
        %8056 = vmatprep.subr.bf16.mxu0 0
        %8057 = vmatpush1.bf16.msra.mxu0 0
        %8058 = vmatprep.subr.bf16.mxu0 0
        %8059 = vmatpush1.bf16.msra.mxu0 0
        %8060 = vmatprep.subr.bf16.mxu0 0
        %8061 = vmatpush1.bf16.msra.mxu0 0
        %8062 = vmatprep.subr.bf16.mxu0 0
        %8063 = vmatpush1.bf16.msra.mxu0 0
        %8064 = vmatprep.mubr.bf16.mxu0 0
        %8065 = vmatmul.mubr.bf16.gmra.mrb[0].mxu0 %v7959
        %v8066 = vpop.f32.mrb[0].mxu0
        %v8067 = vadd.f32 0.0, %v8066
        %v8068 = vpop.f32.mrb[0].mxu0
        %v8069 = vpop.f32.mrb[0].mxu0
        %v8070 = vadd.f32 0.0, %v8069
        %v8071 = vpop.f32.mrb[0].mxu0
        %8072 = vmatprep.mubr.bf16.mxu0 0
        %8073 = vmatmul.mubr.bf16.gmra.mrb[0].mxu0 %v7960
        %v8074 = vpop.f32.mrb[0].mxu0
        %v8075 = vadd.f32 0.0, %v8074
        %v8076 = vpop.f32.mrb[0].mxu0
        %v8077 = vpop.f32.mrb[0].mxu0
        %v8078 = vadd.f32 0.0, %v8077
        %v8079 = vpop.f32.mrb[0].mxu0
        %8080 = vmatprep.mubr.bf16.mxu0 0
        %8081 = vmatmul.mubr.bf16.gmra.mrb[0].mxu0 %v7961
        %v8082 = vpop.f32.mrb[0].mxu0
        %v8083 = vadd.f32 0.0, %v8082
        %v8084 = vpop.f32.mrb[0].mxu0
        %v8085 = vpop.f32.mrb[0].mxu0
        %v8086 = vadd.f32 0.0, %v8085
        %v8087 = vpop.f32.mrb[0].mxu0
        %8088 = vmatprep.mubr.bf16.mxu0 0
        %8089 = vmatmul.mubr.bf16.gmra.mrb[0].mxu0 %v7962
        %v8090 = vpop.f32.mrb[0].mxu0
        %v8091 = vadd.f32 0.0, %v8090
        %v8092 = vpop.f32.mrb[0].mxu0
        %v8093 = vpop.f32.mrb[0].mxu0
        %v8094 = vadd.f32 0.0, %v8093
        %v8095 = vpop.f32.mrb[0].mxu0
        %8096 = vmatprep.mubr.bf16.mxu0 0
        %8097 = vmatmul.mubr.bf16.gmra.mrb[0].mxu0 %v7963
        %v8098 = vpop.f32.mrb[0].mxu0
        %v8099 = vadd.f32 0.0, %v8098
        %v8100 = vpop.f32.mrb[0].mxu0
        %v8101 = vpop.f32.mrb[0].mxu0
        %v8102 = vadd.f32 0.0, %v8101
        %v8103 = vpop.f32.mrb[0].mxu0
        %8104 = vmatprep.mubr.bf16.mxu0 0
        %8105 = vmatmul.mubr.bf16.gmra.mrb[0].mxu0 %v7964
        %v8106 = vpop.f32.mrb[0].mxu0
        %v8107 = vadd.f32 0.0, %v8106
        %v8108 = vpop.f32.mrb[0].mxu0
        %v8109 = vpop.f32.mrb[0].mxu0
        %v8110 = vadd.f32 0.0, %v8109
        %v8111 = vpop.f32.mrb[0].mxu0
        %8112 = vmatprep.mubr.bf16.mxu0 0
        %8113 = vmatmul.mubr.bf16.gmra.mrb[0].mxu0 %v7965
        %v8114 = vpop.f32.mrb[0].mxu0
        %v8115 = vadd.f32 0.0, %v8114
        %v8116 = vpop.f32.mrb[0].mxu0
        %v8117 = vpop.f32.mrb[0].mxu0
        %v8118 = vadd.f32 0.0, %v8117
        %v8119 = vpop.f32.mrb[0].mxu0
        %8120 = vmatprep.mubr.bf16.mxu0 0
        %8121 = vmatmul.mubr.bf16.gmra.mrb[0].mxu0 %v7966
        %v8122 = vpop.f32.mrb[0].mxu0
        %v8123 = vadd.f32 0.0, %v8122
        %v8124 = vpop.f32.mrb[0].mxu0
        %v8125 = vpop.f32.mrb[0].mxu0
        %v8126 = vadd.f32 0.0, %v8125
        %v8127 = vpop.f32.mrb[0].mxu0
        %8128 = vdwg.mxu0
        %v8129 = vadd.f32 %v7927, %v8067
        %v8130 = vadd.f32 %v7928, %v8070
        %v8131 = vadd.f32 %v7929, %v8075
        %v8132 = vadd.f32 %v7930, %v8078
        %v8133 = vadd.f32 %v7931, %v8083
        %v8134 = vadd.f32 %v7932, %v8086
        %v8135 = vadd.f32 %v7933, %v8091
        %v8136 = vadd.f32 %v7934, %v8094
        %v8137 = vadd.f32 %v7935, %v8099
        %v8138 = vadd.f32 %v7936, %v8102
        %v8139 = vadd.f32 %v7937, %v8107
        %v8140 = vadd.f32 %v7938, %v8110
        %v8141 = vadd.f32 %v7939, %v8115
        %v8142 = vadd.f32 %v7940, %v8118
        %v8143 = vadd.f32 %v7941, %v8123
        %v8144 = vadd.f32 %v7942, %v8126
        %s8145 = scalar_lea.vmem [#allocation6], 3
        %v8146 = vld [vmem:[%s8145] sm:$0x1]
        %v8148 = vlaneseq
        %v8149 = vshrl.u32 %v8148, 7
        %v8150 = vsub.s32 0, %v8149
        %v8151 = vrot.slane %v8146, %v8150
        %v8153 = vadd.f32 %v8129, %v8151
        %v8154 = vadd.f32 %v8130, %v8151
        %v8155 = vadd.f32 %v8131, %v8151
        %v8156 = vadd.f32 %v8132, %v8151
        %v8157 = vadd.f32 %v8133, %v8151
        %v8158 = vadd.f32 %v8134, %v8151
        %v8159 = vadd.f32 %v8135, %v8151
        %v8160 = vadd.f32 %v8136, %v8151
        %v8161 = vadd.f32 %v8137, %v8151
        %v8162 = vadd.f32 %v8138, %v8151
        %v8163 = vadd.f32 %v8139, %v8151
        %v8164 = vadd.f32 %v8140, %v8151
        %v8165 = vadd.f32 %v8141, %v8151
        %v8166 = vadd.f32 %v8142, %v8151
        %v8167 = vadd.f32 %v8143, %v8151
        %v8168 = vadd.f32 %v8144, %v8151
        %v8169 = vmin.f32 %v8153, 0.0
        %v8170 = vmin.f32 %v8154, 0.0
        %v8171 = vmin.f32 %v8155, 0.0
        %v8172 = vmin.f32 %v8156, 0.0
        %v8173 = vmin.f32 %v8157, 0.0
        %v8174 = vmin.f32 %v8158, 0.0
        %v8175 = vmin.f32 %v8159, 0.0
        %v8176 = vmin.f32 %v8160, 0.0
        %v8177 = vmin.f32 %v8161, 0.0
        %v8178 = vmin.f32 %v8162, 0.0
        %v8179 = vmin.f32 %v8163, 0.0
        %v8180 = vmin.f32 %v8164, 0.0
        %v8181 = vmin.f32 %v8165, 0.0
        %v8182 = vmin.f32 %v8166, 0.0
        %v8183 = vmin.f32 %v8167, 0.0
        %v8184 = vmin.f32 %v8168, 0.0
        %v8185 = vmul.f32 %v8169, 1.442695
        %v8186 = vpow.pop %v8185
        %v8187 = vmul.f32 %v8170, 1.442695
        %v8188 = vpow.pop %v8187
        %v8189 = vmul.f32 %v8171, 1.442695
        %v8190 = vpow.pop %v8189
        %v8191 = vmul.f32 %v8172, 1.442695
        %v8192 = vpow.pop %v8191
        %v8193 = vmul.f32 %v8173, 1.442695
        %v8194 = vpow.pop %v8193
        %v8195 = vmul.f32 %v8174, 1.442695
        %v8196 = vpow.pop %v8195
        %v8197 = vmul.f32 %v8175, 1.442695
        %v8198 = vpow.pop %v8197
        %v8199 = vmul.f32 %v8176, 1.442695
        %v8200 = vpow.pop %v8199
        %v8201 = vmul.f32 %v8177, 1.442695
        %v8202 = vpow.pop %v8201
        %v8203 = vmul.f32 %v8178, 1.442695
        %v8204 = vpow.pop %v8203
        %v8205 = vmul.f32 %v8179, 1.442695
        %v8206 = vpow.pop %v8205
        %v8207 = vmul.f32 %v8180, 1.442695
        %v8208 = vpow.pop %v8207
        %v8209 = vmul.f32 %v8181, 1.442695
        %v8210 = vpow.pop %v8209
        %v8211 = vmul.f32 %v8182, 1.442695
        %v8212 = vpow.pop %v8211
        %v8213 = vmul.f32 %v8183, 1.442695
        %v8214 = vpow.pop %v8213
        %v8215 = vmul.f32 %v8184, 1.442695
        %v8216 = vpow.pop %v8215
        %v8217 = vsub.f32 %v8186, 1.0
        %v8218 = vsub.f32 %v8188, 1.0
        %v8219 = vsub.f32 %v8190, 1.0
        %v8220 = vsub.f32 %v8192, 1.0
        %v8221 = vsub.f32 %v8194, 1.0
        %v8222 = vsub.f32 %v8196, 1.0
        %v8223 = vsub.f32 %v8198, 1.0
        %v8224 = vsub.f32 %v8200, 1.0
        %v8225 = vsub.f32 %v8202, 1.0
        %v8226 = vsub.f32 %v8204, 1.0
        %v8227 = vsub.f32 %v8206, 1.0
        %v8228 = vsub.f32 %v8208, 1.0
        %v8229 = vsub.f32 %v8210, 1.0
        %v8230 = vsub.f32 %v8212, 1.0
        %v8231 = vsub.f32 %v8214, 1.0
        %v8232 = vsub.f32 %v8216, 1.0
        %vm8233 = vcmp.gt.f32.partialorder %v8153, 0.0
        %vm8234 = vcmp.gt.f32.partialorder %v8154, 0.0
        %vm8235 = vcmp.gt.f32.partialorder %v8155, 0.0
        %vm8236 = vcmp.gt.f32.partialorder %v8156, 0.0
        %vm8237 = vcmp.gt.f32.partialorder %v8157, 0.0
        %vm8238 = vcmp.gt.f32.partialorder %v8158, 0.0
        %vm8239 = vcmp.gt.f32.partialorder %v8159, 0.0
        %vm8240 = vcmp.gt.f32.partialorder %v8160, 0.0
        %vm8241 = vcmp.gt.f32.partialorder %v8161, 0.0
        %vm8242 = vcmp.gt.f32.partialorder %v8162, 0.0
        %vm8243 = vcmp.gt.f32.partialorder %v8163, 0.0
        %vm8244 = vcmp.gt.f32.partialorder %v8164, 0.0
        %vm8245 = vcmp.gt.f32.partialorder %v8165, 0.0
        %vm8246 = vcmp.gt.f32.partialorder %v8166, 0.0
        %vm8247 = vcmp.gt.f32.partialorder %v8167, 0.0
        %vm8248 = vcmp.gt.f32.partialorder %v8168, 0.0
        %v8249 = vsel %vm8233, %v8153, %v8217
        %v8250 = vsel %vm8234, %v8154, %v8218
        %v8251 = vsel %vm8235, %v8155, %v8219
        %v8252 = vsel %vm8236, %v8156, %v8220
        %v8253 = vsel %vm8237, %v8157, %v8221
        %v8254 = vsel %vm8238, %v8158, %v8222
        %v8255 = vsel %vm8239, %v8159, %v8223
        %v8256 = vsel %vm8240, %v8160, %v8224
        %v8257 = vsel %vm8241, %v8161, %v8225
        %v8258 = vsel %vm8242, %v8162, %v8226
        %v8259 = vsel %vm8243, %v8163, %v8227
        %v8260 = vsel %vm8244, %v8164, %v8228
        %v8261 = vsel %vm8245, %v8165, %v8229
        %v8262 = vsel %vm8246, %v8166, %v8230
        %v8263 = vsel %vm8247, %v8167, %v8231
        %v8264 = vsel %vm8248, %v8168, %v8232
        %v8265 = vadd.f32 %v8249, %v8250
        %v8266 = vadd.f32 %v8265, %v8251
        %v8267 = vadd.f32 %v8266, %v8252
        %v8268 = vadd.f32 %v8267, %v8253
        %v8269 = vadd.f32 %v8268, %v8254
        %v8270 = vadd.f32 %v8269, %v8255
        %v8271 = vadd.f32 %v8270, %v8256
        %v8272 = vadd.f32 %v8271, %v8257
        %v8273 = vadd.f32 %v8272, %v8258
        %v8274 = vadd.f32 %v8273, %v8259
        %v8275 = vadd.f32 %v8274, %v8260
        %v8276 = vadd.f32 %v8275, %v8261
        %v8277 = vadd.f32 %v8276, %v8262
        %v8278 = vadd.f32 %v8277, %v8263
        %v8279 = vadd.f32 %v8278, %v8264
        %v8280 = vrot.slane %v8279, 4
        %v8281 = vadd.f32 %v8279, %v8280
        %v8282 = vrot.slane %v8281, 2
        %v8283 = vadd.f32 %v8281, %v8282
        %v8284 = vrot.slane %v8283, 1
        %v8285 = vadd.f32 %v8283, %v8284
        %v8286 = vmul.f32 %v8285, 0.0078125
        %v8287 = vsub.f32 %v8249, %v8286
        %v8288 = vsub.f32 %v8250, %v8286
        %v8289 = vsub.f32 %v8251, %v8286
        %v8290 = vsub.f32 %v8252, %v8286
        %v8291 = vsub.f32 %v8253, %v8286
        %v8292 = vsub.f32 %v8254, %v8286
        %v8293 = vsub.f32 %v8255, %v8286
        %v8294 = vsub.f32 %v8256, %v8286
        %v8295 = vsub.f32 %v8257, %v8286
        %v8296 = vsub.f32 %v8258, %v8286
        %v8297 = vsub.f32 %v8259, %v8286
        %v8298 = vsub.f32 %v8260, %v8286
        %v8299 = vsub.f32 %v8261, %v8286
        %v8300 = vsub.f32 %v8262, %v8286
        %v8301 = vsub.f32 %v8263, %v8286
        %v8302 = vsub.f32 %v8264, %v8286
        %v8303 = vmul.f32 %v8287, %v8287
        %v8304 = vmul.f32 %v8288, %v8288
        %v8305 = vmul.f32 %v8289, %v8289
        %v8306 = vmul.f32 %v8290, %v8290
        %v8307 = vmul.f32 %v8291, %v8291
        %v8308 = vmul.f32 %v8292, %v8292
        %v8309 = vmul.f32 %v8293, %v8293
        %v8310 = vmul.f32 %v8294, %v8294
        %v8311 = vmul.f32 %v8295, %v8295
        %v8312 = vmul.f32 %v8296, %v8296
        %v8313 = vmul.f32 %v8297, %v8297
        %v8314 = vmul.f32 %v8298, %v8298
        %v8315 = vmul.f32 %v8299, %v8299
        %v8316 = vmul.f32 %v8300, %v8300
        %v8317 = vmul.f32 %v8301, %v8301
        %v8318 = vmul.f32 %v8302, %v8302
        %v8319 = vadd.f32 %v8303, %v8304
        %v8320 = vadd.f32 %v8319, %v8305
        %v8321 = vadd.f32 %v8320, %v8306
        %v8322 = vadd.f32 %v8321, %v8307
        %v8323 = vadd.f32 %v8322, %v8308
        %v8324 = vadd.f32 %v8323, %v8309
        %v8325 = vadd.f32 %v8324, %v8310
        %v8326 = vadd.f32 %v8325, %v8311
        %v8327 = vadd.f32 %v8326, %v8312
        %v8328 = vadd.f32 %v8327, %v8313
        %v8329 = vadd.f32 %v8328, %v8314
        %v8330 = vadd.f32 %v8329, %v8315
        %v8331 = vadd.f32 %v8330, %v8316
        %v8332 = vadd.f32 %v8331, %v8317
        %v8333 = vadd.f32 %v8332, %v8318
        %v8334 = vrot.slane %v8333, 4
        %v8335 = vadd.f32 %v8333, %v8334
        %v8336 = vrot.slane %v8335, 2
        %v8337 = vadd.f32 %v8335, %v8336
        %v8338 = vrot.slane %v8337, 1
        %v8339 = vadd.f32 %v8337, %v8338
        %v8340 = vmul.f32 %v8339, 0.0078125
        %v8341 = vadd.f32 %v8340, 1e-05
        %v8342 = vrsqrt.pop %v8341
        %v8343 = vmul.f32 %v8287, %v8342
        %v8344 = vmul.f32 %v8288, %v8342
        %v8345 = vmul.f32 %v8289, %v8342
        %v8346 = vmul.f32 %v8290, %v8342
        %v8347 = vmul.f32 %v8291, %v8342
        %v8348 = vmul.f32 %v8292, %v8342
        %v8349 = vmul.f32 %v8293, %v8342
        %v8350 = vmul.f32 %v8294, %v8342
        %v8351 = vmul.f32 %v8295, %v8342
        %v8352 = vmul.f32 %v8296, %v8342
        %v8353 = vmul.f32 %v8297, %v8342
        %v8354 = vmul.f32 %v8298, %v8342
        %v8355 = vmul.f32 %v8299, %v8342
        %v8356 = vmul.f32 %v8300, %v8342
        %v8357 = vmul.f32 %v8301, %v8342
        %v8358 = vmul.f32 %v8302, %v8342
        %v8359 = vadd.f32 %v7135, %v8343
        %v8360 = vadd.f32 %v7136, %v8344
        %v8361 = vadd.f32 %v7137, %v8345
        %v8362 = vadd.f32 %v7138, %v8346
        %v8363 = vadd.f32 %v7139, %v8347
        %v8364 = vadd.f32 %v7140, %v8348
        %v8365 = vadd.f32 %v7141, %v8349
        %v8366 = vadd.f32 %v7142, %v8350
        %v8367 = vadd.f32 %v7143, %v8351
        %v8368 = vadd.f32 %v7144, %v8352
        %v8369 = vadd.f32 %v7145, %v8353
        %v8370 = vadd.f32 %v7146, %v8354
        %v8371 = vadd.f32 %v7147, %v8355
        %v8372 = vadd.f32 %v7148, %v8356
        %v8373 = vadd.f32 %v7149, %v8357
        %v8374 = vadd.f32 %v7150, %v8358
        %8375 = vst [vmem:[%s246 + $0x1] sm:$0xff] %v8359
        %8376 = vst [vmem:[%s246 + $0x9] sm:$0xff] %v8360
        %8377 = vst [vmem:[%s246 + $0x19] sm:$0xff] %v8361
        %8378 = vst [vmem:[%s246 + $0x21] sm:$0xff] %v8362
        %8379 = vst [vmem:[%s246 + $0x31] sm:$0xff] %v8363
        %8380 = vst [vmem:[%s246 + $0x39] sm:$0xff] %v8364
        %8381 = vst [vmem:[%s246 + $0x49] sm:$0xff] %v8365
        %8382 = vst [vmem:[%s246 + $0x51] sm:$0xff] %v8366
        %8383 = vst [vmem:[%s246 + $0x61] sm:$0xff] %v8367
        %8384 = vst [vmem:[%s246 + $0x69] sm:$0xff] %v8368
        %8385 = vst [vmem:[%s246 + $0x79] sm:$0xff] %v8369
        %8386 = vst [vmem:[%s246 + $0x81] sm:$0xff] %v8370
        %8387 = vst [vmem:[%s246 + $0x91] sm:$0xff] %v8371
        %8388 = vst [vmem:[%s246 + $0x99] sm:$0xff] %v8372
        %8389 = vst [vmem:[%s246 + $0xa9] sm:$0xff] %v8373
        %8390 = vst [vmem:[%s246 + $0xb1] sm:$0xff] %v8374
        %v8391 = vld [vmem:[#allocation2] sm:$0xff]
        %v8392 = vld [vmem:[#allocation2 + $0x8] sm:$0xff]
        %v8393 = vld [vmem:[#allocation2 + $0x18] sm:$0xff]
        %v8394 = vld [vmem:[#allocation2 + $0x20] sm:$0xff]
        %v8395 = vld [vmem:[#allocation2 + $0x30] sm:$0xff]
        %v8396 = vld [vmem:[#allocation2 + $0x38] sm:$0xff]
        %v8397 = vld [vmem:[#allocation2 + $0x48] sm:$0xff]
        %v8398 = vld [vmem:[#allocation2 + $0x50] sm:$0xff]
        %v8399 = vld [vmem:[#allocation2 + $0x60] sm:$0xff]
        %v8400 = vld [vmem:[#allocation2 + $0x68] sm:$0xff]
        %v8401 = vld [vmem:[#allocation2 + $0x78] sm:$0xff]
        %v8402 = vld [vmem:[#allocation2 + $0x80] sm:$0xff]
        %v8403 = vld [vmem:[#allocation2 + $0x90] sm:$0xff]
        %v8404 = vld [vmem:[#allocation2 + $0x98] sm:$0xff]
        %v8405 = vld [vmem:[#allocation2 + $0xa8] sm:$0xff]
        %v8406 = vld [vmem:[#allocation2 + $0xb0] sm:$0xff]
        %v8407 = vpack.c.bf16 %v8392, %v8391
        %v8408 = vpack.c.bf16 %v8394, %v8393
        %v8409 = vpack.c.bf16 %v8396, %v8395
        %v8410 = vpack.c.bf16 %v8398, %v8397
        %v8411 = vpack.c.bf16 %v8400, %v8399
        %v8412 = vpack.c.bf16 %v8402, %v8401
        %v8413 = vpack.c.bf16 %v8404, %v8403
        %v8414 = vpack.c.bf16 %v8406, %v8405
        %s8415 = scalar_lea.vmem [#allocation3], 2304
        %v8416 = vld [vmem:[%s8415] sm:$0xf]
        %v8417 = vld [vmem:[%s8415 + $0x4] sm:$0xf]
        %v8418 = vld [vmem:[%s8415 + $0x8] sm:$0xf]
        %v8419 = vld [vmem:[%s8415 + $0xc] sm:$0xf]
        %v8420 = vld [vmem:[%s8415 + $0x10] sm:$0xf]
        %v8421 = vld [vmem:[%s8415 + $0x14] sm:$0xf]
        %v8422 = vld [vmem:[%s8415 + $0x18] sm:$0xf]
        %v8423 = vld [vmem:[%s8415 + $0x1c] sm:$0xf]
        %v8424 = vld [vmem:[%s8415 + $0x20] sm:$0xf]
        %v8425 = vld [vmem:[%s8415 + $0x24] sm:$0xf]
        %v8426 = vld [vmem:[%s8415 + $0x28] sm:$0xf]
        %v8427 = vld [vmem:[%s8415 + $0x2c] sm:$0xf]
        %v8428 = vld [vmem:[%s8415 + $0x30] sm:$0xf]
        %v8429 = vld [vmem:[%s8415 + $0x34] sm:$0xf]
        %v8430 = vld [vmem:[%s8415 + $0x38] sm:$0xf]
        %v8431 = vld [vmem:[%s8415 + $0x3c] sm:$0xf]
        %v8432 = vld [vmem:[#allocation2 + $0x1] sm:$0xff]
        %v8433 = vld [vmem:[#allocation2 + $0x9] sm:$0xff]
        %v8434 = vld [vmem:[#allocation2 + $0x19] sm:$0xff]
        %v8435 = vld [vmem:[#allocation2 + $0x21] sm:$0xff]
        %v8436 = vld [vmem:[#allocation2 + $0x31] sm:$0xff]
        %v8437 = vld [vmem:[#allocation2 + $0x39] sm:$0xff]
        %v8438 = vld [vmem:[#allocation2 + $0x49] sm:$0xff]
        %v8439 = vld [vmem:[#allocation2 + $0x51] sm:$0xff]
        %v8440 = vld [vmem:[#allocation2 + $0x61] sm:$0xff]
        %v8441 = vld [vmem:[#allocation2 + $0x69] sm:$0xff]
        %v8442 = vld [vmem:[#allocation2 + $0x79] sm:$0xff]
        %v8443 = vld [vmem:[#allocation2 + $0x81] sm:$0xff]
        %v8444 = vld [vmem:[#allocation2 + $0x91] sm:$0xff]
        %v8445 = vld [vmem:[#allocation2 + $0x99] sm:$0xff]
        %v8446 = vld [vmem:[#allocation2 + $0xa9] sm:$0xff]
        %v8447 = vld [vmem:[#allocation2 + $0xb1] sm:$0xff]
        %v8448 = vpack.c.bf16 %v8433, %v8432
        %v8449 = vpack.c.bf16 %v8435, %v8434
        %v8450 = vpack.c.bf16 %v8437, %v8436
        %v8451 = vpack.c.bf16 %v8439, %v8438
        %v8452 = vpack.c.bf16 %v8441, %v8440
        %v8453 = vpack.c.bf16 %v8443, %v8442
        %v8454 = vpack.c.bf16 %v8445, %v8444
        %v8455 = vpack.c.bf16 %v8447, %v8446
        %s8456 = scalar_lea.vmem [#allocation3], 2368
        %v8457 = vld [vmem:[%s8456] sm:$0xf]
        %v8458 = vld [vmem:[%s8456 + $0x4] sm:$0xf]
        %v8459 = vld [vmem:[%s8456 + $0x8] sm:$0xf]
        %v8460 = vld [vmem:[%s8456 + $0xc] sm:$0xf]
        %v8461 = vld [vmem:[%s8456 + $0x10] sm:$0xf]
        %v8462 = vld [vmem:[%s8456 + $0x14] sm:$0xf]
        %v8463 = vld [vmem:[%s8456 + $0x18] sm:$0xf]
        %v8464 = vld [vmem:[%s8456 + $0x1c] sm:$0xf]
        %v8465 = vld [vmem:[%s8456 + $0x20] sm:$0xf]
        %v8466 = vld [vmem:[%s8456 + $0x24] sm:$0xf]
        %v8467 = vld [vmem:[%s8456 + $0x28] sm:$0xf]
        %v8468 = vld [vmem:[%s8456 + $0x2c] sm:$0xf]
        %v8469 = vld [vmem:[%s8456 + $0x30] sm:$0xf]
        %v8470 = vld [vmem:[%s8456 + $0x34] sm:$0xf]
        %v8471 = vld [vmem:[%s8456 + $0x38] sm:$0xf]
        %v8472 = vld [vmem:[%s8456 + $0x3c] sm:$0xf]
        %v8489 = vunpack.c.l.b16 %v8457
        %v8490 = vunpack.c.l.b16 %v8458
        %v8491 = vunpack.c.l.b16 %v8459
        %v8492 = vunpack.c.l.b16 %v8460
        %v8493 = vunpack.c.l.b16 %v8461
        %v8494 = vunpack.c.l.b16 %v8462
        %v8495 = vunpack.c.l.b16 %v8463
        %v8496 = vunpack.c.l.b16 %v8464
        %v8497 = vunpack.c.l.b16 %v8465
        %v8498 = vunpack.c.l.b16 %v8466
        %v8499 = vunpack.c.l.b16 %v8467
        %v8500 = vunpack.c.l.b16 %v8468
        %v8501 = vunpack.c.l.b16 %v8469
        %v8502 = vunpack.c.l.b16 %v8470
        %v8503 = vunpack.c.l.b16 %v8471
        %v8504 = vunpack.c.l.b16 %v8472
        %v8505 = vpack.c.b16 %v8490, %v8489
        %v8506 = vpack.c.b16 %v8492, %v8491
        %v8507 = vpack.c.b16 %v8494, %v8493
        %v8508 = vpack.c.b16 %v8496, %v8495
        %v8509 = vpack.c.b16 %v8498, %v8497
        %v8510 = vpack.c.b16 %v8500, %v8499
        %v8511 = vpack.c.b16 %v8502, %v8501
        %v8512 = vpack.c.b16 %v8504, %v8503
        %8521 = vmatprep.subr.bf16.mxu0 0
        %8522 = vmatpush1.bf16.msra.mxu0 %v8505
        %8523 = vmatprep.subr.bf16.mxu0 0
        %8524 = vmatpush1.bf16.msra.mxu0 %v8506
        %8525 = vmatprep.subr.bf16.mxu0 0
        %8526 = vmatpush1.bf16.msra.mxu0 %v8507
        %8527 = vmatprep.subr.bf16.mxu0 0
        %8528 = vmatpush1.bf16.msra.mxu0 %v8508
        %8529 = vmatprep.subr.bf16.mxu0 0
        %8530 = vmatpush1.bf16.msra.mxu0 %v8509
        %8531 = vmatprep.subr.bf16.mxu0 0
        %8532 = vmatpush1.bf16.msra.mxu0 %v8510
        %8533 = vmatprep.subr.bf16.mxu0 0
        %8534 = vmatpush1.bf16.msra.mxu0 %v8511
        %8535 = vmatprep.subr.bf16.mxu0 0
        %8536 = vmatpush1.bf16.msra.mxu0 %v8512
        %8537 = vmatprep.subr.bf16.mxu0 0
        %8538 = vmatpush1.bf16.msra.mxu0 0
        %8539 = vmatprep.subr.bf16.mxu0 0
        %8540 = vmatpush1.bf16.msra.mxu0 0
        %8541 = vmatprep.subr.bf16.mxu0 0
        %8542 = vmatpush1.bf16.msra.mxu0 0
        %8543 = vmatprep.subr.bf16.mxu0 0
        %8544 = vmatpush1.bf16.msra.mxu0 0
        %8545 = vmatprep.subr.bf16.mxu0 0
        %8546 = vmatpush1.bf16.msra.mxu0 0
        %8547 = vmatprep.subr.bf16.mxu0 0
        %8548 = vmatpush1.bf16.msra.mxu0 0
        %8549 = vmatprep.subr.bf16.mxu0 0
        %8550 = vmatpush1.bf16.msra.mxu0 0
        %8551 = vmatprep.subr.bf16.mxu0 0
        %8552 = vmatpush1.bf16.msra.mxu0 0
        %8553 = vmatprep.mubr.bf16.mxu0 0
        %8554 = vmatmul.mubr.bf16.gmra.mrb[0].mxu0 %v8448
        %v8555 = vpop.f32.mrb[0].mxu0
        %v8556 = vadd.f32 0.0, %v8555
        %v8557 = vpop.f32.mrb[0].mxu0
        %v8558 = vpop.f32.mrb[0].mxu0
        %v8559 = vadd.f32 0.0, %v8558
        %v8560 = vpop.f32.mrb[0].mxu0
        %8561 = vmatprep.mubr.bf16.mxu0 0
        %8562 = vmatmul.mubr.bf16.gmra.mrb[0].mxu0 %v8449
        %v8563 = vpop.f32.mrb[0].mxu0
        %v8564 = vadd.f32 0.0, %v8563
        %v8565 = vpop.f32.mrb[0].mxu0
        %v8566 = vpop.f32.mrb[0].mxu0
        %v8567 = vadd.f32 0.0, %v8566
        %v8568 = vpop.f32.mrb[0].mxu0
        %8569 = vmatprep.mubr.bf16.mxu0 0
        %8570 = vmatmul.mubr.bf16.gmra.mrb[0].mxu0 %v8450
        %v8571 = vpop.f32.mrb[0].mxu0
        %v8572 = vadd.f32 0.0, %v8571
        %v8573 = vpop.f32.mrb[0].mxu0
        %v8574 = vpop.f32.mrb[0].mxu0
        %v8575 = vadd.f32 0.0, %v8574
        %v8576 = vpop.f32.mrb[0].mxu0
        %8577 = vmatprep.mubr.bf16.mxu0 0
        %8578 = vmatmul.mubr.bf16.gmra.mrb[0].mxu0 %v8451
        %v8579 = vpop.f32.mrb[0].mxu0
        %v8580 = vadd.f32 0.0, %v8579
        %v8581 = vpop.f32.mrb[0].mxu0
        %v8582 = vpop.f32.mrb[0].mxu0
        %v8583 = vadd.f32 0.0, %v8582
        %v8584 = vpop.f32.mrb[0].mxu0
        %8585 = vmatprep.mubr.bf16.mxu0 0
        %8586 = vmatmul.mubr.bf16.gmra.mrb[0].mxu0 %v8452
        %v8587 = vpop.f32.mrb[0].mxu0
        %v8588 = vadd.f32 0.0, %v8587
        %v8589 = vpop.f32.mrb[0].mxu0
        %v8590 = vpop.f32.mrb[0].mxu0
        %v8591 = vadd.f32 0.0, %v8590
        %v8592 = vpop.f32.mrb[0].mxu0
        %8593 = vmatprep.mubr.bf16.mxu0 0
        %8594 = vmatmul.mubr.bf16.gmra.mrb[0].mxu0 %v8453
        %v8595 = vpop.f32.mrb[0].mxu0
        %v8596 = vadd.f32 0.0, %v8595
        %v8597 = vpop.f32.mrb[0].mxu0
        %v8598 = vpop.f32.mrb[0].mxu0
        %v8599 = vadd.f32 0.0, %v8598
        %v8600 = vpop.f32.mrb[0].mxu0
        %8601 = vmatprep.mubr.bf16.mxu0 0
        %8602 = vmatmul.mubr.bf16.gmra.mrb[0].mxu0 %v8454
        %v8603 = vpop.f32.mrb[0].mxu0
        %v8604 = vadd.f32 0.0, %v8603
        %v8605 = vpop.f32.mrb[0].mxu0
        %v8606 = vpop.f32.mrb[0].mxu0
        %v8607 = vadd.f32 0.0, %v8606
        %v8608 = vpop.f32.mrb[0].mxu0
        %8609 = vmatprep.mubr.bf16.mxu0 0
        %8610 = vmatmul.mubr.bf16.gmra.mrb[0].mxu0 %v8455
        %v8611 = vpop.f32.mrb[0].mxu0
        %v8612 = vadd.f32 0.0, %v8611
        %v8613 = vpop.f32.mrb[0].mxu0
        %v8614 = vpop.f32.mrb[0].mxu0
        %v8615 = vadd.f32 0.0, %v8614
        %v8616 = vpop.f32.mrb[0].mxu0
        %8617 = vdwg.mxu0
        %v8634 = vunpack.c.l.b16 %v8416
        %v8635 = vunpack.c.l.b16 %v8417
        %v8636 = vunpack.c.l.b16 %v8418
        %v8637 = vunpack.c.l.b16 %v8419
        %v8638 = vunpack.c.l.b16 %v8420
        %v8639 = vunpack.c.l.b16 %v8421
        %v8640 = vunpack.c.l.b16 %v8422
        %v8641 = vunpack.c.l.b16 %v8423
        %v8642 = vunpack.c.l.b16 %v8424
        %v8643 = vunpack.c.l.b16 %v8425
        %v8644 = vunpack.c.l.b16 %v8426
        %v8645 = vunpack.c.l.b16 %v8427
        %v8646 = vunpack.c.l.b16 %v8428
        %v8647 = vunpack.c.l.b16 %v8429
        %v8648 = vunpack.c.l.b16 %v8430
        %v8649 = vunpack.c.l.b16 %v8431
        %v8650 = vpack.c.b16 %v8635, %v8634
        %v8651 = vpack.c.b16 %v8637, %v8636
        %v8652 = vpack.c.b16 %v8639, %v8638
        %v8653 = vpack.c.b16 %v8641, %v8640
        %v8654 = vpack.c.b16 %v8643, %v8642
        %v8655 = vpack.c.b16 %v8645, %v8644
        %v8656 = vpack.c.b16 %v8647, %v8646
        %v8657 = vpack.c.b16 %v8649, %v8648
        %8666 = vmatprep.subr.bf16.mxu0 0
        %8667 = vmatpush1.bf16.msra.mxu0 %v8650
        %8668 = vmatprep.subr.bf16.mxu0 0
        %8669 = vmatpush1.bf16.msra.mxu0 %v8651
        %8670 = vmatprep.subr.bf16.mxu0 0
        %8671 = vmatpush1.bf16.msra.mxu0 %v8652
        %8672 = vmatprep.subr.bf16.mxu0 0
        %8673 = vmatpush1.bf16.msra.mxu0 %v8653
        %8674 = vmatprep.subr.bf16.mxu0 0
        %8675 = vmatpush1.bf16.msra.mxu0 %v8654
        %8676 = vmatprep.subr.bf16.mxu0 0
        %8677 = vmatpush1.bf16.msra.mxu0 %v8655
        %8678 = vmatprep.subr.bf16.mxu0 0
        %8679 = vmatpush1.bf16.msra.mxu0 %v8656
        %8680 = vmatprep.subr.bf16.mxu0 0
        %8681 = vmatpush1.bf16.msra.mxu0 %v8657
        %8682 = vmatprep.subr.bf16.mxu0 0
        %8683 = vmatpush1.bf16.msra.mxu0 0
        %8684 = vmatprep.subr.bf16.mxu0 0
        %8685 = vmatpush1.bf16.msra.mxu0 0
        %8686 = vmatprep.subr.bf16.mxu0 0
        %8687 = vmatpush1.bf16.msra.mxu0 0
        %8688 = vmatprep.subr.bf16.mxu0 0
        %8689 = vmatpush1.bf16.msra.mxu0 0
        %8690 = vmatprep.subr.bf16.mxu0 0
        %8691 = vmatpush1.bf16.msra.mxu0 0
        %8692 = vmatprep.subr.bf16.mxu0 0
        %8693 = vmatpush1.bf16.msra.mxu0 0
        %8694 = vmatprep.subr.bf16.mxu0 0
        %8695 = vmatpush1.bf16.msra.mxu0 0
        %8696 = vmatprep.subr.bf16.mxu0 0
        %8697 = vmatpush1.bf16.msra.mxu0 0
        %8698 = vmatprep.mubr.bf16.mxu0 0
        %8699 = vmatmul.mubr.bf16.gmra.mrb[0].mxu0 %v8407
        %v8700 = vpop.f32.mrb[0].mxu0
        %v8701 = vadd.f32 %v8556, %v8700
        %v8702 = vpop.f32.mrb[0].mxu0
        %v8703 = vpop.f32.mrb[0].mxu0
        %v8704 = vadd.f32 %v8559, %v8703
        %v8705 = vpop.f32.mrb[0].mxu0
        %8706 = vmatprep.mubr.bf16.mxu0 0
        %8707 = vmatmul.mubr.bf16.gmra.mrb[0].mxu0 %v8408
        %v8708 = vpop.f32.mrb[0].mxu0
        %v8709 = vadd.f32 %v8564, %v8708
        %v8710 = vpop.f32.mrb[0].mxu0
        %v8711 = vpop.f32.mrb[0].mxu0
        %v8712 = vadd.f32 %v8567, %v8711
        %v8713 = vpop.f32.mrb[0].mxu0
        %8714 = vmatprep.mubr.bf16.mxu0 0
        %8715 = vmatmul.mubr.bf16.gmra.mrb[0].mxu0 %v8409
        %v8716 = vpop.f32.mrb[0].mxu0
        %v8717 = vadd.f32 %v8572, %v8716
        %v8718 = vpop.f32.mrb[0].mxu0
        %v8719 = vpop.f32.mrb[0].mxu0
        %v8720 = vadd.f32 %v8575, %v8719
        %v8721 = vpop.f32.mrb[0].mxu0
        %8722 = vmatprep.mubr.bf16.mxu0 0
        %8723 = vmatmul.mubr.bf16.gmra.mrb[0].mxu0 %v8410
        %v8724 = vpop.f32.mrb[0].mxu0
        %v8725 = vadd.f32 %v8580, %v8724
        %v8726 = vpop.f32.mrb[0].mxu0
        %v8727 = vpop.f32.mrb[0].mxu0
        %v8728 = vadd.f32 %v8583, %v8727
        %v8729 = vpop.f32.mrb[0].mxu0
        %8730 = vmatprep.mubr.bf16.mxu0 0
        %8731 = vmatmul.mubr.bf16.gmra.mrb[0].mxu0 %v8411
        %v8732 = vpop.f32.mrb[0].mxu0
        %v8733 = vadd.f32 %v8588, %v8732
        %v8734 = vpop.f32.mrb[0].mxu0
        %v8735 = vpop.f32.mrb[0].mxu0
        %v8736 = vadd.f32 %v8591, %v8735
        %v8737 = vpop.f32.mrb[0].mxu0
        %8738 = vmatprep.mubr.bf16.mxu0 0
        %8739 = vmatmul.mubr.bf16.gmra.mrb[0].mxu0 %v8412
        %v8740 = vpop.f32.mrb[0].mxu0
        %v8741 = vadd.f32 %v8596, %v8740
        %v8742 = vpop.f32.mrb[0].mxu0
        %v8743 = vpop.f32.mrb[0].mxu0
        %v8744 = vadd.f32 %v8599, %v8743
        %v8745 = vpop.f32.mrb[0].mxu0
        %8746 = vmatprep.mubr.bf16.mxu0 0
        %8747 = vmatmul.mubr.bf16.gmra.mrb[0].mxu0 %v8413
        %v8748 = vpop.f32.mrb[0].mxu0
        %v8749 = vadd.f32 %v8604, %v8748
        %v8750 = vpop.f32.mrb[0].mxu0
        %v8751 = vpop.f32.mrb[0].mxu0
        %v8752 = vadd.f32 %v8607, %v8751
        %v8753 = vpop.f32.mrb[0].mxu0
        %8754 = vmatprep.mubr.bf16.mxu0 0
        %8755 = vmatmul.mubr.bf16.gmra.mrb[0].mxu0 %v8414
        %v8756 = vpop.f32.mrb[0].mxu0
        %v8757 = vadd.f32 %v8612, %v8756
        %v8758 = vpop.f32.mrb[0].mxu0
        %v8759 = vpop.f32.mrb[0].mxu0
        %v8760 = vadd.f32 %v8615, %v8759
        %v8761 = vpop.f32.mrb[0].mxu0
        %8762 = vdwg.mxu0
        %v8763 = vld [vmem:[#allocation2 + $0x2] sm:$0xff]
        %v8764 = vld [vmem:[#allocation2 + $0xa] sm:$0xff]
        %v8765 = vld [vmem:[#allocation2 + $0x1a] sm:$0xff]
        %v8766 = vld [vmem:[#allocation2 + $0x22] sm:$0xff]
        %v8767 = vld [vmem:[#allocation2 + $0x32] sm:$0xff]
        %v8768 = vld [vmem:[#allocation2 + $0x3a] sm:$0xff]
        %v8769 = vld [vmem:[#allocation2 + $0x4a] sm:$0xff]
        %v8770 = vld [vmem:[#allocation2 + $0x52] sm:$0xff]
        %v8771 = vld [vmem:[#allocation2 + $0x62] sm:$0xff]
        %v8772 = vld [vmem:[#allocation2 + $0x6a] sm:$0xff]
        %v8773 = vld [vmem:[#allocation2 + $0x7a] sm:$0xff]
        %v8774 = vld [vmem:[#allocation2 + $0x82] sm:$0xff]
        %v8775 = vld [vmem:[#allocation2 + $0x92] sm:$0xff]
        %v8776 = vld [vmem:[#allocation2 + $0x9a] sm:$0xff]
        %v8777 = vld [vmem:[#allocation2 + $0xaa] sm:$0xff]
        %v8778 = vld [vmem:[#allocation2 + $0xb2] sm:$0xff]
        %v8779 = vpack.c.bf16 %v8764, %v8763
        %v8780 = vpack.c.bf16 %v8766, %v8765
        %v8781 = vpack.c.bf16 %v8768, %v8767
        %v8782 = vpack.c.bf16 %v8770, %v8769
        %v8783 = vpack.c.bf16 %v8772, %v8771
        %v8784 = vpack.c.bf16 %v8774, %v8773
        %v8785 = vpack.c.bf16 %v8776, %v8775
        %v8786 = vpack.c.bf16 %v8778, %v8777
        %s8787 = scalar_lea.vmem [#allocation3], 2432
        %v8788 = vld [vmem:[%s8787] sm:$0xf]
        %v8789 = vld [vmem:[%s8787 + $0x4] sm:$0xf]
        %v8790 = vld [vmem:[%s8787 + $0x8] sm:$0xf]
        %v8791 = vld [vmem:[%s8787 + $0xc] sm:$0xf]
        %v8792 = vld [vmem:[%s8787 + $0x10] sm:$0xf]
        %v8793 = vld [vmem:[%s8787 + $0x14] sm:$0xf]
        %v8794 = vld [vmem:[%s8787 + $0x18] sm:$0xf]
        %v8795 = vld [vmem:[%s8787 + $0x1c] sm:$0xf]
        %v8796 = vld [vmem:[%s8787 + $0x20] sm:$0xf]
        %v8797 = vld [vmem:[%s8787 + $0x24] sm:$0xf]
        %v8798 = vld [vmem:[%s8787 + $0x28] sm:$0xf]
        %v8799 = vld [vmem:[%s8787 + $0x2c] sm:$0xf]
        %v8800 = vld [vmem:[%s8787 + $0x30] sm:$0xf]
        %v8801 = vld [vmem:[%s8787 + $0x34] sm:$0xf]
        %v8802 = vld [vmem:[%s8787 + $0x38] sm:$0xf]
        %v8803 = vld [vmem:[%s8787 + $0x3c] sm:$0xf]
        %v8820 = vunpack.c.l.b16 %v8788
        %v8821 = vunpack.c.l.b16 %v8789
        %v8822 = vunpack.c.l.b16 %v8790
        %v8823 = vunpack.c.l.b16 %v8791
        %v8824 = vunpack.c.l.b16 %v8792
        %v8825 = vunpack.c.l.b16 %v8793
        %v8826 = vunpack.c.l.b16 %v8794
        %v8827 = vunpack.c.l.b16 %v8795
        %v8828 = vunpack.c.l.b16 %v8796
        %v8829 = vunpack.c.l.b16 %v8797
        %v8830 = vunpack.c.l.b16 %v8798
        %v8831 = vunpack.c.l.b16 %v8799
        %v8832 = vunpack.c.l.b16 %v8800
        %v8833 = vunpack.c.l.b16 %v8801
        %v8834 = vunpack.c.l.b16 %v8802
        %v8835 = vunpack.c.l.b16 %v8803
        %v8836 = vpack.c.b16 %v8821, %v8820
        %v8837 = vpack.c.b16 %v8823, %v8822
        %v8838 = vpack.c.b16 %v8825, %v8824
        %v8839 = vpack.c.b16 %v8827, %v8826
        %v8840 = vpack.c.b16 %v8829, %v8828
        %v8841 = vpack.c.b16 %v8831, %v8830
        %v8842 = vpack.c.b16 %v8833, %v8832
        %v8843 = vpack.c.b16 %v8835, %v8834
        %8852 = vmatprep.subr.bf16.mxu0 0
        %8853 = vmatpush1.bf16.msra.mxu0 %v8836
        %8854 = vmatprep.subr.bf16.mxu0 0
        %8855 = vmatpush1.bf16.msra.mxu0 %v8837
        %8856 = vmatprep.subr.bf16.mxu0 0
        %8857 = vmatpush1.bf16.msra.mxu0 %v8838
        %8858 = vmatprep.subr.bf16.mxu0 0
        %8859 = vmatpush1.bf16.msra.mxu0 %v8839
        %8860 = vmatprep.subr.bf16.mxu0 0
        %8861 = vmatpush1.bf16.msra.mxu0 %v8840
        %8862 = vmatprep.subr.bf16.mxu0 0
        %8863 = vmatpush1.bf16.msra.mxu0 %v8841
        %8864 = vmatprep.subr.bf16.mxu0 0
        %8865 = vmatpush1.bf16.msra.mxu0 %v8842
        %8866 = vmatprep.subr.bf16.mxu0 0
        %8867 = vmatpush1.bf16.msra.mxu0 %v8843
        %8868 = vmatprep.subr.bf16.mxu0 0
        %8869 = vmatpush1.bf16.msra.mxu0 0
        %8870 = vmatprep.subr.bf16.mxu0 0
        %8871 = vmatpush1.bf16.msra.mxu0 0
        %8872 = vmatprep.subr.bf16.mxu0 0
        %8873 = vmatpush1.bf16.msra.mxu0 0
        %8874 = vmatprep.subr.bf16.mxu0 0
        %8875 = vmatpush1.bf16.msra.mxu0 0
        %8876 = vmatprep.subr.bf16.mxu0 0
        %8877 = vmatpush1.bf16.msra.mxu0 0
        %8878 = vmatprep.subr.bf16.mxu0 0
        %8879 = vmatpush1.bf16.msra.mxu0 0
        %8880 = vmatprep.subr.bf16.mxu0 0
        %8881 = vmatpush1.bf16.msra.mxu0 0
        %8882 = vmatprep.subr.bf16.mxu0 0
        %8883 = vmatpush1.bf16.msra.mxu0 0
        %8884 = vmatprep.mubr.bf16.mxu0 0
        %8885 = vmatmul.mubr.bf16.gmra.mrb[0].mxu0 %v8779
        %v8886 = vpop.f32.mrb[0].mxu0
        %v8887 = vadd.f32 0.0, %v8886
        %v8888 = vpop.f32.mrb[0].mxu0
        %v8889 = vpop.f32.mrb[0].mxu0
        %v8890 = vadd.f32 0.0, %v8889
        %v8891 = vpop.f32.mrb[0].mxu0
        %8892 = vmatprep.mubr.bf16.mxu0 0
        %8893 = vmatmul.mubr.bf16.gmra.mrb[0].mxu0 %v8780
        %v8894 = vpop.f32.mrb[0].mxu0
        %v8895 = vadd.f32 0.0, %v8894
        %v8896 = vpop.f32.mrb[0].mxu0
        %v8897 = vpop.f32.mrb[0].mxu0
        %v8898 = vadd.f32 0.0, %v8897
        %v8899 = vpop.f32.mrb[0].mxu0
        %8900 = vmatprep.mubr.bf16.mxu0 0
        %8901 = vmatmul.mubr.bf16.gmra.mrb[0].mxu0 %v8781
        %v8902 = vpop.f32.mrb[0].mxu0
        %v8903 = vadd.f32 0.0, %v8902
        %v8904 = vpop.f32.mrb[0].mxu0
        %v8905 = vpop.f32.mrb[0].mxu0
        %v8906 = vadd.f32 0.0, %v8905
        %v8907 = vpop.f32.mrb[0].mxu0
        %8908 = vmatprep.mubr.bf16.mxu0 0
        %8909 = vmatmul.mubr.bf16.gmra.mrb[0].mxu0 %v8782
        %v8910 = vpop.f32.mrb[0].mxu0
        %v8911 = vadd.f32 0.0, %v8910
        %v8912 = vpop.f32.mrb[0].mxu0
        %v8913 = vpop.f32.mrb[0].mxu0
        %v8914 = vadd.f32 0.0, %v8913
        %v8915 = vpop.f32.mrb[0].mxu0
        %8916 = vmatprep.mubr.bf16.mxu0 0
        %8917 = vmatmul.mubr.bf16.gmra.mrb[0].mxu0 %v8783
        %v8918 = vpop.f32.mrb[0].mxu0
        %v8919 = vadd.f32 0.0, %v8918
        %v8920 = vpop.f32.mrb[0].mxu0
        %v8921 = vpop.f32.mrb[0].mxu0
        %v8922 = vadd.f32 0.0, %v8921
        %v8923 = vpop.f32.mrb[0].mxu0
        %8924 = vmatprep.mubr.bf16.mxu0 0
        %8925 = vmatmul.mubr.bf16.gmra.mrb[0].mxu0 %v8784
        %v8926 = vpop.f32.mrb[0].mxu0
        %v8927 = vadd.f32 0.0, %v8926
        %v8928 = vpop.f32.mrb[0].mxu0
        %v8929 = vpop.f32.mrb[0].mxu0
        %v8930 = vadd.f32 0.0, %v8929
        %v8931 = vpop.f32.mrb[0].mxu0
        %8932 = vmatprep.mubr.bf16.mxu0 0
        %8933 = vmatmul.mubr.bf16.gmra.mrb[0].mxu0 %v8785
        %v8934 = vpop.f32.mrb[0].mxu0
        %v8935 = vadd.f32 0.0, %v8934
        %v8936 = vpop.f32.mrb[0].mxu0
        %v8937 = vpop.f32.mrb[0].mxu0
        %v8938 = vadd.f32 0.0, %v8937
        %v8939 = vpop.f32.mrb[0].mxu0
        %8940 = vmatprep.mubr.bf16.mxu0 0
        %8941 = vmatmul.mubr.bf16.gmra.mrb[0].mxu0 %v8786
        %v8942 = vpop.f32.mrb[0].mxu0
        %v8943 = vadd.f32 0.0, %v8942
        %v8944 = vpop.f32.mrb[0].mxu0
        %v8945 = vpop.f32.mrb[0].mxu0
        %v8946 = vadd.f32 0.0, %v8945
        %v8947 = vpop.f32.mrb[0].mxu0
        %8948 = vdwg.mxu0
        %v8949 = vadd.f32 %v8701, %v8887
        %v8950 = vadd.f32 %v8704, %v8890
        %v8951 = vadd.f32 %v8709, %v8895
        %v8952 = vadd.f32 %v8712, %v8898
        %v8953 = vadd.f32 %v8717, %v8903
        %v8954 = vadd.f32 %v8720, %v8906
        %v8955 = vadd.f32 %v8725, %v8911
        %v8956 = vadd.f32 %v8728, %v8914
        %v8957 = vadd.f32 %v8733, %v8919
        %v8958 = vadd.f32 %v8736, %v8922
        %v8959 = vadd.f32 %v8741, %v8927
        %v8960 = vadd.f32 %v8744, %v8930
        %v8961 = vadd.f32 %v8749, %v8935
        %v8962 = vadd.f32 %v8752, %v8938
        %v8963 = vadd.f32 %v8757, %v8943
        %v8964 = vadd.f32 %v8760, %v8946
        %v8965 = vld [vmem:[%s246] sm:$0xff]
        %v8966 = vld [vmem:[%s246 + $0x8] sm:$0xff]
        %v8967 = vld [vmem:[%s246 + $0x18] sm:$0xff]
        %v8968 = vld [vmem:[%s246 + $0x20] sm:$0xff]
        %v8969 = vld [vmem:[%s246 + $0x30] sm:$0xff]
        %v8970 = vld [vmem:[%s246 + $0x38] sm:$0xff]
        %v8971 = vld [vmem:[%s246 + $0x48] sm:$0xff]
        %v8972 = vld [vmem:[%s246 + $0x50] sm:$0xff]
        %v8973 = vld [vmem:[%s246 + $0x60] sm:$0xff]
        %v8974 = vld [vmem:[%s246 + $0x68] sm:$0xff]
        %v8975 = vld [vmem:[%s246 + $0x78] sm:$0xff]
        %v8976 = vld [vmem:[%s246 + $0x80] sm:$0xff]
        %v8977 = vld [vmem:[%s246 + $0x90] sm:$0xff]
        %v8978 = vld [vmem:[%s246 + $0x98] sm:$0xff]
        %v8979 = vld [vmem:[%s246 + $0xa8] sm:$0xff]
        %v8980 = vld [vmem:[%s246 + $0xb0] sm:$0xff]
        %v8981 = vpack.c.bf16 %v8966, %v8965
        %v8982 = vpack.c.bf16 %v8968, %v8967
        %v8983 = vpack.c.bf16 %v8970, %v8969
        %v8984 = vpack.c.bf16 %v8972, %v8971
        %v8985 = vpack.c.bf16 %v8974, %v8973
        %v8986 = vpack.c.bf16 %v8976, %v8975
        %v8987 = vpack.c.bf16 %v8978, %v8977
        %v8988 = vpack.c.bf16 %v8980, %v8979
        %s8989 = scalar_lea.vmem [#allocation3], 2496
        %v8990 = vld [vmem:[%s8989] sm:$0xf]
        %v8991 = vld [vmem:[%s8989 + $0x4] sm:$0xf]
        %v8992 = vld [vmem:[%s8989 + $0x8] sm:$0xf]
        %v8993 = vld [vmem:[%s8989 + $0xc] sm:$0xf]
        %v8994 = vld [vmem:[%s8989 + $0x10] sm:$0xf]
        %v8995 = vld [vmem:[%s8989 + $0x14] sm:$0xf]
        %v8996 = vld [vmem:[%s8989 + $0x18] sm:$0xf]
        %v8997 = vld [vmem:[%s8989 + $0x1c] sm:$0xf]
        %v8998 = vld [vmem:[%s8989 + $0x20] sm:$0xf]
        %v8999 = vld [vmem:[%s8989 + $0x24] sm:$0xf]
        %v9000 = vld [vmem:[%s8989 + $0x28] sm:$0xf]
        %v9001 = vld [vmem:[%s8989 + $0x2c] sm:$0xf]
        %v9002 = vld [vmem:[%s8989 + $0x30] sm:$0xf]
        %v9003 = vld [vmem:[%s8989 + $0x34] sm:$0xf]
        %v9004 = vld [vmem:[%s8989 + $0x38] sm:$0xf]
        %v9005 = vld [vmem:[%s8989 + $0x3c] sm:$0xf]
        %v9022 = vunpack.c.l.b16 %v8990
        %v9023 = vunpack.c.l.b16 %v8991
        %v9024 = vunpack.c.l.b16 %v8992
        %v9025 = vunpack.c.l.b16 %v8993
        %v9026 = vunpack.c.l.b16 %v8994
        %v9027 = vunpack.c.l.b16 %v8995
        %v9028 = vunpack.c.l.b16 %v8996
        %v9029 = vunpack.c.l.b16 %v8997
        %v9030 = vunpack.c.l.b16 %v8998
        %v9031 = vunpack.c.l.b16 %v8999
        %v9032 = vunpack.c.l.b16 %v9000
        %v9033 = vunpack.c.l.b16 %v9001
        %v9034 = vunpack.c.l.b16 %v9002
        %v9035 = vunpack.c.l.b16 %v9003
        %v9036 = vunpack.c.l.b16 %v9004
        %v9037 = vunpack.c.l.b16 %v9005
        %v9038 = vpack.c.b16 %v9023, %v9022
        %v9039 = vpack.c.b16 %v9025, %v9024
        %v9040 = vpack.c.b16 %v9027, %v9026
        %v9041 = vpack.c.b16 %v9029, %v9028
        %v9042 = vpack.c.b16 %v9031, %v9030
        %v9043 = vpack.c.b16 %v9033, %v9032
        %v9044 = vpack.c.b16 %v9035, %v9034
        %v9045 = vpack.c.b16 %v9037, %v9036
        %9054 = vmatprep.subr.bf16.mxu0 0
        %9055 = vmatpush1.bf16.msra.mxu0 %v9038
        %9056 = vmatprep.subr.bf16.mxu0 0
        %9057 = vmatpush1.bf16.msra.mxu0 %v9039
        %9058 = vmatprep.subr.bf16.mxu0 0
        %9059 = vmatpush1.bf16.msra.mxu0 %v9040
        %9060 = vmatprep.subr.bf16.mxu0 0
        %9061 = vmatpush1.bf16.msra.mxu0 %v9041
        %9062 = vmatprep.subr.bf16.mxu0 0
        %9063 = vmatpush1.bf16.msra.mxu0 %v9042
        %9064 = vmatprep.subr.bf16.mxu0 0
        %9065 = vmatpush1.bf16.msra.mxu0 %v9043
        %9066 = vmatprep.subr.bf16.mxu0 0
        %9067 = vmatpush1.bf16.msra.mxu0 %v9044
        %9068 = vmatprep.subr.bf16.mxu0 0
        %9069 = vmatpush1.bf16.msra.mxu0 %v9045
        %9070 = vmatprep.subr.bf16.mxu0 0
        %9071 = vmatpush1.bf16.msra.mxu0 0
        %9072 = vmatprep.subr.bf16.mxu0 0
        %9073 = vmatpush1.bf16.msra.mxu0 0
        %9074 = vmatprep.subr.bf16.mxu0 0
        %9075 = vmatpush1.bf16.msra.mxu0 0
        %9076 = vmatprep.subr.bf16.mxu0 0
        %9077 = vmatpush1.bf16.msra.mxu0 0
        %9078 = vmatprep.subr.bf16.mxu0 0
        %9079 = vmatpush1.bf16.msra.mxu0 0
        %9080 = vmatprep.subr.bf16.mxu0 0
        %9081 = vmatpush1.bf16.msra.mxu0 0
        %9082 = vmatprep.subr.bf16.mxu0 0
        %9083 = vmatpush1.bf16.msra.mxu0 0
        %9084 = vmatprep.subr.bf16.mxu0 0
        %9085 = vmatpush1.bf16.msra.mxu0 0
        %9086 = vmatprep.mubr.bf16.mxu0 0
        %9087 = vmatmul.mubr.bf16.gmra.mrb[0].mxu0 %v8981
        %v9088 = vpop.f32.mrb[0].mxu0
        %v9089 = vadd.f32 0.0, %v9088
        %v9090 = vpop.f32.mrb[0].mxu0
        %v9091 = vpop.f32.mrb[0].mxu0
        %v9092 = vadd.f32 0.0, %v9091
        %v9093 = vpop.f32.mrb[0].mxu0
        %9094 = vmatprep.mubr.bf16.mxu0 0
        %9095 = vmatmul.mubr.bf16.gmra.mrb[0].mxu0 %v8982
        %v9096 = vpop.f32.mrb[0].mxu0
        %v9097 = vadd.f32 0.0, %v9096
        %v9098 = vpop.f32.mrb[0].mxu0
        %v9099 = vpop.f32.mrb[0].mxu0
        %v9100 = vadd.f32 0.0, %v9099
        %v9101 = vpop.f32.mrb[0].mxu0
        %9102 = vmatprep.mubr.bf16.mxu0 0
        %9103 = vmatmul.mubr.bf16.gmra.mrb[0].mxu0 %v8983
        %v9104 = vpop.f32.mrb[0].mxu0
        %v9105 = vadd.f32 0.0, %v9104
        %v9106 = vpop.f32.mrb[0].mxu0
        %v9107 = vpop.f32.mrb[0].mxu0
        %v9108 = vadd.f32 0.0, %v9107
        %v9109 = vpop.f32.mrb[0].mxu0
        %9110 = vmatprep.mubr.bf16.mxu0 0
        %9111 = vmatmul.mubr.bf16.gmra.mrb[0].mxu0 %v8984
        %v9112 = vpop.f32.mrb[0].mxu0
        %v9113 = vadd.f32 0.0, %v9112
        %v9114 = vpop.f32.mrb[0].mxu0
        %v9115 = vpop.f32.mrb[0].mxu0
        %v9116 = vadd.f32 0.0, %v9115
        %v9117 = vpop.f32.mrb[0].mxu0
        %9118 = vmatprep.mubr.bf16.mxu0 0
        %9119 = vmatmul.mubr.bf16.gmra.mrb[0].mxu0 %v8985
        %v9120 = vpop.f32.mrb[0].mxu0
        %v9121 = vadd.f32 0.0, %v9120
        %v9122 = vpop.f32.mrb[0].mxu0
        %v9123 = vpop.f32.mrb[0].mxu0
        %v9124 = vadd.f32 0.0, %v9123
        %v9125 = vpop.f32.mrb[0].mxu0
        %9126 = vmatprep.mubr.bf16.mxu0 0
        %9127 = vmatmul.mubr.bf16.gmra.mrb[0].mxu0 %v8986
        %v9128 = vpop.f32.mrb[0].mxu0
        %v9129 = vadd.f32 0.0, %v9128
        %v9130 = vpop.f32.mrb[0].mxu0
        %v9131 = vpop.f32.mrb[0].mxu0
        %v9132 = vadd.f32 0.0, %v9131
        %v9133 = vpop.f32.mrb[0].mxu0
        %9134 = vmatprep.mubr.bf16.mxu0 0
        %9135 = vmatmul.mubr.bf16.gmra.mrb[0].mxu0 %v8987
        %v9136 = vpop.f32.mrb[0].mxu0
        %v9137 = vadd.f32 0.0, %v9136
        %v9138 = vpop.f32.mrb[0].mxu0
        %v9139 = vpop.f32.mrb[0].mxu0
        %v9140 = vadd.f32 0.0, %v9139
        %v9141 = vpop.f32.mrb[0].mxu0
        %9142 = vmatprep.mubr.bf16.mxu0 0
        %9143 = vmatmul.mubr.bf16.gmra.mrb[0].mxu0 %v8988
        %v9144 = vpop.f32.mrb[0].mxu0
        %v9145 = vadd.f32 0.0, %v9144
        %v9146 = vpop.f32.mrb[0].mxu0
        %v9147 = vpop.f32.mrb[0].mxu0
        %v9148 = vadd.f32 0.0, %v9147
        %v9149 = vpop.f32.mrb[0].mxu0
        %9150 = vdwg.mxu0
        %v9151 = vadd.f32 %v8949, %v9089
        %v9152 = vadd.f32 %v8950, %v9092
        %v9153 = vadd.f32 %v8951, %v9097
        %v9154 = vadd.f32 %v8952, %v9100
        %v9155 = vadd.f32 %v8953, %v9105
        %v9156 = vadd.f32 %v8954, %v9108
        %v9157 = vadd.f32 %v8955, %v9113
        %v9158 = vadd.f32 %v8956, %v9116
        %v9159 = vadd.f32 %v8957, %v9121
        %v9160 = vadd.f32 %v8958, %v9124
        %v9161 = vadd.f32 %v8959, %v9129
        %v9162 = vadd.f32 %v8960, %v9132
        %v9163 = vadd.f32 %v8961, %v9137
        %v9164 = vadd.f32 %v8962, %v9140
        %v9165 = vadd.f32 %v8963, %v9145
        %v9166 = vadd.f32 %v8964, %v9148
        %v9167 = vld [vmem:[%s246 + $0x1] sm:$0xff]
        %v9168 = vld [vmem:[%s246 + $0x9] sm:$0xff]
        %v9169 = vld [vmem:[%s246 + $0x19] sm:$0xff]
        %v9170 = vld [vmem:[%s246 + $0x21] sm:$0xff]
        %v9171 = vld [vmem:[%s246 + $0x31] sm:$0xff]
        %v9172 = vld [vmem:[%s246 + $0x39] sm:$0xff]
        %v9173 = vld [vmem:[%s246 + $0x49] sm:$0xff]
        %v9174 = vld [vmem:[%s246 + $0x51] sm:$0xff]
        %v9175 = vld [vmem:[%s246 + $0x61] sm:$0xff]
        %v9176 = vld [vmem:[%s246 + $0x69] sm:$0xff]
        %v9177 = vld [vmem:[%s246 + $0x79] sm:$0xff]
        %v9178 = vld [vmem:[%s246 + $0x81] sm:$0xff]
        %v9179 = vld [vmem:[%s246 + $0x91] sm:$0xff]
        %v9180 = vld [vmem:[%s246 + $0x99] sm:$0xff]
        %v9181 = vld [vmem:[%s246 + $0xa9] sm:$0xff]
        %v9182 = vld [vmem:[%s246 + $0xb1] sm:$0xff]
        %v9183 = vpack.c.bf16 %v9168, %v9167
        %v9184 = vpack.c.bf16 %v9170, %v9169
        %v9185 = vpack.c.bf16 %v9172, %v9171
        %v9186 = vpack.c.bf16 %v9174, %v9173
        %v9187 = vpack.c.bf16 %v9176, %v9175
        %v9188 = vpack.c.bf16 %v9178, %v9177
        %v9189 = vpack.c.bf16 %v9180, %v9179
        %v9190 = vpack.c.bf16 %v9182, %v9181
        %s9191 = scalar_lea.vmem [#allocation3], 2560
        %v9192 = vld [vmem:[%s9191] sm:$0xf]
        %v9193 = vld [vmem:[%s9191 + $0x4] sm:$0xf]
        %v9194 = vld [vmem:[%s9191 + $0x8] sm:$0xf]
        %v9195 = vld [vmem:[%s9191 + $0xc] sm:$0xf]
        %v9196 = vld [vmem:[%s9191 + $0x10] sm:$0xf]
        %v9197 = vld [vmem:[%s9191 + $0x14] sm:$0xf]
        %v9198 = vld [vmem:[%s9191 + $0x18] sm:$0xf]
        %v9199 = vld [vmem:[%s9191 + $0x1c] sm:$0xf]
        %v9200 = vld [vmem:[%s9191 + $0x20] sm:$0xf]
        %v9201 = vld [vmem:[%s9191 + $0x24] sm:$0xf]
        %v9202 = vld [vmem:[%s9191 + $0x28] sm:$0xf]
        %v9203 = vld [vmem:[%s9191 + $0x2c] sm:$0xf]
        %v9204 = vld [vmem:[%s9191 + $0x30] sm:$0xf]
        %v9205 = vld [vmem:[%s9191 + $0x34] sm:$0xf]
        %v9206 = vld [vmem:[%s9191 + $0x38] sm:$0xf]
        %v9207 = vld [vmem:[%s9191 + $0x3c] sm:$0xf]
        %v9224 = vunpack.c.l.b16 %v9192
        %v9225 = vunpack.c.l.b16 %v9193
        %v9226 = vunpack.c.l.b16 %v9194
        %v9227 = vunpack.c.l.b16 %v9195
        %v9228 = vunpack.c.l.b16 %v9196
        %v9229 = vunpack.c.l.b16 %v9197
        %v9230 = vunpack.c.l.b16 %v9198
        %v9231 = vunpack.c.l.b16 %v9199
        %v9232 = vunpack.c.l.b16 %v9200
        %v9233 = vunpack.c.l.b16 %v9201
        %v9234 = vunpack.c.l.b16 %v9202
        %v9235 = vunpack.c.l.b16 %v9203
        %v9236 = vunpack.c.l.b16 %v9204
        %v9237 = vunpack.c.l.b16 %v9205
        %v9238 = vunpack.c.l.b16 %v9206
        %v9239 = vunpack.c.l.b16 %v9207
        %v9240 = vpack.c.b16 %v9225, %v9224
        %v9241 = vpack.c.b16 %v9227, %v9226
        %v9242 = vpack.c.b16 %v9229, %v9228
        %v9243 = vpack.c.b16 %v9231, %v9230
        %v9244 = vpack.c.b16 %v9233, %v9232
        %v9245 = vpack.c.b16 %v9235, %v9234
        %v9246 = vpack.c.b16 %v9237, %v9236
        %v9247 = vpack.c.b16 %v9239, %v9238
        %9256 = vmatprep.subr.bf16.mxu0 0
        %9257 = vmatpush1.bf16.msra.mxu0 %v9240
        %9258 = vmatprep.subr.bf16.mxu0 0
        %9259 = vmatpush1.bf16.msra.mxu0 %v9241
        %9260 = vmatprep.subr.bf16.mxu0 0
        %9261 = vmatpush1.bf16.msra.mxu0 %v9242
        %9262 = vmatprep.subr.bf16.mxu0 0
        %9263 = vmatpush1.bf16.msra.mxu0 %v9243
        %9264 = vmatprep.subr.bf16.mxu0 0
        %9265 = vmatpush1.bf16.msra.mxu0 %v9244
        %9266 = vmatprep.subr.bf16.mxu0 0
        %9267 = vmatpush1.bf16.msra.mxu0 %v9245
        %9268 = vmatprep.subr.bf16.mxu0 0
        %9269 = vmatpush1.bf16.msra.mxu0 %v9246
        %9270 = vmatprep.subr.bf16.mxu0 0
        %9271 = vmatpush1.bf16.msra.mxu0 %v9247
        %9272 = vmatprep.subr.bf16.mxu0 0
        %9273 = vmatpush1.bf16.msra.mxu0 0
        %9274 = vmatprep.subr.bf16.mxu0 0
        %9275 = vmatpush1.bf16.msra.mxu0 0
        %9276 = vmatprep.subr.bf16.mxu0 0
        %9277 = vmatpush1.bf16.msra.mxu0 0
        %9278 = vmatprep.subr.bf16.mxu0 0
        %9279 = vmatpush1.bf16.msra.mxu0 0
        %9280 = vmatprep.subr.bf16.mxu0 0
        %9281 = vmatpush1.bf16.msra.mxu0 0
        %9282 = vmatprep.subr.bf16.mxu0 0
        %9283 = vmatpush1.bf16.msra.mxu0 0
        %9284 = vmatprep.subr.bf16.mxu0 0
        %9285 = vmatpush1.bf16.msra.mxu0 0
        %9286 = vmatprep.subr.bf16.mxu0 0
        %9287 = vmatpush1.bf16.msra.mxu0 0
        %9288 = vmatprep.mubr.bf16.mxu0 0
        %9289 = vmatmul.mubr.bf16.gmra.mrb[0].mxu0 %v9183
        %v9290 = vpop.f32.mrb[0].mxu0
        %v9291 = vadd.f32 0.0, %v9290
        %v9292 = vpop.f32.mrb[0].mxu0
        %v9293 = vpop.f32.mrb[0].mxu0
        %v9294 = vadd.f32 0.0, %v9293
        %v9295 = vpop.f32.mrb[0].mxu0
        %9296 = vmatprep.mubr.bf16.mxu0 0
        %9297 = vmatmul.mubr.bf16.gmra.mrb[0].mxu0 %v9184
        %v9298 = vpop.f32.mrb[0].mxu0
        %v9299 = vadd.f32 0.0, %v9298
        %v9300 = vpop.f32.mrb[0].mxu0
        %v9301 = vpop.f32.mrb[0].mxu0
        %v9302 = vadd.f32 0.0, %v9301
        %v9303 = vpop.f32.mrb[0].mxu0
        %9304 = vmatprep.mubr.bf16.mxu0 0
        %9305 = vmatmul.mubr.bf16.gmra.mrb[0].mxu0 %v9185
        %v9306 = vpop.f32.mrb[0].mxu0
        %v9307 = vadd.f32 0.0, %v9306
        %v9308 = vpop.f32.mrb[0].mxu0
        %v9309 = vpop.f32.mrb[0].mxu0
        %v9310 = vadd.f32 0.0, %v9309
        %v9311 = vpop.f32.mrb[0].mxu0
        %9312 = vmatprep.mubr.bf16.mxu0 0
        %9313 = vmatmul.mubr.bf16.gmra.mrb[0].mxu0 %v9186
        %v9314 = vpop.f32.mrb[0].mxu0
        %v9315 = vadd.f32 0.0, %v9314
        %v9316 = vpop.f32.mrb[0].mxu0
        %v9317 = vpop.f32.mrb[0].mxu0
        %v9318 = vadd.f32 0.0, %v9317
        %v9319 = vpop.f32.mrb[0].mxu0
        %9320 = vmatprep.mubr.bf16.mxu0 0
        %9321 = vmatmul.mubr.bf16.gmra.mrb[0].mxu0 %v9187
        %v9322 = vpop.f32.mrb[0].mxu0
        %v9323 = vadd.f32 0.0, %v9322
        %v9324 = vpop.f32.mrb[0].mxu0
        %v9325 = vpop.f32.mrb[0].mxu0
        %v9326 = vadd.f32 0.0, %v9325
        %v9327 = vpop.f32.mrb[0].mxu0
        %9328 = vmatprep.mubr.bf16.mxu0 0
        %9329 = vmatmul.mubr.bf16.gmra.mrb[0].mxu0 %v9188
        %v9330 = vpop.f32.mrb[0].mxu0
        %v9331 = vadd.f32 0.0, %v9330
        %v9332 = vpop.f32.mrb[0].mxu0
        %v9333 = vpop.f32.mrb[0].mxu0
        %v9334 = vadd.f32 0.0, %v9333
        %v9335 = vpop.f32.mrb[0].mxu0
        %9336 = vmatprep.mubr.bf16.mxu0 0
        %9337 = vmatmul.mubr.bf16.gmra.mrb[0].mxu0 %v9189
        %v9338 = vpop.f32.mrb[0].mxu0
        %v9339 = vadd.f32 0.0, %v9338
        %v9340 = vpop.f32.mrb[0].mxu0
        %v9341 = vpop.f32.mrb[0].mxu0
        %v9342 = vadd.f32 0.0, %v9341
        %v9343 = vpop.f32.mrb[0].mxu0
        %9344 = vmatprep.mubr.bf16.mxu0 0
        %9345 = vmatmul.mubr.bf16.gmra.mrb[0].mxu0 %v9190
        %v9346 = vpop.f32.mrb[0].mxu0
        %v9347 = vadd.f32 0.0, %v9346
        %v9348 = vpop.f32.mrb[0].mxu0
        %v9349 = vpop.f32.mrb[0].mxu0
        %v9350 = vadd.f32 0.0, %v9349
        %v9351 = vpop.f32.mrb[0].mxu0
        %9352 = vdwg.mxu0
        %v9353 = vadd.f32 %v9151, %v9291
        %v9354 = vadd.f32 %v9152, %v9294
        %v9355 = vadd.f32 %v9153, %v9299
        %v9356 = vadd.f32 %v9154, %v9302
        %v9357 = vadd.f32 %v9155, %v9307
        %v9358 = vadd.f32 %v9156, %v9310
        %v9359 = vadd.f32 %v9157, %v9315
        %v9360 = vadd.f32 %v9158, %v9318
        %v9361 = vadd.f32 %v9159, %v9323
        %v9362 = vadd.f32 %v9160, %v9326
        %v9363 = vadd.f32 %v9161, %v9331
        %v9364 = vadd.f32 %v9162, %v9334
        %v9365 = vadd.f32 %v9163, %v9339
        %v9366 = vadd.f32 %v9164, %v9342
        %v9367 = vadd.f32 %v9165, %v9347
        %v9368 = vadd.f32 %v9166, %v9350
        %v9369 = vld [vmem:[%s246 + $0x2] sm:$0xff]
        %v9370 = vld [vmem:[%s246 + $0xa] sm:$0xff]
        %v9371 = vld [vmem:[%s246 + $0x1a] sm:$0xff]
        %v9372 = vld [vmem:[%s246 + $0x22] sm:$0xff]
        %v9373 = vld [vmem:[%s246 + $0x32] sm:$0xff]
        %v9374 = vld [vmem:[%s246 + $0x3a] sm:$0xff]
        %v9375 = vld [vmem:[%s246 + $0x4a] sm:$0xff]
        %v9376 = vld [vmem:[%s246 + $0x52] sm:$0xff]
        %v9377 = vld [vmem:[%s246 + $0x62] sm:$0xff]
        %v9378 = vld [vmem:[%s246 + $0x6a] sm:$0xff]
        %v9379 = vld [vmem:[%s246 + $0x7a] sm:$0xff]
        %v9380 = vld [vmem:[%s246 + $0x82] sm:$0xff]
        %v9381 = vld [vmem:[%s246 + $0x92] sm:$0xff]
        %v9382 = vld [vmem:[%s246 + $0x9a] sm:$0xff]
        %v9383 = vld [vmem:[%s246 + $0xaa] sm:$0xff]
        %v9384 = vld [vmem:[%s246 + $0xb2] sm:$0xff]
        %v9385 = vpack.c.bf16 %v9370, %v9369
        %v9386 = vpack.c.bf16 %v9372, %v9371
        %v9387 = vpack.c.bf16 %v9374, %v9373
        %v9388 = vpack.c.bf16 %v9376, %v9375
        %v9389 = vpack.c.bf16 %v9378, %v9377
        %v9390 = vpack.c.bf16 %v9380, %v9379
        %v9391 = vpack.c.bf16 %v9382, %v9381
        %v9392 = vpack.c.bf16 %v9384, %v9383
        %s9393 = scalar_lea.vmem [#allocation3], 2624
        %v9394 = vld [vmem:[%s9393] sm:$0xf]
        %v9395 = vld [vmem:[%s9393 + $0x4] sm:$0xf]
        %v9396 = vld [vmem:[%s9393 + $0x8] sm:$0xf]
        %v9397 = vld [vmem:[%s9393 + $0xc] sm:$0xf]
        %v9398 = vld [vmem:[%s9393 + $0x10] sm:$0xf]
        %v9399 = vld [vmem:[%s9393 + $0x14] sm:$0xf]
        %v9400 = vld [vmem:[%s9393 + $0x18] sm:$0xf]
        %v9401 = vld [vmem:[%s9393 + $0x1c] sm:$0xf]
        %v9402 = vld [vmem:[%s9393 + $0x20] sm:$0xf]
        %v9403 = vld [vmem:[%s9393 + $0x24] sm:$0xf]
        %v9404 = vld [vmem:[%s9393 + $0x28] sm:$0xf]
        %v9405 = vld [vmem:[%s9393 + $0x2c] sm:$0xf]
        %v9406 = vld [vmem:[%s9393 + $0x30] sm:$0xf]
        %v9407 = vld [vmem:[%s9393 + $0x34] sm:$0xf]
        %v9408 = vld [vmem:[%s9393 + $0x38] sm:$0xf]
        %v9409 = vld [vmem:[%s9393 + $0x3c] sm:$0xf]
        %v9426 = vunpack.c.l.b16 %v9394
        %v9427 = vunpack.c.l.b16 %v9395
        %v9428 = vunpack.c.l.b16 %v9396
        %v9429 = vunpack.c.l.b16 %v9397
        %v9430 = vunpack.c.l.b16 %v9398
        %v9431 = vunpack.c.l.b16 %v9399
        %v9432 = vunpack.c.l.b16 %v9400
        %v9433 = vunpack.c.l.b16 %v9401
        %v9434 = vunpack.c.l.b16 %v9402
        %v9435 = vunpack.c.l.b16 %v9403
        %v9436 = vunpack.c.l.b16 %v9404
        %v9437 = vunpack.c.l.b16 %v9405
        %v9438 = vunpack.c.l.b16 %v9406
        %v9439 = vunpack.c.l.b16 %v9407
        %v9440 = vunpack.c.l.b16 %v9408
        %v9441 = vunpack.c.l.b16 %v9409
        %v9442 = vpack.c.b16 %v9427, %v9426
        %v9443 = vpack.c.b16 %v9429, %v9428
        %v9444 = vpack.c.b16 %v9431, %v9430
        %v9445 = vpack.c.b16 %v9433, %v9432
        %v9446 = vpack.c.b16 %v9435, %v9434
        %v9447 = vpack.c.b16 %v9437, %v9436
        %v9448 = vpack.c.b16 %v9439, %v9438
        %v9449 = vpack.c.b16 %v9441, %v9440
        %9458 = vmatprep.subr.bf16.mxu0 0
        %9459 = vmatpush1.bf16.msra.mxu0 %v9442
        %9460 = vmatprep.subr.bf16.mxu0 0
        %9461 = vmatpush1.bf16.msra.mxu0 %v9443
        %9462 = vmatprep.subr.bf16.mxu0 0
        %9463 = vmatpush1.bf16.msra.mxu0 %v9444
        %9464 = vmatprep.subr.bf16.mxu0 0
        %9465 = vmatpush1.bf16.msra.mxu0 %v9445
        %9466 = vmatprep.subr.bf16.mxu0 0
        %9467 = vmatpush1.bf16.msra.mxu0 %v9446
        %9468 = vmatprep.subr.bf16.mxu0 0
        %9469 = vmatpush1.bf16.msra.mxu0 %v9447
        %9470 = vmatprep.subr.bf16.mxu0 0
        %9471 = vmatpush1.bf16.msra.mxu0 %v9448
        %9472 = vmatprep.subr.bf16.mxu0 0
        %9473 = vmatpush1.bf16.msra.mxu0 %v9449
        %9474 = vmatprep.subr.bf16.mxu0 0
        %9475 = vmatpush1.bf16.msra.mxu0 0
        %9476 = vmatprep.subr.bf16.mxu0 0
        %9477 = vmatpush1.bf16.msra.mxu0 0
        %9478 = vmatprep.subr.bf16.mxu0 0
        %9479 = vmatpush1.bf16.msra.mxu0 0
        %9480 = vmatprep.subr.bf16.mxu0 0
        %9481 = vmatpush1.bf16.msra.mxu0 0
        %9482 = vmatprep.subr.bf16.mxu0 0
        %9483 = vmatpush1.bf16.msra.mxu0 0
        %9484 = vmatprep.subr.bf16.mxu0 0
        %9485 = vmatpush1.bf16.msra.mxu0 0
        %9486 = vmatprep.subr.bf16.mxu0 0
        %9487 = vmatpush1.bf16.msra.mxu0 0
        %9488 = vmatprep.subr.bf16.mxu0 0
        %9489 = vmatpush1.bf16.msra.mxu0 0
        %9490 = vmatprep.mubr.bf16.mxu0 0
        %9491 = vmatmul.mubr.bf16.gmra.mrb[0].mxu0 %v9385
        %v9492 = vpop.f32.mrb[0].mxu0
        %v9493 = vadd.f32 0.0, %v9492
        %v9494 = vpop.f32.mrb[0].mxu0
        %v9495 = vpop.f32.mrb[0].mxu0
        %v9496 = vadd.f32 0.0, %v9495
        %v9497 = vpop.f32.mrb[0].mxu0
        %9498 = vmatprep.mubr.bf16.mxu0 0
        %9499 = vmatmul.mubr.bf16.gmra.mrb[0].mxu0 %v9386
        %v9500 = vpop.f32.mrb[0].mxu0
        %v9501 = vadd.f32 0.0, %v9500
        %v9502 = vpop.f32.mrb[0].mxu0
        %v9503 = vpop.f32.mrb[0].mxu0
        %v9504 = vadd.f32 0.0, %v9503
        %v9505 = vpop.f32.mrb[0].mxu0
        %9506 = vmatprep.mubr.bf16.mxu0 0
        %9507 = vmatmul.mubr.bf16.gmra.mrb[0].mxu0 %v9387
        %v9508 = vpop.f32.mrb[0].mxu0
        %v9509 = vadd.f32 0.0, %v9508
        %v9510 = vpop.f32.mrb[0].mxu0
        %v9511 = vpop.f32.mrb[0].mxu0
        %v9512 = vadd.f32 0.0, %v9511
        %v9513 = vpop.f32.mrb[0].mxu0
        %9514 = vmatprep.mubr.bf16.mxu0 0
        %9515 = vmatmul.mubr.bf16.gmra.mrb[0].mxu0 %v9388
        %v9516 = vpop.f32.mrb[0].mxu0
        %v9517 = vadd.f32 0.0, %v9516
        %v9518 = vpop.f32.mrb[0].mxu0
        %v9519 = vpop.f32.mrb[0].mxu0
        %v9520 = vadd.f32 0.0, %v9519
        %v9521 = vpop.f32.mrb[0].mxu0
        %9522 = vmatprep.mubr.bf16.mxu0 0
        %9523 = vmatmul.mubr.bf16.gmra.mrb[0].mxu0 %v9389
        %v9524 = vpop.f32.mrb[0].mxu0
        %v9525 = vadd.f32 0.0, %v9524
        %v9526 = vpop.f32.mrb[0].mxu0
        %v9527 = vpop.f32.mrb[0].mxu0
        %v9528 = vadd.f32 0.0, %v9527
        %v9529 = vpop.f32.mrb[0].mxu0
        %9530 = vmatprep.mubr.bf16.mxu0 0
        %9531 = vmatmul.mubr.bf16.gmra.mrb[0].mxu0 %v9390
        %v9532 = vpop.f32.mrb[0].mxu0
        %v9533 = vadd.f32 0.0, %v9532
        %v9534 = vpop.f32.mrb[0].mxu0
        %v9535 = vpop.f32.mrb[0].mxu0
        %v9536 = vadd.f32 0.0, %v9535
        %v9537 = vpop.f32.mrb[0].mxu0
        %9538 = vmatprep.mubr.bf16.mxu0 0
        %9539 = vmatmul.mubr.bf16.gmra.mrb[0].mxu0 %v9391
        %v9540 = vpop.f32.mrb[0].mxu0
        %v9541 = vadd.f32 0.0, %v9540
        %v9542 = vpop.f32.mrb[0].mxu0
        %v9543 = vpop.f32.mrb[0].mxu0
        %v9544 = vadd.f32 0.0, %v9543
        %v9545 = vpop.f32.mrb[0].mxu0
        %9546 = vmatprep.mubr.bf16.mxu0 0
        %9547 = vmatmul.mubr.bf16.gmra.mrb[0].mxu0 %v9392
        %v9548 = vpop.f32.mrb[0].mxu0
        %v9549 = vadd.f32 0.0, %v9548
        %v9550 = vpop.f32.mrb[0].mxu0
        %v9551 = vpop.f32.mrb[0].mxu0
        %v9552 = vadd.f32 0.0, %v9551
        %v9553 = vpop.f32.mrb[0].mxu0
        %9554 = vdwg.mxu0
        %v9555 = vadd.f32 %v9353, %v9493
        %v9556 = vadd.f32 %v9354, %v9496
        %v9557 = vadd.f32 %v9355, %v9501
        %v9558 = vadd.f32 %v9356, %v9504
        %v9559 = vadd.f32 %v9357, %v9509
        %v9560 = vadd.f32 %v9358, %v9512
        %v9561 = vadd.f32 %v9359, %v9517
        %v9562 = vadd.f32 %v9360, %v9520
        %v9563 = vadd.f32 %v9361, %v9525
        %v9564 = vadd.f32 %v9362, %v9528
        %v9565 = vadd.f32 %v9363, %v9533
        %v9566 = vadd.f32 %v9364, %v9536
        %v9567 = vadd.f32 %v9365, %v9541
        %v9568 = vadd.f32 %v9366, %v9544
        %v9569 = vadd.f32 %v9367, %v9549
        %v9570 = vadd.f32 %v9368, %v9552
        %v9571 = vld [vmem:[%s1443] sm:$0xff]
        %v9572 = vld [vmem:[%s1443 + $0x8] sm:$0xff]
        %v9573 = vld [vmem:[%s1443 + $0x18] sm:$0xff]
        %v9574 = vld [vmem:[%s1443 + $0x20] sm:$0xff]
        %v9575 = vld [vmem:[%s1443 + $0x30] sm:$0xff]
        %v9576 = vld [vmem:[%s1443 + $0x38] sm:$0xff]
        %v9577 = vld [vmem:[%s1443 + $0x48] sm:$0xff]
        %v9578 = vld [vmem:[%s1443 + $0x50] sm:$0xff]
        %v9579 = vld [vmem:[%s1443 + $0x60] sm:$0xff]
        %v9580 = vld [vmem:[%s1443 + $0x68] sm:$0xff]
        %v9581 = vld [vmem:[%s1443 + $0x78] sm:$0xff]
        %v9582 = vld [vmem:[%s1443 + $0x80] sm:$0xff]
        %v9583 = vld [vmem:[%s1443 + $0x90] sm:$0xff]
        %v9584 = vld [vmem:[%s1443 + $0x98] sm:$0xff]
        %v9585 = vld [vmem:[%s1443 + $0xa8] sm:$0xff]
        %v9586 = vld [vmem:[%s1443 + $0xb0] sm:$0xff]
        %v9587 = vpack.c.bf16 %v9572, %v9571
        %v9588 = vpack.c.bf16 %v9574, %v9573
        %v9589 = vpack.c.bf16 %v9576, %v9575
        %v9590 = vpack.c.bf16 %v9578, %v9577
        %v9591 = vpack.c.bf16 %v9580, %v9579
        %v9592 = vpack.c.bf16 %v9582, %v9581
        %v9593 = vpack.c.bf16 %v9584, %v9583
        %v9594 = vpack.c.bf16 %v9586, %v9585
        %s9595 = scalar_lea.vmem [#allocation3], 2688
        %v9596 = vld [vmem:[%s9595] sm:$0xf]
        %v9597 = vld [vmem:[%s9595 + $0x4] sm:$0xf]
        %v9598 = vld [vmem:[%s9595 + $0x8] sm:$0xf]
        %v9599 = vld [vmem:[%s9595 + $0xc] sm:$0xf]
        %v9600 = vld [vmem:[%s9595 + $0x10] sm:$0xf]
        %v9601 = vld [vmem:[%s9595 + $0x14] sm:$0xf]
        %v9602 = vld [vmem:[%s9595 + $0x18] sm:$0xf]
        %v9603 = vld [vmem:[%s9595 + $0x1c] sm:$0xf]
        %v9604 = vld [vmem:[%s9595 + $0x20] sm:$0xf]
        %v9605 = vld [vmem:[%s9595 + $0x24] sm:$0xf]
        %v9606 = vld [vmem:[%s9595 + $0x28] sm:$0xf]
        %v9607 = vld [vmem:[%s9595 + $0x2c] sm:$0xf]
        %v9608 = vld [vmem:[%s9595 + $0x30] sm:$0xf]
        %v9609 = vld [vmem:[%s9595 + $0x34] sm:$0xf]
        %v9610 = vld [vmem:[%s9595 + $0x38] sm:$0xf]
        %v9611 = vld [vmem:[%s9595 + $0x3c] sm:$0xf]
        %v9628 = vunpack.c.l.b16 %v9596
        %v9629 = vunpack.c.l.b16 %v9597
        %v9630 = vunpack.c.l.b16 %v9598
        %v9631 = vunpack.c.l.b16 %v9599
        %v9632 = vunpack.c.l.b16 %v9600
        %v9633 = vunpack.c.l.b16 %v9601
        %v9634 = vunpack.c.l.b16 %v9602
        %v9635 = vunpack.c.l.b16 %v9603
        %v9636 = vunpack.c.l.b16 %v9604
        %v9637 = vunpack.c.l.b16 %v9605
        %v9638 = vunpack.c.l.b16 %v9606
        %v9639 = vunpack.c.l.b16 %v9607
        %v9640 = vunpack.c.l.b16 %v9608
        %v9641 = vunpack.c.l.b16 %v9609
        %v9642 = vunpack.c.l.b16 %v9610
        %v9643 = vunpack.c.l.b16 %v9611
        %v9644 = vpack.c.b16 %v9629, %v9628
        %v9645 = vpack.c.b16 %v9631, %v9630
        %v9646 = vpack.c.b16 %v9633, %v9632
        %v9647 = vpack.c.b16 %v9635, %v9634
        %v9648 = vpack.c.b16 %v9637, %v9636
        %v9649 = vpack.c.b16 %v9639, %v9638
        %v9650 = vpack.c.b16 %v9641, %v9640
        %v9651 = vpack.c.b16 %v9643, %v9642
        %9660 = vmatprep.subr.bf16.mxu0 0
        %9661 = vmatpush1.bf16.msra.mxu0 %v9644
        %9662 = vmatprep.subr.bf16.mxu0 0
        %9663 = vmatpush1.bf16.msra.mxu0 %v9645
        %9664 = vmatprep.subr.bf16.mxu0 0
        %9665 = vmatpush1.bf16.msra.mxu0 %v9646
        %9666 = vmatprep.subr.bf16.mxu0 0
        %9667 = vmatpush1.bf16.msra.mxu0 %v9647
        %9668 = vmatprep.subr.bf16.mxu0 0
        %9669 = vmatpush1.bf16.msra.mxu0 %v9648
        %9670 = vmatprep.subr.bf16.mxu0 0
        %9671 = vmatpush1.bf16.msra.mxu0 %v9649
        %9672 = vmatprep.subr.bf16.mxu0 0
        %9673 = vmatpush1.bf16.msra.mxu0 %v9650
        %9674 = vmatprep.subr.bf16.mxu0 0
        %9675 = vmatpush1.bf16.msra.mxu0 %v9651
        %9676 = vmatprep.subr.bf16.mxu0 0
        %9677 = vmatpush1.bf16.msra.mxu0 0
        %9678 = vmatprep.subr.bf16.mxu0 0
        %9679 = vmatpush1.bf16.msra.mxu0 0
        %9680 = vmatprep.subr.bf16.mxu0 0
        %9681 = vmatpush1.bf16.msra.mxu0 0
        %9682 = vmatprep.subr.bf16.mxu0 0
        %9683 = vmatpush1.bf16.msra.mxu0 0
        %9684 = vmatprep.subr.bf16.mxu0 0
        %9685 = vmatpush1.bf16.msra.mxu0 0
        %9686 = vmatprep.subr.bf16.mxu0 0
        %9687 = vmatpush1.bf16.msra.mxu0 0
        %9688 = vmatprep.subr.bf16.mxu0 0
        %9689 = vmatpush1.bf16.msra.mxu0 0
        %9690 = vmatprep.subr.bf16.mxu0 0
        %9691 = vmatpush1.bf16.msra.mxu0 0
        %9692 = vmatprep.mubr.bf16.mxu0 0
        %9693 = vmatmul.mubr.bf16.gmra.mrb[0].mxu0 %v9587
        %v9694 = vpop.f32.mrb[0].mxu0
        %v9695 = vadd.f32 0.0, %v9694
        %v9696 = vpop.f32.mrb[0].mxu0
        %v9697 = vpop.f32.mrb[0].mxu0
        %v9698 = vadd.f32 0.0, %v9697
        %v9699 = vpop.f32.mrb[0].mxu0
        %9700 = vmatprep.mubr.bf16.mxu0 0
        %9701 = vmatmul.mubr.bf16.gmra.mrb[0].mxu0 %v9588
        %v9702 = vpop.f32.mrb[0].mxu0
        %v9703 = vadd.f32 0.0, %v9702
        %v9704 = vpop.f32.mrb[0].mxu0
        %v9705 = vpop.f32.mrb[0].mxu0
        %v9706 = vadd.f32 0.0, %v9705
        %v9707 = vpop.f32.mrb[0].mxu0
        %9708 = vmatprep.mubr.bf16.mxu0 0
        %9709 = vmatmul.mubr.bf16.gmra.mrb[0].mxu0 %v9589
        %v9710 = vpop.f32.mrb[0].mxu0
        %v9711 = vadd.f32 0.0, %v9710
        %v9712 = vpop.f32.mrb[0].mxu0
        %v9713 = vpop.f32.mrb[0].mxu0
        %v9714 = vadd.f32 0.0, %v9713
        %v9715 = vpop.f32.mrb[0].mxu0
        %9716 = vmatprep.mubr.bf16.mxu0 0
        %9717 = vmatmul.mubr.bf16.gmra.mrb[0].mxu0 %v9590
        %v9718 = vpop.f32.mrb[0].mxu0
        %v9719 = vadd.f32 0.0, %v9718
        %v9720 = vpop.f32.mrb[0].mxu0
        %v9721 = vpop.f32.mrb[0].mxu0
        %v9722 = vadd.f32 0.0, %v9721
        %v9723 = vpop.f32.mrb[0].mxu0
        %9724 = vmatprep.mubr.bf16.mxu0 0
        %9725 = vmatmul.mubr.bf16.gmra.mrb[0].mxu0 %v9591
        %v9726 = vpop.f32.mrb[0].mxu0
        %v9727 = vadd.f32 0.0, %v9726
        %v9728 = vpop.f32.mrb[0].mxu0
        %v9729 = vpop.f32.mrb[0].mxu0
        %v9730 = vadd.f32 0.0, %v9729
        %v9731 = vpop.f32.mrb[0].mxu0
        %9732 = vmatprep.mubr.bf16.mxu0 0
        %9733 = vmatmul.mubr.bf16.gmra.mrb[0].mxu0 %v9592
        %v9734 = vpop.f32.mrb[0].mxu0
        %v9735 = vadd.f32 0.0, %v9734
        %v9736 = vpop.f32.mrb[0].mxu0
        %v9737 = vpop.f32.mrb[0].mxu0
        %v9738 = vadd.f32 0.0, %v9737
        %v9739 = vpop.f32.mrb[0].mxu0
        %9740 = vmatprep.mubr.bf16.mxu0 0
        %9741 = vmatmul.mubr.bf16.gmra.mrb[0].mxu0 %v9593
        %v9742 = vpop.f32.mrb[0].mxu0
        %v9743 = vadd.f32 0.0, %v9742
        %v9744 = vpop.f32.mrb[0].mxu0
        %v9745 = vpop.f32.mrb[0].mxu0
        %v9746 = vadd.f32 0.0, %v9745
        %v9747 = vpop.f32.mrb[0].mxu0
        %9748 = vmatprep.mubr.bf16.mxu0 0
        %9749 = vmatmul.mubr.bf16.gmra.mrb[0].mxu0 %v9594
        %v9750 = vpop.f32.mrb[0].mxu0
        %v9751 = vadd.f32 0.0, %v9750
        %v9752 = vpop.f32.mrb[0].mxu0
        %v9753 = vpop.f32.mrb[0].mxu0
        %v9754 = vadd.f32 0.0, %v9753
        %v9755 = vpop.f32.mrb[0].mxu0
        %9756 = vdwg.mxu0
        %v9757 = vadd.f32 %v9555, %v9695
        %v9758 = vadd.f32 %v9556, %v9698
        %v9759 = vadd.f32 %v9557, %v9703
        %v9760 = vadd.f32 %v9558, %v9706
        %v9761 = vadd.f32 %v9559, %v9711
        %v9762 = vadd.f32 %v9560, %v9714
        %v9763 = vadd.f32 %v9561, %v9719
        %v9764 = vadd.f32 %v9562, %v9722
        %v9765 = vadd.f32 %v9563, %v9727
        %v9766 = vadd.f32 %v9564, %v9730
        %v9767 = vadd.f32 %v9565, %v9735
        %v9768 = vadd.f32 %v9566, %v9738
        %v9769 = vadd.f32 %v9567, %v9743
        %v9770 = vadd.f32 %v9568, %v9746
        %v9771 = vadd.f32 %v9569, %v9751
        %v9772 = vadd.f32 %v9570, %v9754
        %v9773 = vld [vmem:[%s1443 + $0x1] sm:$0xff]
        %v9774 = vld [vmem:[%s1443 + $0x9] sm:$0xff]
        %v9775 = vld [vmem:[%s1443 + $0x19] sm:$0xff]
        %v9776 = vld [vmem:[%s1443 + $0x21] sm:$0xff]
        %v9777 = vld [vmem:[%s1443 + $0x31] sm:$0xff]
        %v9778 = vld [vmem:[%s1443 + $0x39] sm:$0xff]
        %v9779 = vld [vmem:[%s1443 + $0x49] sm:$0xff]
        %v9780 = vld [vmem:[%s1443 + $0x51] sm:$0xff]
        %v9781 = vld [vmem:[%s1443 + $0x61] sm:$0xff]
        %v9782 = vld [vmem:[%s1443 + $0x69] sm:$0xff]
        %v9783 = vld [vmem:[%s1443 + $0x79] sm:$0xff]
        %v9784 = vld [vmem:[%s1443 + $0x81] sm:$0xff]
        %v9785 = vld [vmem:[%s1443 + $0x91] sm:$0xff]
        %v9786 = vld [vmem:[%s1443 + $0x99] sm:$0xff]
        %v9787 = vld [vmem:[%s1443 + $0xa9] sm:$0xff]
        %v9788 = vld [vmem:[%s1443 + $0xb1] sm:$0xff]
        %v9789 = vpack.c.bf16 %v9774, %v9773
        %v9790 = vpack.c.bf16 %v9776, %v9775
        %v9791 = vpack.c.bf16 %v9778, %v9777
        %v9792 = vpack.c.bf16 %v9780, %v9779
        %v9793 = vpack.c.bf16 %v9782, %v9781
        %v9794 = vpack.c.bf16 %v9784, %v9783
        %v9795 = vpack.c.bf16 %v9786, %v9785
        %v9796 = vpack.c.bf16 %v9788, %v9787
        %s9797 = scalar_lea.vmem [#allocation3], 2752
        %v9798 = vld [vmem:[%s9797] sm:$0xf]
        %v9799 = vld [vmem:[%s9797 + $0x4] sm:$0xf]
        %v9800 = vld [vmem:[%s9797 + $0x8] sm:$0xf]
        %v9801 = vld [vmem:[%s9797 + $0xc] sm:$0xf]
        %v9802 = vld [vmem:[%s9797 + $0x10] sm:$0xf]
        %v9803 = vld [vmem:[%s9797 + $0x14] sm:$0xf]
        %v9804 = vld [vmem:[%s9797 + $0x18] sm:$0xf]
        %v9805 = vld [vmem:[%s9797 + $0x1c] sm:$0xf]
        %v9806 = vld [vmem:[%s9797 + $0x20] sm:$0xf]
        %v9807 = vld [vmem:[%s9797 + $0x24] sm:$0xf]
        %v9808 = vld [vmem:[%s9797 + $0x28] sm:$0xf]
        %v9809 = vld [vmem:[%s9797 + $0x2c] sm:$0xf]
        %v9810 = vld [vmem:[%s9797 + $0x30] sm:$0xf]
        %v9811 = vld [vmem:[%s9797 + $0x34] sm:$0xf]
        %v9812 = vld [vmem:[%s9797 + $0x38] sm:$0xf]
        %v9813 = vld [vmem:[%s9797 + $0x3c] sm:$0xf]
        %v9830 = vunpack.c.l.b16 %v9798
        %v9831 = vunpack.c.l.b16 %v9799
        %v9832 = vunpack.c.l.b16 %v9800
        %v9833 = vunpack.c.l.b16 %v9801
        %v9834 = vunpack.c.l.b16 %v9802
        %v9835 = vunpack.c.l.b16 %v9803
        %v9836 = vunpack.c.l.b16 %v9804
        %v9837 = vunpack.c.l.b16 %v9805
        %v9838 = vunpack.c.l.b16 %v9806
        %v9839 = vunpack.c.l.b16 %v9807
        %v9840 = vunpack.c.l.b16 %v9808
        %v9841 = vunpack.c.l.b16 %v9809
        %v9842 = vunpack.c.l.b16 %v9810
        %v9843 = vunpack.c.l.b16 %v9811
        %v9844 = vunpack.c.l.b16 %v9812
        %v9845 = vunpack.c.l.b16 %v9813
        %v9846 = vpack.c.b16 %v9831, %v9830
        %v9847 = vpack.c.b16 %v9833, %v9832
        %v9848 = vpack.c.b16 %v9835, %v9834
        %v9849 = vpack.c.b16 %v9837, %v9836
        %v9850 = vpack.c.b16 %v9839, %v9838
        %v9851 = vpack.c.b16 %v9841, %v9840
        %v9852 = vpack.c.b16 %v9843, %v9842
        %v9853 = vpack.c.b16 %v9845, %v9844
        %9862 = vmatprep.subr.bf16.mxu0 0
        %9863 = vmatpush1.bf16.msra.mxu0 %v9846
        %9864 = vmatprep.subr.bf16.mxu0 0
        %9865 = vmatpush1.bf16.msra.mxu0 %v9847
        %9866 = vmatprep.subr.bf16.mxu0 0
        %9867 = vmatpush1.bf16.msra.mxu0 %v9848
        %9868 = vmatprep.subr.bf16.mxu0 0
        %9869 = vmatpush1.bf16.msra.mxu0 %v9849
        %9870 = vmatprep.subr.bf16.mxu0 0
        %9871 = vmatpush1.bf16.msra.mxu0 %v9850
        %9872 = vmatprep.subr.bf16.mxu0 0
        %9873 = vmatpush1.bf16.msra.mxu0 %v9851
        %9874 = vmatprep.subr.bf16.mxu0 0
        %9875 = vmatpush1.bf16.msra.mxu0 %v9852
        %9876 = vmatprep.subr.bf16.mxu0 0
        %9877 = vmatpush1.bf16.msra.mxu0 %v9853
        %9878 = vmatprep.subr.bf16.mxu0 0
        %9879 = vmatpush1.bf16.msra.mxu0 0
        %9880 = vmatprep.subr.bf16.mxu0 0
        %9881 = vmatpush1.bf16.msra.mxu0 0
        %9882 = vmatprep.subr.bf16.mxu0 0
        %9883 = vmatpush1.bf16.msra.mxu0 0
        %9884 = vmatprep.subr.bf16.mxu0 0
        %9885 = vmatpush1.bf16.msra.mxu0 0
        %9886 = vmatprep.subr.bf16.mxu0 0
        %9887 = vmatpush1.bf16.msra.mxu0 0
        %9888 = vmatprep.subr.bf16.mxu0 0
        %9889 = vmatpush1.bf16.msra.mxu0 0
        %9890 = vmatprep.subr.bf16.mxu0 0
        %9891 = vmatpush1.bf16.msra.mxu0 0
        %9892 = vmatprep.subr.bf16.mxu0 0
        %9893 = vmatpush1.bf16.msra.mxu0 0
        %9894 = vmatprep.mubr.bf16.mxu0 0
        %9895 = vmatmul.mubr.bf16.gmra.mrb[0].mxu0 %v9789
        %v9896 = vpop.f32.mrb[0].mxu0
        %v9897 = vadd.f32 0.0, %v9896
        %v9898 = vpop.f32.mrb[0].mxu0
        %v9899 = vpop.f32.mrb[0].mxu0
        %v9900 = vadd.f32 0.0, %v9899
        %v9901 = vpop.f32.mrb[0].mxu0
        %9902 = vmatprep.mubr.bf16.mxu0 0
        %9903 = vmatmul.mubr.bf16.gmra.mrb[0].mxu0 %v9790
        %v9904 = vpop.f32.mrb[0].mxu0
        %v9905 = vadd.f32 0.0, %v9904
        %v9906 = vpop.f32.mrb[0].mxu0
        %v9907 = vpop.f32.mrb[0].mxu0
        %v9908 = vadd.f32 0.0, %v9907
        %v9909 = vpop.f32.mrb[0].mxu0
        %9910 = vmatprep.mubr.bf16.mxu0 0
        %9911 = vmatmul.mubr.bf16.gmra.mrb[0].mxu0 %v9791
        %v9912 = vpop.f32.mrb[0].mxu0
        %v9913 = vadd.f32 0.0, %v9912
        %v9914 = vpop.f32.mrb[0].mxu0
        %v9915 = vpop.f32.mrb[0].mxu0
        %v9916 = vadd.f32 0.0, %v9915
        %v9917 = vpop.f32.mrb[0].mxu0
        %9918 = vmatprep.mubr.bf16.mxu0 0
        %9919 = vmatmul.mubr.bf16.gmra.mrb[0].mxu0 %v9792
        %v9920 = vpop.f32.mrb[0].mxu0
        %v9921 = vadd.f32 0.0, %v9920
        %v9922 = vpop.f32.mrb[0].mxu0
        %v9923 = vpop.f32.mrb[0].mxu0
        %v9924 = vadd.f32 0.0, %v9923
        %v9925 = vpop.f32.mrb[0].mxu0
        %9926 = vmatprep.mubr.bf16.mxu0 0
        %9927 = vmatmul.mubr.bf16.gmra.mrb[0].mxu0 %v9793
        %v9928 = vpop.f32.mrb[0].mxu0
        %v9929 = vadd.f32 0.0, %v9928
        %v9930 = vpop.f32.mrb[0].mxu0
        %v9931 = vpop.f32.mrb[0].mxu0
        %v9932 = vadd.f32 0.0, %v9931
        %v9933 = vpop.f32.mrb[0].mxu0
        %9934 = vmatprep.mubr.bf16.mxu0 0
        %9935 = vmatmul.mubr.bf16.gmra.mrb[0].mxu0 %v9794
        %v9936 = vpop.f32.mrb[0].mxu0
        %v9937 = vadd.f32 0.0, %v9936
        %v9938 = vpop.f32.mrb[0].mxu0
        %v9939 = vpop.f32.mrb[0].mxu0
        %v9940 = vadd.f32 0.0, %v9939
        %v9941 = vpop.f32.mrb[0].mxu0
        %9942 = vmatprep.mubr.bf16.mxu0 0
        %9943 = vmatmul.mubr.bf16.gmra.mrb[0].mxu0 %v9795
        %v9944 = vpop.f32.mrb[0].mxu0
        %v9945 = vadd.f32 0.0, %v9944
        %v9946 = vpop.f32.mrb[0].mxu0
        %v9947 = vpop.f32.mrb[0].mxu0
        %v9948 = vadd.f32 0.0, %v9947
        %v9949 = vpop.f32.mrb[0].mxu0
        %9950 = vmatprep.mubr.bf16.mxu0 0
        %9951 = vmatmul.mubr.bf16.gmra.mrb[0].mxu0 %v9796
        %v9952 = vpop.f32.mrb[0].mxu0
        %v9953 = vadd.f32 0.0, %v9952
        %v9954 = vpop.f32.mrb[0].mxu0
        %v9955 = vpop.f32.mrb[0].mxu0
        %v9956 = vadd.f32 0.0, %v9955
        %v9957 = vpop.f32.mrb[0].mxu0
        %9958 = vdwg.mxu0
        %v9959 = vadd.f32 %v9757, %v9897
        %v9960 = vadd.f32 %v9758, %v9900
        %v9961 = vadd.f32 %v9759, %v9905
        %v9962 = vadd.f32 %v9760, %v9908
        %v9963 = vadd.f32 %v9761, %v9913
        %v9964 = vadd.f32 %v9762, %v9916
        %v9965 = vadd.f32 %v9763, %v9921
        %v9966 = vadd.f32 %v9764, %v9924
        %v9967 = vadd.f32 %v9765, %v9929
        %v9968 = vadd.f32 %v9766, %v9932
        %v9969 = vadd.f32 %v9767, %v9937
        %v9970 = vadd.f32 %v9768, %v9940
        %v9971 = vadd.f32 %v9769, %v9945
        %v9972 = vadd.f32 %v9770, %v9948
        %v9973 = vadd.f32 %v9771, %v9953
        %v9974 = vadd.f32 %v9772, %v9956
        %v9975 = vld [vmem:[%s1443 + $0x2] sm:$0xff]
        %v9976 = vld [vmem:[%s1443 + $0xa] sm:$0xff]
        %v9977 = vld [vmem:[%s1443 + $0x1a] sm:$0xff]
        %v9978 = vld [vmem:[%s1443 + $0x22] sm:$0xff]
        %v9979 = vld [vmem:[%s1443 + $0x32] sm:$0xff]
        %v9980 = vld [vmem:[%s1443 + $0x3a] sm:$0xff]
        %v9981 = vld [vmem:[%s1443 + $0x4a] sm:$0xff]
        %v9982 = vld [vmem:[%s1443 + $0x52] sm:$0xff]
        %v9983 = vld [vmem:[%s1443 + $0x62] sm:$0xff]
        %v9984 = vld [vmem:[%s1443 + $0x6a] sm:$0xff]
        %v9985 = vld [vmem:[%s1443 + $0x7a] sm:$0xff]
        %v9986 = vld [vmem:[%s1443 + $0x82] sm:$0xff]
        %v9987 = vld [vmem:[%s1443 + $0x92] sm:$0xff]
        %v9988 = vld [vmem:[%s1443 + $0x9a] sm:$0xff]
        %v9989 = vld [vmem:[%s1443 + $0xaa] sm:$0xff]
        %v9990 = vld [vmem:[%s1443 + $0xb2] sm:$0xff]
        %v9991 = vpack.c.bf16 %v9976, %v9975
        %v9992 = vpack.c.bf16 %v9978, %v9977
        %v9993 = vpack.c.bf16 %v9980, %v9979
        %v9994 = vpack.c.bf16 %v9982, %v9981
        %v9995 = vpack.c.bf16 %v9984, %v9983
        %v9996 = vpack.c.bf16 %v9986, %v9985
        %v9997 = vpack.c.bf16 %v9988, %v9987
        %v9998 = vpack.c.bf16 %v9990, %v9989
        %s9999 = scalar_lea.vmem [#allocation3], 2816
        %v10000 = vld [vmem:[%s9999] sm:$0xf]
        %v10001 = vld [vmem:[%s9999 + $0x4] sm:$0xf]
        %v10002 = vld [vmem:[%s9999 + $0x8] sm:$0xf]
        %v10003 = vld [vmem:[%s9999 + $0xc] sm:$0xf]
        %v10004 = vld [vmem:[%s9999 + $0x10] sm:$0xf]
        %v10005 = vld [vmem:[%s9999 + $0x14] sm:$0xf]
        %v10006 = vld [vmem:[%s9999 + $0x18] sm:$0xf]
        %v10007 = vld [vmem:[%s9999 + $0x1c] sm:$0xf]
        %v10008 = vld [vmem:[%s9999 + $0x20] sm:$0xf]
        %v10009 = vld [vmem:[%s9999 + $0x24] sm:$0xf]
        %v10010 = vld [vmem:[%s9999 + $0x28] sm:$0xf]
        %v10011 = vld [vmem:[%s9999 + $0x2c] sm:$0xf]
        %v10012 = vld [vmem:[%s9999 + $0x30] sm:$0xf]
        %v10013 = vld [vmem:[%s9999 + $0x34] sm:$0xf]
        %v10014 = vld [vmem:[%s9999 + $0x38] sm:$0xf]
        %v10015 = vld [vmem:[%s9999 + $0x3c] sm:$0xf]
        %v10032 = vunpack.c.l.b16 %v10000
        %v10033 = vunpack.c.l.b16 %v10001
        %v10034 = vunpack.c.l.b16 %v10002
        %v10035 = vunpack.c.l.b16 %v10003
        %v10036 = vunpack.c.l.b16 %v10004
        %v10037 = vunpack.c.l.b16 %v10005
        %v10038 = vunpack.c.l.b16 %v10006
        %v10039 = vunpack.c.l.b16 %v10007
        %v10040 = vunpack.c.l.b16 %v10008
        %v10041 = vunpack.c.l.b16 %v10009
        %v10042 = vunpack.c.l.b16 %v10010
        %v10043 = vunpack.c.l.b16 %v10011
        %v10044 = vunpack.c.l.b16 %v10012
        %v10045 = vunpack.c.l.b16 %v10013
        %v10046 = vunpack.c.l.b16 %v10014
        %v10047 = vunpack.c.l.b16 %v10015
        %v10048 = vpack.c.b16 %v10033, %v10032
        %v10049 = vpack.c.b16 %v10035, %v10034
        %v10050 = vpack.c.b16 %v10037, %v10036
        %v10051 = vpack.c.b16 %v10039, %v10038
        %v10052 = vpack.c.b16 %v10041, %v10040
        %v10053 = vpack.c.b16 %v10043, %v10042
        %v10054 = vpack.c.b16 %v10045, %v10044
        %v10055 = vpack.c.b16 %v10047, %v10046
        %10064 = vmatprep.subr.bf16.mxu0 0
        %10065 = vmatpush1.bf16.msra.mxu0 %v10048
        %10066 = vmatprep.subr.bf16.mxu0 0
        %10067 = vmatpush1.bf16.msra.mxu0 %v10049
        %10068 = vmatprep.subr.bf16.mxu0 0
        %10069 = vmatpush1.bf16.msra.mxu0 %v10050
        %10070 = vmatprep.subr.bf16.mxu0 0
        %10071 = vmatpush1.bf16.msra.mxu0 %v10051
        %10072 = vmatprep.subr.bf16.mxu0 0
        %10073 = vmatpush1.bf16.msra.mxu0 %v10052
        %10074 = vmatprep.subr.bf16.mxu0 0
        %10075 = vmatpush1.bf16.msra.mxu0 %v10053
        %10076 = vmatprep.subr.bf16.mxu0 0
        %10077 = vmatpush1.bf16.msra.mxu0 %v10054
        %10078 = vmatprep.subr.bf16.mxu0 0
        %10079 = vmatpush1.bf16.msra.mxu0 %v10055
        %10080 = vmatprep.subr.bf16.mxu0 0
        %10081 = vmatpush1.bf16.msra.mxu0 0
        %10082 = vmatprep.subr.bf16.mxu0 0
        %10083 = vmatpush1.bf16.msra.mxu0 0
        %10084 = vmatprep.subr.bf16.mxu0 0
        %10085 = vmatpush1.bf16.msra.mxu0 0
        %10086 = vmatprep.subr.bf16.mxu0 0
        %10087 = vmatpush1.bf16.msra.mxu0 0
        %10088 = vmatprep.subr.bf16.mxu0 0
        %10089 = vmatpush1.bf16.msra.mxu0 0
        %10090 = vmatprep.subr.bf16.mxu0 0
        %10091 = vmatpush1.bf16.msra.mxu0 0
        %10092 = vmatprep.subr.bf16.mxu0 0
        %10093 = vmatpush1.bf16.msra.mxu0 0
        %10094 = vmatprep.subr.bf16.mxu0 0
        %10095 = vmatpush1.bf16.msra.mxu0 0
        %10096 = vmatprep.mubr.bf16.mxu0 0
        %10097 = vmatmul.mubr.bf16.gmra.mrb[0].mxu0 %v9991
        %v10098 = vpop.f32.mrb[0].mxu0
        %v10099 = vadd.f32 0.0, %v10098
        %v10100 = vpop.f32.mrb[0].mxu0
        %v10101 = vpop.f32.mrb[0].mxu0
        %v10102 = vadd.f32 0.0, %v10101
        %v10103 = vpop.f32.mrb[0].mxu0
        %10104 = vmatprep.mubr.bf16.mxu0 0
        %10105 = vmatmul.mubr.bf16.gmra.mrb[0].mxu0 %v9992
        %v10106 = vpop.f32.mrb[0].mxu0
        %v10107 = vadd.f32 0.0, %v10106
        %v10108 = vpop.f32.mrb[0].mxu0
        %v10109 = vpop.f32.mrb[0].mxu0
        %v10110 = vadd.f32 0.0, %v10109
        %v10111 = vpop.f32.mrb[0].mxu0
        %10112 = vmatprep.mubr.bf16.mxu0 0
        %10113 = vmatmul.mubr.bf16.gmra.mrb[0].mxu0 %v9993
        %v10114 = vpop.f32.mrb[0].mxu0
        %v10115 = vadd.f32 0.0, %v10114
        %v10116 = vpop.f32.mrb[0].mxu0
        %v10117 = vpop.f32.mrb[0].mxu0
        %v10118 = vadd.f32 0.0, %v10117
        %v10119 = vpop.f32.mrb[0].mxu0
        %10120 = vmatprep.mubr.bf16.mxu0 0
        %10121 = vmatmul.mubr.bf16.gmra.mrb[0].mxu0 %v9994
        %v10122 = vpop.f32.mrb[0].mxu0
        %v10123 = vadd.f32 0.0, %v10122
        %v10124 = vpop.f32.mrb[0].mxu0
        %v10125 = vpop.f32.mrb[0].mxu0
        %v10126 = vadd.f32 0.0, %v10125
        %v10127 = vpop.f32.mrb[0].mxu0
        %10128 = vmatprep.mubr.bf16.mxu0 0
        %10129 = vmatmul.mubr.bf16.gmra.mrb[0].mxu0 %v9995
        %v10130 = vpop.f32.mrb[0].mxu0
        %v10131 = vadd.f32 0.0, %v10130
        %v10132 = vpop.f32.mrb[0].mxu0
        %v10133 = vpop.f32.mrb[0].mxu0
        %v10134 = vadd.f32 0.0, %v10133
        %v10135 = vpop.f32.mrb[0].mxu0
        %10136 = vmatprep.mubr.bf16.mxu0 0
        %10137 = vmatmul.mubr.bf16.gmra.mrb[0].mxu0 %v9996
        %v10138 = vpop.f32.mrb[0].mxu0
        %v10139 = vadd.f32 0.0, %v10138
        %v10140 = vpop.f32.mrb[0].mxu0
        %v10141 = vpop.f32.mrb[0].mxu0
        %v10142 = vadd.f32 0.0, %v10141
        %v10143 = vpop.f32.mrb[0].mxu0
        %10144 = vmatprep.mubr.bf16.mxu0 0
        %10145 = vmatmul.mubr.bf16.gmra.mrb[0].mxu0 %v9997
        %v10146 = vpop.f32.mrb[0].mxu0
        %v10147 = vadd.f32 0.0, %v10146
        %v10148 = vpop.f32.mrb[0].mxu0
        %v10149 = vpop.f32.mrb[0].mxu0
        %v10150 = vadd.f32 0.0, %v10149
        %v10151 = vpop.f32.mrb[0].mxu0
        %10152 = vmatprep.mubr.bf16.mxu0 0
        %10153 = vmatmul.mubr.bf16.gmra.mrb[0].mxu0 %v9998
        %v10154 = vpop.f32.mrb[0].mxu0
        %v10155 = vadd.f32 0.0, %v10154
        %v10156 = vpop.f32.mrb[0].mxu0
        %v10157 = vpop.f32.mrb[0].mxu0
        %v10158 = vadd.f32 0.0, %v10157
        %v10159 = vpop.f32.mrb[0].mxu0
        %10160 = vdwg.mxu0
        %v10161 = vadd.f32 %v9959, %v10099
        %v10162 = vadd.f32 %v9960, %v10102
        %v10163 = vadd.f32 %v9961, %v10107
        %v10164 = vadd.f32 %v9962, %v10110
        %v10165 = vadd.f32 %v9963, %v10115
        %v10166 = vadd.f32 %v9964, %v10118
        %v10167 = vadd.f32 %v9965, %v10123
        %v10168 = vadd.f32 %v9966, %v10126
        %v10169 = vadd.f32 %v9967, %v10131
        %v10170 = vadd.f32 %v9968, %v10134
        %v10171 = vadd.f32 %v9969, %v10139
        %v10172 = vadd.f32 %v9970, %v10142
        %v10173 = vadd.f32 %v9971, %v10147
        %v10174 = vadd.f32 %v9972, %v10150
        %v10175 = vadd.f32 %v9973, %v10155
        %v10176 = vadd.f32 %v9974, %v10158
        %s10177 = scalar_lea.vmem [#allocation6], 4
        %v10178 = vld [vmem:[%s10177] sm:$0x1]
        %v10180 = vlaneseq
        %v10181 = vshrl.u32 %v10180, 7
        %v10182 = vsub.s32 0, %v10181
        %v10183 = vrot.slane %v10178, %v10182
        %v10185 = vadd.f32 %v10161, %v10183
        %v10186 = vadd.f32 %v10162, %v10183
        %v10187 = vadd.f32 %v10163, %v10183
        %v10188 = vadd.f32 %v10164, %v10183
        %v10189 = vadd.f32 %v10165, %v10183
        %v10190 = vadd.f32 %v10166, %v10183
        %v10191 = vadd.f32 %v10167, %v10183
        %v10192 = vadd.f32 %v10168, %v10183
        %v10193 = vadd.f32 %v10169, %v10183
        %v10194 = vadd.f32 %v10170, %v10183
        %v10195 = vadd.f32 %v10171, %v10183
        %v10196 = vadd.f32 %v10172, %v10183
        %v10197 = vadd.f32 %v10173, %v10183
        %v10198 = vadd.f32 %v10174, %v10183
        %v10199 = vadd.f32 %v10175, %v10183
        %v10200 = vadd.f32 %v10176, %v10183
        %v10201 = vmin.f32 %v10185, 0.0
        %v10202 = vmin.f32 %v10186, 0.0
        %v10203 = vmin.f32 %v10187, 0.0
        %v10204 = vmin.f32 %v10188, 0.0
        %v10205 = vmin.f32 %v10189, 0.0
        %v10206 = vmin.f32 %v10190, 0.0
        %v10207 = vmin.f32 %v10191, 0.0
        %v10208 = vmin.f32 %v10192, 0.0
        %v10209 = vmin.f32 %v10193, 0.0
        %v10210 = vmin.f32 %v10194, 0.0
        %v10211 = vmin.f32 %v10195, 0.0
        %v10212 = vmin.f32 %v10196, 0.0
        %v10213 = vmin.f32 %v10197, 0.0
        %v10214 = vmin.f32 %v10198, 0.0
        %v10215 = vmin.f32 %v10199, 0.0
        %v10216 = vmin.f32 %v10200, 0.0
        %v10217 = vmul.f32 %v10201, 1.442695
        %v10218 = vpow.pop %v10217
        %v10219 = vmul.f32 %v10202, 1.442695
        %v10220 = vpow.pop %v10219
        %v10221 = vmul.f32 %v10203, 1.442695
        %v10222 = vpow.pop %v10221
        %v10223 = vmul.f32 %v10204, 1.442695
        %v10224 = vpow.pop %v10223
        %v10225 = vmul.f32 %v10205, 1.442695
        %v10226 = vpow.pop %v10225
        %v10227 = vmul.f32 %v10206, 1.442695
        %v10228 = vpow.pop %v10227
        %v10229 = vmul.f32 %v10207, 1.442695
        %v10230 = vpow.pop %v10229
        %v10231 = vmul.f32 %v10208, 1.442695
        %v10232 = vpow.pop %v10231
        %v10233 = vmul.f32 %v10209, 1.442695
        %v10234 = vpow.pop %v10233
        %v10235 = vmul.f32 %v10210, 1.442695
        %v10236 = vpow.pop %v10235
        %v10237 = vmul.f32 %v10211, 1.442695
        %v10238 = vpow.pop %v10237
        %v10239 = vmul.f32 %v10212, 1.442695
        %v10240 = vpow.pop %v10239
        %v10241 = vmul.f32 %v10213, 1.442695
        %v10242 = vpow.pop %v10241
        %v10243 = vmul.f32 %v10214, 1.442695
        %v10244 = vpow.pop %v10243
        %v10245 = vmul.f32 %v10215, 1.442695
        %v10246 = vpow.pop %v10245
        %v10247 = vmul.f32 %v10216, 1.442695
        %v10248 = vpow.pop %v10247
        %v10249 = vsub.f32 %v10218, 1.0
        %v10250 = vsub.f32 %v10220, 1.0
        %v10251 = vsub.f32 %v10222, 1.0
        %v10252 = vsub.f32 %v10224, 1.0
        %v10253 = vsub.f32 %v10226, 1.0
        %v10254 = vsub.f32 %v10228, 1.0
        %v10255 = vsub.f32 %v10230, 1.0
        %v10256 = vsub.f32 %v10232, 1.0
        %v10257 = vsub.f32 %v10234, 1.0
        %v10258 = vsub.f32 %v10236, 1.0
        %v10259 = vsub.f32 %v10238, 1.0
        %v10260 = vsub.f32 %v10240, 1.0
        %v10261 = vsub.f32 %v10242, 1.0
        %v10262 = vsub.f32 %v10244, 1.0
        %v10263 = vsub.f32 %v10246, 1.0
        %v10264 = vsub.f32 %v10248, 1.0
        %vm10265 = vcmp.gt.f32.partialorder %v10185, 0.0
        %vm10266 = vcmp.gt.f32.partialorder %v10186, 0.0
        %vm10267 = vcmp.gt.f32.partialorder %v10187, 0.0
        %vm10268 = vcmp.gt.f32.partialorder %v10188, 0.0
        %vm10269 = vcmp.gt.f32.partialorder %v10189, 0.0
        %vm10270 = vcmp.gt.f32.partialorder %v10190, 0.0
        %vm10271 = vcmp.gt.f32.partialorder %v10191, 0.0
        %vm10272 = vcmp.gt.f32.partialorder %v10192, 0.0
        %vm10273 = vcmp.gt.f32.partialorder %v10193, 0.0
        %vm10274 = vcmp.gt.f32.partialorder %v10194, 0.0
        %vm10275 = vcmp.gt.f32.partialorder %v10195, 0.0
        %vm10276 = vcmp.gt.f32.partialorder %v10196, 0.0
        %vm10277 = vcmp.gt.f32.partialorder %v10197, 0.0
        %vm10278 = vcmp.gt.f32.partialorder %v10198, 0.0
        %vm10279 = vcmp.gt.f32.partialorder %v10199, 0.0
        %vm10280 = vcmp.gt.f32.partialorder %v10200, 0.0
        %v10281 = vsel %vm10265, %v10185, %v10249
        %v10282 = vsel %vm10266, %v10186, %v10250
        %v10283 = vsel %vm10267, %v10187, %v10251
        %v10284 = vsel %vm10268, %v10188, %v10252
        %v10285 = vsel %vm10269, %v10189, %v10253
        %v10286 = vsel %vm10270, %v10190, %v10254
        %v10287 = vsel %vm10271, %v10191, %v10255
        %v10288 = vsel %vm10272, %v10192, %v10256
        %v10289 = vsel %vm10273, %v10193, %v10257
        %v10290 = vsel %vm10274, %v10194, %v10258
        %v10291 = vsel %vm10275, %v10195, %v10259
        %v10292 = vsel %vm10276, %v10196, %v10260
        %v10293 = vsel %vm10277, %v10197, %v10261
        %v10294 = vsel %vm10278, %v10198, %v10262
        %v10295 = vsel %vm10279, %v10199, %v10263
        %v10296 = vsel %vm10280, %v10200, %v10264
        %v10297 = vadd.f32 %v10281, %v10282
        %v10298 = vadd.f32 %v10297, %v10283
        %v10299 = vadd.f32 %v10298, %v10284
        %v10300 = vadd.f32 %v10299, %v10285
        %v10301 = vadd.f32 %v10300, %v10286
        %v10302 = vadd.f32 %v10301, %v10287
        %v10303 = vadd.f32 %v10302, %v10288
        %v10304 = vadd.f32 %v10303, %v10289
        %v10305 = vadd.f32 %v10304, %v10290
        %v10306 = vadd.f32 %v10305, %v10291
        %v10307 = vadd.f32 %v10306, %v10292
        %v10308 = vadd.f32 %v10307, %v10293
        %v10309 = vadd.f32 %v10308, %v10294
        %v10310 = vadd.f32 %v10309, %v10295
        %v10311 = vadd.f32 %v10310, %v10296
        %v10312 = vrot.slane %v10311, 4
        %v10313 = vadd.f32 %v10311, %v10312
        %v10314 = vrot.slane %v10313, 2
        %v10315 = vadd.f32 %v10313, %v10314
        %v10316 = vrot.slane %v10315, 1
        %v10317 = vadd.f32 %v10315, %v10316
        %v10318 = vmul.f32 %v10317, 0.0078125
        %v10319 = vsub.f32 %v10281, %v10318
        %v10320 = vsub.f32 %v10282, %v10318
        %v10321 = vsub.f32 %v10283, %v10318
        %v10322 = vsub.f32 %v10284, %v10318
        %v10323 = vsub.f32 %v10285, %v10318
        %v10324 = vsub.f32 %v10286, %v10318
        %v10325 = vsub.f32 %v10287, %v10318
        %v10326 = vsub.f32 %v10288, %v10318
        %v10327 = vsub.f32 %v10289, %v10318
        %v10328 = vsub.f32 %v10290, %v10318
        %v10329 = vsub.f32 %v10291, %v10318
        %v10330 = vsub.f32 %v10292, %v10318
        %v10331 = vsub.f32 %v10293, %v10318
        %v10332 = vsub.f32 %v10294, %v10318
        %v10333 = vsub.f32 %v10295, %v10318
        %v10334 = vsub.f32 %v10296, %v10318
        %v10335 = vmul.f32 %v10319, %v10319
        %v10336 = vmul.f32 %v10320, %v10320
        %v10337 = vmul.f32 %v10321, %v10321
        %v10338 = vmul.f32 %v10322, %v10322
        %v10339 = vmul.f32 %v10323, %v10323
        %v10340 = vmul.f32 %v10324, %v10324
        %v10341 = vmul.f32 %v10325, %v10325
        %v10342 = vmul.f32 %v10326, %v10326
        %v10343 = vmul.f32 %v10327, %v10327
        %v10344 = vmul.f32 %v10328, %v10328
        %v10345 = vmul.f32 %v10329, %v10329
        %v10346 = vmul.f32 %v10330, %v10330
        %v10347 = vmul.f32 %v10331, %v10331
        %v10348 = vmul.f32 %v10332, %v10332
        %v10349 = vmul.f32 %v10333, %v10333
        %v10350 = vmul.f32 %v10334, %v10334
        %v10351 = vadd.f32 %v10335, %v10336
        %v10352 = vadd.f32 %v10351, %v10337
        %v10353 = vadd.f32 %v10352, %v10338
        %v10354 = vadd.f32 %v10353, %v10339
        %v10355 = vadd.f32 %v10354, %v10340
        %v10356 = vadd.f32 %v10355, %v10341
        %v10357 = vadd.f32 %v10356, %v10342
        %v10358 = vadd.f32 %v10357, %v10343
        %v10359 = vadd.f32 %v10358, %v10344
        %v10360 = vadd.f32 %v10359, %v10345
        %v10361 = vadd.f32 %v10360, %v10346
        %v10362 = vadd.f32 %v10361, %v10347
        %v10363 = vadd.f32 %v10362, %v10348
        %v10364 = vadd.f32 %v10363, %v10349
        %v10365 = vadd.f32 %v10364, %v10350
        %v10366 = vrot.slane %v10365, 4
        %v10367 = vadd.f32 %v10365, %v10366
        %v10368 = vrot.slane %v10367, 2
        %v10369 = vadd.f32 %v10367, %v10368
        %v10370 = vrot.slane %v10369, 1
        %v10371 = vadd.f32 %v10369, %v10370
        %v10372 = vmul.f32 %v10371, 0.0078125
        %v10373 = vadd.f32 %v10372, 1e-05
        %v10374 = vrsqrt.pop %v10373
        %v10375 = vmul.f32 %v10319, %v10374
        %v10376 = vmul.f32 %v10320, %v10374
        %v10377 = vmul.f32 %v10321, %v10374
        %v10378 = vmul.f32 %v10322, %v10374
        %v10379 = vmul.f32 %v10323, %v10374
        %v10380 = vmul.f32 %v10324, %v10374
        %v10381 = vmul.f32 %v10325, %v10374
        %v10382 = vmul.f32 %v10326, %v10374
        %v10383 = vmul.f32 %v10327, %v10374
        %v10384 = vmul.f32 %v10328, %v10374
        %v10385 = vmul.f32 %v10329, %v10374
        %v10386 = vmul.f32 %v10330, %v10374
        %v10387 = vmul.f32 %v10331, %v10374
        %v10388 = vmul.f32 %v10332, %v10374
        %v10389 = vmul.f32 %v10333, %v10374
        %v10390 = vmul.f32 %v10334, %v10374
        %10391 = vst [vmem:[%s193] sm:$0xff] %v10375
        %10392 = vst [vmem:[%s193 + $0x8] sm:$0xff] %v10376
        %10393 = vst [vmem:[%s193 + $0x10] sm:$0xff] %v10377
        %10394 = vst [vmem:[%s193 + $0x18] sm:$0xff] %v10378
        %10395 = vst [vmem:[%s193 + $0x20] sm:$0xff] %v10379
        %10396 = vst [vmem:[%s193 + $0x28] sm:$0xff] %v10380
        %10397 = vst [vmem:[%s193 + $0x30] sm:$0xff] %v10381
        %10398 = vst [vmem:[%s193 + $0x38] sm:$0xff] %v10382
        %10399 = vst [vmem:[%s193 + $0x40] sm:$0xff] %v10383
        %10400 = vst [vmem:[%s193 + $0x48] sm:$0xff] %v10384
        %10401 = vst [vmem:[%s193 + $0x50] sm:$0xff] %v10385
        %10402 = vst [vmem:[%s193 + $0x58] sm:$0xff] %v10386
        %10403 = vst [vmem:[%s193 + $0x60] sm:$0xff] %v10387
        %10404 = vst [vmem:[%s193 + $0x68] sm:$0xff] %v10388
        %10405 = vst [vmem:[%s193 + $0x70] sm:$0xff] %v10389
        %10406 = vst [vmem:[%s193 + $0x78] sm:$0xff] %v10390
        %s10407 = sand.u32 %s95, 1
        %s10408 = scalar_lea.sflag [#allocation5], %s10407
        %s10409 = sand.u32 %s95, 1
        %s10410 = smul.addr %s10409, 128
        %s10411 = scalar_lea.vmem [#allocation8], %s10410
        // Predicated region
        $region41: #{tpu_custom_call.1} parent=31 // pred_check
          %p10412 = pneg %p105
        $region42: #{tpu_custom_call.1} parent=31 // pred_check_branch
          %10414 = sbr.rel (%p10412) target = $region44
        $region43: #{tpu_custom_call.1} parent=31 // pred_region
          %s10416 = ssub.s32 2048, 2048
          %10417 = vsyncadd %s10408, %s10416
          %s10418 = smul.addr %s19, 16
          %s10419 = smul.addr %s10418, 128
          %s10420 = scalar_lea.hbm %s3, %s10419
          %s10421 = sshll.u32 %s10411, 4
          %s10422 = int_to_ptr.vmem [resolvable:$true] %s10421
          %10427 = dma.vmem_to_hbm [thread:$0]  %s10422, 2048, %s10420, %s10408, 128, 128, 8
        $region44: #{tpu_custom_call.1} parent=31 // pred_fallthru
          _
      $region32: #{tpu_custom_call.1} parent=5 // pred_fallthru
        _
      %p10428 = scmp.le.s32.totalorder 2, %s14
      // Predicated region
      $region45: #{tpu_custom_call.1} parent=5 // pred_check
        %p10429 = pneg %p10428
      $region46: #{tpu_custom_call.1} parent=5 // pred_check_branch
        %10431 = sbr.rel (%p10429) target = $region48
      $region47: #{tpu_custom_call.1} parent=5 // pred_region
        %s10432 = ssub.s32 %s14, 2
        // Predicated region
        $region49: #{tpu_custom_call.1} parent=47 // pred_check
          %p10433 = pneg %p111
        $region50: #{tpu_custom_call.1} parent=47 // pred_check_branch
          %10435 = sbr.rel (%p10433) target = $region52
        $region51: #{tpu_custom_call.1} parent=47 // pred_region
          %s10436 = sand.u32 %s96, 1
          %s10437 = scalar_lea.sflag [#allocation5], %s10436
          %s10438 = sand.u32 %s96, 1
          %s10439 = smul.addr %s10438, 128
          %s10440 = scalar_lea.vmem [#allocation8], %s10439
          %10441 = dma.done %s10437, 2048
        $region52: #{tpu_custom_call.1} parent=47 // pred_fallthru
          _
      $region48: #{tpu_custom_call.1} parent=5 // pred_fallthru
        _
    $region6: #{tpu_custom_call.1} parent=1 // loop_footer
      %s18 = sadd.s32 1, %s14
    $region7: #{tpu_custom_call.1} parent=1 // loop_footer_branch
      %13 = sbr.rel target = $region3
    $region8: #{tpu_custom_call.1} parent=1 // loop_exit
      _
    %10442 = vsyncpa [#allocation4], 1
    %s10443 = scalar_lea.sflag [#allocation4], 1
    %10444 = vsyncpa %s10443, 1
    %10445 = vsyncpa [#allocation7], 1
    %10446 = vsyncpa [#allocation5], 1
    %s10447 = scalar_lea.sflag [#allocation5], 1
    %10448 = vsyncpa %s10447, 1

</llo_original>
